<compile_context>
chip_gen: v7x
topology: tpu7x:2x2x1
jax: 0.10.0
libtpu: 0.0.40
codegen_flags: <defaults>
</compile_context>

<pallas_src>
import functools
import math

import jax
import jax.numpy as jnp
from jax.experimental import pallas as pl
from jax.experimental.pallas import tpu as pltpu

# ----------------------------- model config (small) -------------------------
IMG = 16          # img_size
PATCH = 4         # patch_size
IN_C = 3          # in_c
EMBED = 32        # embed_dim
DEPTH = 2         # depth
HEADS = 4         # num_heads
MLP_RATIO = 4.0
NUM_CLASSES = 10
BATCH = 2
LN_EPS = 1e-6     # norm_layer = partial(nn.LayerNorm, eps=1e-6)

GRID_HW = IMG // PATCH
NUM_PATCHES = GRID_HW * GRID_HW
NUM_TOKENS = NUM_PATCHES + 1               # 17 (+ cls token)
N_PAD = 24                                 # tokens padded to a multiple of 8
HEAD_DIM = EMBED // HEADS                  # 8
MLP_HIDDEN = int(EMBED * MLP_RATIO)        # 128 -> lane-dense
PATCH_FEAT = IN_C * PATCH * PATCH          # 48
CP_PAD = 128                               # lane-dense padded patch-feature axis
HEAD_PAD = 128                             # lane-dense classifier slab
ATTN_SCALE = HEAD_DIM ** (-0.5)


def _layernorm(x, g, b):
    """LayerNorm over the last dim (biased variance, matches PyTorch), f32."""
    mean = jnp.mean(x, axis=-1, keepdims=True)
    xc = x - mean
    var = jnp.mean(xc * xc, axis=-1, keepdims=True)
    return (xc * jax.lax.rsqrt(var + LN_EPS)) * g + b


# ----------------------------- fused Pallas kernel ---------------------------
def _vit_fused_kernel(
    tok_ref,        # (block_b*N_PAD, CP_PAD) bf16  padded patch vectors (cls/pad rows = 0)
    patch_w_ref,    # (CP_PAD, D) bf16
    embed_add_ref,  # (block_b*N_PAD, D) f32  cls+pos / patch_bias+pos additive term
    ln1_g_ref, ln1_b_ref,        # (DEPTH, 1, D) f32
    qkv_w_ref,                   # (DEPTH*3*HEADS, D, Dh) bf16   per-head slabs
    qkv_b_ref,                   # (DEPTH*3*HEADS, 1, Dh) f32
    proj_w_ref,                  # (DEPTH*HEADS, Dh, D) bf16     per-head proj slabs
    proj_b_ref,                  # (DEPTH, 1, D) f32
    ln2_g_ref, ln2_b_ref,        # (DEPTH, 1, D) f32
    fc1_w_ref, fc1_b_ref,        # (DEPTH, D, H) bf16, (DEPTH, 1, H) f32
    fc2_w_ref, fc2_b_ref,        # (DEPTH, H, D) bf16, (DEPTH, 1, D) f32
    norm_g_ref, norm_b_ref,      # (1, D) f32
    head_w_ref, head_b_ref,      # (D, HEAD_PAD) bf16, (1, HEAD_PAD) f32
    out_ref,                     # (1, block_b, HEAD_PAD) f32
    *, block_b,
):
    # Additive -inf mask for padded key columns (tokens 17..23).
    col = jax.lax.broadcasted_iota(jnp.int32, (1, N_PAD), 1)
    key_mask = jnp.where(col < NUM_TOKENS, 0.0, -1e30).astype(jnp.float32)

    # ---- patch embedding + (cls token + pos-embed) folded additive term -----
    x = jnp.dot(tok_ref[...], patch_w_ref[...],
                preferred_element_type=jnp.float32) + embed_add_ref[...]   # (bb*NP, D) f32

    for d in range(DEPTH):
        # ---------------- attention branch ----------------
        hn = _layernorm(x, ln1_g_ref[d], ln1_b_ref[d])
        hn_b = hn.astype(jnp.bfloat16)

        scores = []          # stacked (head, image) score tiles
        v_heads = []         # per-head values, f32 (aligned slicing; cast at use)
        for h in range(HEADS):
            qi = (d * 3 + 0) * HEADS + h
            ki = (d * 3 + 1) * HEADS + h
            vi = (d * 3 + 2) * HEADS + h
            q_h = (jnp.dot(hn_b, qkv_w_ref[qi], preferred_element_type=jnp.float32)
                   + qkv_b_ref[qi]) * ATTN_SCALE                            # (bb*NP, Dh)
            k_h = (jnp.dot(hn_b, qkv_w_ref[ki], preferred_element_type=jnp.float32)
                   + qkv_b_ref[ki])
            v_h = (jnp.dot(hn_b, qkv_w_ref[vi], preferred_element_type=jnp.float32)
                   + qkv_b_ref[vi])
            v_heads.append(v_h)
            for b in range(block_b):
                r = b * N_PAD
                s = jax.lax.dot_general(
                    q_h[r:r + N_PAD, :], k_h[r:r + N_PAD, :],
                    dimension_numbers=(((1,), (1,)), ((), ())),
                    preferred_element_type=jnp.float32)                     # (NP, NP)
                scores.append(s)

        # Fused softmax: one max / exp / sum / reciprocal over all stacked tiles.
        s_all = jnp.concatenate(scores, axis=0) + key_mask                  # (H*bb*NP, NP)
        s_all = s_all - jnp.max(s_all, axis=-1, keepdims=True)
        p_all = jnp.exp(s_all)
        p_all = p_all * pl.reciprocal(jnp.sum(p_all, axis=-1, keepdims=True),
                                      approx=True)

        attn_parts = [jnp.zeros((N_PAD, EMBED), jnp.float32) for _ in range(block_b)]
        idx = 0
        for h in range(HEADS):
            pw_h = proj_w_ref[d * HEADS + h]                                # (Dh, D) bf16
            for b in range(block_b):
                r = b * N_PAD
                p_bh = p_all[idx * N_PAD:(idx + 1) * N_PAD, :].astype(jnp.bfloat16)
                v_bh = v_heads[h][r:r + N_PAD, :].astype(jnp.bfloat16)
                o_bh = jnp.dot(p_bh, v_bh, preferred_element_type=jnp.float32)   # (NP, Dh)
                # concat(heads) @ proj == sum_h o_h @ proj[h]  (lane-dense D output)
                attn_parts[b] = attn_parts[b] + jnp.dot(
                    o_bh.astype(jnp.bfloat16), pw_h,
                    preferred_element_type=jnp.float32)
                idx += 1
        attn = jnp.concatenate(attn_parts, axis=0)                          # (bb*NP, D)
        x = x + attn + proj_b_ref[d]            # residual (drop_path = identity)

        # ---------------- MLP branch ----------------
        hn = _layernorm(x, ln2_g_ref[d], ln2_b_ref[d])
        m = jnp.dot(hn.astype(jnp.bfloat16), fc1_w_ref[d],
                    preferred_element_type=jnp.float32) + fc1_b_ref[d]      # (bb*NP, H)
        # tanh-GELU routes the transcendental to the EUP slot (tiny deviation
        # from torch's exact-erf default; acceptable per perf review).
        m = jax.nn.gelu(m, approximate=True)
        m = jnp.dot(m.astype(jnp.bfloat16), fc2_w_ref[d],
                    preferred_element_type=jnp.float32) + fc2_b_ref[d]      # (bb*NP, D)
        x = x + m

    # ---- final norm + classifier on the cls rows only ------------------------
    cls = jnp.concatenate([x[b * N_PAD:b * N_PAD + 1, :] for b in range(block_b)],
                          axis=0)                                           # (bb, D)
    cls = _layernorm(cls, norm_g_ref[...], norm_b_ref[...])
    logits = jnp.dot(cls.astype(jnp.bfloat16), head_w_ref[...],
                     preferred_element_type=jnp.float32) + head_b_ref[...]  # (bb, 128)
    out_ref[0] = logits


# ----------------------------- parameter init --------------------------------
def _trunc_normal(key, shape, std):
    return jax.random.truncated_normal(key, -2.0, 2.0, shape, jnp.float32) * std


def init_params(key):
    keys = jax.random.split(key, 4 + DEPTH)
    p = {}

    # PatchEmbed conv: (embed, in_c, P, P), kaiming fan_out; stored (Cp_pad, D) bf16
    fan_out = EMBED * PATCH * PATCH
    conv_w = jax.random.normal(keys[0], (EMBED, IN_C, PATCH, PATCH),
                               jnp.float32) * math.sqrt(2.0 / fan_out)
    patch_w = conv_w.reshape(EMBED, PATCH_FEAT).T                     # (48, D)
    p["patch_w"] = (jnp.zeros((CP_PAD, EMBED), jnp.float32)
                    .at[:PATCH_FEAT, :].set(patch_w).astype(jnp.bfloat16))
    p["patch_b"] = jnp.zeros((1, EMBED), jnp.float32)

    p["cls_token"] = _trunc_normal(keys[1], (1, 1, EMBED), 0.02)
    p["pos_embed"] = _trunc_normal(keys[2], (1, NUM_TOKENS, EMBED), 0.02)

    qkv_w, proj_w, fc1_w, fc2_w = [], [], [], []
    for d in range(DEPTH):
        bk = jax.random.split(keys[3 + d], 4)
        w = _trunc_normal(bk[0], (EMBED, 3 * EMBED), 0.01)
        # torch qkv column order is (s in {q,k,v}, head h, j) -> per-head slabs
        qkv_w.append(w.reshape(EMBED, 3, HEADS, HEAD_DIM).transpose(1, 2, 0, 3))
        pw = _trunc_normal(bk[1], (EMBED, EMBED), 0.01)
        proj_w.append(pw.reshape(HEADS, HEAD_DIM, EMBED))             # row block = head
        fc1_w.append(_trunc_normal(bk[2], (EMBED, MLP_HIDDEN), 0.01))
        fc2_w.append(_trunc_normal(bk[3], (MLP_HIDDEN, EMBED), 0.01))

    p["qkv_w"] = (jnp.stack(qkv_w)                                    # (DEPTH,3,H,D,Dh)
                  .reshape(DEPTH * 3 * HEADS, EMBED, HEAD_DIM).astype(jnp.bfloat16))
    p["qkv_b"] = jnp.zeros((DEPTH * 3 * HEADS, 1, HEAD_DIM), jnp.float32)  # qkv_bias=True
    p["proj_w"] = (jnp.stack(proj_w)                                  # (DEPTH,H,Dh,D)
                   .reshape(DEPTH * HEADS, HEAD_DIM, EMBED).astype(jnp.bfloat16))
    p["proj_b"] = jnp.zeros((DEPTH, 1, EMBED), jnp.float32)
    p["fc1_w"] = jnp.stack(fc1_w).astype(jnp.bfloat16)                # (DEPTH, D, H)
    p["fc1_b"] = jnp.zeros((DEPTH, 1, MLP_HIDDEN), jnp.float32)
    p["fc2_w"] = jnp.stack(fc2_w).astype(jnp.bfloat16)                # (DEPTH, H, D)
    p["fc2_b"] = jnp.zeros((DEPTH, 1, EMBED), jnp.float32)
    p["ln1_g"] = jnp.ones((DEPTH, 1, EMBED), jnp.float32)
    p["ln1_b"] = jnp.zeros((DEPTH, 1, EMBED), jnp.float32)
    p["ln2_g"] = jnp.ones((DEPTH, 1, EMBED), jnp.float32)
    p["ln2_b"] = jnp.zeros((DEPTH, 1, EMBED), jnp.float32)
    p["norm_g"] = jnp.ones((1, EMBED), jnp.float32)
    p["norm_b"] = jnp.zeros((1, EMBED), jnp.float32)

    head_w = _trunc_normal(keys[3 + DEPTH], (EMBED, NUM_CLASSES), 0.01)
    p["head_w"] = (jnp.zeros((EMBED, HEAD_PAD), jnp.float32)
                   .at[:, :NUM_CLASSES].set(head_w).astype(jnp.bfloat16))
    p["head_b"] = jnp.zeros((1, HEAD_PAD), jnp.float32)
    return p


# ----------------------------- forward pass -----------------------------------
def extract_patches(x):
    """(B, C, H, W) NCHW -> (B, num_patches, C*P*P), feature order (c, kh, kw)."""
    B = x.shape[0]
    x = x.reshape(B, IN_C, GRID_HW, PATCH, GRID_HW, PATCH)
    x = x.transpose(0, 2, 4, 1, 3, 5)                  # (B, gh, gw, C, P, P)
    return x.reshape(B, NUM_PATCHES, PATCH_FEAT)


def _grid_steps():
    """1 step on single-TC chips (v5e/v6e); 2-wide parallel grid on v7x (2 TCs)."""
    try:
        kind = jax.devices()[0].device_kind.lower()
    except Exception:
        kind = ""
    steps = 2 if "v7" in kind else 1
    if BATCH % steps != 0:
        steps = 1
    return steps


@jax.jit
def vit_forward(x, p):
    B = x.shape[0]
    steps = _grid_steps()
    block_b = B // steps
    nt_block = block_b * N_PAD

    # Cheap XLA glue under jit: patch extraction, token padding (17->24 rows,
    # 48->128 features), and folding cls-token / pos-embed / patch-bias into
    # one additive term so the kernel needs no concatenation.
    patches = extract_patches(x)                                     # (B, 16, 48)
    tok = jnp.zeros((B, N_PAD, CP_PAD), jnp.float32)
    tok = tok.at[:, 1:NUM_TOKENS, :PATCH_FEAT].set(patches)          # row0 = cls slot
    tok = tok.reshape(B * N_PAD, CP_PAD).astype(jnp.bfloat16)

    embed_add_img = jnp.concatenate(
        [p["cls_token"][0] + p["pos_embed"][0, 0:1],                  # (1, D)
         p["patch_b"] + p["pos_embed"][0, 1:],                        # (16, D)
         jnp.zeros((N_PAD - NUM_TOKENS, EMBED), jnp.float32)], axis=0)  # pad rows
    embed_add = jnp.tile(embed_add_img, (block_b, 1))                 # (nt_block, D)
    # pos_drop: p=0.0 -> identity

    weights = (
        p["patch_w"], embed_add,
        p["ln1_g"], p["ln1_b"], p["qkv_w"], p["qkv_b"], p["proj_w"], p["proj_b"],
        p["ln2_g"], p["ln2_b"], p["fc1_w"], p["fc1_b"], p["fc2_w"], p["fc2_b"],
        p["norm_g"], p["norm_b"], p["head_w"], p["head_b"],
    )
    in_specs = [pl.BlockSpec((nt_block, CP_PAD), lambda g: (g, 0))]
    in_specs += [pl.BlockSpec(a.shape, lambda g, nd=a.ndim: (0,) * nd) for a in weights]

    out = pl.pallas_call(
        functools.partial(_vit_fused_kernel, block_b=block_b),
        out_shape=jax.ShapeDtypeStruct((steps, block_b, HEAD_PAD), jnp.float32),
        grid=(steps,),
        in_specs=in_specs,
        out_specs=pl.BlockSpec((1, block_b, HEAD_PAD), lambda g: (g, 0, 0)),
        compiler_params=pltpu.CompilerParams(
            dimension_semantics=("parallel",)),   # v7x: 2 TCs split the batch
    )(tok, *weights)

    return out.reshape(B, HEAD_PAD)[:, :NUM_CLASSES]   # drop the lane padding


# ----------------------------- main --------------------------------------------
if __name__ == "__main__":
    key = jax.random.PRNGKey(0)
    pkey, xkey = jax.random.split(key)
    params = init_params(pkey)
    x = jax.random.normal(xkey, (BATCH, IN_C, IMG, IMG), jnp.float32)

    out = vit_forward(x, params)
    out = jax.block_until_ready(out)
    assert out.shape == (BATCH, NUM_CLASSES), out.shape
    assert bool(jnp.all(jnp.isfinite(out)))
    print("KERNEL_OK")
</pallas_src>

<mosaic_0001>
module attributes {stable_mosaic.version = 11 : i64} {
  func.func @_vit_fused_kernel(%arg0: i32, %arg1: memref<48x128xbf16, #tpu.memory_space<vmem>>, %arg2: memref<128x32xbf16, #tpu.memory_space<vmem>>, %arg3: memref<48x32xf32, #tpu.memory_space<vmem>>, %arg4: memref<2x1x32xf32, #tpu.memory_space<vmem>>, %arg5: memref<2x1x32xf32, #tpu.memory_space<vmem>>, %arg6: memref<24x32x8xbf16, #tpu.memory_space<vmem>>, %arg7: memref<24x1x8xf32, #tpu.memory_space<vmem>>, %arg8: memref<8x8x32xbf16, #tpu.memory_space<vmem>>, %arg9: memref<2x1x32xf32, #tpu.memory_space<vmem>>, %arg10: memref<2x1x32xf32, #tpu.memory_space<vmem>>, %arg11: memref<2x1x32xf32, #tpu.memory_space<vmem>>, %arg12: memref<2x32x128xbf16, #tpu.memory_space<vmem>>, %arg13: memref<2x1x128xf32, #tpu.memory_space<vmem>>, %arg14: memref<2x128x32xbf16, #tpu.memory_space<vmem>>, %arg15: memref<2x1x32xf32, #tpu.memory_space<vmem>>, %arg16: memref<1x32xf32, #tpu.memory_space<vmem>>, %arg17: memref<1x32xf32, #tpu.memory_space<vmem>>, %arg18: memref<32x128xbf16, #tpu.memory_space<vmem>>, %arg19: memref<1x128xf32, #tpu.memory_space<vmem>>, %arg20: memref<1x2x128xf32, #tpu.memory_space<vmem>>) attributes {dimension_semantics = [#tpu.dimension_semantics<parallel>], iteration_bounds = array<i64: 1>, scalar_prefetch = 0 : i64, scratch_operands = 0 : i64, tpu.core_type = #tpu.core_type<tc>, window_params = [{transform_indices = @transform_0, window_bounds = array<i64: 48, 128>}, {pipeline_mode = #tpu.pipeline_mode<synchronous>, transform_indices = @transform_1, window_bounds = array<i64: 128, 32>}, {pipeline_mode = #tpu.pipeline_mode<synchronous>, transform_indices = @transform_2, window_bounds = array<i64: 48, 32>}, {pipeline_mode = #tpu.pipeline_mode<synchronous>, transform_indices = @transform_3, window_bounds = array<i64: 2, 1, 32>}, {pipeline_mode = #tpu.pipeline_mode<synchronous>, transform_indices = @transform_4, window_bounds = array<i64: 2, 1, 32>}, {pipeline_mode = #tpu.pipeline_mode<synchronous>, transform_indices = @transform_5, window_bounds = array<i64: 24, 32, 8>}, {pipeline_mode = #tpu.pipeline_mode<synchronous>, transform_indices = @transform_6, window_bounds = array<i64: 24, 1, 8>}, {pipeline_mode = #tpu.pipeline_mode<synchronous>, transform_indices = @transform_7, window_bounds = array<i64: 8, 8, 32>}, {pipeline_mode = #tpu.pipeline_mode<synchronous>, transform_indices = @transform_8, window_bounds = array<i64: 2, 1, 32>}, {pipeline_mode = #tpu.pipeline_mode<synchronous>, transform_indices = @transform_9, window_bounds = array<i64: 2, 1, 32>}, {pipeline_mode = #tpu.pipeline_mode<synchronous>, transform_indices = @transform_10, window_bounds = array<i64: 2, 1, 32>}, {pipeline_mode = #tpu.pipeline_mode<synchronous>, transform_indices = @transform_11, window_bounds = array<i64: 2, 32, 128>}, {pipeline_mode = #tpu.pipeline_mode<synchronous>, transform_indices = @transform_12, window_bounds = array<i64: 2, 1, 128>}, {pipeline_mode = #tpu.pipeline_mode<synchronous>, transform_indices = @transform_13, window_bounds = array<i64: 2, 128, 32>}, {pipeline_mode = #tpu.pipeline_mode<synchronous>, transform_indices = @transform_14, window_bounds = array<i64: 2, 1, 32>}, {pipeline_mode = #tpu.pipeline_mode<synchronous>, transform_indices = @transform_15, window_bounds = array<i64: 1, 32>}, {pipeline_mode = #tpu.pipeline_mode<synchronous>, transform_indices = @transform_16, window_bounds = array<i64: 1, 32>}, {pipeline_mode = #tpu.pipeline_mode<synchronous>, transform_indices = @transform_17, window_bounds = array<i64: 32, 128>}, {pipeline_mode = #tpu.pipeline_mode<synchronous>, transform_indices = @transform_18, window_bounds = array<i64: 1, 128>}, {transform_indices = @transform_19, window_bounds = array<i64: 1, 2, 128>}]} {
    %0 = tpu.iota {dimensions = array<i32: 1>} : vector<1x24xi32>
    %c17_i32 = arith.constant 17 : i32
    %1 = vector.broadcast %c17_i32 : i32 to vector<1x24xi32>
    %2 = arith.cmpi slt, %0, %1 : vector<1x24xi32>
    %cst = arith.constant 0.000000e+00 : f32
    %cst_0 = arith.constant -1.000000e+30 : f32
    %3 = vector.broadcast %cst : f32 to vector<1x24xf32>
    %4 = vector.broadcast %cst_0 : f32 to vector<1x24xf32>
    %5 = arith.select %2, %3, %4 : vector<1x24xi1>, vector<1x24xf32>
    %c0 = arith.constant 0 : index
    %c0_1 = arith.constant 0 : index
    %6 = vector.load %arg1[%c0, %c0_1] : memref<48x128xbf16, #tpu.memory_space<vmem>>, vector<48x128xbf16>
    %c0_2 = arith.constant 0 : index
    %c0_3 = arith.constant 0 : index
    %7 = vector.load %arg2[%c0_2, %c0_3] : memref<128x32xbf16, #tpu.memory_space<vmem>>, vector<128x32xbf16>
    %cst_4 = arith.constant dense<0.000000e+00> : vector<48x32xf32>
    %8 = tpu.matmul %6, %7, %cst_4 {dimension_numbers = #tpu.dot_dimension_numbers<[1], [0], [0], [1], [0, 0, 1, 1], [], []>} : vector<48x128xbf16>, vector<128x32xbf16>, vector<48x32xf32> -> vector<48x32xf32>
    %c0_5 = arith.constant 0 : index
    %c0_6 = arith.constant 0 : index
    %9 = vector.load %arg3[%c0_5, %c0_6] : memref<48x32xf32, #tpu.memory_space<vmem>>, vector<48x32xf32>
    %10 = arith.addf %8, %9 : vector<48x32xf32>
    %c0_7 = arith.constant 0 : index
    %c0_8 = arith.constant 0 : index
    %c0_9 = arith.constant 0 : index
    %11 = vector.load %arg4[%c0_7, %c0_8, %c0_9] : memref<2x1x32xf32, #tpu.memory_space<vmem>>, vector<1x1x32xf32>
    %12 = vector.shape_cast %11 : vector<1x1x32xf32> to vector<1x32xf32>
    %c0_10 = arith.constant 0 : index
    %c0_11 = arith.constant 0 : index
    %c0_12 = arith.constant 0 : index
    %13 = vector.load %arg5[%c0_10, %c0_11, %c0_12] : memref<2x1x32xf32, #tpu.memory_space<vmem>>, vector<1x1x32xf32>
    %14 = vector.shape_cast %13 : vector<1x1x32xf32> to vector<1x32xf32>
    %cst_13 = arith.constant dense<0.000000e+00> : vector<48xf32>
    %15 = vector.multi_reduction <add>, %10, %cst_13 [1] : vector<48x32xf32> to vector<48xf32>
    %16 = vector.shape_cast %15 : vector<48xf32> to vector<48x1xf32>
    %cst_14 = arith.constant 3.200000e+01 : f32
    %17 = vector.broadcast %cst_14 : f32 to vector<48x1xf32>
    %18 = arith.divf %16, %17 : vector<48x1xf32>
    %19 = vector.broadcast %18 : vector<48x1xf32> to vector<48x32xf32>
    %20 = arith.subf %10, %19 : vector<48x32xf32>
    %21 = arith.mulf %20, %20 : vector<48x32xf32>
    %cst_15 = arith.constant dense<0.000000e+00> : vector<48xf32>
    %22 = vector.multi_reduction <add>, %21, %cst_15 [1] : vector<48x32xf32> to vector<48xf32>
    %23 = vector.shape_cast %22 : vector<48xf32> to vector<48x1xf32>
    %cst_16 = arith.constant 3.200000e+01 : f32
    %24 = vector.broadcast %cst_16 : f32 to vector<48x1xf32>
    %25 = arith.divf %23, %24 : vector<48x1xf32>
    %cst_17 = arith.constant 9.99999997E-7 : f32
    %26 = vector.broadcast %cst_17 : f32 to vector<48x1xf32>
    %27 = arith.addf %25, %26 : vector<48x1xf32>
    %28 = math.rsqrt %27 : vector<48x1xf32>
    %29 = vector.broadcast %28 : vector<48x1xf32> to vector<48x32xf32>
    %30 = arith.mulf %20, %29 : vector<48x32xf32>
    %31 = vector.broadcast %12 : vector<1x32xf32> to vector<48x32xf32>
    %32 = arith.mulf %30, %31 : vector<48x32xf32>
    %33 = vector.broadcast %14 : vector<1x32xf32> to vector<48x32xf32>
    %34 = arith.addf %32, %33 : vector<48x32xf32>
    %35 = arith.truncf %34 : vector<48x32xf32> to vector<48x32xbf16>
    %c0_18 = arith.constant 0 : index
    %c0_19 = arith.constant 0 : index
    %c0_20 = arith.constant 0 : index
    %36 = vector.load %arg6[%c0_18, %c0_19, %c0_20] : memref<24x32x8xbf16, #tpu.memory_space<vmem>>, vector<1x32x8xbf16>
    %37 = vector.shape_cast %36 : vector<1x32x8xbf16> to vector<32x8xbf16>
    %cst_21 = arith.constant dense<0.000000e+00> : vector<48x8xf32>
    %38 = tpu.matmul %35, %37, %cst_21 {dimension_numbers = #tpu.dot_dimension_numbers<[1], [0], [0], [1], [0, 0, 1, 1], [], []>} : vector<48x32xbf16>, vector<32x8xbf16>, vector<48x8xf32> -> vector<48x8xf32>
    %c0_22 = arith.constant 0 : index
    %c0_23 = arith.constant 0 : index
    %c0_24 = arith.constant 0 : index
    %39 = vector.load %arg7[%c0_22, %c0_23, %c0_24] : memref<24x1x8xf32, #tpu.memory_space<vmem>>, vector<1x1x8xf32>
    %40 = vector.shape_cast %39 : vector<1x1x8xf32> to vector<1x8xf32>
    %41 = vector.broadcast %40 : vector<1x8xf32> to vector<48x8xf32>
    %42 = arith.addf %38, %41 : vector<48x8xf32>
    %cst_25 = arith.constant 0.353553385 : f32
    %43 = vector.broadcast %cst_25 : f32 to vector<48x8xf32>
    %44 = arith.mulf %42, %43 : vector<48x8xf32>
    %c4 = arith.constant 4 : index
    %c0_26 = arith.constant 0 : index
    %c0_27 = arith.constant 0 : index
    %45 = vector.load %arg6[%c4, %c0_26, %c0_27] : memref<24x32x8xbf16, #tpu.memory_space<vmem>>, vector<1x32x8xbf16>
    %46 = vector.shape_cast %45 : vector<1x32x8xbf16> to vector<32x8xbf16>
    %cst_28 = arith.constant dense<0.000000e+00> : vector<48x8xf32>
    %47 = tpu.matmul %35, %46, %cst_28 {dimension_numbers = #tpu.dot_dimension_numbers<[1], [0], [0], [1], [0, 0, 1, 1], [], []>} : vector<48x32xbf16>, vector<32x8xbf16>, vector<48x8xf32> -> vector<48x8xf32>
    %c4_29 = arith.constant 4 : index
    %c0_30 = arith.constant 0 : index
    %c0_31 = arith.constant 0 : index
    %48 = vector.load %arg7[%c4_29, %c0_30, %c0_31] : memref<24x1x8xf32, #tpu.memory_space<vmem>>, vector<1x1x8xf32>
    %49 = vector.shape_cast %48 : vector<1x1x8xf32> to vector<1x8xf32>
    %50 = vector.broadcast %49 : vector<1x8xf32> to vector<48x8xf32>
    %51 = arith.addf %47, %50 : vector<48x8xf32>
    %c8 = arith.constant 8 : index
    %c0_32 = arith.constant 0 : index
    %c0_33 = arith.constant 0 : index
    %52 = vector.load %arg6[%c8, %c0_32, %c0_33] : memref<24x32x8xbf16, #tpu.memory_space<vmem>>, vector<1x32x8xbf16>
    %53 = vector.shape_cast %52 : vector<1x32x8xbf16> to vector<32x8xbf16>
    %cst_34 = arith.constant dense<0.000000e+00> : vector<48x8xf32>
    %54 = tpu.matmul %35, %53, %cst_34 {dimension_numbers = #tpu.dot_dimension_numbers<[1], [0], [0], [1], [0, 0, 1, 1], [], []>} : vector<48x32xbf16>, vector<32x8xbf16>, vector<48x8xf32> -> vector<48x8xf32>
    %c8_35 = arith.constant 8 : index
    %c0_36 = arith.constant 0 : index
    %c0_37 = arith.constant 0 : index
    %55 = vector.load %arg7[%c8_35, %c0_36, %c0_37] : memref<24x1x8xf32, #tpu.memory_space<vmem>>, vector<1x1x8xf32>
    %56 = vector.shape_cast %55 : vector<1x1x8xf32> to vector<1x8xf32>
    %57 = vector.broadcast %56 : vector<1x8xf32> to vector<48x8xf32>
    %58 = arith.addf %54, %57 : vector<48x8xf32>
    %59 = vector.extract_strided_slice %44 {offsets = [0, 0], sizes = [24, 8], strides = [1, 1]} : vector<48x8xf32> to vector<24x8xf32>
    %60 = vector.extract_strided_slice %51 {offsets = [0, 0], sizes = [24, 8], strides = [1, 1]} : vector<48x8xf32> to vector<24x8xf32>
    %cst_38 = arith.constant dense<0.000000e+00> : vector<24x24xf32>
    %61 = tpu.matmul %59, %60, %cst_38 {dimension_numbers = #tpu.dot_dimension_numbers<[1], [1], [0], [0], [0, 0, 1, 0], [], []>} : vector<24x8xf32>, vector<24x8xf32>, vector<24x24xf32> -> vector<24x24xf32>
    %62 = vector.extract_strided_slice %44 {offsets = [24, 0], sizes = [24, 8], strides = [1, 1]} : vector<48x8xf32> to vector<24x8xf32>
    %63 = vector.extract_strided_slice %51 {offsets = [24, 0], sizes = [24, 8], strides = [1, 1]} : vector<48x8xf32> to vector<24x8xf32>
    %cst_39 = arith.constant dense<0.000000e+00> : vector<24x24xf32>
    %64 = tpu.matmul %62, %63, %cst_39 {dimension_numbers = #tpu.dot_dimension_numbers<[1], [1], [0], [0], [0, 0, 1, 0], [], []>} : vector<24x8xf32>, vector<24x8xf32>, vector<24x24xf32> -> vector<24x24xf32>
    %c1 = arith.constant 1 : index
    %c0_40 = arith.constant 0 : index
    %c0_41 = arith.constant 0 : index
    %65 = vector.load %arg6[%c1, %c0_40, %c0_41] : memref<24x32x8xbf16, #tpu.memory_space<vmem>>, vector<1x32x8xbf16>
    %66 = vector.shape_cast %65 : vector<1x32x8xbf16> to vector<32x8xbf16>
    %cst_42 = arith.constant dense<0.000000e+00> : vector<48x8xf32>
    %67 = tpu.matmul %35, %66, %cst_42 {dimension_numbers = #tpu.dot_dimension_numbers<[1], [0], [0], [1], [0, 0, 1, 1], [], []>} : vector<48x32xbf16>, vector<32x8xbf16>, vector<48x8xf32> -> vector<48x8xf32>
    %c1_43 = arith.constant 1 : index
    %c0_44 = arith.constant 0 : index
    %c0_45 = arith.constant 0 : index
    %68 = vector.load %arg7[%c1_43, %c0_44, %c0_45] : memref<24x1x8xf32, #tpu.memory_space<vmem>>, vector<1x1x8xf32>
    %69 = vector.shape_cast %68 : vector<1x1x8xf32> to vector<1x8xf32>
    %70 = vector.broadcast %69 : vector<1x8xf32> to vector<48x8xf32>
    %71 = arith.addf %67, %70 : vector<48x8xf32>
    %cst_46 = arith.constant 0.353553385 : f32
    %72 = vector.broadcast %cst_46 : f32 to vector<48x8xf32>
    %73 = arith.mulf %71, %72 : vector<48x8xf32>
    %c5 = arith.constant 5 : index
    %c0_47 = arith.constant 0 : index
    %c0_48 = arith.constant 0 : index
    %74 = vector.load %arg6[%c5, %c0_47, %c0_48] : memref<24x32x8xbf16, #tpu.memory_space<vmem>>, vector<1x32x8xbf16>
    %75 = vector.shape_cast %74 : vector<1x32x8xbf16> to vector<32x8xbf16>
    %cst_49 = arith.constant dense<0.000000e+00> : vector<48x8xf32>
    %76 = tpu.matmul %35, %75, %cst_49 {dimension_numbers = #tpu.dot_dimension_numbers<[1], [0], [0], [1], [0, 0, 1, 1], [], []>} : vector<48x32xbf16>, vector<32x8xbf16>, vector<48x8xf32> -> vector<48x8xf32>
    %c5_50 = arith.constant 5 : index
    %c0_51 = arith.constant 0 : index
    %c0_52 = arith.constant 0 : index
    %77 = vector.load %arg7[%c5_50, %c0_51, %c0_52] : memref<24x1x8xf32, #tpu.memory_space<vmem>>, vector<1x1x8xf32>
    %78 = vector.shape_cast %77 : vector<1x1x8xf32> to vector<1x8xf32>
    %79 = vector.broadcast %78 : vector<1x8xf32> to vector<48x8xf32>
    %80 = arith.addf %76, %79 : vector<48x8xf32>
    %c9 = arith.constant 9 : index
    %c0_53 = arith.constant 0 : index
    %c0_54 = arith.constant 0 : index
    %81 = vector.load %arg6[%c9, %c0_53, %c0_54] : memref<24x32x8xbf16, #tpu.memory_space<vmem>>, vector<1x32x8xbf16>
    %82 = vector.shape_cast %81 : vector<1x32x8xbf16> to vector<32x8xbf16>
    %cst_55 = arith.constant dense<0.000000e+00> : vector<48x8xf32>
    %83 = tpu.matmul %35, %82, %cst_55 {dimension_numbers = #tpu.dot_dimension_numbers<[1], [0], [0], [1], [0, 0, 1, 1], [], []>} : vector<48x32xbf16>, vector<32x8xbf16>, vector<48x8xf32> -> vector<48x8xf32>
    %c9_56 = arith.constant 9 : index
    %c0_57 = arith.constant 0 : index
    %c0_58 = arith.constant 0 : index
    %84 = vector.load %arg7[%c9_56, %c0_57, %c0_58] : memref<24x1x8xf32, #tpu.memory_space<vmem>>, vector<1x1x8xf32>
    %85 = vector.shape_cast %84 : vector<1x1x8xf32> to vector<1x8xf32>
    %86 = vector.broadcast %85 : vector<1x8xf32> to vector<48x8xf32>
    %87 = arith.addf %83, %86 : vector<48x8xf32>
    %88 = vector.extract_strided_slice %73 {offsets = [0, 0], sizes = [24, 8], strides = [1, 1]} : vector<48x8xf32> to vector<24x8xf32>
    %89 = vector.extract_strided_slice %80 {offsets = [0, 0], sizes = [24, 8], strides = [1, 1]} : vector<48x8xf32> to vector<24x8xf32>
    %cst_59 = arith.constant dense<0.000000e+00> : vector<24x24xf32>
    %90 = tpu.matmul %88, %89, %cst_59 {dimension_numbers = #tpu.dot_dimension_numbers<[1], [1], [0], [0], [0, 0, 1, 0], [], []>} : vector<24x8xf32>, vector<24x8xf32>, vector<24x24xf32> -> vector<24x24xf32>
    %91 = vector.extract_strided_slice %73 {offsets = [24, 0], sizes = [24, 8], strides = [1, 1]} : vector<48x8xf32> to vector<24x8xf32>
    %92 = vector.extract_strided_slice %80 {offsets = [24, 0], sizes = [24, 8], strides = [1, 1]} : vector<48x8xf32> to vector<24x8xf32>
    %cst_60 = arith.constant dense<0.000000e+00> : vector<24x24xf32>
    %93 = tpu.matmul %91, %92, %cst_60 {dimension_numbers = #tpu.dot_dimension_numbers<[1], [1], [0], [0], [0, 0, 1, 0], [], []>} : vector<24x8xf32>, vector<24x8xf32>, vector<24x24xf32> -> vector<24x24xf32>
    %c2 = arith.constant 2 : index
    %c0_61 = arith.constant 0 : index
    %c0_62 = arith.constant 0 : index
    %94 = vector.load %arg6[%c2, %c0_61, %c0_62] : memref<24x32x8xbf16, #tpu.memory_space<vmem>>, vector<1x32x8xbf16>
    %95 = vector.shape_cast %94 : vector<1x32x8xbf16> to vector<32x8xbf16>
    %cst_63 = arith.constant dense<0.000000e+00> : vector<48x8xf32>
    %96 = tpu.matmul %35, %95, %cst_63 {dimension_numbers = #tpu.dot_dimension_numbers<[1], [0], [0], [1], [0, 0, 1, 1], [], []>} : vector<48x32xbf16>, vector<32x8xbf16>, vector<48x8xf32> -> vector<48x8xf32>
    %c2_64 = arith.constant 2 : index
    %c0_65 = arith.constant 0 : index
    %c0_66 = arith.constant 0 : index
    %97 = vector.load %arg7[%c2_64, %c0_65, %c0_66] : memref<24x1x8xf32, #tpu.memory_space<vmem>>, vector<1x1x8xf32>
    %98 = vector.shape_cast %97 : vector<1x1x8xf32> to vector<1x8xf32>
    %99 = vector.broadcast %98 : vector<1x8xf32> to vector<48x8xf32>
    %100 = arith.addf %96, %99 : vector<48x8xf32>
    %cst_67 = arith.constant 0.353553385 : f32
    %101 = vector.broadcast %cst_67 : f32 to vector<48x8xf32>
    %102 = arith.mulf %100, %101 : vector<48x8xf32>
    %c6 = arith.constant 6 : index
    %c0_68 = arith.constant 0 : index
    %c0_69 = arith.constant 0 : index
    %103 = vector.load %arg6[%c6, %c0_68, %c0_69] : memref<24x32x8xbf16, #tpu.memory_space<vmem>>, vector<1x32x8xbf16>
    %104 = vector.shape_cast %103 : vector<1x32x8xbf16> to vector<32x8xbf16>
    %cst_70 = arith.constant dense<0.000000e+00> : vector<48x8xf32>
    %105 = tpu.matmul %35, %104, %cst_70 {dimension_numbers = #tpu.dot_dimension_numbers<[1], [0], [0], [1], [0, 0, 1, 1], [], []>} : vector<48x32xbf16>, vector<32x8xbf16>, vector<48x8xf32> -> vector<48x8xf32>
    %c6_71 = arith.constant 6 : index
    %c0_72 = arith.constant 0 : index
    %c0_73 = arith.constant 0 : index
    %106 = vector.load %arg7[%c6_71, %c0_72, %c0_73] : memref<24x1x8xf32, #tpu.memory_space<vmem>>, vector<1x1x8xf32>
    %107 = vector.shape_cast %106 : vector<1x1x8xf32> to vector<1x8xf32>
    %108 = vector.broadcast %107 : vector<1x8xf32> to vector<48x8xf32>
    %109 = arith.addf %105, %108 : vector<48x8xf32>
    %c10 = arith.constant 10 : index
    %c0_74 = arith.constant 0 : index
    %c0_75 = arith.constant 0 : index
    %110 = vector.load %arg6[%c10, %c0_74, %c0_75] : memref<24x32x8xbf16, #tpu.memory_space<vmem>>, vector<1x32x8xbf16>
    %111 = vector.shape_cast %110 : vector<1x32x8xbf16> to vector<32x8xbf16>
    %cst_76 = arith.constant dense<0.000000e+00> : vector<48x8xf32>
    %112 = tpu.matmul %35, %111, %cst_76 {dimension_numbers = #tpu.dot_dimension_numbers<[1], [0], [0], [1], [0, 0, 1, 1], [], []>} : vector<48x32xbf16>, vector<32x8xbf16>, vector<48x8xf32> -> vector<48x8xf32>
    %c10_77 = arith.constant 10 : index
    %c0_78 = arith.constant 0 : index
    %c0_79 = arith.constant 0 : index
    %113 = vector.load %arg7[%c10_77, %c0_78, %c0_79] : memref<24x1x8xf32, #tpu.memory_space<vmem>>, vector<1x1x8xf32>
    %114 = vector.shape_cast %113 : vector<1x1x8xf32> to vector<1x8xf32>
    %115 = vector.broadcast %114 : vector<1x8xf32> to vector<48x8xf32>
    %116 = arith.addf %112, %115 : vector<48x8xf32>
    %117 = vector.extract_strided_slice %102 {offsets = [0, 0], sizes = [24, 8], strides = [1, 1]} : vector<48x8xf32> to vector<24x8xf32>
    %118 = vector.extract_strided_slice %109 {offsets = [0, 0], sizes = [24, 8], strides = [1, 1]} : vector<48x8xf32> to vector<24x8xf32>
    %cst_80 = arith.constant dense<0.000000e+00> : vector<24x24xf32>
    %119 = tpu.matmul %117, %118, %cst_80 {dimension_numbers = #tpu.dot_dimension_numbers<[1], [1], [0], [0], [0, 0, 1, 0], [], []>} : vector<24x8xf32>, vector<24x8xf32>, vector<24x24xf32> -> vector<24x24xf32>
    %120 = vector.extract_strided_slice %102 {offsets = [24, 0], sizes = [24, 8], strides = [1, 1]} : vector<48x8xf32> to vector<24x8xf32>
    %121 = vector.extract_strided_slice %109 {offsets = [24, 0], sizes = [24, 8], strides = [1, 1]} : vector<48x8xf32> to vector<24x8xf32>
    %cst_81 = arith.constant dense<0.000000e+00> : vector<24x24xf32>
    %122 = tpu.matmul %120, %121, %cst_81 {dimension_numbers = #tpu.dot_dimension_numbers<[1], [1], [0], [0], [0, 0, 1, 0], [], []>} : vector<24x8xf32>, vector<24x8xf32>, vector<24x24xf32> -> vector<24x24xf32>
    %c3 = arith.constant 3 : index
    %c0_82 = arith.constant 0 : index
    %c0_83 = arith.constant 0 : index
    %123 = vector.load %arg6[%c3, %c0_82, %c0_83] : memref<24x32x8xbf16, #tpu.memory_space<vmem>>, vector<1x32x8xbf16>
    %124 = vector.shape_cast %123 : vector<1x32x8xbf16> to vector<32x8xbf16>
    %cst_84 = arith.constant dense<0.000000e+00> : vector<48x8xf32>
    %125 = tpu.matmul %35, %124, %cst_84 {dimension_numbers = #tpu.dot_dimension_numbers<[1], [0], [0], [1], [0, 0, 1, 1], [], []>} : vector<48x32xbf16>, vector<32x8xbf16>, vector<48x8xf32> -> vector<48x8xf32>
    %c3_85 = arith.constant 3 : index
    %c0_86 = arith.constant 0 : index
    %c0_87 = arith.constant 0 : index
    %126 = vector.load %arg7[%c3_85, %c0_86, %c0_87] : memref<24x1x8xf32, #tpu.memory_space<vmem>>, vector<1x1x8xf32>
    %127 = vector.shape_cast %126 : vector<1x1x8xf32> to vector<1x8xf32>
    %128 = vector.broadcast %127 : vector<1x8xf32> to vector<48x8xf32>
    %129 = arith.addf %125, %128 : vector<48x8xf32>
    %cst_88 = arith.constant 0.353553385 : f32
    %130 = vector.broadcast %cst_88 : f32 to vector<48x8xf32>
    %131 = arith.mulf %129, %130 : vector<48x8xf32>
    %c7 = arith.constant 7 : index
    %c0_89 = arith.constant 0 : index
    %c0_90 = arith.constant 0 : index
    %132 = vector.load %arg6[%c7, %c0_89, %c0_90] : memref<24x32x8xbf16, #tpu.memory_space<vmem>>, vector<1x32x8xbf16>
    %133 = vector.shape_cast %132 : vector<1x32x8xbf16> to vector<32x8xbf16>
    %cst_91 = arith.constant dense<0.000000e+00> : vector<48x8xf32>
    %134 = tpu.matmul %35, %133, %cst_91 {dimension_numbers = #tpu.dot_dimension_numbers<[1], [0], [0], [1], [0, 0, 1, 1], [], []>} : vector<48x32xbf16>, vector<32x8xbf16>, vector<48x8xf32> -> vector<48x8xf32>
    %c7_92 = arith.constant 7 : index
    %c0_93 = arith.constant 0 : index
    %c0_94 = arith.constant 0 : index
    %135 = vector.load %arg7[%c7_92, %c0_93, %c0_94] : memref<24x1x8xf32, #tpu.memory_space<vmem>>, vector<1x1x8xf32>
    %136 = vector.shape_cast %135 : vector<1x1x8xf32> to vector<1x8xf32>
    %137 = vector.broadcast %136 : vector<1x8xf32> to vector<48x8xf32>
    %138 = arith.addf %134, %137 : vector<48x8xf32>
    %c11 = arith.constant 11 : index
    %c0_95 = arith.constant 0 : index
    %c0_96 = arith.constant 0 : index
    %139 = vector.load %arg6[%c11, %c0_95, %c0_96] : memref<24x32x8xbf16, #tpu.memory_space<vmem>>, vector<1x32x8xbf16>
    %140 = vector.shape_cast %139 : vector<1x32x8xbf16> to vector<32x8xbf16>
    %cst_97 = arith.constant dense<0.000000e+00> : vector<48x8xf32>
    %141 = tpu.matmul %35, %140, %cst_97 {dimension_numbers = #tpu.dot_dimension_numbers<[1], [0], [0], [1], [0, 0, 1, 1], [], []>} : vector<48x32xbf16>, vector<32x8xbf16>, vector<48x8xf32> -> vector<48x8xf32>
    %c11_98 = arith.constant 11 : index
    %c0_99 = arith.constant 0 : index
    %c0_100 = arith.constant 0 : index
    %142 = vector.load %arg7[%c11_98, %c0_99, %c0_100] : memref<24x1x8xf32, #tpu.memory_space<vmem>>, vector<1x1x8xf32>
    %143 = vector.shape_cast %142 : vector<1x1x8xf32> to vector<1x8xf32>
    %144 = vector.broadcast %143 : vector<1x8xf32> to vector<48x8xf32>
    %145 = arith.addf %141, %144 : vector<48x8xf32>
    %146 = vector.extract_strided_slice %131 {offsets = [0, 0], sizes = [24, 8], strides = [1, 1]} : vector<48x8xf32> to vector<24x8xf32>
    %147 = vector.extract_strided_slice %138 {offsets = [0, 0], sizes = [24, 8], strides = [1, 1]} : vector<48x8xf32> to vector<24x8xf32>
    %cst_101 = arith.constant dense<0.000000e+00> : vector<24x24xf32>
    %148 = tpu.matmul %146, %147, %cst_101 {dimension_numbers = #tpu.dot_dimension_numbers<[1], [1], [0], [0], [0, 0, 1, 0], [], []>} : vector<24x8xf32>, vector<24x8xf32>, vector<24x24xf32> -> vector<24x24xf32>
    %149 = vector.extract_strided_slice %131 {offsets = [24, 0], sizes = [24, 8], strides = [1, 1]} : vector<48x8xf32> to vector<24x8xf32>
    %150 = vector.extract_strided_slice %138 {offsets = [24, 0], sizes = [24, 8], strides = [1, 1]} : vector<48x8xf32> to vector<24x8xf32>
    %cst_102 = arith.constant dense<0.000000e+00> : vector<24x24xf32>
    %151 = tpu.matmul %149, %150, %cst_102 {dimension_numbers = #tpu.dot_dimension_numbers<[1], [1], [0], [0], [0, 0, 1, 0], [], []>} : vector<24x8xf32>, vector<24x8xf32>, vector<24x24xf32> -> vector<24x24xf32>
    %152 = tpu.concatenate %61, %64, %90, %93, %119, %122, %148, %151 in 0 : vector<24x24xf32>, vector<24x24xf32>, vector<24x24xf32>, vector<24x24xf32>, vector<24x24xf32>, vector<24x24xf32>, vector<24x24xf32>, vector<24x24xf32> -> vector<192x24xf32>
    %153 = vector.broadcast %5 : vector<1x24xf32> to vector<192x24xf32>
    %154 = arith.addf %152, %153 : vector<192x24xf32>
    %cst_103 = arith.constant dense<0xFF800000> : vector<192xf32>
    %155 = vector.multi_reduction <maximumf>, %154, %cst_103 [1] : vector<192x24xf32> to vector<192xf32>
    %156 = vector.shape_cast %155 : vector<192xf32> to vector<192x1xf32>
    %157 = vector.broadcast %156 : vector<192x1xf32> to vector<192x24xf32>
    %158 = arith.subf %154, %157 : vector<192x24xf32>
    %159 = math.exp %158 : vector<192x24xf32>
    %cst_104 = arith.constant dense<0.000000e+00> : vector<192xf32>
    %160 = vector.multi_reduction <add>, %159, %cst_104 [1] : vector<192x24xf32> to vector<192xf32>
    %161 = vector.shape_cast %160 : vector<192xf32> to vector<192x1xf32>
    %162 = tpu.reciprocal %161 {approx = true} : vector<192x1xf32> -> vector<192x1xf32>
    %163 = vector.broadcast %162 : vector<192x1xf32> to vector<192x24xf32>
    %164 = arith.mulf %159, %163 : vector<192x24xf32>
    %cst_105 = arith.constant 0.000000e+00 : f32
    %165 = vector.broadcast %cst_105 : f32 to vector<24x32xf32>
    %cst_106 = arith.constant 0.000000e+00 : f32
    %166 = vector.broadcast %cst_106 : f32 to vector<24x32xf32>
    %c0_107 = arith.constant 0 : index
    %c0_108 = arith.constant 0 : index
    %c0_109 = arith.constant 0 : index
    %167 = vector.load %arg8[%c0_107, %c0_108, %c0_109] : memref<8x8x32xbf16, #tpu.memory_space<vmem>>, vector<1x8x32xbf16>
    %168 = vector.shape_cast %167 : vector<1x8x32xbf16> to vector<8x32xbf16>
    %169 = vector.extract_strided_slice %164 {offsets = [0, 0], sizes = [24, 24], strides = [1, 1]} : vector<192x24xf32> to vector<24x24xf32>
    %170 = arith.truncf %169 : vector<24x24xf32> to vector<24x24xbf16>
    %171 = vector.extract_strided_slice %58 {offsets = [0, 0], sizes = [24, 8], strides = [1, 1]} : vector<48x8xf32> to vector<24x8xf32>
    %172 = arith.truncf %171 : vector<24x8xf32> to vector<24x8xbf16>
    %cst_110 = arith.constant dense<0.000000e+00> : vector<24x8xf32>
    %173 = tpu.matmul %170, %172, %cst_110 {dimension_numbers = #tpu.dot_dimension_numbers<[1], [0], [0], [1], [0, 0, 1, 1], [], []>} : vector<24x24xbf16>, vector<24x8xbf16>, vector<24x8xf32> -> vector<24x8xf32>
    %174 = arith.truncf %173 : vector<24x8xf32> to vector<24x8xbf16>
    %cst_111 = arith.constant dense<0.000000e+00> : vector<24x32xf32>
    %175 = tpu.matmul %174, %168, %cst_111 {dimension_numbers = #tpu.dot_dimension_numbers<[1], [0], [0], [1], [0, 0, 1, 1], [], []>} : vector<24x8xbf16>, vector<8x32xbf16>, vector<24x32xf32> -> vector<24x32xf32>
    %176 = arith.addf %165, %175 : vector<24x32xf32>
    %177 = vector.extract_strided_slice %164 {offsets = [24, 0], sizes = [24, 24], strides = [1, 1]} : vector<192x24xf32> to vector<24x24xf32>
    %178 = arith.truncf %177 : vector<24x24xf32> to vector<24x24xbf16>
    %179 = vector.extract_strided_slice %58 {offsets = [24, 0], sizes = [24, 8], strides = [1, 1]} : vector<48x8xf32> to vector<24x8xf32>
    %180 = arith.truncf %179 : vector<24x8xf32> to vector<24x8xbf16>
    %cst_112 = arith.constant dense<0.000000e+00> : vector<24x8xf32>
    %181 = tpu.matmul %178, %180, %cst_112 {dimension_numbers = #tpu.dot_dimension_numbers<[1], [0], [0], [1], [0, 0, 1, 1], [], []>} : vector<24x24xbf16>, vector<24x8xbf16>, vector<24x8xf32> -> vector<24x8xf32>
    %182 = arith.truncf %181 : vector<24x8xf32> to vector<24x8xbf16>
    %cst_113 = arith.constant dense<0.000000e+00> : vector<24x32xf32>
    %183 = tpu.matmul %182, %168, %cst_113 {dimension_numbers = #tpu.dot_dimension_numbers<[1], [0], [0], [1], [0, 0, 1, 1], [], []>} : vector<24x8xbf16>, vector<8x32xbf16>, vector<24x32xf32> -> vector<24x32xf32>
    %184 = arith.addf %166, %183 : vector<24x32xf32>
    %c1_114 = arith.constant 1 : index
    %c0_115 = arith.constant 0 : index
    %c0_116 = arith.constant 0 : index
    %185 = vector.load %arg8[%c1_114, %c0_115, %c0_116] : memref<8x8x32xbf16, #tpu.memory_space<vmem>>, vector<1x8x32xbf16>
    %186 = vector.shape_cast %185 : vector<1x8x32xbf16> to vector<8x32xbf16>
    %187 = vector.extract_strided_slice %164 {offsets = [48, 0], sizes = [24, 24], strides = [1, 1]} : vector<192x24xf32> to vector<24x24xf32>
    %188 = arith.truncf %187 : vector<24x24xf32> to vector<24x24xbf16>
    %189 = vector.extract_strided_slice %87 {offsets = [0, 0], sizes = [24, 8], strides = [1, 1]} : vector<48x8xf32> to vector<24x8xf32>
    %190 = arith.truncf %189 : vector<24x8xf32> to vector<24x8xbf16>
    %cst_117 = arith.constant dense<0.000000e+00> : vector<24x8xf32>
    %191 = tpu.matmul %188, %190, %cst_117 {dimension_numbers = #tpu.dot_dimension_numbers<[1], [0], [0], [1], [0, 0, 1, 1], [], []>} : vector<24x24xbf16>, vector<24x8xbf16>, vector<24x8xf32> -> vector<24x8xf32>
    %192 = arith.truncf %191 : vector<24x8xf32> to vector<24x8xbf16>
    %cst_118 = arith.constant dense<0.000000e+00> : vector<24x32xf32>
    %193 = tpu.matmul %192, %186, %cst_118 {dimension_numbers = #tpu.dot_dimension_numbers<[1], [0], [0], [1], [0, 0, 1, 1], [], []>} : vector<24x8xbf16>, vector<8x32xbf16>, vector<24x32xf32> -> vector<24x32xf32>
    %194 = arith.addf %176, %193 : vector<24x32xf32>
    %195 = vector.extract_strided_slice %164 {offsets = [72, 0], sizes = [24, 24], strides = [1, 1]} : vector<192x24xf32> to vector<24x24xf32>
    %196 = arith.truncf %195 : vector<24x24xf32> to vector<24x24xbf16>
    %197 = vector.extract_strided_slice %87 {offsets = [24, 0], sizes = [24, 8], strides = [1, 1]} : vector<48x8xf32> to vector<24x8xf32>
    %198 = arith.truncf %197 : vector<24x8xf32> to vector<24x8xbf16>
    %cst_119 = arith.constant dense<0.000000e+00> : vector<24x8xf32>
    %199 = tpu.matmul %196, %198, %cst_119 {dimension_numbers = #tpu.dot_dimension_numbers<[1], [0], [0], [1], [0, 0, 1, 1], [], []>} : vector<24x24xbf16>, vector<24x8xbf16>, vector<24x8xf32> -> vector<24x8xf32>
    %200 = arith.truncf %199 : vector<24x8xf32> to vector<24x8xbf16>
    %cst_120 = arith.constant dense<0.000000e+00> : vector<24x32xf32>
    %201 = tpu.matmul %200, %186, %cst_120 {dimension_numbers = #tpu.dot_dimension_numbers<[1], [0], [0], [1], [0, 0, 1, 1], [], []>} : vector<24x8xbf16>, vector<8x32xbf16>, vector<24x32xf32> -> vector<24x32xf32>
    %202 = arith.addf %184, %201 : vector<24x32xf32>
    %c2_121 = arith.constant 2 : index
    %c0_122 = arith.constant 0 : index
    %c0_123 = arith.constant 0 : index
    %203 = vector.load %arg8[%c2_121, %c0_122, %c0_123] : memref<8x8x32xbf16, #tpu.memory_space<vmem>>, vector<1x8x32xbf16>
    %204 = vector.shape_cast %203 : vector<1x8x32xbf16> to vector<8x32xbf16>
    %205 = vector.extract_strided_slice %164 {offsets = [96, 0], sizes = [24, 24], strides = [1, 1]} : vector<192x24xf32> to vector<24x24xf32>
    %206 = arith.truncf %205 : vector<24x24xf32> to vector<24x24xbf16>
    %207 = vector.extract_strided_slice %116 {offsets = [0, 0], sizes = [24, 8], strides = [1, 1]} : vector<48x8xf32> to vector<24x8xf32>
    %208 = arith.truncf %207 : vector<24x8xf32> to vector<24x8xbf16>
    %cst_124 = arith.constant dense<0.000000e+00> : vector<24x8xf32>
    %209 = tpu.matmul %206, %208, %cst_124 {dimension_numbers = #tpu.dot_dimension_numbers<[1], [0], [0], [1], [0, 0, 1, 1], [], []>} : vector<24x24xbf16>, vector<24x8xbf16>, vector<24x8xf32> -> vector<24x8xf32>
    %210 = arith.truncf %209 : vector<24x8xf32> to vector<24x8xbf16>
    %cst_125 = arith.constant dense<0.000000e+00> : vector<24x32xf32>
    %211 = tpu.matmul %210, %204, %cst_125 {dimension_numbers = #tpu.dot_dimension_numbers<[1], [0], [0], [1], [0, 0, 1, 1], [], []>} : vector<24x8xbf16>, vector<8x32xbf16>, vector<24x32xf32> -> vector<24x32xf32>
    %212 = arith.addf %194, %211 : vector<24x32xf32>
    %213 = vector.extract_strided_slice %164 {offsets = [120, 0], sizes = [24, 24], strides = [1, 1]} : vector<192x24xf32> to vector<24x24xf32>
    %214 = arith.truncf %213 : vector<24x24xf32> to vector<24x24xbf16>
    %215 = vector.extract_strided_slice %116 {offsets = [24, 0], sizes = [24, 8], strides = [1, 1]} : vector<48x8xf32> to vector<24x8xf32>
    %216 = arith.truncf %215 : vector<24x8xf32> to vector<24x8xbf16>
    %cst_126 = arith.constant dense<0.000000e+00> : vector<24x8xf32>
    %217 = tpu.matmul %214, %216, %cst_126 {dimension_numbers = #tpu.dot_dimension_numbers<[1], [0], [0], [1], [0, 0, 1, 1], [], []>} : vector<24x24xbf16>, vector<24x8xbf16>, vector<24x8xf32> -> vector<24x8xf32>
    %218 = arith.truncf %217 : vector<24x8xf32> to vector<24x8xbf16>
    %cst_127 = arith.constant dense<0.000000e+00> : vector<24x32xf32>
    %219 = tpu.matmul %218, %204, %cst_127 {dimension_numbers = #tpu.dot_dimension_numbers<[1], [0], [0], [1], [0, 0, 1, 1], [], []>} : vector<24x8xbf16>, vector<8x32xbf16>, vector<24x32xf32> -> vector<24x32xf32>
    %220 = arith.addf %202, %219 : vector<24x32xf32>
    %c3_128 = arith.constant 3 : index
    %c0_129 = arith.constant 0 : index
    %c0_130 = arith.constant 0 : index
    %221 = vector.load %arg8[%c3_128, %c0_129, %c0_130] : memref<8x8x32xbf16, #tpu.memory_space<vmem>>, vector<1x8x32xbf16>
    %222 = vector.shape_cast %221 : vector<1x8x32xbf16> to vector<8x32xbf16>
    %223 = vector.extract_strided_slice %164 {offsets = [144, 0], sizes = [24, 24], strides = [1, 1]} : vector<192x24xf32> to vector<24x24xf32>
    %224 = arith.truncf %223 : vector<24x24xf32> to vector<24x24xbf16>
    %225 = vector.extract_strided_slice %145 {offsets = [0, 0], sizes = [24, 8], strides = [1, 1]} : vector<48x8xf32> to vector<24x8xf32>
    %226 = arith.truncf %225 : vector<24x8xf32> to vector<24x8xbf16>
    %cst_131 = arith.constant dense<0.000000e+00> : vector<24x8xf32>
    %227 = tpu.matmul %224, %226, %cst_131 {dimension_numbers = #tpu.dot_dimension_numbers<[1], [0], [0], [1], [0, 0, 1, 1], [], []>} : vector<24x24xbf16>, vector<24x8xbf16>, vector<24x8xf32> -> vector<24x8xf32>
    %228 = arith.truncf %227 : vector<24x8xf32> to vector<24x8xbf16>
    %cst_132 = arith.constant dense<0.000000e+00> : vector<24x32xf32>
    %229 = tpu.matmul %228, %222, %cst_132 {dimension_numbers = #tpu.dot_dimension_numbers<[1], [0], [0], [1], [0, 0, 1, 1], [], []>} : vector<24x8xbf16>, vector<8x32xbf16>, vector<24x32xf32> -> vector<24x32xf32>
    %230 = arith.addf %212, %229 : vector<24x32xf32>
    %231 = vector.extract_strided_slice %164 {offsets = [168, 0], sizes = [24, 24], strides = [1, 1]} : vector<192x24xf32> to vector<24x24xf32>
    %232 = arith.truncf %231 : vector<24x24xf32> to vector<24x24xbf16>
    %233 = vector.extract_strided_slice %145 {offsets = [24, 0], sizes = [24, 8], strides = [1, 1]} : vector<48x8xf32> to vector<24x8xf32>
    %234 = arith.truncf %233 : vector<24x8xf32> to vector<24x8xbf16>
    %cst_133 = arith.constant dense<0.000000e+00> : vector<24x8xf32>
    %235 = tpu.matmul %232, %234, %cst_133 {dimension_numbers = #tpu.dot_dimension_numbers<[1], [0], [0], [1], [0, 0, 1, 1], [], []>} : vector<24x24xbf16>, vector<24x8xbf16>, vector<24x8xf32> -> vector<24x8xf32>
    %236 = arith.truncf %235 : vector<24x8xf32> to vector<24x8xbf16>
    %cst_134 = arith.constant dense<0.000000e+00> : vector<24x32xf32>
    %237 = tpu.matmul %236, %222, %cst_134 {dimension_numbers = #tpu.dot_dimension_numbers<[1], [0], [0], [1], [0, 0, 1, 1], [], []>} : vector<24x8xbf16>, vector<8x32xbf16>, vector<24x32xf32> -> vector<24x32xf32>
    %238 = arith.addf %220, %237 : vector<24x32xf32>
    %239 = tpu.concatenate %230, %238 in 0 : vector<24x32xf32>, vector<24x32xf32> -> vector<48x32xf32>
    %240 = arith.addf %10, %239 : vector<48x32xf32>
    %c0_135 = arith.constant 0 : index
    %c0_136 = arith.constant 0 : index
    %c0_137 = arith.constant 0 : index
    %241 = vector.load %arg9[%c0_135, %c0_136, %c0_137] : memref<2x1x32xf32, #tpu.memory_space<vmem>>, vector<1x1x32xf32>
    %242 = vector.shape_cast %241 : vector<1x1x32xf32> to vector<1x32xf32>
    %243 = vector.broadcast %242 : vector<1x32xf32> to vector<48x32xf32>
    %244 = arith.addf %240, %243 : vector<48x32xf32>
    %c0_138 = arith.constant 0 : index
    %c0_139 = arith.constant 0 : index
    %c0_140 = arith.constant 0 : index
    %245 = vector.load %arg10[%c0_138, %c0_139, %c0_140] : memref<2x1x32xf32, #tpu.memory_space<vmem>>, vector<1x1x32xf32>
    %246 = vector.shape_cast %245 : vector<1x1x32xf32> to vector<1x32xf32>
    %c0_141 = arith.constant 0 : index
    %c0_142 = arith.constant 0 : index
    %c0_143 = arith.constant 0 : index
    %247 = vector.load %arg11[%c0_141, %c0_142, %c0_143] : memref<2x1x32xf32, #tpu.memory_space<vmem>>, vector<1x1x32xf32>
    %248 = vector.shape_cast %247 : vector<1x1x32xf32> to vector<1x32xf32>
    %cst_144 = arith.constant dense<0.000000e+00> : vector<48xf32>
    %249 = vector.multi_reduction <add>, %244, %cst_144 [1] : vector<48x32xf32> to vector<48xf32>
    %250 = vector.shape_cast %249 : vector<48xf32> to vector<48x1xf32>
    %cst_145 = arith.constant 3.200000e+01 : f32
    %251 = vector.broadcast %cst_145 : f32 to vector<48x1xf32>
    %252 = arith.divf %250, %251 : vector<48x1xf32>
    %253 = vector.broadcast %252 : vector<48x1xf32> to vector<48x32xf32>
    %254 = arith.subf %244, %253 : vector<48x32xf32>
    %255 = arith.mulf %254, %254 : vector<48x32xf32>
    %cst_146 = arith.constant dense<0.000000e+00> : vector<48xf32>
    %256 = vector.multi_reduction <add>, %255, %cst_146 [1] : vector<48x32xf32> to vector<48xf32>
    %257 = vector.shape_cast %256 : vector<48xf32> to vector<48x1xf32>
    %cst_147 = arith.constant 3.200000e+01 : f32
    %258 = vector.broadcast %cst_147 : f32 to vector<48x1xf32>
    %259 = arith.divf %257, %258 : vector<48x1xf32>
    %cst_148 = arith.constant 9.99999997E-7 : f32
    %260 = vector.broadcast %cst_148 : f32 to vector<48x1xf32>
    %261 = arith.addf %259, %260 : vector<48x1xf32>
    %262 = math.rsqrt %261 : vector<48x1xf32>
    %263 = vector.broadcast %262 : vector<48x1xf32> to vector<48x32xf32>
    %264 = arith.mulf %254, %263 : vector<48x32xf32>
    %265 = vector.broadcast %246 : vector<1x32xf32> to vector<48x32xf32>
    %266 = arith.mulf %264, %265 : vector<48x32xf32>
    %267 = vector.broadcast %248 : vector<1x32xf32> to vector<48x32xf32>
    %268 = arith.addf %266, %267 : vector<48x32xf32>
    %269 = arith.truncf %268 : vector<48x32xf32> to vector<48x32xbf16>
    %c0_149 = arith.constant 0 : index
    %c0_150 = arith.constant 0 : index
    %c0_151 = arith.constant 0 : index
    %270 = vector.load %arg12[%c0_149, %c0_150, %c0_151] : memref<2x32x128xbf16, #tpu.memory_space<vmem>>, vector<1x32x128xbf16>
    %271 = vector.shape_cast %270 : vector<1x32x128xbf16> to vector<32x128xbf16>
    %cst_152 = arith.constant dense<0.000000e+00> : vector<48x128xf32>
    %272 = tpu.matmul %269, %271, %cst_152 {dimension_numbers = #tpu.dot_dimension_numbers<[1], [0], [0], [1], [0, 0, 1, 1], [], []>} : vector<48x32xbf16>, vector<32x128xbf16>, vector<48x128xf32> -> vector<48x128xf32>
    %c0_153 = arith.constant 0 : index
    %c0_154 = arith.constant 0 : index
    %c0_155 = arith.constant 0 : index
    %273 = vector.load %arg13[%c0_153, %c0_154, %c0_155] : memref<2x1x128xf32, #tpu.memory_space<vmem>>, vector<1x1x128xf32>
    %274 = vector.shape_cast %273 : vector<1x1x128xf32> to vector<1x128xf32>
    %275 = vector.broadcast %274 : vector<1x128xf32> to vector<48x128xf32>
    %276 = arith.addf %272, %275 : vector<48x128xf32>
    %277 = arith.mulf %276, %276 : vector<48x128xf32>
    %278 = arith.mulf %276, %277 : vector<48x128xf32>
    %cst_156 = arith.constant 4.471500e-02 : f32
    %279 = vector.broadcast %cst_156 : f32 to vector<48x128xf32>
    %280 = arith.mulf %279, %278 : vector<48x128xf32>
    %281 = arith.addf %276, %280 : vector<48x128xf32>
    %cst_157 = arith.constant 0.797884583 : f32
    %282 = vector.broadcast %cst_157 : f32 to vector<48x128xf32>
    %283 = arith.mulf %282, %281 : vector<48x128xf32>
    %284 = math.tanh %283 : vector<48x128xf32>
    %cst_158 = arith.constant 1.000000e+00 : f32
    %285 = vector.broadcast %cst_158 : f32 to vector<48x128xf32>
    %286 = arith.addf %285, %284 : vector<48x128xf32>
    %cst_159 = arith.constant 5.000000e-01 : f32
    %287 = vector.broadcast %cst_159 : f32 to vector<48x128xf32>
    %288 = arith.mulf %287, %286 : vector<48x128xf32>
    %289 = arith.mulf %276, %288 : vector<48x128xf32>
    %290 = arith.truncf %289 : vector<48x128xf32> to vector<48x128xbf16>
    %c0_160 = arith.constant 0 : index
    %c0_161 = arith.constant 0 : index
    %c0_162 = arith.constant 0 : index
    %291 = vector.load %arg14[%c0_160, %c0_161, %c0_162] : memref<2x128x32xbf16, #tpu.memory_space<vmem>>, vector<1x128x32xbf16>
    %292 = vector.shape_cast %291 : vector<1x128x32xbf16> to vector<128x32xbf16>
    %cst_163 = arith.constant dense<0.000000e+00> : vector<48x32xf32>
    %293 = tpu.matmul %290, %292, %cst_163 {dimension_numbers = #tpu.dot_dimension_numbers<[1], [0], [0], [1], [0, 0, 1, 1], [], []>} : vector<48x128xbf16>, vector<128x32xbf16>, vector<48x32xf32> -> vector<48x32xf32>
    %c0_164 = arith.constant 0 : index
    %c0_165 = arith.constant 0 : index
    %c0_166 = arith.constant 0 : index
    %294 = vector.load %arg15[%c0_164, %c0_165, %c0_166] : memref<2x1x32xf32, #tpu.memory_space<vmem>>, vector<1x1x32xf32>
    %295 = vector.shape_cast %294 : vector<1x1x32xf32> to vector<1x32xf32>
    %296 = vector.broadcast %295 : vector<1x32xf32> to vector<48x32xf32>
    %297 = arith.addf %293, %296 : vector<48x32xf32>
    %298 = arith.addf %244, %297 : vector<48x32xf32>
    %c1_167 = arith.constant 1 : index
    %c0_168 = arith.constant 0 : index
    %c0_169 = arith.constant 0 : index
    %299 = vector.load %arg4[%c1_167, %c0_168, %c0_169] : memref<2x1x32xf32, #tpu.memory_space<vmem>>, vector<1x1x32xf32>
    %300 = vector.shape_cast %299 : vector<1x1x32xf32> to vector<1x32xf32>
    %c1_170 = arith.constant 1 : index
    %c0_171 = arith.constant 0 : index
    %c0_172 = arith.constant 0 : index
    %301 = vector.load %arg5[%c1_170, %c0_171, %c0_172] : memref<2x1x32xf32, #tpu.memory_space<vmem>>, vector<1x1x32xf32>
    %302 = vector.shape_cast %301 : vector<1x1x32xf32> to vector<1x32xf32>
    %cst_173 = arith.constant dense<0.000000e+00> : vector<48xf32>
    %303 = vector.multi_reduction <add>, %298, %cst_173 [1] : vector<48x32xf32> to vector<48xf32>
    %304 = vector.shape_cast %303 : vector<48xf32> to vector<48x1xf32>
    %cst_174 = arith.constant 3.200000e+01 : f32
    %305 = vector.broadcast %cst_174 : f32 to vector<48x1xf32>
    %306 = arith.divf %304, %305 : vector<48x1xf32>
    %307 = vector.broadcast %306 : vector<48x1xf32> to vector<48x32xf32>
    %308 = arith.subf %298, %307 : vector<48x32xf32>
    %309 = arith.mulf %308, %308 : vector<48x32xf32>
    %cst_175 = arith.constant dense<0.000000e+00> : vector<48xf32>
    %310 = vector.multi_reduction <add>, %309, %cst_175 [1] : vector<48x32xf32> to vector<48xf32>
    %311 = vector.shape_cast %310 : vector<48xf32> to vector<48x1xf32>
    %cst_176 = arith.constant 3.200000e+01 : f32
    %312 = vector.broadcast %cst_176 : f32 to vector<48x1xf32>
    %313 = arith.divf %311, %312 : vector<48x1xf32>
    %cst_177 = arith.constant 9.99999997E-7 : f32
    %314 = vector.broadcast %cst_177 : f32 to vector<48x1xf32>
    %315 = arith.addf %313, %314 : vector<48x1xf32>
    %316 = math.rsqrt %315 : vector<48x1xf32>
    %317 = vector.broadcast %316 : vector<48x1xf32> to vector<48x32xf32>
    %318 = arith.mulf %308, %317 : vector<48x32xf32>
    %319 = vector.broadcast %300 : vector<1x32xf32> to vector<48x32xf32>
    %320 = arith.mulf %318, %319 : vector<48x32xf32>
    %321 = vector.broadcast %302 : vector<1x32xf32> to vector<48x32xf32>
    %322 = arith.addf %320, %321 : vector<48x32xf32>
    %323 = arith.truncf %322 : vector<48x32xf32> to vector<48x32xbf16>
    %c12 = arith.constant 12 : index
    %c0_178 = arith.constant 0 : index
    %c0_179 = arith.constant 0 : index
    %324 = vector.load %arg6[%c12, %c0_178, %c0_179] : memref<24x32x8xbf16, #tpu.memory_space<vmem>>, vector<1x32x8xbf16>
    %325 = vector.shape_cast %324 : vector<1x32x8xbf16> to vector<32x8xbf16>
    %cst_180 = arith.constant dense<0.000000e+00> : vector<48x8xf32>
    %326 = tpu.matmul %323, %325, %cst_180 {dimension_numbers = #tpu.dot_dimension_numbers<[1], [0], [0], [1], [0, 0, 1, 1], [], []>} : vector<48x32xbf16>, vector<32x8xbf16>, vector<48x8xf32> -> vector<48x8xf32>
    %c12_181 = arith.constant 12 : index
    %c0_182 = arith.constant 0 : index
    %c0_183 = arith.constant 0 : index
    %327 = vector.load %arg7[%c12_181, %c0_182, %c0_183] : memref<24x1x8xf32, #tpu.memory_space<vmem>>, vector<1x1x8xf32>
    %328 = vector.shape_cast %327 : vector<1x1x8xf32> to vector<1x8xf32>
    %329 = vector.broadcast %328 : vector<1x8xf32> to vector<48x8xf32>
    %330 = arith.addf %326, %329 : vector<48x8xf32>
    %cst_184 = arith.constant 0.353553385 : f32
    %331 = vector.broadcast %cst_184 : f32 to vector<48x8xf32>
    %332 = arith.mulf %330, %331 : vector<48x8xf32>
    %c16 = arith.constant 16 : index
    %c0_185 = arith.constant 0 : index
    %c0_186 = arith.constant 0 : index
    %333 = vector.load %arg6[%c16, %c0_185, %c0_186] : memref<24x32x8xbf16, #tpu.memory_space<vmem>>, vector<1x32x8xbf16>
    %334 = vector.shape_cast %333 : vector<1x32x8xbf16> to vector<32x8xbf16>
    %cst_187 = arith.constant dense<0.000000e+00> : vector<48x8xf32>
    %335 = tpu.matmul %323, %334, %cst_187 {dimension_numbers = #tpu.dot_dimension_numbers<[1], [0], [0], [1], [0, 0, 1, 1], [], []>} : vector<48x32xbf16>, vector<32x8xbf16>, vector<48x8xf32> -> vector<48x8xf32>
    %c16_188 = arith.constant 16 : index
    %c0_189 = arith.constant 0 : index
    %c0_190 = arith.constant 0 : index
    %336 = vector.load %arg7[%c16_188, %c0_189, %c0_190] : memref<24x1x8xf32, #tpu.memory_space<vmem>>, vector<1x1x8xf32>
    %337 = vector.shape_cast %336 : vector<1x1x8xf32> to vector<1x8xf32>
    %338 = vector.broadcast %337 : vector<1x8xf32> to vector<48x8xf32>
    %339 = arith.addf %335, %338 : vector<48x8xf32>
    %c20 = arith.constant 20 : index
    %c0_191 = arith.constant 0 : index
    %c0_192 = arith.constant 0 : index
    %340 = vector.load %arg6[%c20, %c0_191, %c0_192] : memref<24x32x8xbf16, #tpu.memory_space<vmem>>, vector<1x32x8xbf16>
    %341 = vector.shape_cast %340 : vector<1x32x8xbf16> to vector<32x8xbf16>
    %cst_193 = arith.constant dense<0.000000e+00> : vector<48x8xf32>
    %342 = tpu.matmul %323, %341, %cst_193 {dimension_numbers = #tpu.dot_dimension_numbers<[1], [0], [0], [1], [0, 0, 1, 1], [], []>} : vector<48x32xbf16>, vector<32x8xbf16>, vector<48x8xf32> -> vector<48x8xf32>
    %c20_194 = arith.constant 20 : index
    %c0_195 = arith.constant 0 : index
    %c0_196 = arith.constant 0 : index
    %343 = vector.load %arg7[%c20_194, %c0_195, %c0_196] : memref<24x1x8xf32, #tpu.memory_space<vmem>>, vector<1x1x8xf32>
    %344 = vector.shape_cast %343 : vector<1x1x8xf32> to vector<1x8xf32>
    %345 = vector.broadcast %344 : vector<1x8xf32> to vector<48x8xf32>
    %346 = arith.addf %342, %345 : vector<48x8xf32>
    %347 = vector.extract_strided_slice %332 {offsets = [0, 0], sizes = [24, 8], strides = [1, 1]} : vector<48x8xf32> to vector<24x8xf32>
    %348 = vector.extract_strided_slice %339 {offsets = [0, 0], sizes = [24, 8], strides = [1, 1]} : vector<48x8xf32> to vector<24x8xf32>
    %cst_197 = arith.constant dense<0.000000e+00> : vector<24x24xf32>
    %349 = tpu.matmul %347, %348, %cst_197 {dimension_numbers = #tpu.dot_dimension_numbers<[1], [1], [0], [0], [0, 0, 1, 0], [], []>} : vector<24x8xf32>, vector<24x8xf32>, vector<24x24xf32> -> vector<24x24xf32>
    %350 = vector.extract_strided_slice %332 {offsets = [24, 0], sizes = [24, 8], strides = [1, 1]} : vector<48x8xf32> to vector<24x8xf32>
    %351 = vector.extract_strided_slice %339 {offsets = [24, 0], sizes = [24, 8], strides = [1, 1]} : vector<48x8xf32> to vector<24x8xf32>
    %cst_198 = arith.constant dense<0.000000e+00> : vector<24x24xf32>
    %352 = tpu.matmul %350, %351, %cst_198 {dimension_numbers = #tpu.dot_dimension_numbers<[1], [1], [0], [0], [0, 0, 1, 0], [], []>} : vector<24x8xf32>, vector<24x8xf32>, vector<24x24xf32> -> vector<24x24xf32>
    %c13 = arith.constant 13 : index
    %c0_199 = arith.constant 0 : index
    %c0_200 = arith.constant 0 : index
    %353 = vector.load %arg6[%c13, %c0_199, %c0_200] : memref<24x32x8xbf16, #tpu.memory_space<vmem>>, vector<1x32x8xbf16>
    %354 = vector.shape_cast %353 : vector<1x32x8xbf16> to vector<32x8xbf16>
    %cst_201 = arith.constant dense<0.000000e+00> : vector<48x8xf32>
    %355 = tpu.matmul %323, %354, %cst_201 {dimension_numbers = #tpu.dot_dimension_numbers<[1], [0], [0], [1], [0, 0, 1, 1], [], []>} : vector<48x32xbf16>, vector<32x8xbf16>, vector<48x8xf32> -> vector<48x8xf32>
    %c13_202 = arith.constant 13 : index
    %c0_203 = arith.constant 0 : index
    %c0_204 = arith.constant 0 : index
    %356 = vector.load %arg7[%c13_202, %c0_203, %c0_204] : memref<24x1x8xf32, #tpu.memory_space<vmem>>, vector<1x1x8xf32>
    %357 = vector.shape_cast %356 : vector<1x1x8xf32> to vector<1x8xf32>
    %358 = vector.broadcast %357 : vector<1x8xf32> to vector<48x8xf32>
    %359 = arith.addf %355, %358 : vector<48x8xf32>
    %cst_205 = arith.constant 0.353553385 : f32
    %360 = vector.broadcast %cst_205 : f32 to vector<48x8xf32>
    %361 = arith.mulf %359, %360 : vector<48x8xf32>
    %c17 = arith.constant 17 : index
    %c0_206 = arith.constant 0 : index
    %c0_207 = arith.constant 0 : index
    %362 = vector.load %arg6[%c17, %c0_206, %c0_207] : memref<24x32x8xbf16, #tpu.memory_space<vmem>>, vector<1x32x8xbf16>
    %363 = vector.shape_cast %362 : vector<1x32x8xbf16> to vector<32x8xbf16>
    %cst_208 = arith.constant dense<0.000000e+00> : vector<48x8xf32>
    %364 = tpu.matmul %323, %363, %cst_208 {dimension_numbers = #tpu.dot_dimension_numbers<[1], [0], [0], [1], [0, 0, 1, 1], [], []>} : vector<48x32xbf16>, vector<32x8xbf16>, vector<48x8xf32> -> vector<48x8xf32>
    %c17_209 = arith.constant 17 : index
    %c0_210 = arith.constant 0 : index
    %c0_211 = arith.constant 0 : index
    %365 = vector.load %arg7[%c17_209, %c0_210, %c0_211] : memref<24x1x8xf32, #tpu.memory_space<vmem>>, vector<1x1x8xf32>
    %366 = vector.shape_cast %365 : vector<1x1x8xf32> to vector<1x8xf32>
    %367 = vector.broadcast %366 : vector<1x8xf32> to vector<48x8xf32>
    %368 = arith.addf %364, %367 : vector<48x8xf32>
    %c21 = arith.constant 21 : index
    %c0_212 = arith.constant 0 : index
    %c0_213 = arith.constant 0 : index
    %369 = vector.load %arg6[%c21, %c0_212, %c0_213] : memref<24x32x8xbf16, #tpu.memory_space<vmem>>, vector<1x32x8xbf16>
    %370 = vector.shape_cast %369 : vector<1x32x8xbf16> to vector<32x8xbf16>
    %cst_214 = arith.constant dense<0.000000e+00> : vector<48x8xf32>
    %371 = tpu.matmul %323, %370, %cst_214 {dimension_numbers = #tpu.dot_dimension_numbers<[1], [0], [0], [1], [0, 0, 1, 1], [], []>} : vector<48x32xbf16>, vector<32x8xbf16>, vector<48x8xf32> -> vector<48x8xf32>
    %c21_215 = arith.constant 21 : index
    %c0_216 = arith.constant 0 : index
    %c0_217 = arith.constant 0 : index
    %372 = vector.load %arg7[%c21_215, %c0_216, %c0_217] : memref<24x1x8xf32, #tpu.memory_space<vmem>>, vector<1x1x8xf32>
    %373 = vector.shape_cast %372 : vector<1x1x8xf32> to vector<1x8xf32>
    %374 = vector.broadcast %373 : vector<1x8xf32> to vector<48x8xf32>
    %375 = arith.addf %371, %374 : vector<48x8xf32>
    %376 = vector.extract_strided_slice %361 {offsets = [0, 0], sizes = [24, 8], strides = [1, 1]} : vector<48x8xf32> to vector<24x8xf32>
    %377 = vector.extract_strided_slice %368 {offsets = [0, 0], sizes = [24, 8], strides = [1, 1]} : vector<48x8xf32> to vector<24x8xf32>
    %cst_218 = arith.constant dense<0.000000e+00> : vector<24x24xf32>
    %378 = tpu.matmul %376, %377, %cst_218 {dimension_numbers = #tpu.dot_dimension_numbers<[1], [1], [0], [0], [0, 0, 1, 0], [], []>} : vector<24x8xf32>, vector<24x8xf32>, vector<24x24xf32> -> vector<24x24xf32>
    %379 = vector.extract_strided_slice %361 {offsets = [24, 0], sizes = [24, 8], strides = [1, 1]} : vector<48x8xf32> to vector<24x8xf32>
    %380 = vector.extract_strided_slice %368 {offsets = [24, 0], sizes = [24, 8], strides = [1, 1]} : vector<48x8xf32> to vector<24x8xf32>
    %cst_219 = arith.constant dense<0.000000e+00> : vector<24x24xf32>
    %381 = tpu.matmul %379, %380, %cst_219 {dimension_numbers = #tpu.dot_dimension_numbers<[1], [1], [0], [0], [0, 0, 1, 0], [], []>} : vector<24x8xf32>, vector<24x8xf32>, vector<24x24xf32> -> vector<24x24xf32>
    %c14 = arith.constant 14 : index
    %c0_220 = arith.constant 0 : index
    %c0_221 = arith.constant 0 : index
    %382 = vector.load %arg6[%c14, %c0_220, %c0_221] : memref<24x32x8xbf16, #tpu.memory_space<vmem>>, vector<1x32x8xbf16>
    %383 = vector.shape_cast %382 : vector<1x32x8xbf16> to vector<32x8xbf16>
    %cst_222 = arith.constant dense<0.000000e+00> : vector<48x8xf32>
    %384 = tpu.matmul %323, %383, %cst_222 {dimension_numbers = #tpu.dot_dimension_numbers<[1], [0], [0], [1], [0, 0, 1, 1], [], []>} : vector<48x32xbf16>, vector<32x8xbf16>, vector<48x8xf32> -> vector<48x8xf32>
    %c14_223 = arith.constant 14 : index
    %c0_224 = arith.constant 0 : index
    %c0_225 = arith.constant 0 : index
    %385 = vector.load %arg7[%c14_223, %c0_224, %c0_225] : memref<24x1x8xf32, #tpu.memory_space<vmem>>, vector<1x1x8xf32>
    %386 = vector.shape_cast %385 : vector<1x1x8xf32> to vector<1x8xf32>
    %387 = vector.broadcast %386 : vector<1x8xf32> to vector<48x8xf32>
    %388 = arith.addf %384, %387 : vector<48x8xf32>
    %cst_226 = arith.constant 0.353553385 : f32
    %389 = vector.broadcast %cst_226 : f32 to vector<48x8xf32>
    %390 = arith.mulf %388, %389 : vector<48x8xf32>
    %c18 = arith.constant 18 : index
    %c0_227 = arith.constant 0 : index
    %c0_228 = arith.constant 0 : index
    %391 = vector.load %arg6[%c18, %c0_227, %c0_228] : memref<24x32x8xbf16, #tpu.memory_space<vmem>>, vector<1x32x8xbf16>
    %392 = vector.shape_cast %391 : vector<1x32x8xbf16> to vector<32x8xbf16>
    %cst_229 = arith.constant dense<0.000000e+00> : vector<48x8xf32>
    %393 = tpu.matmul %323, %392, %cst_229 {dimension_numbers = #tpu.dot_dimension_numbers<[1], [0], [0], [1], [0, 0, 1, 1], [], []>} : vector<48x32xbf16>, vector<32x8xbf16>, vector<48x8xf32> -> vector<48x8xf32>
    %c18_230 = arith.constant 18 : index
    %c0_231 = arith.constant 0 : index
    %c0_232 = arith.constant 0 : index
    %394 = vector.load %arg7[%c18_230, %c0_231, %c0_232] : memref<24x1x8xf32, #tpu.memory_space<vmem>>, vector<1x1x8xf32>
    %395 = vector.shape_cast %394 : vector<1x1x8xf32> to vector<1x8xf32>
    %396 = vector.broadcast %395 : vector<1x8xf32> to vector<48x8xf32>
    %397 = arith.addf %393, %396 : vector<48x8xf32>
    %c22 = arith.constant 22 : index
    %c0_233 = arith.constant 0 : index
    %c0_234 = arith.constant 0 : index
    %398 = vector.load %arg6[%c22, %c0_233, %c0_234] : memref<24x32x8xbf16, #tpu.memory_space<vmem>>, vector<1x32x8xbf16>
    %399 = vector.shape_cast %398 : vector<1x32x8xbf16> to vector<32x8xbf16>
    %cst_235 = arith.constant dense<0.000000e+00> : vector<48x8xf32>
    %400 = tpu.matmul %323, %399, %cst_235 {dimension_numbers = #tpu.dot_dimension_numbers<[1], [0], [0], [1], [0, 0, 1, 1], [], []>} : vector<48x32xbf16>, vector<32x8xbf16>, vector<48x8xf32> -> vector<48x8xf32>
    %c22_236 = arith.constant 22 : index
    %c0_237 = arith.constant 0 : index
    %c0_238 = arith.constant 0 : index
    %401 = vector.load %arg7[%c22_236, %c0_237, %c0_238] : memref<24x1x8xf32, #tpu.memory_space<vmem>>, vector<1x1x8xf32>
    %402 = vector.shape_cast %401 : vector<1x1x8xf32> to vector<1x8xf32>
    %403 = vector.broadcast %402 : vector<1x8xf32> to vector<48x8xf32>
    %404 = arith.addf %400, %403 : vector<48x8xf32>
    %405 = vector.extract_strided_slice %390 {offsets = [0, 0], sizes = [24, 8], strides = [1, 1]} : vector<48x8xf32> to vector<24x8xf32>
    %406 = vector.extract_strided_slice %397 {offsets = [0, 0], sizes = [24, 8], strides = [1, 1]} : vector<48x8xf32> to vector<24x8xf32>
    %cst_239 = arith.constant dense<0.000000e+00> : vector<24x24xf32>
    %407 = tpu.matmul %405, %406, %cst_239 {dimension_numbers = #tpu.dot_dimension_numbers<[1], [1], [0], [0], [0, 0, 1, 0], [], []>} : vector<24x8xf32>, vector<24x8xf32>, vector<24x24xf32> -> vector<24x24xf32>
    %408 = vector.extract_strided_slice %390 {offsets = [24, 0], sizes = [24, 8], strides = [1, 1]} : vector<48x8xf32> to vector<24x8xf32>
    %409 = vector.extract_strided_slice %397 {offsets = [24, 0], sizes = [24, 8], strides = [1, 1]} : vector<48x8xf32> to vector<24x8xf32>
    %cst_240 = arith.constant dense<0.000000e+00> : vector<24x24xf32>
    %410 = tpu.matmul %408, %409, %cst_240 {dimension_numbers = #tpu.dot_dimension_numbers<[1], [1], [0], [0], [0, 0, 1, 0], [], []>} : vector<24x8xf32>, vector<24x8xf32>, vector<24x24xf32> -> vector<24x24xf32>
    %c15 = arith.constant 15 : index
    %c0_241 = arith.constant 0 : index
    %c0_242 = arith.constant 0 : index
    %411 = vector.load %arg6[%c15, %c0_241, %c0_242] : memref<24x32x8xbf16, #tpu.memory_space<vmem>>, vector<1x32x8xbf16>
    %412 = vector.shape_cast %411 : vector<1x32x8xbf16> to vector<32x8xbf16>
    %cst_243 = arith.constant dense<0.000000e+00> : vector<48x8xf32>
    %413 = tpu.matmul %323, %412, %cst_243 {dimension_numbers = #tpu.dot_dimension_numbers<[1], [0], [0], [1], [0, 0, 1, 1], [], []>} : vector<48x32xbf16>, vector<32x8xbf16>, vector<48x8xf32> -> vector<48x8xf32>
    %c15_244 = arith.constant 15 : index
    %c0_245 = arith.constant 0 : index
    %c0_246 = arith.constant 0 : index
    %414 = vector.load %arg7[%c15_244, %c0_245, %c0_246] : memref<24x1x8xf32, #tpu.memory_space<vmem>>, vector<1x1x8xf32>
    %415 = vector.shape_cast %414 : vector<1x1x8xf32> to vector<1x8xf32>
    %416 = vector.broadcast %415 : vector<1x8xf32> to vector<48x8xf32>
    %417 = arith.addf %413, %416 : vector<48x8xf32>
    %cst_247 = arith.constant 0.353553385 : f32
    %418 = vector.broadcast %cst_247 : f32 to vector<48x8xf32>
    %419 = arith.mulf %417, %418 : vector<48x8xf32>
    %c19 = arith.constant 19 : index
    %c0_248 = arith.constant 0 : index
    %c0_249 = arith.constant 0 : index
    %420 = vector.load %arg6[%c19, %c0_248, %c0_249] : memref<24x32x8xbf16, #tpu.memory_space<vmem>>, vector<1x32x8xbf16>
    %421 = vector.shape_cast %420 : vector<1x32x8xbf16> to vector<32x8xbf16>
    %cst_250 = arith.constant dense<0.000000e+00> : vector<48x8xf32>
    %422 = tpu.matmul %323, %421, %cst_250 {dimension_numbers = #tpu.dot_dimension_numbers<[1], [0], [0], [1], [0, 0, 1, 1], [], []>} : vector<48x32xbf16>, vector<32x8xbf16>, vector<48x8xf32> -> vector<48x8xf32>
    %c19_251 = arith.constant 19 : index
    %c0_252 = arith.constant 0 : index
    %c0_253 = arith.constant 0 : index
    %423 = vector.load %arg7[%c19_251, %c0_252, %c0_253] : memref<24x1x8xf32, #tpu.memory_space<vmem>>, vector<1x1x8xf32>
    %424 = vector.shape_cast %423 : vector<1x1x8xf32> to vector<1x8xf32>
    %425 = vector.broadcast %424 : vector<1x8xf32> to vector<48x8xf32>
    %426 = arith.addf %422, %425 : vector<48x8xf32>
    %c23 = arith.constant 23 : index
    %c0_254 = arith.constant 0 : index
    %c0_255 = arith.constant 0 : index
    %427 = vector.load %arg6[%c23, %c0_254, %c0_255] : memref<24x32x8xbf16, #tpu.memory_space<vmem>>, vector<1x32x8xbf16>
    %428 = vector.shape_cast %427 : vector<1x32x8xbf16> to vector<32x8xbf16>
    %cst_256 = arith.constant dense<0.000000e+00> : vector<48x8xf32>
    %429 = tpu.matmul %323, %428, %cst_256 {dimension_numbers = #tpu.dot_dimension_numbers<[1], [0], [0], [1], [0, 0, 1, 1], [], []>} : vector<48x32xbf16>, vector<32x8xbf16>, vector<48x8xf32> -> vector<48x8xf32>
    %c23_257 = arith.constant 23 : index
    %c0_258 = arith.constant 0 : index
    %c0_259 = arith.constant 0 : index
    %430 = vector.load %arg7[%c23_257, %c0_258, %c0_259] : memref<24x1x8xf32, #tpu.memory_space<vmem>>, vector<1x1x8xf32>
    %431 = vector.shape_cast %430 : vector<1x1x8xf32> to vector<1x8xf32>
    %432 = vector.broadcast %431 : vector<1x8xf32> to vector<48x8xf32>
    %433 = arith.addf %429, %432 : vector<48x8xf32>
    %434 = vector.extract_strided_slice %419 {offsets = [0, 0], sizes = [24, 8], strides = [1, 1]} : vector<48x8xf32> to vector<24x8xf32>
    %435 = vector.extract_strided_slice %426 {offsets = [0, 0], sizes = [24, 8], strides = [1, 1]} : vector<48x8xf32> to vector<24x8xf32>
    %cst_260 = arith.constant dense<0.000000e+00> : vector<24x24xf32>
    %436 = tpu.matmul %434, %435, %cst_260 {dimension_numbers = #tpu.dot_dimension_numbers<[1], [1], [0], [0], [0, 0, 1, 0], [], []>} : vector<24x8xf32>, vector<24x8xf32>, vector<24x24xf32> -> vector<24x24xf32>
    %437 = vector.extract_strided_slice %419 {offsets = [24, 0], sizes = [24, 8], strides = [1, 1]} : vector<48x8xf32> to vector<24x8xf32>
    %438 = vector.extract_strided_slice %426 {offsets = [24, 0], sizes = [24, 8], strides = [1, 1]} : vector<48x8xf32> to vector<24x8xf32>
    %cst_261 = arith.constant dense<0.000000e+00> : vector<24x24xf32>
    %439 = tpu.matmul %437, %438, %cst_261 {dimension_numbers = #tpu.dot_dimension_numbers<[1], [1], [0], [0], [0, 0, 1, 0], [], []>} : vector<24x8xf32>, vector<24x8xf32>, vector<24x24xf32> -> vector<24x24xf32>
    %440 = tpu.concatenate %349, %352, %378, %381, %407, %410, %436, %439 in 0 : vector<24x24xf32>, vector<24x24xf32>, vector<24x24xf32>, vector<24x24xf32>, vector<24x24xf32>, vector<24x24xf32>, vector<24x24xf32>, vector<24x24xf32> -> vector<192x24xf32>
    %441 = vector.broadcast %5 : vector<1x24xf32> to vector<192x24xf32>
    %442 = arith.addf %440, %441 : vector<192x24xf32>
    %cst_262 = arith.constant dense<0xFF800000> : vector<192xf32>
    %443 = vector.multi_reduction <maximumf>, %442, %cst_262 [1] : vector<192x24xf32> to vector<192xf32>
    %444 = vector.shape_cast %443 : vector<192xf32> to vector<192x1xf32>
    %445 = vector.broadcast %444 : vector<192x1xf32> to vector<192x24xf32>
    %446 = arith.subf %442, %445 : vector<192x24xf32>
    %447 = math.exp %446 : vector<192x24xf32>
    %cst_263 = arith.constant dense<0.000000e+00> : vector<192xf32>
    %448 = vector.multi_reduction <add>, %447, %cst_263 [1] : vector<192x24xf32> to vector<192xf32>
    %449 = vector.shape_cast %448 : vector<192xf32> to vector<192x1xf32>
    %450 = tpu.reciprocal %449 {approx = true} : vector<192x1xf32> -> vector<192x1xf32>
    %451 = vector.broadcast %450 : vector<192x1xf32> to vector<192x24xf32>
    %452 = arith.mulf %447, %451 : vector<192x24xf32>
    %cst_264 = arith.constant 0.000000e+00 : f32
    %453 = vector.broadcast %cst_264 : f32 to vector<24x32xf32>
    %cst_265 = arith.constant 0.000000e+00 : f32
    %454 = vector.broadcast %cst_265 : f32 to vector<24x32xf32>
    %c4_266 = arith.constant 4 : index
    %c0_267 = arith.constant 0 : index
    %c0_268 = arith.constant 0 : index
    %455 = vector.load %arg8[%c4_266, %c0_267, %c0_268] : memref<8x8x32xbf16, #tpu.memory_space<vmem>>, vector<1x8x32xbf16>
    %456 = vector.shape_cast %455 : vector<1x8x32xbf16> to vector<8x32xbf16>
    %457 = vector.extract_strided_slice %452 {offsets = [0, 0], sizes = [24, 24], strides = [1, 1]} : vector<192x24xf32> to vector<24x24xf32>
    %458 = arith.truncf %457 : vector<24x24xf32> to vector<24x24xbf16>
    %459 = vector.extract_strided_slice %346 {offsets = [0, 0], sizes = [24, 8], strides = [1, 1]} : vector<48x8xf32> to vector<24x8xf32>
    %460 = arith.truncf %459 : vector<24x8xf32> to vector<24x8xbf16>
    %cst_269 = arith.constant dense<0.000000e+00> : vector<24x8xf32>
    %461 = tpu.matmul %458, %460, %cst_269 {dimension_numbers = #tpu.dot_dimension_numbers<[1], [0], [0], [1], [0, 0, 1, 1], [], []>} : vector<24x24xbf16>, vector<24x8xbf16>, vector<24x8xf32> -> vector<24x8xf32>
    %462 = arith.truncf %461 : vector<24x8xf32> to vector<24x8xbf16>
    %cst_270 = arith.constant dense<0.000000e+00> : vector<24x32xf32>
    %463 = tpu.matmul %462, %456, %cst_270 {dimension_numbers = #tpu.dot_dimension_numbers<[1], [0], [0], [1], [0, 0, 1, 1], [], []>} : vector<24x8xbf16>, vector<8x32xbf16>, vector<24x32xf32> -> vector<24x32xf32>
    %464 = arith.addf %453, %463 : vector<24x32xf32>
    %465 = vector.extract_strided_slice %452 {offsets = [24, 0], sizes = [24, 24], strides = [1, 1]} : vector<192x24xf32> to vector<24x24xf32>
    %466 = arith.truncf %465 : vector<24x24xf32> to vector<24x24xbf16>
    %467 = vector.extract_strided_slice %346 {offsets = [24, 0], sizes = [24, 8], strides = [1, 1]} : vector<48x8xf32> to vector<24x8xf32>
    %468 = arith.truncf %467 : vector<24x8xf32> to vector<24x8xbf16>
    %cst_271 = arith.constant dense<0.000000e+00> : vector<24x8xf32>
    %469 = tpu.matmul %466, %468, %cst_271 {dimension_numbers = #tpu.dot_dimension_numbers<[1], [0], [0], [1], [0, 0, 1, 1], [], []>} : vector<24x24xbf16>, vector<24x8xbf16>, vector<24x8xf32> -> vector<24x8xf32>
    %470 = arith.truncf %469 : vector<24x8xf32> to vector<24x8xbf16>
    %cst_272 = arith.constant dense<0.000000e+00> : vector<24x32xf32>
    %471 = tpu.matmul %470, %456, %cst_272 {dimension_numbers = #tpu.dot_dimension_numbers<[1], [0], [0], [1], [0, 0, 1, 1], [], []>} : vector<24x8xbf16>, vector<8x32xbf16>, vector<24x32xf32> -> vector<24x32xf32>
    %472 = arith.addf %454, %471 : vector<24x32xf32>
    %c5_273 = arith.constant 5 : index
    %c0_274 = arith.constant 0 : index
    %c0_275 = arith.constant 0 : index
    %473 = vector.load %arg8[%c5_273, %c0_274, %c0_275] : memref<8x8x32xbf16, #tpu.memory_space<vmem>>, vector<1x8x32xbf16>
    %474 = vector.shape_cast %473 : vector<1x8x32xbf16> to vector<8x32xbf16>
    %475 = vector.extract_strided_slice %452 {offsets = [48, 0], sizes = [24, 24], strides = [1, 1]} : vector<192x24xf32> to vector<24x24xf32>
    %476 = arith.truncf %475 : vector<24x24xf32> to vector<24x24xbf16>
    %477 = vector.extract_strided_slice %375 {offsets = [0, 0], sizes = [24, 8], strides = [1, 1]} : vector<48x8xf32> to vector<24x8xf32>
    %478 = arith.truncf %477 : vector<24x8xf32> to vector<24x8xbf16>
    %cst_276 = arith.constant dense<0.000000e+00> : vector<24x8xf32>
    %479 = tpu.matmul %476, %478, %cst_276 {dimension_numbers = #tpu.dot_dimension_numbers<[1], [0], [0], [1], [0, 0, 1, 1], [], []>} : vector<24x24xbf16>, vector<24x8xbf16>, vector<24x8xf32> -> vector<24x8xf32>
    %480 = arith.truncf %479 : vector<24x8xf32> to vector<24x8xbf16>
    %cst_277 = arith.constant dense<0.000000e+00> : vector<24x32xf32>
    %481 = tpu.matmul %480, %474, %cst_277 {dimension_numbers = #tpu.dot_dimension_numbers<[1], [0], [0], [1], [0, 0, 1, 1], [], []>} : vector<24x8xbf16>, vector<8x32xbf16>, vector<24x32xf32> -> vector<24x32xf32>
    %482 = arith.addf %464, %481 : vector<24x32xf32>
    %483 = vector.extract_strided_slice %452 {offsets = [72, 0], sizes = [24, 24], strides = [1, 1]} : vector<192x24xf32> to vector<24x24xf32>
    %484 = arith.truncf %483 : vector<24x24xf32> to vector<24x24xbf16>
    %485 = vector.extract_strided_slice %375 {offsets = [24, 0], sizes = [24, 8], strides = [1, 1]} : vector<48x8xf32> to vector<24x8xf32>
    %486 = arith.truncf %485 : vector<24x8xf32> to vector<24x8xbf16>
    %cst_278 = arith.constant dense<0.000000e+00> : vector<24x8xf32>
    %487 = tpu.matmul %484, %486, %cst_278 {dimension_numbers = #tpu.dot_dimension_numbers<[1], [0], [0], [1], [0, 0, 1, 1], [], []>} : vector<24x24xbf16>, vector<24x8xbf16>, vector<24x8xf32> -> vector<24x8xf32>
    %488 = arith.truncf %487 : vector<24x8xf32> to vector<24x8xbf16>
    %cst_279 = arith.constant dense<0.000000e+00> : vector<24x32xf32>
    %489 = tpu.matmul %488, %474, %cst_279 {dimension_numbers = #tpu.dot_dimension_numbers<[1], [0], [0], [1], [0, 0, 1, 1], [], []>} : vector<24x8xbf16>, vector<8x32xbf16>, vector<24x32xf32> -> vector<24x32xf32>
    %490 = arith.addf %472, %489 : vector<24x32xf32>
    %c6_280 = arith.constant 6 : index
    %c0_281 = arith.constant 0 : index
    %c0_282 = arith.constant 0 : index
    %491 = vector.load %arg8[%c6_280, %c0_281, %c0_282] : memref<8x8x32xbf16, #tpu.memory_space<vmem>>, vector<1x8x32xbf16>
    %492 = vector.shape_cast %491 : vector<1x8x32xbf16> to vector<8x32xbf16>
    %493 = vector.extract_strided_slice %452 {offsets = [96, 0], sizes = [24, 24], strides = [1, 1]} : vector<192x24xf32> to vector<24x24xf32>
    %494 = arith.truncf %493 : vector<24x24xf32> to vector<24x24xbf16>
    %495 = vector.extract_strided_slice %404 {offsets = [0, 0], sizes = [24, 8], strides = [1, 1]} : vector<48x8xf32> to vector<24x8xf32>
    %496 = arith.truncf %495 : vector<24x8xf32> to vector<24x8xbf16>
    %cst_283 = arith.constant dense<0.000000e+00> : vector<24x8xf32>
    %497 = tpu.matmul %494, %496, %cst_283 {dimension_numbers = #tpu.dot_dimension_numbers<[1], [0], [0], [1], [0, 0, 1, 1], [], []>} : vector<24x24xbf16>, vector<24x8xbf16>, vector<24x8xf32> -> vector<24x8xf32>
    %498 = arith.truncf %497 : vector<24x8xf32> to vector<24x8xbf16>
    %cst_284 = arith.constant dense<0.000000e+00> : vector<24x32xf32>
    %499 = tpu.matmul %498, %492, %cst_284 {dimension_numbers = #tpu.dot_dimension_numbers<[1], [0], [0], [1], [0, 0, 1, 1], [], []>} : vector<24x8xbf16>, vector<8x32xbf16>, vector<24x32xf32> -> vector<24x32xf32>
    %500 = arith.addf %482, %499 : vector<24x32xf32>
    %501 = vector.extract_strided_slice %452 {offsets = [120, 0], sizes = [24, 24], strides = [1, 1]} : vector<192x24xf32> to vector<24x24xf32>
    %502 = arith.truncf %501 : vector<24x24xf32> to vector<24x24xbf16>
    %503 = vector.extract_strided_slice %404 {offsets = [24, 0], sizes = [24, 8], strides = [1, 1]} : vector<48x8xf32> to vector<24x8xf32>
    %504 = arith.truncf %503 : vector<24x8xf32> to vector<24x8xbf16>
    %cst_285 = arith.constant dense<0.000000e+00> : vector<24x8xf32>
    %505 = tpu.matmul %502, %504, %cst_285 {dimension_numbers = #tpu.dot_dimension_numbers<[1], [0], [0], [1], [0, 0, 1, 1], [], []>} : vector<24x24xbf16>, vector<24x8xbf16>, vector<24x8xf32> -> vector<24x8xf32>
    %506 = arith.truncf %505 : vector<24x8xf32> to vector<24x8xbf16>
    %cst_286 = arith.constant dense<0.000000e+00> : vector<24x32xf32>
    %507 = tpu.matmul %506, %492, %cst_286 {dimension_numbers = #tpu.dot_dimension_numbers<[1], [0], [0], [1], [0, 0, 1, 1], [], []>} : vector<24x8xbf16>, vector<8x32xbf16>, vector<24x32xf32> -> vector<24x32xf32>
    %508 = arith.addf %490, %507 : vector<24x32xf32>
    %c7_287 = arith.constant 7 : index
    %c0_288 = arith.constant 0 : index
    %c0_289 = arith.constant 0 : index
    %509 = vector.load %arg8[%c7_287, %c0_288, %c0_289] : memref<8x8x32xbf16, #tpu.memory_space<vmem>>, vector<1x8x32xbf16>
    %510 = vector.shape_cast %509 : vector<1x8x32xbf16> to vector<8x32xbf16>
    %511 = vector.extract_strided_slice %452 {offsets = [144, 0], sizes = [24, 24], strides = [1, 1]} : vector<192x24xf32> to vector<24x24xf32>
    %512 = arith.truncf %511 : vector<24x24xf32> to vector<24x24xbf16>
    %513 = vector.extract_strided_slice %433 {offsets = [0, 0], sizes = [24, 8], strides = [1, 1]} : vector<48x8xf32> to vector<24x8xf32>
    %514 = arith.truncf %513 : vector<24x8xf32> to vector<24x8xbf16>
    %cst_290 = arith.constant dense<0.000000e+00> : vector<24x8xf32>
    %515 = tpu.matmul %512, %514, %cst_290 {dimension_numbers = #tpu.dot_dimension_numbers<[1], [0], [0], [1], [0, 0, 1, 1], [], []>} : vector<24x24xbf16>, vector<24x8xbf16>, vector<24x8xf32> -> vector<24x8xf32>
    %516 = arith.truncf %515 : vector<24x8xf32> to vector<24x8xbf16>
    %cst_291 = arith.constant dense<0.000000e+00> : vector<24x32xf32>
    %517 = tpu.matmul %516, %510, %cst_291 {dimension_numbers = #tpu.dot_dimension_numbers<[1], [0], [0], [1], [0, 0, 1, 1], [], []>} : vector<24x8xbf16>, vector<8x32xbf16>, vector<24x32xf32> -> vector<24x32xf32>
    %518 = arith.addf %500, %517 : vector<24x32xf32>
    %519 = vector.extract_strided_slice %452 {offsets = [168, 0], sizes = [24, 24], strides = [1, 1]} : vector<192x24xf32> to vector<24x24xf32>
    %520 = arith.truncf %519 : vector<24x24xf32> to vector<24x24xbf16>
    %521 = vector.extract_strided_slice %433 {offsets = [24, 0], sizes = [24, 8], strides = [1, 1]} : vector<48x8xf32> to vector<24x8xf32>
    %522 = arith.truncf %521 : vector<24x8xf32> to vector<24x8xbf16>
    %cst_292 = arith.constant dense<0.000000e+00> : vector<24x8xf32>
    %523 = tpu.matmul %520, %522, %cst_292 {dimension_numbers = #tpu.dot_dimension_numbers<[1], [0], [0], [1], [0, 0, 1, 1], [], []>} : vector<24x24xbf16>, vector<24x8xbf16>, vector<24x8xf32> -> vector<24x8xf32>
    %524 = arith.truncf %523 : vector<24x8xf32> to vector<24x8xbf16>
    %cst_293 = arith.constant dense<0.000000e+00> : vector<24x32xf32>
    %525 = tpu.matmul %524, %510, %cst_293 {dimension_numbers = #tpu.dot_dimension_numbers<[1], [0], [0], [1], [0, 0, 1, 1], [], []>} : vector<24x8xbf16>, vector<8x32xbf16>, vector<24x32xf32> -> vector<24x32xf32>
    %526 = arith.addf %508, %525 : vector<24x32xf32>
    %527 = tpu.concatenate %518, %526 in 0 : vector<24x32xf32>, vector<24x32xf32> -> vector<48x32xf32>
    %528 = arith.addf %298, %527 : vector<48x32xf32>
    %c1_294 = arith.constant 1 : index
    %c0_295 = arith.constant 0 : index
    %c0_296 = arith.constant 0 : index
    %529 = vector.load %arg9[%c1_294, %c0_295, %c0_296] : memref<2x1x32xf32, #tpu.memory_space<vmem>>, vector<1x1x32xf32>
    %530 = vector.shape_cast %529 : vector<1x1x32xf32> to vector<1x32xf32>
    %531 = vector.broadcast %530 : vector<1x32xf32> to vector<48x32xf32>
    %532 = arith.addf %528, %531 : vector<48x32xf32>
    %c1_297 = arith.constant 1 : index
    %c0_298 = arith.constant 0 : index
    %c0_299 = arith.constant 0 : index
    %533 = vector.load %arg10[%c1_297, %c0_298, %c0_299] : memref<2x1x32xf32, #tpu.memory_space<vmem>>, vector<1x1x32xf32>
    %534 = vector.shape_cast %533 : vector<1x1x32xf32> to vector<1x32xf32>
    %c1_300 = arith.constant 1 : index
    %c0_301 = arith.constant 0 : index
    %c0_302 = arith.constant 0 : index
    %535 = vector.load %arg11[%c1_300, %c0_301, %c0_302] : memref<2x1x32xf32, #tpu.memory_space<vmem>>, vector<1x1x32xf32>
    %536 = vector.shape_cast %535 : vector<1x1x32xf32> to vector<1x32xf32>
    %cst_303 = arith.constant dense<0.000000e+00> : vector<48xf32>
    %537 = vector.multi_reduction <add>, %532, %cst_303 [1] : vector<48x32xf32> to vector<48xf32>
    %538 = vector.shape_cast %537 : vector<48xf32> to vector<48x1xf32>
    %cst_304 = arith.constant 3.200000e+01 : f32
    %539 = vector.broadcast %cst_304 : f32 to vector<48x1xf32>
    %540 = arith.divf %538, %539 : vector<48x1xf32>
    %541 = vector.broadcast %540 : vector<48x1xf32> to vector<48x32xf32>
    %542 = arith.subf %532, %541 : vector<48x32xf32>
    %543 = arith.mulf %542, %542 : vector<48x32xf32>
    %cst_305 = arith.constant dense<0.000000e+00> : vector<48xf32>
    %544 = vector.multi_reduction <add>, %543, %cst_305 [1] : vector<48x32xf32> to vector<48xf32>
    %545 = vector.shape_cast %544 : vector<48xf32> to vector<48x1xf32>
    %cst_306 = arith.constant 3.200000e+01 : f32
    %546 = vector.broadcast %cst_306 : f32 to vector<48x1xf32>
    %547 = arith.divf %545, %546 : vector<48x1xf32>
    %cst_307 = arith.constant 9.99999997E-7 : f32
    %548 = vector.broadcast %cst_307 : f32 to vector<48x1xf32>
    %549 = arith.addf %547, %548 : vector<48x1xf32>
    %550 = math.rsqrt %549 : vector<48x1xf32>
    %551 = vector.broadcast %550 : vector<48x1xf32> to vector<48x32xf32>
    %552 = arith.mulf %542, %551 : vector<48x32xf32>
    %553 = vector.broadcast %534 : vector<1x32xf32> to vector<48x32xf32>
    %554 = arith.mulf %552, %553 : vector<48x32xf32>
    %555 = vector.broadcast %536 : vector<1x32xf32> to vector<48x32xf32>
    %556 = arith.addf %554, %555 : vector<48x32xf32>
    %557 = arith.truncf %556 : vector<48x32xf32> to vector<48x32xbf16>
    %c1_308 = arith.constant 1 : index
    %c0_309 = arith.constant 0 : index
    %c0_310 = arith.constant 0 : index
    %558 = vector.load %arg12[%c1_308, %c0_309, %c0_310] : memref<2x32x128xbf16, #tpu.memory_space<vmem>>, vector<1x32x128xbf16>
    %559 = vector.shape_cast %558 : vector<1x32x128xbf16> to vector<32x128xbf16>
    %cst_311 = arith.constant dense<0.000000e+00> : vector<48x128xf32>
    %560 = tpu.matmul %557, %559, %cst_311 {dimension_numbers = #tpu.dot_dimension_numbers<[1], [0], [0], [1], [0, 0, 1, 1], [], []>} : vector<48x32xbf16>, vector<32x128xbf16>, vector<48x128xf32> -> vector<48x128xf32>
    %c1_312 = arith.constant 1 : index
    %c0_313 = arith.constant 0 : index
    %c0_314 = arith.constant 0 : index
    %561 = vector.load %arg13[%c1_312, %c0_313, %c0_314] : memref<2x1x128xf32, #tpu.memory_space<vmem>>, vector<1x1x128xf32>
    %562 = vector.shape_cast %561 : vector<1x1x128xf32> to vector<1x128xf32>
    %563 = vector.broadcast %562 : vector<1x128xf32> to vector<48x128xf32>
    %564 = arith.addf %560, %563 : vector<48x128xf32>
    %565 = arith.mulf %564, %564 : vector<48x128xf32>
    %566 = arith.mulf %564, %565 : vector<48x128xf32>
    %cst_315 = arith.constant 4.471500e-02 : f32
    %567 = vector.broadcast %cst_315 : f32 to vector<48x128xf32>
    %568 = arith.mulf %567, %566 : vector<48x128xf32>
    %569 = arith.addf %564, %568 : vector<48x128xf32>
    %cst_316 = arith.constant 0.797884583 : f32
    %570 = vector.broadcast %cst_316 : f32 to vector<48x128xf32>
    %571 = arith.mulf %570, %569 : vector<48x128xf32>
    %572 = math.tanh %571 : vector<48x128xf32>
    %cst_317 = arith.constant 1.000000e+00 : f32
    %573 = vector.broadcast %cst_317 : f32 to vector<48x128xf32>
    %574 = arith.addf %573, %572 : vector<48x128xf32>
    %cst_318 = arith.constant 5.000000e-01 : f32
    %575 = vector.broadcast %cst_318 : f32 to vector<48x128xf32>
    %576 = arith.mulf %575, %574 : vector<48x128xf32>
    %577 = arith.mulf %564, %576 : vector<48x128xf32>
    %578 = arith.truncf %577 : vector<48x128xf32> to vector<48x128xbf16>
    %c1_319 = arith.constant 1 : index
    %c0_320 = arith.constant 0 : index
    %c0_321 = arith.constant 0 : index
    %579 = vector.load %arg14[%c1_319, %c0_320, %c0_321] : memref<2x128x32xbf16, #tpu.memory_space<vmem>>, vector<1x128x32xbf16>
    %580 = vector.shape_cast %579 : vector<1x128x32xbf16> to vector<128x32xbf16>
    %cst_322 = arith.constant dense<0.000000e+00> : vector<48x32xf32>
    %581 = tpu.matmul %578, %580, %cst_322 {dimension_numbers = #tpu.dot_dimension_numbers<[1], [0], [0], [1], [0, 0, 1, 1], [], []>} : vector<48x128xbf16>, vector<128x32xbf16>, vector<48x32xf32> -> vector<48x32xf32>
    %c1_323 = arith.constant 1 : index
    %c0_324 = arith.constant 0 : index
    %c0_325 = arith.constant 0 : index
    %582 = vector.load %arg15[%c1_323, %c0_324, %c0_325] : memref<2x1x32xf32, #tpu.memory_space<vmem>>, vector<1x1x32xf32>
    %583 = vector.shape_cast %582 : vector<1x1x32xf32> to vector<1x32xf32>
    %584 = vector.broadcast %583 : vector<1x32xf32> to vector<48x32xf32>
    %585 = arith.addf %581, %584 : vector<48x32xf32>
    %586 = arith.addf %532, %585 : vector<48x32xf32>
    %587 = vector.extract_strided_slice %586 {offsets = [0, 0], sizes = [1, 32], strides = [1, 1]} : vector<48x32xf32> to vector<1x32xf32>
    %588 = vector.extract_strided_slice %586 {offsets = [24, 0], sizes = [1, 32], strides = [1, 1]} : vector<48x32xf32> to vector<1x32xf32>
    %589 = tpu.concatenate %587, %588 in 0 : vector<1x32xf32>, vector<1x32xf32> -> vector<2x32xf32>
    %c0_326 = arith.constant 0 : index
    %c0_327 = arith.constant 0 : index
    %590 = vector.load %arg16[%c0_326, %c0_327] : memref<1x32xf32, #tpu.memory_space<vmem>>, vector<1x32xf32>
    %c0_328 = arith.constant 0 : index
    %c0_329 = arith.constant 0 : index
    %591 = vector.load %arg17[%c0_328, %c0_329] : memref<1x32xf32, #tpu.memory_space<vmem>>, vector<1x32xf32>
    %cst_330 = arith.constant dense<0.000000e+00> : vector<2xf32>
    %592 = vector.multi_reduction <add>, %589, %cst_330 [1] : vector<2x32xf32> to vector<2xf32>
    %593 = vector.shape_cast %592 : vector<2xf32> to vector<2x1xf32>
    %cst_331 = arith.constant 3.200000e+01 : f32
    %594 = vector.broadcast %cst_331 : f32 to vector<2x1xf32>
    %595 = arith.divf %593, %594 : vector<2x1xf32>
    %596 = vector.broadcast %595 : vector<2x1xf32> to vector<2x32xf32>
    %597 = arith.subf %589, %596 : vector<2x32xf32>
    %598 = arith.mulf %597, %597 : vector<2x32xf32>
    %cst_332 = arith.constant dense<0.000000e+00> : vector<2xf32>
    %599 = vector.multi_reduction <add>, %598, %cst_332 [1] : vector<2x32xf32> to vector<2xf32>
    %600 = vector.shape_cast %599 : vector<2xf32> to vector<2x1xf32>
    %cst_333 = arith.constant 3.200000e+01 : f32
    %601 = vector.broadcast %cst_333 : f32 to vector<2x1xf32>
    %602 = arith.divf %600, %601 : vector<2x1xf32>
    %cst_334 = arith.constant 9.99999997E-7 : f32
    %603 = vector.broadcast %cst_334 : f32 to vector<2x1xf32>
    %604 = arith.addf %602, %603 : vector<2x1xf32>
    %605 = math.rsqrt %604 : vector<2x1xf32>
    %606 = vector.broadcast %605 : vector<2x1xf32> to vector<2x32xf32>
    %607 = arith.mulf %597, %606 : vector<2x32xf32>
    %608 = vector.broadcast %590 : vector<1x32xf32> to vector<2x32xf32>
    %609 = arith.mulf %607, %608 : vector<2x32xf32>
    %610 = vector.broadcast %591 : vector<1x32xf32> to vector<2x32xf32>
    %611 = arith.addf %609, %610 : vector<2x32xf32>
    %612 = arith.truncf %611 : vector<2x32xf32> to vector<2x32xbf16>
    %c0_335 = arith.constant 0 : index
    %c0_336 = arith.constant 0 : index
    %613 = vector.load %arg18[%c0_335, %c0_336] : memref<32x128xbf16, #tpu.memory_space<vmem>>, vector<32x128xbf16>
    %cst_337 = arith.constant dense<0.000000e+00> : vector<2x128xf32>
    %614 = tpu.matmul %612, %613, %cst_337 {dimension_numbers = #tpu.dot_dimension_numbers<[1], [0], [0], [1], [0, 0, 1, 1], [], []>} : vector<2x32xbf16>, vector<32x128xbf16>, vector<2x128xf32> -> vector<2x128xf32>
    %c0_338 = arith.constant 0 : index
    %c0_339 = arith.constant 0 : index
    %615 = vector.load %arg19[%c0_338, %c0_339] : memref<1x128xf32, #tpu.memory_space<vmem>>, vector<1x128xf32>
    %616 = vector.broadcast %615 : vector<1x128xf32> to vector<2x128xf32>
    %617 = arith.addf %614, %616 : vector<2x128xf32>
    %c0_340 = arith.constant 0 : index
    %c0_341 = arith.constant 0 : index
    %c0_342 = arith.constant 0 : index
    %618 = vector.load %arg20[%c0_340, %c0_341, %c0_342] : memref<1x2x128xf32, #tpu.memory_space<vmem>>, vector<1x2x128xf32>
    %619 = vector.shape_cast %618 : vector<1x2x128xf32> to vector<2x128xf32>
    %620 = vector.shape_cast %617 : vector<2x128xf32> to vector<1x2x128xf32>
    tpu.vector_store %arg20[%c0_340, %c0_341, %c0_342], %620 {strides = array<i32>} : memref<1x2x128xf32, #tpu.memory_space<vmem>>, vector<1x2x128xf32>,
    return
  }
  func.func @transform_0(%arg0: i32) -> (i32, i32) {
    %c0_i32 = arith.constant 0 : i32
    %c0_i32_0 = arith.constant 0 : i32
    return %arg0, %c0_i32 : i32, i32
  }
  func.func @transform_1(%arg0: i32) -> (i32, i32) {
    %c0_i32 = arith.constant 0 : i32
    %c0_i32_0 = arith.constant 0 : i32
    %c0_i32_1 = arith.constant 0 : i32
    return %c0_i32, %c0_i32_0 : i32, i32
  }
  func.func @transform_2(%arg0: i32) -> (i32, i32) {
    %c0_i32 = arith.constant 0 : i32
    %c0_i32_0 = arith.constant 0 : i32
    %c0_i32_1 = arith.constant 0 : i32
    return %c0_i32, %c0_i32_0 : i32, i32
  }
  func.func @transform_3(%arg0: i32) -> (i32, i32, i32) {
    %c0_i32 = arith.constant 0 : i32
    %c0_i32_0 = arith.constant 0 : i32
    %c0_i32_1 = arith.constant 0 : i32
    %c0_i32_2 = arith.constant 0 : i32
    return %c0_i32, %c0_i32_0, %c0_i32_1 : i32, i32, i32
  }
  func.func @transform_4(%arg0: i32) -> (i32, i32, i32) {
    %c0_i32 = arith.constant 0 : i32
    %c0_i32_0 = arith.constant 0 : i32
    %c0_i32_1 = arith.constant 0 : i32
    %c0_i32_2 = arith.constant 0 : i32
    return %c0_i32, %c0_i32_0, %c0_i32_1 : i32, i32, i32
  }
  func.func @transform_5(%arg0: i32) -> (i32, i32, i32) {
    %c0_i32 = arith.constant 0 : i32
    %c0_i32_0 = arith.constant 0 : i32
    %c0_i32_1 = arith.constant 0 : i32
    %c0_i32_2 = arith.constant 0 : i32
    return %c0_i32, %c0_i32_0, %c0_i32_1 : i32, i32, i32
  }
  func.func @transform_6(%arg0: i32) -> (i32, i32, i32) {
    %c0_i32 = arith.constant 0 : i32
    %c0_i32_0 = arith.constant 0 : i32
    %c0_i32_1 = arith.constant 0 : i32
    %c0_i32_2 = arith.constant 0 : i32
    return %c0_i32, %c0_i32_0, %c0_i32_1 : i32, i32, i32
  }
  func.func @transform_7(%arg0: i32) -> (i32, i32, i32) {
    %c0_i32 = arith.constant 0 : i32
    %c0_i32_0 = arith.constant 0 : i32
    %c0_i32_1 = arith.constant 0 : i32
    %c0_i32_2 = arith.constant 0 : i32
    return %c0_i32, %c0_i32_0, %c0_i32_1 : i32, i32, i32
  }
  func.func @transform_8(%arg0: i32) -> (i32, i32, i32) {
    %c0_i32 = arith.constant 0 : i32
    %c0_i32_0 = arith.constant 0 : i32
    %c0_i32_1 = arith.constant 0 : i32
    %c0_i32_2 = arith.constant 0 : i32
    return %c0_i32, %c0_i32_0, %c0_i32_1 : i32, i32, i32
  }
  func.func @transform_9(%arg0: i32) -> (i32, i32, i32) {
    %c0_i32 = arith.constant 0 : i32
    %c0_i32_0 = arith.constant 0 : i32
    %c0_i32_1 = arith.constant 0 : i32
    %c0_i32_2 = arith.constant 0 : i32
    return %c0_i32, %c0_i32_0, %c0_i32_1 : i32, i32, i32
  }
  func.func @transform_10(%arg0: i32) -> (i32, i32, i32) {
    %c0_i32 = arith.constant 0 : i32
    %c0_i32_0 = arith.constant 0 : i32
    %c0_i32_1 = arith.constant 0 : i32
    %c0_i32_2 = arith.constant 0 : i32
    return %c0_i32, %c0_i32_0, %c0_i32_1 : i32, i32, i32
  }
  func.func @transform_11(%arg0: i32) -> (i32, i32, i32) {
    %c0_i32 = arith.constant 0 : i32
    %c0_i32_0 = arith.constant 0 : i32
    %c0_i32_1 = arith.constant 0 : i32
    %c0_i32_2 = arith.constant 0 : i32
    return %c0_i32, %c0_i32_0, %c0_i32_1 : i32, i32, i32
  }
  func.func @transform_12(%arg0: i32) -> (i32, i32, i32) {
    %c0_i32 = arith.constant 0 : i32
    %c0_i32_0 = arith.constant 0 : i32
    %c0_i32_1 = arith.constant 0 : i32
    %c0_i32_2 = arith.constant 0 : i32
    return %c0_i32, %c0_i32_0, %c0_i32_1 : i32, i32, i32
  }
  func.func @transform_13(%arg0: i32) -> (i32, i32, i32) {
    %c0_i32 = arith.constant 0 : i32
    %c0_i32_0 = arith.constant 0 : i32
    %c0_i32_1 = arith.constant 0 : i32
    %c0_i32_2 = arith.constant 0 : i32
    return %c0_i32, %c0_i32_0, %c0_i32_1 : i32, i32, i32
  }
  func.func @transform_14(%arg0: i32) -> (i32, i32, i32) {
    %c0_i32 = arith.constant 0 : i32
    %c0_i32_0 = arith.constant 0 : i32
    %c0_i32_1 = arith.constant 0 : i32
    %c0_i32_2 = arith.constant 0 : i32
    return %c0_i32, %c0_i32_0, %c0_i32_1 : i32, i32, i32
  }
  func.func @transform_15(%arg0: i32) -> (i32, i32) {
    %c0_i32 = arith.constant 0 : i32
    %c0_i32_0 = arith.constant 0 : i32
    %c0_i32_1 = arith.constant 0 : i32
    return %c0_i32, %c0_i32_0 : i32, i32
  }
  func.func @transform_16(%arg0: i32) -> (i32, i32) {
    %c0_i32 = arith.constant 0 : i32
    %c0_i32_0 = arith.constant 0 : i32
    %c0_i32_1 = arith.constant 0 : i32
    return %c0_i32, %c0_i32_0 : i32, i32
  }
  func.func @transform_17(%arg0: i32) -> (i32, i32) {
    %c0_i32 = arith.constant 0 : i32
    %c0_i32_0 = arith.constant 0 : i32
    %c0_i32_1 = arith.constant 0 : i32
    return %c0_i32, %c0_i32_0 : i32, i32
  }
  func.func @transform_18(%arg0: i32) -> (i32, i32) {
    %c0_i32 = arith.constant 0 : i32
    %c0_i32_0 = arith.constant 0 : i32
    %c0_i32_1 = arith.constant 0 : i32
    return %c0_i32, %c0_i32_0 : i32, i32
  }
  func.func @transform_19(%arg0: i32) -> (i32, i32, i32) {
    %c0_i32 = arith.constant 0 : i32
    %c0_i32_0 = arith.constant 0 : i32
    %c0_i32_1 = arith.constant 0 : i32
    return %arg0, %c0_i32, %c0_i32_0 : i32, i32, i32
  }
}

</mosaic_0001>

<llo_original>
// kernel: vit_forward.1
$region0: #{vit_forward.1}
  #allocation0 [shape = 'u32[]', space=smem, size = 0x4, offset = 0x4, fixed_abs, tag = 'smem constant byte address 0x4 - core index']
  #allocation1 [shape = 'u32[144,128]{1,0:T(1,128)}', space=vmem, size = 0x12000, scoped, tag = 'internal scratch']
  %s0 = inlined_call_operand.vmem [shape: bf16[48,128], index: 0, kind: input, shape index: {}]
  %s1 = inlined_call_operand.vmem [shape: bf16[128,32], index: 1, kind: input, shape index: {}]
  %s2 = inlined_call_operand.vmem [shape: f32[48,32], index: 2, kind: input, shape index: {}]
  %s3 = inlined_call_operand.vmem [shape: f32[2,1,32], index: 3, kind: input, shape index: {}]
  %s4 = inlined_call_operand.vmem [shape: f32[2,1,32], index: 4, kind: input, shape index: {}]
  %s5 = inlined_call_operand.vmem [shape: bf16[24,32,8], index: 5, kind: input, shape index: {}]
  %s6 = inlined_call_operand.vmem [shape: f32[24,1,8], index: 6, kind: input, shape index: {}]
  %s7 = inlined_call_operand.vmem [shape: bf16[8,8,32], index: 7, kind: input, shape index: {}]
  %s8 = inlined_call_operand.vmem [shape: f32[2,1,32], index: 8, kind: input, shape index: {}]
  %s9 = inlined_call_operand.vmem [shape: f32[2,1,32], index: 9, kind: input, shape index: {}]
  %s10 = inlined_call_operand.vmem [shape: f32[2,1,32], index: 10, kind: input, shape index: {}]
  %s11 = inlined_call_operand.vmem [shape: bf16[2,32,128], index: 11, kind: input, shape index: {}]
  %s12 = inlined_call_operand.vmem [shape: f32[2,1,128], index: 12, kind: input, shape index: {}]
  %s13 = inlined_call_operand.vmem [shape: bf16[2,128,32], index: 13, kind: input, shape index: {}]
  %s14 = inlined_call_operand.vmem [shape: f32[2,1,32], index: 14, kind: input, shape index: {}]
  %s15 = inlined_call_operand.vmem [shape: f32[1,32], index: 15, kind: input, shape index: {}]
  %s16 = inlined_call_operand.vmem [shape: f32[1,32], index: 16, kind: input, shape index: {}]
  %s17 = inlined_call_operand.vmem [shape: bf16[32,128], index: 17, kind: input, shape index: {}]
  %s18 = inlined_call_operand.vmem [shape: f32[1,128], index: 18, kind: input, shape index: {}]
  %s19 = inlined_call_operand.hbm [shape: f32[1,2,128], index: 19, kind: output, shape index: {}]
  %s20 = sld [smem:[#allocation0]]
  $region86: #{vit_forward.1} parent=0
    _
  %s22 = ssub.s32 1, %s20
  %s23 = scalar_select 0, %s22, %s20
  $region1: #{vit_forward.1} parent=0
    #allocation2 [shape = 'u8[1024]{0}', space=vmem, size = 0x400, scoped, tag = 'output window, operand 0, single buffered']
    #allocation3 [shape = 's32[1]{0}', space=sflag, size = 0x4, scoped, tag = 'scoped memory for vit_forward.1']
    %24 = vsyncpa [#allocation3], 0
    // Predicated region
    $region2: #{vit_forward.1} parent=1 // pred_check
      _
    $region3: #{vit_forward.1} parent=1 // pred_check_branch
      %26 = sbr.rel (0) target = $region5
    $region4: #{vit_forward.1} parent=1 // pred_region
      _
    $region5: #{vit_forward.1} parent=1 // pred_fallthru
      _
    // Predicated region
    $region6: #{vit_forward.1} parent=1 // pred_check
      _
    $region7: #{vit_forward.1} parent=1 // pred_check_branch
      %28 = sbr.rel (0) target = $region9
    $region8: #{vit_forward.1} parent=1 // pred_region
      _
    $region9: #{vit_forward.1} parent=1 // pred_fallthru
      _
    // Predicated region
    $region10: #{vit_forward.1} parent=1 // pred_check
      _
    $region11: #{vit_forward.1} parent=1 // pred_check_branch
      %30 = sbr.rel (0) target = $region13
    $region12: #{vit_forward.1} parent=1 // pred_region
      _
    $region13: #{vit_forward.1} parent=1 // pred_fallthru
      _
    // Predicated region
    $region14: #{vit_forward.1} parent=1 // pred_check
      _
    $region15: #{vit_forward.1} parent=1 // pred_check_branch
      %32 = sbr.rel (0) target = $region17
    $region16: #{vit_forward.1} parent=1 // pred_region
      _
    $region17: #{vit_forward.1} parent=1 // pred_fallthru
      _
    // Predicated region
    $region18: #{vit_forward.1} parent=1 // pred_check
      _
    $region19: #{vit_forward.1} parent=1 // pred_check_branch
      %34 = sbr.rel (0) target = $region21
    $region20: #{vit_forward.1} parent=1 // pred_region
      _
    $region21: #{vit_forward.1} parent=1 // pred_fallthru
      _
    // Predicated region
    $region22: #{vit_forward.1} parent=1 // pred_check
      _
    $region23: #{vit_forward.1} parent=1 // pred_check_branch
      %36 = sbr.rel (0) target = $region25
    $region24: #{vit_forward.1} parent=1 // pred_region
      _
    $region25: #{vit_forward.1} parent=1 // pred_fallthru
      _
    // Predicated region
    $region26: #{vit_forward.1} parent=1 // pred_check
      _
    $region27: #{vit_forward.1} parent=1 // pred_check_branch
      %38 = sbr.rel (0) target = $region29
    $region28: #{vit_forward.1} parent=1 // pred_region
      _
    $region29: #{vit_forward.1} parent=1 // pred_fallthru
      _
    // Predicated region
    $region30: #{vit_forward.1} parent=1 // pred_check
      _
    $region31: #{vit_forward.1} parent=1 // pred_check_branch
      %40 = sbr.rel (0) target = $region33
    $region32: #{vit_forward.1} parent=1 // pred_region
      _
    $region33: #{vit_forward.1} parent=1 // pred_fallthru
      _
    // Predicated region
    $region34: #{vit_forward.1} parent=1 // pred_check
      _
    $region35: #{vit_forward.1} parent=1 // pred_check_branch
      %42 = sbr.rel (0) target = $region37
    $region36: #{vit_forward.1} parent=1 // pred_region
      _
    $region37: #{vit_forward.1} parent=1 // pred_fallthru
      _
    // Predicated region
    $region38: #{vit_forward.1} parent=1 // pred_check
      _
    $region39: #{vit_forward.1} parent=1 // pred_check_branch
      %44 = sbr.rel (0) target = $region41
    $region40: #{vit_forward.1} parent=1 // pred_region
      _
    $region41: #{vit_forward.1} parent=1 // pred_fallthru
      _
    // Predicated region
    $region42: #{vit_forward.1} parent=1 // pred_check
      _
    $region43: #{vit_forward.1} parent=1 // pred_check_branch
      %46 = sbr.rel (0) target = $region45
    $region44: #{vit_forward.1} parent=1 // pred_region
      _
    $region45: #{vit_forward.1} parent=1 // pred_fallthru
      _
    // Predicated region
    $region46: #{vit_forward.1} parent=1 // pred_check
      _
    $region47: #{vit_forward.1} parent=1 // pred_check_branch
      %48 = sbr.rel (0) target = $region49
    $region48: #{vit_forward.1} parent=1 // pred_region
      _
    $region49: #{vit_forward.1} parent=1 // pred_fallthru
      _
    // Predicated region
    $region50: #{vit_forward.1} parent=1 // pred_check
      _
    $region51: #{vit_forward.1} parent=1 // pred_check_branch
      %50 = sbr.rel (0) target = $region53
    $region52: #{vit_forward.1} parent=1 // pred_region
      _
    $region53: #{vit_forward.1} parent=1 // pred_fallthru
      _
    // Predicated region
    $region54: #{vit_forward.1} parent=1 // pred_check
      _
    $region55: #{vit_forward.1} parent=1 // pred_check_branch
      %52 = sbr.rel (0) target = $region57
    $region56: #{vit_forward.1} parent=1 // pred_region
      _
    $region57: #{vit_forward.1} parent=1 // pred_fallthru
      _
    // Predicated region
    $region58: #{vit_forward.1} parent=1 // pred_check
      _
    $region59: #{vit_forward.1} parent=1 // pred_check_branch
      %54 = sbr.rel (0) target = $region61
    $region60: #{vit_forward.1} parent=1 // pred_region
      _
    $region61: #{vit_forward.1} parent=1 // pred_fallthru
      _
    // Predicated region
    $region62: #{vit_forward.1} parent=1 // pred_check
      _
    $region63: #{vit_forward.1} parent=1 // pred_check_branch
      %56 = sbr.rel (0) target = $region65
    $region64: #{vit_forward.1} parent=1 // pred_region
      _
    $region65: #{vit_forward.1} parent=1 // pred_fallthru
      _
    // Predicated region
    $region66: #{vit_forward.1} parent=1 // pred_check
      _
    $region67: #{vit_forward.1} parent=1 // pred_check_branch
      %58 = sbr.rel (0) target = $region69
    $region68: #{vit_forward.1} parent=1 // pred_region
      _
    $region69: #{vit_forward.1} parent=1 // pred_fallthru
      _
    // Predicated region
    $region70: #{vit_forward.1} parent=1 // pred_check
      _
    $region71: #{vit_forward.1} parent=1 // pred_check_branch
      %60 = sbr.rel (0) target = $region73
    $region72: #{vit_forward.1} parent=1 // pred_region
      _
    $region73: #{vit_forward.1} parent=1 // pred_fallthru
      _
    // Predicated region
    $region74: #{vit_forward.1} parent=1 // pred_check
      _
    $region75: #{vit_forward.1} parent=1 // pred_check_branch
      %62 = sbr.rel (0) target = $region77
    $region76: #{vit_forward.1} parent=1 // pred_region
      _
    $region77: #{vit_forward.1} parent=1 // pred_fallthru
      _
    %v64 = vlaneseq
    %v65 = vand.u32 %v64, 127
    %vm66 = vcmp.lt.s32.totalorder %v65, 17
    %v67 = vsel %vm66, 0.0, -1e+30
    %v68 = vld [vmem:[%s0] sm:$0xf]
    %v69 = vld [vmem:[%s0 + $0x4] sm:$0xf]
    %v70 = vld [vmem:[%s0 + $0x8] sm:$0xf]
    %v71 = vld [vmem:[%s0 + $0xc] sm:$0xf]
    %v72 = vld [vmem:[%s0 + $0x10] sm:$0xf]
    %v73 = vld [vmem:[%s0 + $0x14] sm:$0xf]
    %v74 = vld [vmem:[%s1] sm:$0xf]
    %v75 = vld [vmem:[%s1 + $0x4] sm:$0xf]
    %v76 = vld [vmem:[%s1 + $0x8] sm:$0xf]
    %v77 = vld [vmem:[%s1 + $0xc] sm:$0xf]
    %v78 = vld [vmem:[%s1 + $0x10] sm:$0xf]
    %v79 = vld [vmem:[%s1 + $0x14] sm:$0xf]
    %v80 = vld [vmem:[%s1 + $0x18] sm:$0xf]
    %v81 = vld [vmem:[%s1 + $0x1c] sm:$0xf]
    %v82 = vld [vmem:[%s1 + $0x20] sm:$0xf]
    %v83 = vld [vmem:[%s1 + $0x24] sm:$0xf]
    %v84 = vld [vmem:[%s1 + $0x28] sm:$0xf]
    %v85 = vld [vmem:[%s1 + $0x2c] sm:$0xf]
    %v86 = vld [vmem:[%s1 + $0x30] sm:$0xf]
    %v87 = vld [vmem:[%s1 + $0x34] sm:$0xf]
    %v88 = vld [vmem:[%s1 + $0x38] sm:$0xf]
    %v89 = vld [vmem:[%s1 + $0x3c] sm:$0xf]
    %v90 = vld [vmem:[%s2] sm:$0xff]
    %v91 = vld [vmem:[%s2 + $0x8] sm:$0xff]
    %v92 = vld [vmem:[%s2 + $0x10] sm:$0xff]
    %v93 = vld [vmem:[%s2 + $0x18] sm:$0xff]
    %v94 = vld [vmem:[%s2 + $0x20] sm:$0xff]
    %v95 = vld [vmem:[%s2 + $0x28] sm:$0xff]
    %v102 = vunpack.c.l.b16 %v68
    %v103 = vunpack.c.l.b16 %v69
    %v104 = vunpack.c.l.b16 %v70
    %v105 = vunpack.c.l.b16 %v71
    %v106 = vunpack.c.l.b16 %v72
    %v107 = vunpack.c.l.b16 %v73
    %v108 = vpack.c.b16 %v103, %v102
    %v109 = vpack.c.b16 %v105, %v104
    %v110 = vpack.c.b16 %v107, %v106
    %v130 = vunpack.c.l.b16 %v74
    %v131 = vunpack.c.l.b16 %v75
    %v132 = vunpack.c.l.b16 %v76
    %v133 = vunpack.c.l.b16 %v77
    %v134 = vunpack.c.l.b16 %v78
    %v135 = vunpack.c.l.b16 %v79
    %v136 = vunpack.c.l.b16 %v80
    %v137 = vunpack.c.l.b16 %v81
    %v138 = vunpack.c.l.b16 %v82
    %v139 = vunpack.c.l.b16 %v83
    %v140 = vunpack.c.l.b16 %v84
    %v141 = vunpack.c.l.b16 %v85
    %v142 = vunpack.c.l.b16 %v86
    %v143 = vunpack.c.l.b16 %v87
    %v144 = vunpack.c.l.b16 %v88
    %v145 = vunpack.c.l.b16 %v89
    %v146 = vpack.c.b16 %v131, %v130
    %v147 = vpack.c.b16 %v133, %v132
    %v148 = vpack.c.b16 %v135, %v134
    %v149 = vpack.c.b16 %v137, %v136
    %v150 = vpack.c.b16 %v139, %v138
    %v151 = vpack.c.b16 %v141, %v140
    %v152 = vpack.c.b16 %v143, %v142
    %v153 = vpack.c.b16 %v145, %v144
    %162 = vmatprep.subr.bf16.mxu0 0
    %163 = vmatpush1.bf16.msra.mxu0 %v146
    %164 = vmatprep.subr.bf16.mxu0 0
    %165 = vmatpush1.bf16.msra.mxu0 %v147
    %166 = vmatprep.subr.bf16.mxu0 0
    %167 = vmatpush1.bf16.msra.mxu0 %v148
    %168 = vmatprep.subr.bf16.mxu0 0
    %169 = vmatpush1.bf16.msra.mxu0 %v149
    %170 = vmatprep.subr.bf16.mxu0 0
    %171 = vmatpush1.bf16.msra.mxu0 %v150
    %172 = vmatprep.subr.bf16.mxu0 0
    %173 = vmatpush1.bf16.msra.mxu0 %v151
    %174 = vmatprep.subr.bf16.mxu0 0
    %175 = vmatpush1.bf16.msra.mxu0 %v152
    %176 = vmatprep.subr.bf16.mxu0 0
    %177 = vmatpush1.bf16.msra.mxu0 %v153
    %178 = vmatprep.subr.bf16.mxu0 0
    %179 = vmatpush1.bf16.msra.mxu0 0
    %180 = vmatprep.subr.bf16.mxu0 0
    %181 = vmatpush1.bf16.msra.mxu0 0
    %182 = vmatprep.subr.bf16.mxu0 0
    %183 = vmatpush1.bf16.msra.mxu0 0
    %184 = vmatprep.subr.bf16.mxu0 0
    %185 = vmatpush1.bf16.msra.mxu0 0
    %186 = vmatprep.subr.bf16.mxu0 0
    %187 = vmatpush1.bf16.msra.mxu0 0
    %188 = vmatprep.subr.bf16.mxu0 0
    %189 = vmatpush1.bf16.msra.mxu0 0
    %190 = vmatprep.subr.bf16.mxu0 0
    %191 = vmatpush1.bf16.msra.mxu0 0
    %192 = vmatprep.subr.bf16.mxu0 0
    %193 = vmatpush1.bf16.msra.mxu0 0
    %194 = vmatprep.mubr.bf16.mxu0 0
    %195 = vmatmul.mubr.bf16.gmra.mrb[0].mxu0 %v108
    %v196 = vpop.f32.mrb[0].mxu0
    %v197 = vadd.f32 %v90, %v196
    %v198 = vpop.f32.mrb[0].mxu0
    %v199 = vpop.f32.mrb[0].mxu0
    %v200 = vadd.f32 %v91, %v199
    %v201 = vpop.f32.mrb[0].mxu0
    %202 = vmatprep.mubr.bf16.mxu0 0
    %203 = vmatmul.mubr.bf16.gmra.mrb[0].mxu0 %v109
    %v204 = vpop.f32.mrb[0].mxu0
    %v205 = vadd.f32 %v92, %v204
    %v206 = vpop.f32.mrb[0].mxu0
    %v207 = vpop.f32.mrb[0].mxu0
    %v208 = vadd.f32 %v93, %v207
    %v209 = vpop.f32.mrb[0].mxu0
    %210 = vmatprep.mubr.bf16.mxu0 0
    %211 = vmatmul.mubr.bf16.gmra.mrb[0].mxu0 %v110
    %v212 = vpop.f32.mrb[0].mxu0
    %v213 = vadd.f32 %v94, %v212
    %v214 = vpop.f32.mrb[0].mxu0
    %v215 = vpop.f32.mrb[0].mxu0
    %v216 = vadd.f32 %v95, %v215
    %v217 = vpop.f32.mrb[0].mxu0
    %218 = vdwg.mxu0
    %v219 = vld [vmem:[%s3] sm:$0x1]
    %v220 = vld [vmem:[%s4] sm:$0x1]
    %vm221 = vcmask 261120
    %v222 = vsel %vm221, %v197, 0.0
    %223 = vadd.xlane.f32.xlu0 %v222
    %v224 = vpop.xlane.xlu0 %223
    %v225 = vsel %vm221, %v200, 0.0
    %226 = vadd.xlane.f32.xlu0 %v225
    %v227 = vpop.xlane.xlu0 %226
    %v228 = vsel %vm221, %v205, 0.0
    %229 = vadd.xlane.f32.xlu0 %v228
    %v230 = vpop.xlane.xlu0 %229
    %v231 = vsel %vm221, %v208, 0.0
    %232 = vadd.xlane.f32.xlu0 %v231
    %v233 = vpop.xlane.xlu0 %232
    %v234 = vsel %vm221, %v213, 0.0
    %235 = vadd.xlane.f32.xlu0 %v234
    %v236 = vpop.xlane.xlu0 %235
    %v237 = vsel %vm221, %v216, 0.0
    %238 = vadd.xlane.f32.xlu0 %v237
    %v239 = vpop.xlane.xlu0 %238
    %v240 = vrcp.pop 32.0
    %v241 = vmul.f32 %v224, %v240
    %v242 = vmul.f32 %v227, %v240
    %v243 = vmul.f32 %v230, %v240
    %v244 = vmul.f32 %v233, %v240
    %v245 = vmul.f32 %v236, %v240
    %v246 = vmul.f32 %v239, %v240
    %v247 = vsub.f32 %v197, %v241
    %v248 = vsub.f32 %v200, %v242
    %v249 = vsub.f32 %v205, %v243
    %v250 = vsub.f32 %v208, %v244
    %v251 = vsub.f32 %v213, %v245
    %v252 = vsub.f32 %v216, %v246
    %v253 = vmul.f32 %v247, %v247
    %v254 = vmul.f32 %v248, %v248
    %v255 = vmul.f32 %v249, %v249
    %v256 = vmul.f32 %v250, %v250
    %v257 = vmul.f32 %v251, %v251
    %v258 = vmul.f32 %v252, %v252
    %v259 = vsel %vm221, %v253, 0.0
    %260 = vadd.xlane.f32.xlu0 %v259
    %v261 = vpop.xlane.xlu0 %260
    %v262 = vsel %vm221, %v254, 0.0
    %263 = vadd.xlane.f32.xlu0 %v262
    %v264 = vpop.xlane.xlu0 %263
    %v265 = vsel %vm221, %v255, 0.0
    %266 = vadd.xlane.f32.xlu0 %v265
    %v267 = vpop.xlane.xlu0 %266
    %v268 = vsel %vm221, %v256, 0.0
    %269 = vadd.xlane.f32.xlu0 %v268
    %v270 = vpop.xlane.xlu0 %269
    %v271 = vsel %vm221, %v257, 0.0
    %272 = vadd.xlane.f32.xlu0 %v271
    %v273 = vpop.xlane.xlu0 %272
    %v274 = vsel %vm221, %v258, 0.0
    %275 = vadd.xlane.f32.xlu0 %v274
    %v276 = vpop.xlane.xlu0 %275
    %v277 = vmul.f32 %v261, %v240
    %v278 = vmul.f32 %v264, %v240
    %v279 = vmul.f32 %v267, %v240
    %v280 = vmul.f32 %v270, %v240
    %v281 = vmul.f32 %v273, %v240
    %v282 = vmul.f32 %v276, %v240
    %v283 = vadd.f32 %v277, 1e-06
    %v284 = vadd.f32 %v278, 1e-06
    %v285 = vadd.f32 %v279, 1e-06
    %v286 = vadd.f32 %v280, 1e-06
    %v287 = vadd.f32 %v281, 1e-06
    %v288 = vadd.f32 %v282, 1e-06
    %v289 = vrsqrt.pop %v283
    %v290 = vrsqrt.pop %v284
    %v291 = vrsqrt.pop %v285
    %v292 = vrsqrt.pop %v286
    %v293 = vrsqrt.pop %v287
    %v294 = vrsqrt.pop %v288
    %v295 = vmul.f32 %v247, %v289
    %v296 = vmul.f32 %v248, %v290
    %v297 = vmul.f32 %v249, %v291
    %v298 = vmul.f32 %v250, %v292
    %v299 = vmul.f32 %v251, %v293
    %v300 = vmul.f32 %v252, %v294
    %v302 = vlaneseq
    %v303 = vshrl.u32 %v302, 7
    %v304 = vsub.s32 0, %v303
    %v305 = vrot.slane %v219, %v304
    %v307 = vmul.f32 %v295, %v305
    %v308 = vmul.f32 %v296, %v305
    %v309 = vmul.f32 %v297, %v305
    %v310 = vmul.f32 %v298, %v305
    %v311 = vmul.f32 %v299, %v305
    %v312 = vmul.f32 %v300, %v305
    %v314 = vlaneseq
    %v315 = vshrl.u32 %v314, 7
    %v316 = vsub.s32 0, %v315
    %v317 = vrot.slane %v220, %v316
    %v319 = vadd.f32 %v307, %v317
    %v320 = vadd.f32 %v308, %v317
    %v321 = vadd.f32 %v309, %v317
    %v322 = vadd.f32 %v310, %v317
    %v323 = vadd.f32 %v311, %v317
    %v324 = vadd.f32 %v312, %v317
    %v325 = vpack.c.bf16 %v320, %v319
    %v326 = vpack.c.bf16 %v322, %v321
    %v327 = vpack.c.bf16 %v324, %v323
    %v328 = vld [vmem:[%s5] sm:$0xf]
    %v329 = vld [vmem:[%s5 + $0x4] sm:$0xf]
    %v330 = vld [vmem:[%s5 + $0x8] sm:$0xf]
    %v331 = vld [vmem:[%s5 + $0xc] sm:$0xf]
    %v332 = vld [vmem:[%s6] sm:$0x1]
    %v334 = vlaneseq
    %v335 = vshrl.u32 %v334, 7
    %v336 = vsub.s32 0, %v335
    %v337 = vrot.slane %v332, %v336
    %v343 = vunpack.c.l.b16 %v328
    %v344 = vunpack.c.l.b16 %v329
    %v345 = vunpack.c.l.b16 %v330
    %v346 = vunpack.c.l.b16 %v331
    %v347 = vpack.c.b16 %v344, %v343
    %v348 = vpack.c.b16 %v346, %v345
    %v352 = vsel %vm221, %v325, 0
    %v355 = vsel %vm221, %v326, 0
    %v358 = vsel %vm221, %v327, 0
    %360 = vmatprep.subr.bf16.mxu0 0
    %361 = vmatpush1.bf16.msra.mxu0 %v347
    %362 = vmatprep.subr.bf16.mxu0 0
    %363 = vmatpush1.bf16.msra.mxu0 %v348
    %364 = vmatprep.subr.bf16.mxu0 0
    %365 = vmatpush1.bf16.msra.mxu0 0
    %366 = vmatprep.subr.bf16.mxu0 0
    %367 = vmatpush1.bf16.msra.mxu0 0
    %368 = vmatprep.subr.bf16.mxu0 0
    %369 = vmatpush1.bf16.msra.mxu0 0
    %370 = vmatprep.subr.bf16.mxu0 0
    %371 = vmatpush1.bf16.msra.mxu0 0
    %372 = vmatprep.subr.bf16.mxu0 0
    %373 = vmatpush1.bf16.msra.mxu0 0
    %374 = vmatprep.subr.bf16.mxu0 0
    %375 = vmatpush1.bf16.msra.mxu0 0
    %376 = vmatprep.subr.bf16.mxu0 0
    %377 = vmatpush1.bf16.msra.mxu0 0
    %378 = vmatprep.subr.bf16.mxu0 0
    %379 = vmatpush1.bf16.msra.mxu0 0
    %380 = vmatprep.subr.bf16.mxu0 0
    %381 = vmatpush1.bf16.msra.mxu0 0
    %382 = vmatprep.subr.bf16.mxu0 0
    %383 = vmatpush1.bf16.msra.mxu0 0
    %384 = vmatprep.subr.bf16.mxu0 0
    %385 = vmatpush1.bf16.msra.mxu0 0
    %386 = vmatprep.subr.bf16.mxu0 0
    %387 = vmatpush1.bf16.msra.mxu0 0
    %388 = vmatprep.subr.bf16.mxu0 0
    %389 = vmatpush1.bf16.msra.mxu0 0
    %390 = vmatprep.subr.bf16.mxu0 0
    %391 = vmatpush1.bf16.msra.mxu0 0
    %392 = vmatprep.mubr.bf16.mxu0 0
    %393 = vmatmul.mubr.bf16.gmra.mrb[0].mxu0 %v352
    %v394 = vpop.f32.mrb[0].mxu0
    %v395 = vadd.f32 %v337, %v394
    %v396 = vpop.f32.mrb[0].mxu0
    %v397 = vpop.f32.mrb[0].mxu0
    %v398 = vadd.f32 %v337, %v397
    %v399 = vpop.f32.mrb[0].mxu0
    %400 = vmatprep.mubr.bf16.mxu0 0
    %401 = vmatmul.mubr.bf16.gmra.mrb[0].mxu0 %v355
    %v402 = vpop.f32.mrb[0].mxu0
    %v403 = vadd.f32 %v337, %v402
    %v404 = vpop.f32.mrb[0].mxu0
    %v405 = vpop.f32.mrb[0].mxu0
    %v406 = vadd.f32 %v337, %v405
    %v407 = vpop.f32.mrb[0].mxu0
    %408 = vmatprep.mubr.bf16.mxu0 0
    %409 = vmatmul.mubr.bf16.gmra.mrb[0].mxu0 %v358
    %v410 = vpop.f32.mrb[0].mxu0
    %v411 = vadd.f32 %v337, %v410
    %v412 = vpop.f32.mrb[0].mxu0
    %v413 = vpop.f32.mrb[0].mxu0
    %v414 = vadd.f32 %v337, %v413
    %v415 = vpop.f32.mrb[0].mxu0
    %416 = vdwg.mxu0
    %v417 = vmul.f32 %v395, 0.35355338
    %v418 = vmul.f32 %v398, 0.35355338
    %v419 = vmul.f32 %v403, 0.35355338
    %v420 = vmul.f32 %v406, 0.35355338
    %v421 = vmul.f32 %v411, 0.35355338
    %v422 = vmul.f32 %v414, 0.35355338
    %s423 = scalar_lea.vmem %s5, 64
    %v424 = vld [vmem:[%s423] sm:$0xf]
    %v425 = vld [vmem:[%s423 + $0x4] sm:$0xf]
    %v426 = vld [vmem:[%s423 + $0x8] sm:$0xf]
    %v427 = vld [vmem:[%s423 + $0xc] sm:$0xf]
    %s428 = scalar_lea.vmem %s6, 4
    %v429 = vld [vmem:[%s428] sm:$0x1]
    %v431 = vlaneseq
    %v432 = vshrl.u32 %v431, 7
    %v433 = vsub.s32 0, %v432
    %v434 = vrot.slane %v429, %v433
    %v440 = vunpack.c.l.b16 %v424
    %v441 = vunpack.c.l.b16 %v425
    %v442 = vunpack.c.l.b16 %v426
    %v443 = vunpack.c.l.b16 %v427
    %v444 = vpack.c.b16 %v441, %v440
    %v445 = vpack.c.b16 %v443, %v442
    %448 = vmatprep.subr.bf16.mxu0 0
    %449 = vmatpush1.bf16.msra.mxu0 %v444
    %450 = vmatprep.subr.bf16.mxu0 0
    %451 = vmatpush1.bf16.msra.mxu0 %v445
    %452 = vmatprep.subr.bf16.mxu0 0
    %453 = vmatpush1.bf16.msra.mxu0 0
    %454 = vmatprep.subr.bf16.mxu0 0
    %455 = vmatpush1.bf16.msra.mxu0 0
    %456 = vmatprep.subr.bf16.mxu0 0
    %457 = vmatpush1.bf16.msra.mxu0 0
    %458 = vmatprep.subr.bf16.mxu0 0
    %459 = vmatpush1.bf16.msra.mxu0 0
    %460 = vmatprep.subr.bf16.mxu0 0
    %461 = vmatpush1.bf16.msra.mxu0 0
    %462 = vmatprep.subr.bf16.mxu0 0
    %463 = vmatpush1.bf16.msra.mxu0 0
    %464 = vmatprep.subr.bf16.mxu0 0
    %465 = vmatpush1.bf16.msra.mxu0 0
    %466 = vmatprep.subr.bf16.mxu0 0
    %467 = vmatpush1.bf16.msra.mxu0 0
    %468 = vmatprep.subr.bf16.mxu0 0
    %469 = vmatpush1.bf16.msra.mxu0 0
    %470 = vmatprep.subr.bf16.mxu0 0
    %471 = vmatpush1.bf16.msra.mxu0 0
    %472 = vmatprep.subr.bf16.mxu0 0
    %473 = vmatpush1.bf16.msra.mxu0 0
    %474 = vmatprep.subr.bf16.mxu0 0
    %475 = vmatpush1.bf16.msra.mxu0 0
    %476 = vmatprep.subr.bf16.mxu0 0
    %477 = vmatpush1.bf16.msra.mxu0 0
    %478 = vmatprep.subr.bf16.mxu0 0
    %479 = vmatpush1.bf16.msra.mxu0 0
    %480 = vmatprep.mubr.bf16.mxu0 0
    %481 = vmatmul.mubr.bf16.gmra.mrb[0].mxu0 %v352
    %v482 = vpop.f32.mrb[0].mxu0
    %v483 = vadd.f32 %v434, %v482
    %v484 = vpop.f32.mrb[0].mxu0
    %v485 = vpop.f32.mrb[0].mxu0
    %v486 = vadd.f32 %v434, %v485
    %v487 = vpop.f32.mrb[0].mxu0
    %488 = vmatprep.mubr.bf16.mxu0 0
    %489 = vmatmul.mubr.bf16.gmra.mrb[0].mxu0 %v355
    %v490 = vpop.f32.mrb[0].mxu0
    %v491 = vadd.f32 %v434, %v490
    %v492 = vpop.f32.mrb[0].mxu0
    %v493 = vpop.f32.mrb[0].mxu0
    %v494 = vadd.f32 %v434, %v493
    %v495 = vpop.f32.mrb[0].mxu0
    %496 = vmatprep.mubr.bf16.mxu0 0
    %497 = vmatmul.mubr.bf16.gmra.mrb[0].mxu0 %v358
    %v498 = vpop.f32.mrb[0].mxu0
    %v499 = vadd.f32 %v434, %v498
    %v500 = vpop.f32.mrb[0].mxu0
    %v501 = vpop.f32.mrb[0].mxu0
    %v502 = vadd.f32 %v434, %v501
    %v503 = vpop.f32.mrb[0].mxu0
    %504 = vdwg.mxu0
    %s505 = scalar_lea.vmem %s5, 128
    %v506 = vld [vmem:[%s505] sm:$0xf]
    %v507 = vld [vmem:[%s505 + $0x4] sm:$0xf]
    %v508 = vld [vmem:[%s505 + $0x8] sm:$0xf]
    %v509 = vld [vmem:[%s505 + $0xc] sm:$0xf]
    %s510 = scalar_lea.vmem %s6, 8
    %v511 = vld [vmem:[%s510] sm:$0x1]
    %v513 = vlaneseq
    %v514 = vshrl.u32 %v513, 7
    %v515 = vsub.s32 0, %v514
    %v516 = vrot.slane %v511, %v515
    %v522 = vunpack.c.l.b16 %v506
    %v523 = vunpack.c.l.b16 %v507
    %v524 = vunpack.c.l.b16 %v508
    %v525 = vunpack.c.l.b16 %v509
    %v526 = vpack.c.b16 %v523, %v522
    %v527 = vpack.c.b16 %v525, %v524
    %530 = vmatprep.subr.bf16.mxu0 0
    %531 = vmatpush1.bf16.msra.mxu0 %v526
    %532 = vmatprep.subr.bf16.mxu0 0
    %533 = vmatpush1.bf16.msra.mxu0 %v527
    %534 = vmatprep.subr.bf16.mxu0 0
    %535 = vmatpush1.bf16.msra.mxu0 0
    %536 = vmatprep.subr.bf16.mxu0 0
    %537 = vmatpush1.bf16.msra.mxu0 0
    %538 = vmatprep.subr.bf16.mxu0 0
    %539 = vmatpush1.bf16.msra.mxu0 0
    %540 = vmatprep.subr.bf16.mxu0 0
    %541 = vmatpush1.bf16.msra.mxu0 0
    %542 = vmatprep.subr.bf16.mxu0 0
    %543 = vmatpush1.bf16.msra.mxu0 0
    %544 = vmatprep.subr.bf16.mxu0 0
    %545 = vmatpush1.bf16.msra.mxu0 0
    %546 = vmatprep.subr.bf16.mxu0 0
    %547 = vmatpush1.bf16.msra.mxu0 0
    %548 = vmatprep.subr.bf16.mxu0 0
    %549 = vmatpush1.bf16.msra.mxu0 0
    %550 = vmatprep.subr.bf16.mxu0 0
    %551 = vmatpush1.bf16.msra.mxu0 0
    %552 = vmatprep.subr.bf16.mxu0 0
    %553 = vmatpush1.bf16.msra.mxu0 0
    %554 = vmatprep.subr.bf16.mxu0 0
    %555 = vmatpush1.bf16.msra.mxu0 0
    %556 = vmatprep.subr.bf16.mxu0 0
    %557 = vmatpush1.bf16.msra.mxu0 0
    %558 = vmatprep.subr.bf16.mxu0 0
    %559 = vmatpush1.bf16.msra.mxu0 0
    %560 = vmatprep.subr.bf16.mxu0 0
    %561 = vmatpush1.bf16.msra.mxu0 0
    %562 = vmatprep.mubr.bf16.mxu0 0
    %563 = vmatmul.mubr.bf16.gmra.mrb[0].mxu0 %v352
    %v564 = vpop.f32.mrb[0].mxu0
    %v565 = vadd.f32 %v516, %v564
    %v566 = vpop.f32.mrb[0].mxu0
    %v567 = vpop.f32.mrb[0].mxu0
    %v568 = vadd.f32 %v516, %v567
    %v569 = vpop.f32.mrb[0].mxu0
    %570 = vmatprep.mubr.bf16.mxu0 0
    %571 = vmatmul.mubr.bf16.gmra.mrb[0].mxu0 %v355
    %v572 = vpop.f32.mrb[0].mxu0
    %v573 = vadd.f32 %v516, %v572
    %v574 = vpop.f32.mrb[0].mxu0
    %v575 = vpop.f32.mrb[0].mxu0
    %v576 = vadd.f32 %v516, %v575
    %v577 = vpop.f32.mrb[0].mxu0
    %578 = vmatprep.mubr.bf16.mxu0 0
    %579 = vmatmul.mubr.bf16.gmra.mrb[0].mxu0 %v358
    %v580 = vpop.f32.mrb[0].mxu0
    %v581 = vadd.f32 %v516, %v580
    %v582 = vpop.f32.mrb[0].mxu0
    %v583 = vpop.f32.mrb[0].mxu0
    %v584 = vadd.f32 %v516, %v583
    %v585 = vpop.f32.mrb[0].mxu0
    %586 = vdwg.mxu0
    %vm587 = vcmask 64512
    %v589 = vsel %vm587, %v417, 0
    %v592 = vsel %vm587, %v418, 0
    %v595 = vsel %vm587, %v419, 0
    %v598 = vsel %vm587, %v483, 0
    %v601 = vsel %vm587, %v486, 0
    %v604 = vsel %vm587, %v491, 0
    %606 = vmatprep.subr.mxu0 0.0
    %607 = vmatpush1.xpose.msra.mxu0 %v598
    %608 = vmatprep.subr.mxu0 0.0
    %609 = vmatpush1.xpose.msra.mxu0 %v601
    %610 = vmatprep.subr.mxu0 0.0
    %611 = vmatpush1.xpose.msra.mxu0 %v604
    %612 = vmatprep.subr.mxu0 0.0
    %613 = vmatpush1.xpose.msra.mxu0 0.0
    %614 = vmatprep.subr.mxu0 0.0
    %615 = vmatpush1.xpose.msra.mxu0 0.0
    %616 = vmatprep.subr.mxu0 0.0
    %617 = vmatpush1.xpose.msra.mxu0 0.0
    %618 = vmatprep.subr.mxu0 0.0
    %619 = vmatpush1.xpose.msra.mxu0 0.0
    %620 = vmatprep.subr.mxu0 0.0
    %621 = vmatpush1.xpose.msra.mxu0 0.0
    %622 = vmatprep.subr.mxu0 0.0
    %623 = vmatpush1.xpose.msra.mxu0 0.0
    %624 = vmatprep.subr.mxu0 0.0
    %625 = vmatpush1.xpose.msra.mxu0 0.0
    %626 = vmatprep.subr.mxu0 0.0
    %627 = vmatpush1.xpose.msra.mxu0 0.0
    %628 = vmatprep.subr.mxu0 0.0
    %629 = vmatpush1.xpose.msra.mxu0 0.0
    %630 = vmatprep.subr.mxu0 0.0
    %631 = vmatpush1.xpose.msra.mxu0 0.0
    %632 = vmatprep.subr.mxu0 0.0
    %633 = vmatpush1.xpose.msra.mxu0 0.0
    %634 = vmatprep.subr.mxu0 0.0
    %635 = vmatpush1.xpose.msra.mxu0 0.0
    %636 = vmatprep.subr.mxu0 0.0
    %637 = vmatpush1.xpose.msra.mxu0 0.0
    %638 = vmatprep.subr.mxu0 0.0
    %639 = vmatpush1.xpose.msra.mxu0 0.0
    %640 = vmatprep.subr.mxu0 0.0
    %641 = vmatpush1.xpose.msra.mxu0 0.0
    %642 = vmatprep.subr.mxu0 0.0
    %643 = vmatpush1.xpose.msra.mxu0 0.0
    %644 = vmatprep.subr.mxu0 0.0
    %645 = vmatpush1.xpose.msra.mxu0 0.0
    %646 = vmatprep.subr.mxu0 0.0
    %647 = vmatpush1.xpose.msra.mxu0 0.0
    %648 = vmatprep.subr.mxu0 0.0
    %649 = vmatpush1.xpose.msra.mxu0 0.0
    %650 = vmatprep.subr.mxu0 0.0
    %651 = vmatpush1.xpose.msra.mxu0 0.0
    %652 = vmatprep.subr.mxu0 0.0
    %653 = vmatpush1.xpose.msra.mxu0 0.0
    %654 = vmatprep.subr.mxu0 0.0
    %655 = vmatpush1.xpose.msra.mxu0 0.0
    %656 = vmatprep.subr.mxu0 0.0
    %657 = vmatpush1.xpose.msra.mxu0 0.0
    %658 = vmatprep.subr.mxu0 0.0
    %659 = vmatpush1.xpose.msra.mxu0 0.0
    %660 = vmatprep.subr.mxu0 0.0
    %661 = vmatpush1.xpose.msra.mxu0 0.0
    %662 = vmatprep.subr.mxu0 0.0
    %663 = vmatpush1.xpose.msra.mxu0 0.0
    %664 = vmatprep.subr.mxu0 0.0
    %665 = vmatpush1.xpose.msra.mxu0 0.0
    %666 = vmatprep.subr.mxu0 0.0
    %667 = vmatpush1.xpose.msra.mxu0 0.0
    %668 = vmatprep.subr.mxu0 0.0
    %669 = vmatpush1.xpose.msra.mxu0 0.0
    %670 = vmatprep.mubr.f32.mxu0 0.0
    %671 = vmatmul.mubr.f32.gmra.mrb[0].mxu0 %v589
    %v672 = vpop.f32.mrb[0].mxu0
    %v673 = vadd.f32 0.0, %v672
    %v674 = vpop.f32.mrb[0].mxu0
    %675 = vmatprep.mubr.f32.mxu0 0.0
    %676 = vmatmul.mubr.f32.gmra.mrb[0].mxu0 %v592
    %v677 = vpop.f32.mrb[0].mxu0
    %v678 = vadd.f32 0.0, %v677
    %v679 = vpop.f32.mrb[0].mxu0
    %680 = vmatprep.mubr.f32.mxu0 0.0
    %681 = vmatmul.mubr.f32.gmra.mrb[0].mxu0 %v595
    %v682 = vpop.f32.mrb[0].mxu0
    %v683 = vadd.f32 0.0, %v682
    %v684 = vpop.f32.mrb[0].mxu0
    %685 = vdwg.mxu0
    %v687 = vsel %vm587, %v420, 0
    %v690 = vsel %vm587, %v421, 0
    %v693 = vsel %vm587, %v422, 0
    %v696 = vsel %vm587, %v494, 0
    %v699 = vsel %vm587, %v499, 0
    %v702 = vsel %vm587, %v502, 0
    %704 = vmatprep.subr.mxu0 0.0
    %705 = vmatpush1.xpose.msra.mxu0 %v696
    %706 = vmatprep.subr.mxu0 0.0
    %707 = vmatpush1.xpose.msra.mxu0 %v699
    %708 = vmatprep.subr.mxu0 0.0
    %709 = vmatpush1.xpose.msra.mxu0 %v702
    %710 = vmatprep.subr.mxu0 0.0
    %711 = vmatpush1.xpose.msra.mxu0 0.0
    %712 = vmatprep.subr.mxu0 0.0
    %713 = vmatpush1.xpose.msra.mxu0 0.0
    %714 = vmatprep.subr.mxu0 0.0
    %715 = vmatpush1.xpose.msra.mxu0 0.0
    %716 = vmatprep.subr.mxu0 0.0
    %717 = vmatpush1.xpose.msra.mxu0 0.0
    %718 = vmatprep.subr.mxu0 0.0
    %719 = vmatpush1.xpose.msra.mxu0 0.0
    %720 = vmatprep.subr.mxu0 0.0
    %721 = vmatpush1.xpose.msra.mxu0 0.0
    %722 = vmatprep.subr.mxu0 0.0
    %723 = vmatpush1.xpose.msra.mxu0 0.0
    %724 = vmatprep.subr.mxu0 0.0
    %725 = vmatpush1.xpose.msra.mxu0 0.0
    %726 = vmatprep.subr.mxu0 0.0
    %727 = vmatpush1.xpose.msra.mxu0 0.0
    %728 = vmatprep.subr.mxu0 0.0
    %729 = vmatpush1.xpose.msra.mxu0 0.0
    %730 = vmatprep.subr.mxu0 0.0
    %731 = vmatpush1.xpose.msra.mxu0 0.0
    %732 = vmatprep.subr.mxu0 0.0
    %733 = vmatpush1.xpose.msra.mxu0 0.0
    %734 = vmatprep.subr.mxu0 0.0
    %735 = vmatpush1.xpose.msra.mxu0 0.0
    %736 = vmatprep.subr.mxu0 0.0
    %737 = vmatpush1.xpose.msra.mxu0 0.0
    %738 = vmatprep.subr.mxu0 0.0
    %739 = vmatpush1.xpose.msra.mxu0 0.0
    %740 = vmatprep.subr.mxu0 0.0
    %741 = vmatpush1.xpose.msra.mxu0 0.0
    %742 = vmatprep.subr.mxu0 0.0
    %743 = vmatpush1.xpose.msra.mxu0 0.0
    %744 = vmatprep.subr.mxu0 0.0
    %745 = vmatpush1.xpose.msra.mxu0 0.0
    %746 = vmatprep.subr.mxu0 0.0
    %747 = vmatpush1.xpose.msra.mxu0 0.0
    %748 = vmatprep.subr.mxu0 0.0
    %749 = vmatpush1.xpose.msra.mxu0 0.0
    %750 = vmatprep.subr.mxu0 0.0
    %751 = vmatpush1.xpose.msra.mxu0 0.0
    %752 = vmatprep.subr.mxu0 0.0
    %753 = vmatpush1.xpose.msra.mxu0 0.0
    %754 = vmatprep.subr.mxu0 0.0
    %755 = vmatpush1.xpose.msra.mxu0 0.0
    %756 = vmatprep.subr.mxu0 0.0
    %757 = vmatpush1.xpose.msra.mxu0 0.0
    %758 = vmatprep.subr.mxu0 0.0
    %759 = vmatpush1.xpose.msra.mxu0 0.0
    %760 = vmatprep.subr.mxu0 0.0
    %761 = vmatpush1.xpose.msra.mxu0 0.0
    %762 = vmatprep.subr.mxu0 0.0
    %763 = vmatpush1.xpose.msra.mxu0 0.0
    %764 = vmatprep.subr.mxu0 0.0
    %765 = vmatpush1.xpose.msra.mxu0 0.0
    %766 = vmatprep.subr.mxu0 0.0
    %767 = vmatpush1.xpose.msra.mxu0 0.0
    %768 = vmatprep.mubr.f32.mxu0 0.0
    %769 = vmatmul.mubr.f32.gmra.mrb[0].mxu0 %v687
    %v770 = vpop.f32.mrb[0].mxu0
    %v771 = vadd.f32 0.0, %v770
    %v772 = vpop.f32.mrb[0].mxu0
    %773 = vmatprep.mubr.f32.mxu0 0.0
    %774 = vmatmul.mubr.f32.gmra.mrb[0].mxu0 %v690
    %v775 = vpop.f32.mrb[0].mxu0
    %v776 = vadd.f32 0.0, %v775
    %v777 = vpop.f32.mrb[0].mxu0
    %778 = vmatprep.mubr.f32.mxu0 0.0
    %779 = vmatmul.mubr.f32.gmra.mrb[0].mxu0 %v693
    %v780 = vpop.f32.mrb[0].mxu0
    %v781 = vadd.f32 0.0, %v780
    %v782 = vpop.f32.mrb[0].mxu0
    %783 = vdwg.mxu0
    %s784 = scalar_lea.vmem %s5, 16
    %v785 = vld [vmem:[%s784] sm:$0xf]
    %v786 = vld [vmem:[%s784 + $0x4] sm:$0xf]
    %v787 = vld [vmem:[%s784 + $0x8] sm:$0xf]
    %v788 = vld [vmem:[%s784 + $0xc] sm:$0xf]
    %s789 = scalar_lea.vmem %s6, 1
    %v790 = vld [vmem:[%s789] sm:$0x1]
    %v792 = vlaneseq
    %v793 = vshrl.u32 %v792, 7
    %v794 = vsub.s32 0, %v793
    %v795 = vrot.slane %v790, %v794
    %v801 = vunpack.c.l.b16 %v785
    %v802 = vunpack.c.l.b16 %v786
    %v803 = vunpack.c.l.b16 %v787
    %v804 = vunpack.c.l.b16 %v788
    %v805 = vpack.c.b16 %v802, %v801
    %v806 = vpack.c.b16 %v804, %v803
    %809 = vmatprep.subr.bf16.mxu0 0
    %810 = vmatpush1.bf16.msra.mxu0 %v805
    %811 = vmatprep.subr.bf16.mxu0 0
    %812 = vmatpush1.bf16.msra.mxu0 %v806
    %813 = vmatprep.subr.bf16.mxu0 0
    %814 = vmatpush1.bf16.msra.mxu0 0
    %815 = vmatprep.subr.bf16.mxu0 0
    %816 = vmatpush1.bf16.msra.mxu0 0
    %817 = vmatprep.subr.bf16.mxu0 0
    %818 = vmatpush1.bf16.msra.mxu0 0
    %819 = vmatprep.subr.bf16.mxu0 0
    %820 = vmatpush1.bf16.msra.mxu0 0
    %821 = vmatprep.subr.bf16.mxu0 0
    %822 = vmatpush1.bf16.msra.mxu0 0
    %823 = vmatprep.subr.bf16.mxu0 0
    %824 = vmatpush1.bf16.msra.mxu0 0
    %825 = vmatprep.subr.bf16.mxu0 0
    %826 = vmatpush1.bf16.msra.mxu0 0
    %827 = vmatprep.subr.bf16.mxu0 0
    %828 = vmatpush1.bf16.msra.mxu0 0
    %829 = vmatprep.subr.bf16.mxu0 0
    %830 = vmatpush1.bf16.msra.mxu0 0
    %831 = vmatprep.subr.bf16.mxu0 0
    %832 = vmatpush1.bf16.msra.mxu0 0
    %833 = vmatprep.subr.bf16.mxu0 0
    %834 = vmatpush1.bf16.msra.mxu0 0
    %835 = vmatprep.subr.bf16.mxu0 0
    %836 = vmatpush1.bf16.msra.mxu0 0
    %837 = vmatprep.subr.bf16.mxu0 0
    %838 = vmatpush1.bf16.msra.mxu0 0
    %839 = vmatprep.subr.bf16.mxu0 0
    %840 = vmatpush1.bf16.msra.mxu0 0
    %841 = vmatprep.mubr.bf16.mxu0 0
    %842 = vmatmul.mubr.bf16.gmra.mrb[0].mxu0 %v352
    %v843 = vpop.f32.mrb[0].mxu0
    %v844 = vadd.f32 %v795, %v843
    %v845 = vpop.f32.mrb[0].mxu0
    %v846 = vpop.f32.mrb[0].mxu0
    %v847 = vadd.f32 %v795, %v846
    %v848 = vpop.f32.mrb[0].mxu0
    %849 = vmatprep.mubr.bf16.mxu0 0
    %850 = vmatmul.mubr.bf16.gmra.mrb[0].mxu0 %v355
    %v851 = vpop.f32.mrb[0].mxu0
    %v852 = vadd.f32 %v795, %v851
    %v853 = vpop.f32.mrb[0].mxu0
    %v854 = vpop.f32.mrb[0].mxu0
    %v855 = vadd.f32 %v795, %v854
    %v856 = vpop.f32.mrb[0].mxu0
    %857 = vmatprep.mubr.bf16.mxu0 0
    %858 = vmatmul.mubr.bf16.gmra.mrb[0].mxu0 %v358
    %v859 = vpop.f32.mrb[0].mxu0
    %v860 = vadd.f32 %v795, %v859
    %v861 = vpop.f32.mrb[0].mxu0
    %v862 = vpop.f32.mrb[0].mxu0
    %v863 = vadd.f32 %v795, %v862
    %v864 = vpop.f32.mrb[0].mxu0
    %865 = vdwg.mxu0
    %v866 = vmul.f32 %v844, 0.35355338
    %v867 = vmul.f32 %v847, 0.35355338
    %v868 = vmul.f32 %v852, 0.35355338
    %v869 = vmul.f32 %v855, 0.35355338
    %v870 = vmul.f32 %v860, 0.35355338
    %v871 = vmul.f32 %v863, 0.35355338
    %s872 = scalar_lea.vmem %s5, 80
    %v873 = vld [vmem:[%s872] sm:$0xf]
    %v874 = vld [vmem:[%s872 + $0x4] sm:$0xf]
    %v875 = vld [vmem:[%s872 + $0x8] sm:$0xf]
    %v876 = vld [vmem:[%s872 + $0xc] sm:$0xf]
    %s877 = scalar_lea.vmem %s6, 5
    %v878 = vld [vmem:[%s877] sm:$0x1]
    %v880 = vlaneseq
    %v881 = vshrl.u32 %v880, 7
    %v882 = vsub.s32 0, %v881
    %v883 = vrot.slane %v878, %v882
    %v889 = vunpack.c.l.b16 %v873
    %v890 = vunpack.c.l.b16 %v874
    %v891 = vunpack.c.l.b16 %v875
    %v892 = vunpack.c.l.b16 %v876
    %v893 = vpack.c.b16 %v890, %v889
    %v894 = vpack.c.b16 %v892, %v891
    %897 = vmatprep.subr.bf16.mxu0 0
    %898 = vmatpush1.bf16.msra.mxu0 %v893
    %899 = vmatprep.subr.bf16.mxu0 0
    %900 = vmatpush1.bf16.msra.mxu0 %v894
    %901 = vmatprep.subr.bf16.mxu0 0
    %902 = vmatpush1.bf16.msra.mxu0 0
    %903 = vmatprep.subr.bf16.mxu0 0
    %904 = vmatpush1.bf16.msra.mxu0 0
    %905 = vmatprep.subr.bf16.mxu0 0
    %906 = vmatpush1.bf16.msra.mxu0 0
    %907 = vmatprep.subr.bf16.mxu0 0
    %908 = vmatpush1.bf16.msra.mxu0 0
    %909 = vmatprep.subr.bf16.mxu0 0
    %910 = vmatpush1.bf16.msra.mxu0 0
    %911 = vmatprep.subr.bf16.mxu0 0
    %912 = vmatpush1.bf16.msra.mxu0 0
    %913 = vmatprep.subr.bf16.mxu0 0
    %914 = vmatpush1.bf16.msra.mxu0 0
    %915 = vmatprep.subr.bf16.mxu0 0
    %916 = vmatpush1.bf16.msra.mxu0 0
    %917 = vmatprep.subr.bf16.mxu0 0
    %918 = vmatpush1.bf16.msra.mxu0 0
    %919 = vmatprep.subr.bf16.mxu0 0
    %920 = vmatpush1.bf16.msra.mxu0 0
    %921 = vmatprep.subr.bf16.mxu0 0
    %922 = vmatpush1.bf16.msra.mxu0 0
    %923 = vmatprep.subr.bf16.mxu0 0
    %924 = vmatpush1.bf16.msra.mxu0 0
    %925 = vmatprep.subr.bf16.mxu0 0
    %926 = vmatpush1.bf16.msra.mxu0 0
    %927 = vmatprep.subr.bf16.mxu0 0
    %928 = vmatpush1.bf16.msra.mxu0 0
    %929 = vmatprep.mubr.bf16.mxu0 0
    %930 = vmatmul.mubr.bf16.gmra.mrb[0].mxu0 %v352
    %v931 = vpop.f32.mrb[0].mxu0
    %v932 = vadd.f32 %v883, %v931
    %v933 = vpop.f32.mrb[0].mxu0
    %v934 = vpop.f32.mrb[0].mxu0
    %v935 = vadd.f32 %v883, %v934
    %v936 = vpop.f32.mrb[0].mxu0
    %937 = vmatprep.mubr.bf16.mxu0 0
    %938 = vmatmul.mubr.bf16.gmra.mrb[0].mxu0 %v355
    %v939 = vpop.f32.mrb[0].mxu0
    %v940 = vadd.f32 %v883, %v939
    %v941 = vpop.f32.mrb[0].mxu0
    %v942 = vpop.f32.mrb[0].mxu0
    %v943 = vadd.f32 %v883, %v942
    %v944 = vpop.f32.mrb[0].mxu0
    %945 = vmatprep.mubr.bf16.mxu0 0
    %946 = vmatmul.mubr.bf16.gmra.mrb[0].mxu0 %v358
    %v947 = vpop.f32.mrb[0].mxu0
    %v948 = vadd.f32 %v883, %v947
    %v949 = vpop.f32.mrb[0].mxu0
    %v950 = vpop.f32.mrb[0].mxu0
    %v951 = vadd.f32 %v883, %v950
    %v952 = vpop.f32.mrb[0].mxu0
    %953 = vdwg.mxu0
    %s954 = scalar_lea.vmem %s5, 144
    %v955 = vld [vmem:[%s954] sm:$0xf]
    %v956 = vld [vmem:[%s954 + $0x4] sm:$0xf]
    %v957 = vld [vmem:[%s954 + $0x8] sm:$0xf]
    %v958 = vld [vmem:[%s954 + $0xc] sm:$0xf]
    %s959 = scalar_lea.vmem %s6, 9
    %v960 = vld [vmem:[%s959] sm:$0x1]
    %v962 = vlaneseq
    %v963 = vshrl.u32 %v962, 7
    %v964 = vsub.s32 0, %v963
    %v965 = vrot.slane %v960, %v964
    %v971 = vunpack.c.l.b16 %v955
    %v972 = vunpack.c.l.b16 %v956
    %v973 = vunpack.c.l.b16 %v957
    %v974 = vunpack.c.l.b16 %v958
    %v975 = vpack.c.b16 %v972, %v971
    %v976 = vpack.c.b16 %v974, %v973
    %979 = vmatprep.subr.bf16.mxu0 0
    %980 = vmatpush1.bf16.msra.mxu0 %v975
    %981 = vmatprep.subr.bf16.mxu0 0
    %982 = vmatpush1.bf16.msra.mxu0 %v976
    %983 = vmatprep.subr.bf16.mxu0 0
    %984 = vmatpush1.bf16.msra.mxu0 0
    %985 = vmatprep.subr.bf16.mxu0 0
    %986 = vmatpush1.bf16.msra.mxu0 0
    %987 = vmatprep.subr.bf16.mxu0 0
    %988 = vmatpush1.bf16.msra.mxu0 0
    %989 = vmatprep.subr.bf16.mxu0 0
    %990 = vmatpush1.bf16.msra.mxu0 0
    %991 = vmatprep.subr.bf16.mxu0 0
    %992 = vmatpush1.bf16.msra.mxu0 0
    %993 = vmatprep.subr.bf16.mxu0 0
    %994 = vmatpush1.bf16.msra.mxu0 0
    %995 = vmatprep.subr.bf16.mxu0 0
    %996 = vmatpush1.bf16.msra.mxu0 0
    %997 = vmatprep.subr.bf16.mxu0 0
    %998 = vmatpush1.bf16.msra.mxu0 0
    %999 = vmatprep.subr.bf16.mxu0 0
    %1000 = vmatpush1.bf16.msra.mxu0 0
    %1001 = vmatprep.subr.bf16.mxu0 0
    %1002 = vmatpush1.bf16.msra.mxu0 0
    %1003 = vmatprep.subr.bf16.mxu0 0
    %1004 = vmatpush1.bf16.msra.mxu0 0
    %1005 = vmatprep.subr.bf16.mxu0 0
    %1006 = vmatpush1.bf16.msra.mxu0 0
    %1007 = vmatprep.subr.bf16.mxu0 0
    %1008 = vmatpush1.bf16.msra.mxu0 0
    %1009 = vmatprep.subr.bf16.mxu0 0
    %1010 = vmatpush1.bf16.msra.mxu0 0
    %1011 = vmatprep.mubr.bf16.mxu0 0
    %1012 = vmatmul.mubr.bf16.gmra.mrb[0].mxu0 %v352
    %v1013 = vpop.f32.mrb[0].mxu0
    %v1014 = vadd.f32 %v965, %v1013
    %v1015 = vpop.f32.mrb[0].mxu0
    %v1016 = vpop.f32.mrb[0].mxu0
    %v1017 = vadd.f32 %v965, %v1016
    %v1018 = vpop.f32.mrb[0].mxu0
    %1019 = vmatprep.mubr.bf16.mxu0 0
    %1020 = vmatmul.mubr.bf16.gmra.mrb[0].mxu0 %v355
    %v1021 = vpop.f32.mrb[0].mxu0
    %v1022 = vadd.f32 %v965, %v1021
    %v1023 = vpop.f32.mrb[0].mxu0
    %v1024 = vpop.f32.mrb[0].mxu0
    %v1025 = vadd.f32 %v965, %v1024
    %v1026 = vpop.f32.mrb[0].mxu0
    %1027 = vmatprep.mubr.bf16.mxu0 0
    %1028 = vmatmul.mubr.bf16.gmra.mrb[0].mxu0 %v358
    %v1029 = vpop.f32.mrb[0].mxu0
    %v1030 = vadd.f32 %v965, %v1029
    %v1031 = vpop.f32.mrb[0].mxu0
    %v1032 = vpop.f32.mrb[0].mxu0
    %v1033 = vadd.f32 %v965, %v1032
    %v1034 = vpop.f32.mrb[0].mxu0
    %1035 = vdwg.mxu0
    %v1037 = vsel %vm587, %v866, 0
    %v1040 = vsel %vm587, %v867, 0
    %v1043 = vsel %vm587, %v868, 0
    %v1046 = vsel %vm587, %v932, 0
    %v1049 = vsel %vm587, %v935, 0
    %v1052 = vsel %vm587, %v940, 0
    %1054 = vmatprep.subr.mxu0 0.0
    %1055 = vmatpush1.xpose.msra.mxu0 %v1046
    %1056 = vmatprep.subr.mxu0 0.0
    %1057 = vmatpush1.xpose.msra.mxu0 %v1049
    %1058 = vmatprep.subr.mxu0 0.0
    %1059 = vmatpush1.xpose.msra.mxu0 %v1052
    %1060 = vmatprep.subr.mxu0 0.0
    %1061 = vmatpush1.xpose.msra.mxu0 0.0
    %1062 = vmatprep.subr.mxu0 0.0
    %1063 = vmatpush1.xpose.msra.mxu0 0.0
    %1064 = vmatprep.subr.mxu0 0.0
    %1065 = vmatpush1.xpose.msra.mxu0 0.0
    %1066 = vmatprep.subr.mxu0 0.0
    %1067 = vmatpush1.xpose.msra.mxu0 0.0
    %1068 = vmatprep.subr.mxu0 0.0
    %1069 = vmatpush1.xpose.msra.mxu0 0.0
    %1070 = vmatprep.subr.mxu0 0.0
    %1071 = vmatpush1.xpose.msra.mxu0 0.0
    %1072 = vmatprep.subr.mxu0 0.0
    %1073 = vmatpush1.xpose.msra.mxu0 0.0
    %1074 = vmatprep.subr.mxu0 0.0
    %1075 = vmatpush1.xpose.msra.mxu0 0.0
    %1076 = vmatprep.subr.mxu0 0.0
    %1077 = vmatpush1.xpose.msra.mxu0 0.0
    %1078 = vmatprep.subr.mxu0 0.0
    %1079 = vmatpush1.xpose.msra.mxu0 0.0
    %1080 = vmatprep.subr.mxu0 0.0
    %1081 = vmatpush1.xpose.msra.mxu0 0.0
    %1082 = vmatprep.subr.mxu0 0.0
    %1083 = vmatpush1.xpose.msra.mxu0 0.0
    %1084 = vmatprep.subr.mxu0 0.0
    %1085 = vmatpush1.xpose.msra.mxu0 0.0
    %1086 = vmatprep.subr.mxu0 0.0
    %1087 = vmatpush1.xpose.msra.mxu0 0.0
    %1088 = vmatprep.subr.mxu0 0.0
    %1089 = vmatpush1.xpose.msra.mxu0 0.0
    %1090 = vmatprep.subr.mxu0 0.0
    %1091 = vmatpush1.xpose.msra.mxu0 0.0
    %1092 = vmatprep.subr.mxu0 0.0
    %1093 = vmatpush1.xpose.msra.mxu0 0.0
    %1094 = vmatprep.subr.mxu0 0.0
    %1095 = vmatpush1.xpose.msra.mxu0 0.0
    %1096 = vmatprep.subr.mxu0 0.0
    %1097 = vmatpush1.xpose.msra.mxu0 0.0
    %1098 = vmatprep.subr.mxu0 0.0
    %1099 = vmatpush1.xpose.msra.mxu0 0.0
    %1100 = vmatprep.subr.mxu0 0.0
    %1101 = vmatpush1.xpose.msra.mxu0 0.0
    %1102 = vmatprep.subr.mxu0 0.0
    %1103 = vmatpush1.xpose.msra.mxu0 0.0
    %1104 = vmatprep.subr.mxu0 0.0
    %1105 = vmatpush1.xpose.msra.mxu0 0.0
    %1106 = vmatprep.subr.mxu0 0.0
    %1107 = vmatpush1.xpose.msra.mxu0 0.0
    %1108 = vmatprep.subr.mxu0 0.0
    %1109 = vmatpush1.xpose.msra.mxu0 0.0
    %1110 = vmatprep.subr.mxu0 0.0
    %1111 = vmatpush1.xpose.msra.mxu0 0.0
    %1112 = vmatprep.subr.mxu0 0.0
    %1113 = vmatpush1.xpose.msra.mxu0 0.0
    %1114 = vmatprep.subr.mxu0 0.0
    %1115 = vmatpush1.xpose.msra.mxu0 0.0
    %1116 = vmatprep.subr.mxu0 0.0
    %1117 = vmatpush1.xpose.msra.mxu0 0.0
    %1118 = vmatprep.mubr.f32.mxu0 0.0
    %1119 = vmatmul.mubr.f32.gmra.mrb[0].mxu0 %v1037
    %v1120 = vpop.f32.mrb[0].mxu0
    %v1121 = vadd.f32 0.0, %v1120
    %v1122 = vpop.f32.mrb[0].mxu0
    %1123 = vmatprep.mubr.f32.mxu0 0.0
    %1124 = vmatmul.mubr.f32.gmra.mrb[0].mxu0 %v1040
    %v1125 = vpop.f32.mrb[0].mxu0
    %v1126 = vadd.f32 0.0, %v1125
    %v1127 = vpop.f32.mrb[0].mxu0
    %1128 = vmatprep.mubr.f32.mxu0 0.0
    %1129 = vmatmul.mubr.f32.gmra.mrb[0].mxu0 %v1043
    %v1130 = vpop.f32.mrb[0].mxu0
    %v1131 = vadd.f32 0.0, %v1130
    %v1132 = vpop.f32.mrb[0].mxu0
    %1133 = vdwg.mxu0
    %v1135 = vsel %vm587, %v869, 0
    %v1138 = vsel %vm587, %v870, 0
    %v1141 = vsel %vm587, %v871, 0
    %v1144 = vsel %vm587, %v943, 0
    %v1147 = vsel %vm587, %v948, 0
    %v1150 = vsel %vm587, %v951, 0
    %1152 = vmatprep.subr.mxu0 0.0
    %1153 = vmatpush1.xpose.msra.mxu0 %v1144
    %1154 = vmatprep.subr.mxu0 0.0
    %1155 = vmatpush1.xpose.msra.mxu0 %v1147
    %1156 = vmatprep.subr.mxu0 0.0
    %1157 = vmatpush1.xpose.msra.mxu0 %v1150
    %1158 = vmatprep.subr.mxu0 0.0
    %1159 = vmatpush1.xpose.msra.mxu0 0.0
    %1160 = vmatprep.subr.mxu0 0.0
    %1161 = vmatpush1.xpose.msra.mxu0 0.0
    %1162 = vmatprep.subr.mxu0 0.0
    %1163 = vmatpush1.xpose.msra.mxu0 0.0
    %1164 = vmatprep.subr.mxu0 0.0
    %1165 = vmatpush1.xpose.msra.mxu0 0.0
    %1166 = vmatprep.subr.mxu0 0.0
    %1167 = vmatpush1.xpose.msra.mxu0 0.0
    %1168 = vmatprep.subr.mxu0 0.0
    %1169 = vmatpush1.xpose.msra.mxu0 0.0
    %1170 = vmatprep.subr.mxu0 0.0
    %1171 = vmatpush1.xpose.msra.mxu0 0.0
    %1172 = vmatprep.subr.mxu0 0.0
    %1173 = vmatpush1.xpose.msra.mxu0 0.0
    %1174 = vmatprep.subr.mxu0 0.0
    %1175 = vmatpush1.xpose.msra.mxu0 0.0
    %1176 = vmatprep.subr.mxu0 0.0
    %1177 = vmatpush1.xpose.msra.mxu0 0.0
    %1178 = vmatprep.subr.mxu0 0.0
    %1179 = vmatpush1.xpose.msra.mxu0 0.0
    %1180 = vmatprep.subr.mxu0 0.0
    %1181 = vmatpush1.xpose.msra.mxu0 0.0
    %1182 = vmatprep.subr.mxu0 0.0
    %1183 = vmatpush1.xpose.msra.mxu0 0.0
    %1184 = vmatprep.subr.mxu0 0.0
    %1185 = vmatpush1.xpose.msra.mxu0 0.0
    %1186 = vmatprep.subr.mxu0 0.0
    %1187 = vmatpush1.xpose.msra.mxu0 0.0
    %1188 = vmatprep.subr.mxu0 0.0
    %1189 = vmatpush1.xpose.msra.mxu0 0.0
    %1190 = vmatprep.subr.mxu0 0.0
    %1191 = vmatpush1.xpose.msra.mxu0 0.0
    %1192 = vmatprep.subr.mxu0 0.0
    %1193 = vmatpush1.xpose.msra.mxu0 0.0
    %1194 = vmatprep.subr.mxu0 0.0
    %1195 = vmatpush1.xpose.msra.mxu0 0.0
    %1196 = vmatprep.subr.mxu0 0.0
    %1197 = vmatpush1.xpose.msra.mxu0 0.0
    %1198 = vmatprep.subr.mxu0 0.0
    %1199 = vmatpush1.xpose.msra.mxu0 0.0
    %1200 = vmatprep.subr.mxu0 0.0
    %1201 = vmatpush1.xpose.msra.mxu0 0.0
    %1202 = vmatprep.subr.mxu0 0.0
    %1203 = vmatpush1.xpose.msra.mxu0 0.0
    %1204 = vmatprep.subr.mxu0 0.0
    %1205 = vmatpush1.xpose.msra.mxu0 0.0
    %1206 = vmatprep.subr.mxu0 0.0
    %1207 = vmatpush1.xpose.msra.mxu0 0.0
    %1208 = vmatprep.subr.mxu0 0.0
    %1209 = vmatpush1.xpose.msra.mxu0 0.0
    %1210 = vmatprep.subr.mxu0 0.0
    %1211 = vmatpush1.xpose.msra.mxu0 0.0
    %1212 = vmatprep.subr.mxu0 0.0
    %1213 = vmatpush1.xpose.msra.mxu0 0.0
    %1214 = vmatprep.subr.mxu0 0.0
    %1215 = vmatpush1.xpose.msra.mxu0 0.0
    %1216 = vmatprep.mubr.f32.mxu0 0.0
    %1217 = vmatmul.mubr.f32.gmra.mrb[0].mxu0 %v1135
    %v1218 = vpop.f32.mrb[0].mxu0
    %v1219 = vadd.f32 0.0, %v1218
    %v1220 = vpop.f32.mrb[0].mxu0
    %1221 = vmatprep.mubr.f32.mxu0 0.0
    %1222 = vmatmul.mubr.f32.gmra.mrb[0].mxu0 %v1138
    %v1223 = vpop.f32.mrb[0].mxu0
    %v1224 = vadd.f32 0.0, %v1223
    %v1225 = vpop.f32.mrb[0].mxu0
    %1226 = vmatprep.mubr.f32.mxu0 0.0
    %1227 = vmatmul.mubr.f32.gmra.mrb[0].mxu0 %v1141
    %v1228 = vpop.f32.mrb[0].mxu0
    %v1229 = vadd.f32 0.0, %v1228
    %v1230 = vpop.f32.mrb[0].mxu0
    %1231 = vdwg.mxu0
    %s1232 = scalar_lea.vmem %s5, 32
    %v1233 = vld [vmem:[%s1232] sm:$0xf]
    %v1234 = vld [vmem:[%s1232 + $0x4] sm:$0xf]
    %v1235 = vld [vmem:[%s1232 + $0x8] sm:$0xf]
    %v1236 = vld [vmem:[%s1232 + $0xc] sm:$0xf]
    %s1237 = scalar_lea.vmem %s6, 2
    %v1238 = vld [vmem:[%s1237] sm:$0x1]
    %v1240 = vlaneseq
    %v1241 = vshrl.u32 %v1240, 7
    %v1242 = vsub.s32 0, %v1241
    %v1243 = vrot.slane %v1238, %v1242
    %v1249 = vunpack.c.l.b16 %v1233
    %v1250 = vunpack.c.l.b16 %v1234
    %v1251 = vunpack.c.l.b16 %v1235
    %v1252 = vunpack.c.l.b16 %v1236
    %v1253 = vpack.c.b16 %v1250, %v1249
    %v1254 = vpack.c.b16 %v1252, %v1251
    %1257 = vmatprep.subr.bf16.mxu0 0
    %1258 = vmatpush1.bf16.msra.mxu0 %v1253
    %1259 = vmatprep.subr.bf16.mxu0 0
    %1260 = vmatpush1.bf16.msra.mxu0 %v1254
    %1261 = vmatprep.subr.bf16.mxu0 0
    %1262 = vmatpush1.bf16.msra.mxu0 0
    %1263 = vmatprep.subr.bf16.mxu0 0
    %1264 = vmatpush1.bf16.msra.mxu0 0
    %1265 = vmatprep.subr.bf16.mxu0 0
    %1266 = vmatpush1.bf16.msra.mxu0 0
    %1267 = vmatprep.subr.bf16.mxu0 0
    %1268 = vmatpush1.bf16.msra.mxu0 0
    %1269 = vmatprep.subr.bf16.mxu0 0
    %1270 = vmatpush1.bf16.msra.mxu0 0
    %1271 = vmatprep.subr.bf16.mxu0 0
    %1272 = vmatpush1.bf16.msra.mxu0 0
    %1273 = vmatprep.subr.bf16.mxu0 0
    %1274 = vmatpush1.bf16.msra.mxu0 0
    %1275 = vmatprep.subr.bf16.mxu0 0
    %1276 = vmatpush1.bf16.msra.mxu0 0
    %1277 = vmatprep.subr.bf16.mxu0 0
    %1278 = vmatpush1.bf16.msra.mxu0 0
    %1279 = vmatprep.subr.bf16.mxu0 0
    %1280 = vmatpush1.bf16.msra.mxu0 0
    %1281 = vmatprep.subr.bf16.mxu0 0
    %1282 = vmatpush1.bf16.msra.mxu0 0
    %1283 = vmatprep.subr.bf16.mxu0 0
    %1284 = vmatpush1.bf16.msra.mxu0 0
    %1285 = vmatprep.subr.bf16.mxu0 0
    %1286 = vmatpush1.bf16.msra.mxu0 0
    %1287 = vmatprep.subr.bf16.mxu0 0
    %1288 = vmatpush1.bf16.msra.mxu0 0
    %1289 = vmatprep.mubr.bf16.mxu0 0
    %1290 = vmatmul.mubr.bf16.gmra.mrb[0].mxu0 %v352
    %v1291 = vpop.f32.mrb[0].mxu0
    %v1292 = vadd.f32 %v1243, %v1291
    %v1293 = vpop.f32.mrb[0].mxu0
    %v1294 = vpop.f32.mrb[0].mxu0
    %v1295 = vadd.f32 %v1243, %v1294
    %v1296 = vpop.f32.mrb[0].mxu0
    %1297 = vmatprep.mubr.bf16.mxu0 0
    %1298 = vmatmul.mubr.bf16.gmra.mrb[0].mxu0 %v355
    %v1299 = vpop.f32.mrb[0].mxu0
    %v1300 = vadd.f32 %v1243, %v1299
    %v1301 = vpop.f32.mrb[0].mxu0
    %v1302 = vpop.f32.mrb[0].mxu0
    %v1303 = vadd.f32 %v1243, %v1302
    %v1304 = vpop.f32.mrb[0].mxu0
    %1305 = vmatprep.mubr.bf16.mxu0 0
    %1306 = vmatmul.mubr.bf16.gmra.mrb[0].mxu0 %v358
    %v1307 = vpop.f32.mrb[0].mxu0
    %v1308 = vadd.f32 %v1243, %v1307
    %v1309 = vpop.f32.mrb[0].mxu0
    %v1310 = vpop.f32.mrb[0].mxu0
    %v1311 = vadd.f32 %v1243, %v1310
    %v1312 = vpop.f32.mrb[0].mxu0
    %1313 = vdwg.mxu0
    %v1314 = vmul.f32 %v1292, 0.35355338
    %v1315 = vmul.f32 %v1295, 0.35355338
    %v1316 = vmul.f32 %v1300, 0.35355338
    %v1317 = vmul.f32 %v1303, 0.35355338
    %v1318 = vmul.f32 %v1308, 0.35355338
    %v1319 = vmul.f32 %v1311, 0.35355338
    %s1320 = scalar_lea.vmem %s5, 96
    %v1321 = vld [vmem:[%s1320] sm:$0xf]
    %v1322 = vld [vmem:[%s1320 + $0x4] sm:$0xf]
    %v1323 = vld [vmem:[%s1320 + $0x8] sm:$0xf]
    %v1324 = vld [vmem:[%s1320 + $0xc] sm:$0xf]
    %s1325 = scalar_lea.vmem %s6, 6
    %v1326 = vld [vmem:[%s1325] sm:$0x1]
    %v1328 = vlaneseq
    %v1329 = vshrl.u32 %v1328, 7
    %v1330 = vsub.s32 0, %v1329
    %v1331 = vrot.slane %v1326, %v1330
    %v1337 = vunpack.c.l.b16 %v1321
    %v1338 = vunpack.c.l.b16 %v1322
    %v1339 = vunpack.c.l.b16 %v1323
    %v1340 = vunpack.c.l.b16 %v1324
    %v1341 = vpack.c.b16 %v1338, %v1337
    %v1342 = vpack.c.b16 %v1340, %v1339
    %1345 = vmatprep.subr.bf16.mxu0 0
    %1346 = vmatpush1.bf16.msra.mxu0 %v1341
    %1347 = vmatprep.subr.bf16.mxu0 0
    %1348 = vmatpush1.bf16.msra.mxu0 %v1342
    %1349 = vmatprep.subr.bf16.mxu0 0
    %1350 = vmatpush1.bf16.msra.mxu0 0
    %1351 = vmatprep.subr.bf16.mxu0 0
    %1352 = vmatpush1.bf16.msra.mxu0 0
    %1353 = vmatprep.subr.bf16.mxu0 0
    %1354 = vmatpush1.bf16.msra.mxu0 0
    %1355 = vmatprep.subr.bf16.mxu0 0
    %1356 = vmatpush1.bf16.msra.mxu0 0
    %1357 = vmatprep.subr.bf16.mxu0 0
    %1358 = vmatpush1.bf16.msra.mxu0 0
    %1359 = vmatprep.subr.bf16.mxu0 0
    %1360 = vmatpush1.bf16.msra.mxu0 0
    %1361 = vmatprep.subr.bf16.mxu0 0
    %1362 = vmatpush1.bf16.msra.mxu0 0
    %1363 = vmatprep.subr.bf16.mxu0 0
    %1364 = vmatpush1.bf16.msra.mxu0 0
    %1365 = vmatprep.subr.bf16.mxu0 0
    %1366 = vmatpush1.bf16.msra.mxu0 0
    %1367 = vmatprep.subr.bf16.mxu0 0
    %1368 = vmatpush1.bf16.msra.mxu0 0
    %1369 = vmatprep.subr.bf16.mxu0 0
    %1370 = vmatpush1.bf16.msra.mxu0 0
    %1371 = vmatprep.subr.bf16.mxu0 0
    %1372 = vmatpush1.bf16.msra.mxu0 0
    %1373 = vmatprep.subr.bf16.mxu0 0
    %1374 = vmatpush1.bf16.msra.mxu0 0
    %1375 = vmatprep.subr.bf16.mxu0 0
    %1376 = vmatpush1.bf16.msra.mxu0 0
    %1377 = vmatprep.mubr.bf16.mxu0 0
    %1378 = vmatmul.mubr.bf16.gmra.mrb[0].mxu0 %v352
    %v1379 = vpop.f32.mrb[0].mxu0
    %v1380 = vadd.f32 %v1331, %v1379
    %v1381 = vpop.f32.mrb[0].mxu0
    %v1382 = vpop.f32.mrb[0].mxu0
    %v1383 = vadd.f32 %v1331, %v1382
    %v1384 = vpop.f32.mrb[0].mxu0
    %1385 = vmatprep.mubr.bf16.mxu0 0
    %1386 = vmatmul.mubr.bf16.gmra.mrb[0].mxu0 %v355
    %v1387 = vpop.f32.mrb[0].mxu0
    %v1388 = vadd.f32 %v1331, %v1387
    %v1389 = vpop.f32.mrb[0].mxu0
    %v1390 = vpop.f32.mrb[0].mxu0
    %v1391 = vadd.f32 %v1331, %v1390
    %v1392 = vpop.f32.mrb[0].mxu0
    %1393 = vmatprep.mubr.bf16.mxu0 0
    %1394 = vmatmul.mubr.bf16.gmra.mrb[0].mxu0 %v358
    %v1395 = vpop.f32.mrb[0].mxu0
    %v1396 = vadd.f32 %v1331, %v1395
    %v1397 = vpop.f32.mrb[0].mxu0
    %v1398 = vpop.f32.mrb[0].mxu0
    %v1399 = vadd.f32 %v1331, %v1398
    %v1400 = vpop.f32.mrb[0].mxu0
    %1401 = vdwg.mxu0
    %s1402 = scalar_lea.vmem %s5, 160
    %v1403 = vld [vmem:[%s1402] sm:$0xf]
    %v1404 = vld [vmem:[%s1402 + $0x4] sm:$0xf]
    %v1405 = vld [vmem:[%s1402 + $0x8] sm:$0xf]
    %v1406 = vld [vmem:[%s1402 + $0xc] sm:$0xf]
    %s1407 = scalar_lea.vmem %s6, 10
    %v1408 = vld [vmem:[%s1407] sm:$0x1]
    %v1410 = vlaneseq
    %v1411 = vshrl.u32 %v1410, 7
    %v1412 = vsub.s32 0, %v1411
    %v1413 = vrot.slane %v1408, %v1412
    %v1419 = vunpack.c.l.b16 %v1403
    %v1420 = vunpack.c.l.b16 %v1404
    %v1421 = vunpack.c.l.b16 %v1405
    %v1422 = vunpack.c.l.b16 %v1406
    %v1423 = vpack.c.b16 %v1420, %v1419
    %v1424 = vpack.c.b16 %v1422, %v1421
    %1427 = vmatprep.subr.bf16.mxu0 0
    %1428 = vmatpush1.bf16.msra.mxu0 %v1423
    %1429 = vmatprep.subr.bf16.mxu0 0
    %1430 = vmatpush1.bf16.msra.mxu0 %v1424
    %1431 = vmatprep.subr.bf16.mxu0 0
    %1432 = vmatpush1.bf16.msra.mxu0 0
    %1433 = vmatprep.subr.bf16.mxu0 0
    %1434 = vmatpush1.bf16.msra.mxu0 0
    %1435 = vmatprep.subr.bf16.mxu0 0
    %1436 = vmatpush1.bf16.msra.mxu0 0
    %1437 = vmatprep.subr.bf16.mxu0 0
    %1438 = vmatpush1.bf16.msra.mxu0 0
    %1439 = vmatprep.subr.bf16.mxu0 0
    %1440 = vmatpush1.bf16.msra.mxu0 0
    %1441 = vmatprep.subr.bf16.mxu0 0
    %1442 = vmatpush1.bf16.msra.mxu0 0
    %1443 = vmatprep.subr.bf16.mxu0 0
    %1444 = vmatpush1.bf16.msra.mxu0 0
    %1445 = vmatprep.subr.bf16.mxu0 0
    %1446 = vmatpush1.bf16.msra.mxu0 0
    %1447 = vmatprep.subr.bf16.mxu0 0
    %1448 = vmatpush1.bf16.msra.mxu0 0
    %1449 = vmatprep.subr.bf16.mxu0 0
    %1450 = vmatpush1.bf16.msra.mxu0 0
    %1451 = vmatprep.subr.bf16.mxu0 0
    %1452 = vmatpush1.bf16.msra.mxu0 0
    %1453 = vmatprep.subr.bf16.mxu0 0
    %1454 = vmatpush1.bf16.msra.mxu0 0
    %1455 = vmatprep.subr.bf16.mxu0 0
    %1456 = vmatpush1.bf16.msra.mxu0 0
    %1457 = vmatprep.subr.bf16.mxu0 0
    %1458 = vmatpush1.bf16.msra.mxu0 0
    %1459 = vmatprep.mubr.bf16.mxu0 0
    %1460 = vmatmul.mubr.bf16.gmra.mrb[0].mxu0 %v352
    %v1461 = vpop.f32.mrb[0].mxu0
    %v1462 = vadd.f32 %v1413, %v1461
    %v1463 = vpop.f32.mrb[0].mxu0
    %v1464 = vpop.f32.mrb[0].mxu0
    %v1465 = vadd.f32 %v1413, %v1464
    %v1466 = vpop.f32.mrb[0].mxu0
    %1467 = vmatprep.mubr.bf16.mxu0 0
    %1468 = vmatmul.mubr.bf16.gmra.mrb[0].mxu0 %v355
    %v1469 = vpop.f32.mrb[0].mxu0
    %v1470 = vadd.f32 %v1413, %v1469
    %v1471 = vpop.f32.mrb[0].mxu0
    %v1472 = vpop.f32.mrb[0].mxu0
    %v1473 = vadd.f32 %v1413, %v1472
    %v1474 = vpop.f32.mrb[0].mxu0
    %1475 = vmatprep.mubr.bf16.mxu0 0
    %1476 = vmatmul.mubr.bf16.gmra.mrb[0].mxu0 %v358
    %v1477 = vpop.f32.mrb[0].mxu0
    %v1478 = vadd.f32 %v1413, %v1477
    %v1479 = vpop.f32.mrb[0].mxu0
    %v1480 = vpop.f32.mrb[0].mxu0
    %v1481 = vadd.f32 %v1413, %v1480
    %v1482 = vpop.f32.mrb[0].mxu0
    %1483 = vdwg.mxu0
    %v1485 = vsel %vm587, %v1314, 0
    %v1488 = vsel %vm587, %v1315, 0
    %v1491 = vsel %vm587, %v1316, 0
    %v1494 = vsel %vm587, %v1380, 0
    %v1497 = vsel %vm587, %v1383, 0
    %v1500 = vsel %vm587, %v1388, 0
    %1502 = vmatprep.subr.mxu0 0.0
    %1503 = vmatpush1.xpose.msra.mxu0 %v1494
    %1504 = vmatprep.subr.mxu0 0.0
    %1505 = vmatpush1.xpose.msra.mxu0 %v1497
    %1506 = vmatprep.subr.mxu0 0.0
    %1507 = vmatpush1.xpose.msra.mxu0 %v1500
    %1508 = vmatprep.subr.mxu0 0.0
    %1509 = vmatpush1.xpose.msra.mxu0 0.0
    %1510 = vmatprep.subr.mxu0 0.0
    %1511 = vmatpush1.xpose.msra.mxu0 0.0
    %1512 = vmatprep.subr.mxu0 0.0
    %1513 = vmatpush1.xpose.msra.mxu0 0.0
    %1514 = vmatprep.subr.mxu0 0.0
    %1515 = vmatpush1.xpose.msra.mxu0 0.0
    %1516 = vmatprep.subr.mxu0 0.0
    %1517 = vmatpush1.xpose.msra.mxu0 0.0
    %1518 = vmatprep.subr.mxu0 0.0
    %1519 = vmatpush1.xpose.msra.mxu0 0.0
    %1520 = vmatprep.subr.mxu0 0.0
    %1521 = vmatpush1.xpose.msra.mxu0 0.0
    %1522 = vmatprep.subr.mxu0 0.0
    %1523 = vmatpush1.xpose.msra.mxu0 0.0
    %1524 = vmatprep.subr.mxu0 0.0
    %1525 = vmatpush1.xpose.msra.mxu0 0.0
    %1526 = vmatprep.subr.mxu0 0.0
    %1527 = vmatpush1.xpose.msra.mxu0 0.0
    %1528 = vmatprep.subr.mxu0 0.0
    %1529 = vmatpush1.xpose.msra.mxu0 0.0
    %1530 = vmatprep.subr.mxu0 0.0
    %1531 = vmatpush1.xpose.msra.mxu0 0.0
    %1532 = vmatprep.subr.mxu0 0.0
    %1533 = vmatpush1.xpose.msra.mxu0 0.0
    %1534 = vmatprep.subr.mxu0 0.0
    %1535 = vmatpush1.xpose.msra.mxu0 0.0
    %1536 = vmatprep.subr.mxu0 0.0
    %1537 = vmatpush1.xpose.msra.mxu0 0.0
    %1538 = vmatprep.subr.mxu0 0.0
    %1539 = vmatpush1.xpose.msra.mxu0 0.0
    %1540 = vmatprep.subr.mxu0 0.0
    %1541 = vmatpush1.xpose.msra.mxu0 0.0
    %1542 = vmatprep.subr.mxu0 0.0
    %1543 = vmatpush1.xpose.msra.mxu0 0.0
    %1544 = vmatprep.subr.mxu0 0.0
    %1545 = vmatpush1.xpose.msra.mxu0 0.0
    %1546 = vmatprep.subr.mxu0 0.0
    %1547 = vmatpush1.xpose.msra.mxu0 0.0
    %1548 = vmatprep.subr.mxu0 0.0
    %1549 = vmatpush1.xpose.msra.mxu0 0.0
    %1550 = vmatprep.subr.mxu0 0.0
    %1551 = vmatpush1.xpose.msra.mxu0 0.0
    %1552 = vmatprep.subr.mxu0 0.0
    %1553 = vmatpush1.xpose.msra.mxu0 0.0
    %1554 = vmatprep.subr.mxu0 0.0
    %1555 = vmatpush1.xpose.msra.mxu0 0.0
    %1556 = vmatprep.subr.mxu0 0.0
    %1557 = vmatpush1.xpose.msra.mxu0 0.0
    %1558 = vmatprep.subr.mxu0 0.0
    %1559 = vmatpush1.xpose.msra.mxu0 0.0
    %1560 = vmatprep.subr.mxu0 0.0
    %1561 = vmatpush1.xpose.msra.mxu0 0.0
    %1562 = vmatprep.subr.mxu0 0.0
    %1563 = vmatpush1.xpose.msra.mxu0 0.0
    %1564 = vmatprep.subr.mxu0 0.0
    %1565 = vmatpush1.xpose.msra.mxu0 0.0
    %1566 = vmatprep.mubr.f32.mxu0 0.0
    %1567 = vmatmul.mubr.f32.gmra.mrb[0].mxu0 %v1485
    %v1568 = vpop.f32.mrb[0].mxu0
    %v1569 = vadd.f32 0.0, %v1568
    %v1570 = vpop.f32.mrb[0].mxu0
    %1571 = vmatprep.mubr.f32.mxu0 0.0
    %1572 = vmatmul.mubr.f32.gmra.mrb[0].mxu0 %v1488
    %v1573 = vpop.f32.mrb[0].mxu0
    %v1574 = vadd.f32 0.0, %v1573
    %v1575 = vpop.f32.mrb[0].mxu0
    %1576 = vmatprep.mubr.f32.mxu0 0.0
    %1577 = vmatmul.mubr.f32.gmra.mrb[0].mxu0 %v1491
    %v1578 = vpop.f32.mrb[0].mxu0
    %v1579 = vadd.f32 0.0, %v1578
    %v1580 = vpop.f32.mrb[0].mxu0
    %1581 = vdwg.mxu0
    %v1583 = vsel %vm587, %v1317, 0
    %v1586 = vsel %vm587, %v1318, 0
    %v1589 = vsel %vm587, %v1319, 0
    %v1592 = vsel %vm587, %v1391, 0
    %v1595 = vsel %vm587, %v1396, 0
    %v1598 = vsel %vm587, %v1399, 0
    %1600 = vmatprep.subr.mxu0 0.0
    %1601 = vmatpush1.xpose.msra.mxu0 %v1592
    %1602 = vmatprep.subr.mxu0 0.0
    %1603 = vmatpush1.xpose.msra.mxu0 %v1595
    %1604 = vmatprep.subr.mxu0 0.0
    %1605 = vmatpush1.xpose.msra.mxu0 %v1598
    %1606 = vmatprep.subr.mxu0 0.0
    %1607 = vmatpush1.xpose.msra.mxu0 0.0
    %1608 = vmatprep.subr.mxu0 0.0
    %1609 = vmatpush1.xpose.msra.mxu0 0.0
    %1610 = vmatprep.subr.mxu0 0.0
    %1611 = vmatpush1.xpose.msra.mxu0 0.0
    %1612 = vmatprep.subr.mxu0 0.0
    %1613 = vmatpush1.xpose.msra.mxu0 0.0
    %1614 = vmatprep.subr.mxu0 0.0
    %1615 = vmatpush1.xpose.msra.mxu0 0.0
    %1616 = vmatprep.subr.mxu0 0.0
    %1617 = vmatpush1.xpose.msra.mxu0 0.0
    %1618 = vmatprep.subr.mxu0 0.0
    %1619 = vmatpush1.xpose.msra.mxu0 0.0
    %1620 = vmatprep.subr.mxu0 0.0
    %1621 = vmatpush1.xpose.msra.mxu0 0.0
    %1622 = vmatprep.subr.mxu0 0.0
    %1623 = vmatpush1.xpose.msra.mxu0 0.0
    %1624 = vmatprep.subr.mxu0 0.0
    %1625 = vmatpush1.xpose.msra.mxu0 0.0
    %1626 = vmatprep.subr.mxu0 0.0
    %1627 = vmatpush1.xpose.msra.mxu0 0.0
    %1628 = vmatprep.subr.mxu0 0.0
    %1629 = vmatpush1.xpose.msra.mxu0 0.0
    %1630 = vmatprep.subr.mxu0 0.0
    %1631 = vmatpush1.xpose.msra.mxu0 0.0
    %1632 = vmatprep.subr.mxu0 0.0
    %1633 = vmatpush1.xpose.msra.mxu0 0.0
    %1634 = vmatprep.subr.mxu0 0.0
    %1635 = vmatpush1.xpose.msra.mxu0 0.0
    %1636 = vmatprep.subr.mxu0 0.0
    %1637 = vmatpush1.xpose.msra.mxu0 0.0
    %1638 = vmatprep.subr.mxu0 0.0
    %1639 = vmatpush1.xpose.msra.mxu0 0.0
    %1640 = vmatprep.subr.mxu0 0.0
    %1641 = vmatpush1.xpose.msra.mxu0 0.0
    %1642 = vmatprep.subr.mxu0 0.0
    %1643 = vmatpush1.xpose.msra.mxu0 0.0
    %1644 = vmatprep.subr.mxu0 0.0
    %1645 = vmatpush1.xpose.msra.mxu0 0.0
    %1646 = vmatprep.subr.mxu0 0.0
    %1647 = vmatpush1.xpose.msra.mxu0 0.0
    %1648 = vmatprep.subr.mxu0 0.0
    %1649 = vmatpush1.xpose.msra.mxu0 0.0
    %1650 = vmatprep.subr.mxu0 0.0
    %1651 = vmatpush1.xpose.msra.mxu0 0.0
    %1652 = vmatprep.subr.mxu0 0.0
    %1653 = vmatpush1.xpose.msra.mxu0 0.0
    %1654 = vmatprep.subr.mxu0 0.0
    %1655 = vmatpush1.xpose.msra.mxu0 0.0
    %1656 = vmatprep.subr.mxu0 0.0
    %1657 = vmatpush1.xpose.msra.mxu0 0.0
    %1658 = vmatprep.subr.mxu0 0.0
    %1659 = vmatpush1.xpose.msra.mxu0 0.0
    %1660 = vmatprep.subr.mxu0 0.0
    %1661 = vmatpush1.xpose.msra.mxu0 0.0
    %1662 = vmatprep.subr.mxu0 0.0
    %1663 = vmatpush1.xpose.msra.mxu0 0.0
    %1664 = vmatprep.mubr.f32.mxu0 0.0
    %1665 = vmatmul.mubr.f32.gmra.mrb[0].mxu0 %v1583
    %v1666 = vpop.f32.mrb[0].mxu0
    %v1667 = vadd.f32 0.0, %v1666
    %v1668 = vpop.f32.mrb[0].mxu0
    %1669 = vmatprep.mubr.f32.mxu0 0.0
    %1670 = vmatmul.mubr.f32.gmra.mrb[0].mxu0 %v1586
    %v1671 = vpop.f32.mrb[0].mxu0
    %v1672 = vadd.f32 0.0, %v1671
    %v1673 = vpop.f32.mrb[0].mxu0
    %1674 = vmatprep.mubr.f32.mxu0 0.0
    %1675 = vmatmul.mubr.f32.gmra.mrb[0].mxu0 %v1589
    %v1676 = vpop.f32.mrb[0].mxu0
    %v1677 = vadd.f32 0.0, %v1676
    %v1678 = vpop.f32.mrb[0].mxu0
    %1679 = vdwg.mxu0
    %s1680 = scalar_lea.vmem %s5, 48
    %v1681 = vld [vmem:[%s1680] sm:$0xf]
    %v1682 = vld [vmem:[%s1680 + $0x4] sm:$0xf]
    %v1683 = vld [vmem:[%s1680 + $0x8] sm:$0xf]
    %v1684 = vld [vmem:[%s1680 + $0xc] sm:$0xf]
    %s1685 = scalar_lea.vmem %s6, 3
    %v1686 = vld [vmem:[%s1685] sm:$0x1]
    %v1688 = vlaneseq
    %v1689 = vshrl.u32 %v1688, 7
    %v1690 = vsub.s32 0, %v1689
    %v1691 = vrot.slane %v1686, %v1690
    %v1697 = vunpack.c.l.b16 %v1681
    %v1698 = vunpack.c.l.b16 %v1682
    %v1699 = vunpack.c.l.b16 %v1683
    %v1700 = vunpack.c.l.b16 %v1684
    %v1701 = vpack.c.b16 %v1698, %v1697
    %v1702 = vpack.c.b16 %v1700, %v1699
    %1705 = vmatprep.subr.bf16.mxu0 0
    %1706 = vmatpush1.bf16.msra.mxu0 %v1701
    %1707 = vmatprep.subr.bf16.mxu0 0
    %1708 = vmatpush1.bf16.msra.mxu0 %v1702
    %1709 = vmatprep.subr.bf16.mxu0 0
    %1710 = vmatpush1.bf16.msra.mxu0 0
    %1711 = vmatprep.subr.bf16.mxu0 0
    %1712 = vmatpush1.bf16.msra.mxu0 0
    %1713 = vmatprep.subr.bf16.mxu0 0
    %1714 = vmatpush1.bf16.msra.mxu0 0
    %1715 = vmatprep.subr.bf16.mxu0 0
    %1716 = vmatpush1.bf16.msra.mxu0 0
    %1717 = vmatprep.subr.bf16.mxu0 0
    %1718 = vmatpush1.bf16.msra.mxu0 0
    %1719 = vmatprep.subr.bf16.mxu0 0
    %1720 = vmatpush1.bf16.msra.mxu0 0
    %1721 = vmatprep.subr.bf16.mxu0 0
    %1722 = vmatpush1.bf16.msra.mxu0 0
    %1723 = vmatprep.subr.bf16.mxu0 0
    %1724 = vmatpush1.bf16.msra.mxu0 0
    %1725 = vmatprep.subr.bf16.mxu0 0
    %1726 = vmatpush1.bf16.msra.mxu0 0
    %1727 = vmatprep.subr.bf16.mxu0 0
    %1728 = vmatpush1.bf16.msra.mxu0 0
    %1729 = vmatprep.subr.bf16.mxu0 0
    %1730 = vmatpush1.bf16.msra.mxu0 0
    %1731 = vmatprep.subr.bf16.mxu0 0
    %1732 = vmatpush1.bf16.msra.mxu0 0
    %1733 = vmatprep.subr.bf16.mxu0 0
    %1734 = vmatpush1.bf16.msra.mxu0 0
    %1735 = vmatprep.subr.bf16.mxu0 0
    %1736 = vmatpush1.bf16.msra.mxu0 0
    %1737 = vmatprep.mubr.bf16.mxu0 0
    %1738 = vmatmul.mubr.bf16.gmra.mrb[0].mxu0 %v352
    %v1739 = vpop.f32.mrb[0].mxu0
    %v1740 = vadd.f32 %v1691, %v1739
    %v1741 = vpop.f32.mrb[0].mxu0
    %v1742 = vpop.f32.mrb[0].mxu0
    %v1743 = vadd.f32 %v1691, %v1742
    %v1744 = vpop.f32.mrb[0].mxu0
    %1745 = vmatprep.mubr.bf16.mxu0 0
    %1746 = vmatmul.mubr.bf16.gmra.mrb[0].mxu0 %v355
    %v1747 = vpop.f32.mrb[0].mxu0
    %v1748 = vadd.f32 %v1691, %v1747
    %v1749 = vpop.f32.mrb[0].mxu0
    %v1750 = vpop.f32.mrb[0].mxu0
    %v1751 = vadd.f32 %v1691, %v1750
    %v1752 = vpop.f32.mrb[0].mxu0
    %1753 = vmatprep.mubr.bf16.mxu0 0
    %1754 = vmatmul.mubr.bf16.gmra.mrb[0].mxu0 %v358
    %v1755 = vpop.f32.mrb[0].mxu0
    %v1756 = vadd.f32 %v1691, %v1755
    %v1757 = vpop.f32.mrb[0].mxu0
    %v1758 = vpop.f32.mrb[0].mxu0
    %v1759 = vadd.f32 %v1691, %v1758
    %v1760 = vpop.f32.mrb[0].mxu0
    %1761 = vdwg.mxu0
    %v1762 = vmul.f32 %v1740, 0.35355338
    %v1763 = vmul.f32 %v1743, 0.35355338
    %v1764 = vmul.f32 %v1748, 0.35355338
    %v1765 = vmul.f32 %v1751, 0.35355338
    %v1766 = vmul.f32 %v1756, 0.35355338
    %v1767 = vmul.f32 %v1759, 0.35355338
    %s1768 = scalar_lea.vmem %s5, 112
    %v1769 = vld [vmem:[%s1768] sm:$0xf]
    %v1770 = vld [vmem:[%s1768 + $0x4] sm:$0xf]
    %v1771 = vld [vmem:[%s1768 + $0x8] sm:$0xf]
    %v1772 = vld [vmem:[%s1768 + $0xc] sm:$0xf]
    %s1773 = scalar_lea.vmem %s6, 7
    %v1774 = vld [vmem:[%s1773] sm:$0x1]
    %v1776 = vlaneseq
    %v1777 = vshrl.u32 %v1776, 7
    %v1778 = vsub.s32 0, %v1777
    %v1779 = vrot.slane %v1774, %v1778
    %v1785 = vunpack.c.l.b16 %v1769
    %v1786 = vunpack.c.l.b16 %v1770
    %v1787 = vunpack.c.l.b16 %v1771
    %v1788 = vunpack.c.l.b16 %v1772
    %v1789 = vpack.c.b16 %v1786, %v1785
    %v1790 = vpack.c.b16 %v1788, %v1787
    %1793 = vmatprep.subr.bf16.mxu0 0
    %1794 = vmatpush1.bf16.msra.mxu0 %v1789
    %1795 = vmatprep.subr.bf16.mxu0 0
    %1796 = vmatpush1.bf16.msra.mxu0 %v1790
    %1797 = vmatprep.subr.bf16.mxu0 0
    %1798 = vmatpush1.bf16.msra.mxu0 0
    %1799 = vmatprep.subr.bf16.mxu0 0
    %1800 = vmatpush1.bf16.msra.mxu0 0
    %1801 = vmatprep.subr.bf16.mxu0 0
    %1802 = vmatpush1.bf16.msra.mxu0 0
    %1803 = vmatprep.subr.bf16.mxu0 0
    %1804 = vmatpush1.bf16.msra.mxu0 0
    %1805 = vmatprep.subr.bf16.mxu0 0
    %1806 = vmatpush1.bf16.msra.mxu0 0
    %1807 = vmatprep.subr.bf16.mxu0 0
    %1808 = vmatpush1.bf16.msra.mxu0 0
    %1809 = vmatprep.subr.bf16.mxu0 0
    %1810 = vmatpush1.bf16.msra.mxu0 0
    %1811 = vmatprep.subr.bf16.mxu0 0
    %1812 = vmatpush1.bf16.msra.mxu0 0
    %1813 = vmatprep.subr.bf16.mxu0 0
    %1814 = vmatpush1.bf16.msra.mxu0 0
    %1815 = vmatprep.subr.bf16.mxu0 0
    %1816 = vmatpush1.bf16.msra.mxu0 0
    %1817 = vmatprep.subr.bf16.mxu0 0
    %1818 = vmatpush1.bf16.msra.mxu0 0
    %1819 = vmatprep.subr.bf16.mxu0 0
    %1820 = vmatpush1.bf16.msra.mxu0 0
    %1821 = vmatprep.subr.bf16.mxu0 0
    %1822 = vmatpush1.bf16.msra.mxu0 0
    %1823 = vmatprep.subr.bf16.mxu0 0
    %1824 = vmatpush1.bf16.msra.mxu0 0
    %1825 = vmatprep.mubr.bf16.mxu0 0
    %1826 = vmatmul.mubr.bf16.gmra.mrb[0].mxu0 %v352
    %v1827 = vpop.f32.mrb[0].mxu0
    %v1828 = vadd.f32 %v1779, %v1827
    %v1829 = vpop.f32.mrb[0].mxu0
    %v1830 = vpop.f32.mrb[0].mxu0
    %v1831 = vadd.f32 %v1779, %v1830
    %v1832 = vpop.f32.mrb[0].mxu0
    %1833 = vmatprep.mubr.bf16.mxu0 0
    %1834 = vmatmul.mubr.bf16.gmra.mrb[0].mxu0 %v355
    %v1835 = vpop.f32.mrb[0].mxu0
    %v1836 = vadd.f32 %v1779, %v1835
    %v1837 = vpop.f32.mrb[0].mxu0
    %v1838 = vpop.f32.mrb[0].mxu0
    %v1839 = vadd.f32 %v1779, %v1838
    %v1840 = vpop.f32.mrb[0].mxu0
    %1841 = vmatprep.mubr.bf16.mxu0 0
    %1842 = vmatmul.mubr.bf16.gmra.mrb[0].mxu0 %v358
    %v1843 = vpop.f32.mrb[0].mxu0
    %v1844 = vadd.f32 %v1779, %v1843
    %v1845 = vpop.f32.mrb[0].mxu0
    %v1846 = vpop.f32.mrb[0].mxu0
    %v1847 = vadd.f32 %v1779, %v1846
    %v1848 = vpop.f32.mrb[0].mxu0
    %1849 = vdwg.mxu0
    %s1850 = scalar_lea.vmem %s5, 176
    %v1851 = vld [vmem:[%s1850] sm:$0xf]
    %v1852 = vld [vmem:[%s1850 + $0x4] sm:$0xf]
    %v1853 = vld [vmem:[%s1850 + $0x8] sm:$0xf]
    %v1854 = vld [vmem:[%s1850 + $0xc] sm:$0xf]
    %s1855 = scalar_lea.vmem %s6, 11
    %v1856 = vld [vmem:[%s1855] sm:$0x1]
    %v1858 = vlaneseq
    %v1859 = vshrl.u32 %v1858, 7
    %v1860 = vsub.s32 0, %v1859
    %v1861 = vrot.slane %v1856, %v1860
    %v1867 = vunpack.c.l.b16 %v1851
    %v1868 = vunpack.c.l.b16 %v1852
    %v1869 = vunpack.c.l.b16 %v1853
    %v1870 = vunpack.c.l.b16 %v1854
    %v1871 = vpack.c.b16 %v1868, %v1867
    %v1872 = vpack.c.b16 %v1870, %v1869
    %1875 = vmatprep.subr.bf16.mxu0 0
    %1876 = vmatpush1.bf16.msra.mxu0 %v1871
    %1877 = vmatprep.subr.bf16.mxu0 0
    %1878 = vmatpush1.bf16.msra.mxu0 %v1872
    %1879 = vmatprep.subr.bf16.mxu0 0
    %1880 = vmatpush1.bf16.msra.mxu0 0
    %1881 = vmatprep.subr.bf16.mxu0 0
    %1882 = vmatpush1.bf16.msra.mxu0 0
    %1883 = vmatprep.subr.bf16.mxu0 0
    %1884 = vmatpush1.bf16.msra.mxu0 0
    %1885 = vmatprep.subr.bf16.mxu0 0
    %1886 = vmatpush1.bf16.msra.mxu0 0
    %1887 = vmatprep.subr.bf16.mxu0 0
    %1888 = vmatpush1.bf16.msra.mxu0 0
    %1889 = vmatprep.subr.bf16.mxu0 0
    %1890 = vmatpush1.bf16.msra.mxu0 0
    %1891 = vmatprep.subr.bf16.mxu0 0
    %1892 = vmatpush1.bf16.msra.mxu0 0
    %1893 = vmatprep.subr.bf16.mxu0 0
    %1894 = vmatpush1.bf16.msra.mxu0 0
    %1895 = vmatprep.subr.bf16.mxu0 0
    %1896 = vmatpush1.bf16.msra.mxu0 0
    %1897 = vmatprep.subr.bf16.mxu0 0
    %1898 = vmatpush1.bf16.msra.mxu0 0
    %1899 = vmatprep.subr.bf16.mxu0 0
    %1900 = vmatpush1.bf16.msra.mxu0 0
    %1901 = vmatprep.subr.bf16.mxu0 0
    %1902 = vmatpush1.bf16.msra.mxu0 0
    %1903 = vmatprep.subr.bf16.mxu0 0
    %1904 = vmatpush1.bf16.msra.mxu0 0
    %1905 = vmatprep.subr.bf16.mxu0 0
    %1906 = vmatpush1.bf16.msra.mxu0 0
    %1907 = vmatprep.mubr.bf16.mxu0 0
    %1908 = vmatmul.mubr.bf16.gmra.mrb[0].mxu0 %v352
    %v1909 = vpop.f32.mrb[0].mxu0
    %v1910 = vadd.f32 %v1861, %v1909
    %v1911 = vpop.f32.mrb[0].mxu0
    %v1912 = vpop.f32.mrb[0].mxu0
    %v1913 = vadd.f32 %v1861, %v1912
    %v1914 = vpop.f32.mrb[0].mxu0
    %1915 = vmatprep.mubr.bf16.mxu0 0
    %1916 = vmatmul.mubr.bf16.gmra.mrb[0].mxu0 %v355
    %v1917 = vpop.f32.mrb[0].mxu0
    %v1918 = vadd.f32 %v1861, %v1917
    %v1919 = vpop.f32.mrb[0].mxu0
    %v1920 = vpop.f32.mrb[0].mxu0
    %v1921 = vadd.f32 %v1861, %v1920
    %v1922 = vpop.f32.mrb[0].mxu0
    %1923 = vmatprep.mubr.bf16.mxu0 0
    %1924 = vmatmul.mubr.bf16.gmra.mrb[0].mxu0 %v358
    %v1925 = vpop.f32.mrb[0].mxu0
    %v1926 = vadd.f32 %v1861, %v1925
    %v1927 = vpop.f32.mrb[0].mxu0
    %v1928 = vpop.f32.mrb[0].mxu0
    %v1929 = vadd.f32 %v1861, %v1928
    %v1930 = vpop.f32.mrb[0].mxu0
    %1931 = vdwg.mxu0
    %v1933 = vsel %vm587, %v1762, 0
    %v1936 = vsel %vm587, %v1763, 0
    %v1939 = vsel %vm587, %v1764, 0
    %v1942 = vsel %vm587, %v1828, 0
    %v1945 = vsel %vm587, %v1831, 0
    %v1948 = vsel %vm587, %v1836, 0
    %1950 = vmatprep.subr.mxu0 0.0
    %1951 = vmatpush1.xpose.msra.mxu0 %v1942
    %1952 = vmatprep.subr.mxu0 0.0
    %1953 = vmatpush1.xpose.msra.mxu0 %v1945
    %1954 = vmatprep.subr.mxu0 0.0
    %1955 = vmatpush1.xpose.msra.mxu0 %v1948
    %1956 = vmatprep.subr.mxu0 0.0
    %1957 = vmatpush1.xpose.msra.mxu0 0.0
    %1958 = vmatprep.subr.mxu0 0.0
    %1959 = vmatpush1.xpose.msra.mxu0 0.0
    %1960 = vmatprep.subr.mxu0 0.0
    %1961 = vmatpush1.xpose.msra.mxu0 0.0
    %1962 = vmatprep.subr.mxu0 0.0
    %1963 = vmatpush1.xpose.msra.mxu0 0.0
    %1964 = vmatprep.subr.mxu0 0.0
    %1965 = vmatpush1.xpose.msra.mxu0 0.0
    %1966 = vmatprep.subr.mxu0 0.0
    %1967 = vmatpush1.xpose.msra.mxu0 0.0
    %1968 = vmatprep.subr.mxu0 0.0
    %1969 = vmatpush1.xpose.msra.mxu0 0.0
    %1970 = vmatprep.subr.mxu0 0.0
    %1971 = vmatpush1.xpose.msra.mxu0 0.0
    %1972 = vmatprep.subr.mxu0 0.0
    %1973 = vmatpush1.xpose.msra.mxu0 0.0
    %1974 = vmatprep.subr.mxu0 0.0
    %1975 = vmatpush1.xpose.msra.mxu0 0.0
    %1976 = vmatprep.subr.mxu0 0.0
    %1977 = vmatpush1.xpose.msra.mxu0 0.0
    %1978 = vmatprep.subr.mxu0 0.0
    %1979 = vmatpush1.xpose.msra.mxu0 0.0
    %1980 = vmatprep.subr.mxu0 0.0
    %1981 = vmatpush1.xpose.msra.mxu0 0.0
    %1982 = vmatprep.subr.mxu0 0.0
    %1983 = vmatpush1.xpose.msra.mxu0 0.0
    %1984 = vmatprep.subr.mxu0 0.0
    %1985 = vmatpush1.xpose.msra.mxu0 0.0
    %1986 = vmatprep.subr.mxu0 0.0
    %1987 = vmatpush1.xpose.msra.mxu0 0.0
    %1988 = vmatprep.subr.mxu0 0.0
    %1989 = vmatpush1.xpose.msra.mxu0 0.0
    %1990 = vmatprep.subr.mxu0 0.0
    %1991 = vmatpush1.xpose.msra.mxu0 0.0
    %1992 = vmatprep.subr.mxu0 0.0
    %1993 = vmatpush1.xpose.msra.mxu0 0.0
    %1994 = vmatprep.subr.mxu0 0.0
    %1995 = vmatpush1.xpose.msra.mxu0 0.0
    %1996 = vmatprep.subr.mxu0 0.0
    %1997 = vmatpush1.xpose.msra.mxu0 0.0
    %1998 = vmatprep.subr.mxu0 0.0
    %1999 = vmatpush1.xpose.msra.mxu0 0.0
    %2000 = vmatprep.subr.mxu0 0.0
    %2001 = vmatpush1.xpose.msra.mxu0 0.0
    %2002 = vmatprep.subr.mxu0 0.0
    %2003 = vmatpush1.xpose.msra.mxu0 0.0
    %2004 = vmatprep.subr.mxu0 0.0
    %2005 = vmatpush1.xpose.msra.mxu0 0.0
    %2006 = vmatprep.subr.mxu0 0.0
    %2007 = vmatpush1.xpose.msra.mxu0 0.0
    %2008 = vmatprep.subr.mxu0 0.0
    %2009 = vmatpush1.xpose.msra.mxu0 0.0
    %2010 = vmatprep.subr.mxu0 0.0
    %2011 = vmatpush1.xpose.msra.mxu0 0.0
    %2012 = vmatprep.subr.mxu0 0.0
    %2013 = vmatpush1.xpose.msra.mxu0 0.0
    %2014 = vmatprep.mubr.f32.mxu0 0.0
    %2015 = vmatmul.mubr.f32.gmra.mrb[0].mxu0 %v1933
    %v2016 = vpop.f32.mrb[0].mxu0
    %v2017 = vadd.f32 0.0, %v2016
    %v2018 = vpop.f32.mrb[0].mxu0
    %2019 = vmatprep.mubr.f32.mxu0 0.0
    %2020 = vmatmul.mubr.f32.gmra.mrb[0].mxu0 %v1936
    %v2021 = vpop.f32.mrb[0].mxu0
    %v2022 = vadd.f32 0.0, %v2021
    %v2023 = vpop.f32.mrb[0].mxu0
    %2024 = vmatprep.mubr.f32.mxu0 0.0
    %2025 = vmatmul.mubr.f32.gmra.mrb[0].mxu0 %v1939
    %v2026 = vpop.f32.mrb[0].mxu0
    %v2027 = vadd.f32 0.0, %v2026
    %v2028 = vpop.f32.mrb[0].mxu0
    %2029 = vdwg.mxu0
    %v2031 = vsel %vm587, %v1765, 0
    %v2034 = vsel %vm587, %v1766, 0
    %v2037 = vsel %vm587, %v1767, 0
    %v2040 = vsel %vm587, %v1839, 0
    %v2043 = vsel %vm587, %v1844, 0
    %v2046 = vsel %vm587, %v1847, 0
    %2048 = vmatprep.subr.mxu0 0.0
    %2049 = vmatpush1.xpose.msra.mxu0 %v2040
    %2050 = vmatprep.subr.mxu0 0.0
    %2051 = vmatpush1.xpose.msra.mxu0 %v2043
    %2052 = vmatprep.subr.mxu0 0.0
    %2053 = vmatpush1.xpose.msra.mxu0 %v2046
    %2054 = vmatprep.subr.mxu0 0.0
    %2055 = vmatpush1.xpose.msra.mxu0 0.0
    %2056 = vmatprep.subr.mxu0 0.0
    %2057 = vmatpush1.xpose.msra.mxu0 0.0
    %2058 = vmatprep.subr.mxu0 0.0
    %2059 = vmatpush1.xpose.msra.mxu0 0.0
    %2060 = vmatprep.subr.mxu0 0.0
    %2061 = vmatpush1.xpose.msra.mxu0 0.0
    %2062 = vmatprep.subr.mxu0 0.0
    %2063 = vmatpush1.xpose.msra.mxu0 0.0
    %2064 = vmatprep.subr.mxu0 0.0
    %2065 = vmatpush1.xpose.msra.mxu0 0.0
    %2066 = vmatprep.subr.mxu0 0.0
    %2067 = vmatpush1.xpose.msra.mxu0 0.0
    %2068 = vmatprep.subr.mxu0 0.0
    %2069 = vmatpush1.xpose.msra.mxu0 0.0
    %2070 = vmatprep.subr.mxu0 0.0
    %2071 = vmatpush1.xpose.msra.mxu0 0.0
    %2072 = vmatprep.subr.mxu0 0.0
    %2073 = vmatpush1.xpose.msra.mxu0 0.0
    %2074 = vmatprep.subr.mxu0 0.0
    %2075 = vmatpush1.xpose.msra.mxu0 0.0
    %2076 = vmatprep.subr.mxu0 0.0
    %2077 = vmatpush1.xpose.msra.mxu0 0.0
    %2078 = vmatprep.subr.mxu0 0.0
    %2079 = vmatpush1.xpose.msra.mxu0 0.0
    %2080 = vmatprep.subr.mxu0 0.0
    %2081 = vmatpush1.xpose.msra.mxu0 0.0
    %2082 = vmatprep.subr.mxu0 0.0
    %2083 = vmatpush1.xpose.msra.mxu0 0.0
    %2084 = vmatprep.subr.mxu0 0.0
    %2085 = vmatpush1.xpose.msra.mxu0 0.0
    %2086 = vmatprep.subr.mxu0 0.0
    %2087 = vmatpush1.xpose.msra.mxu0 0.0
    %2088 = vmatprep.subr.mxu0 0.0
    %2089 = vmatpush1.xpose.msra.mxu0 0.0
    %2090 = vmatprep.subr.mxu0 0.0
    %2091 = vmatpush1.xpose.msra.mxu0 0.0
    %2092 = vmatprep.subr.mxu0 0.0
    %2093 = vmatpush1.xpose.msra.mxu0 0.0
    %2094 = vmatprep.subr.mxu0 0.0
    %2095 = vmatpush1.xpose.msra.mxu0 0.0
    %2096 = vmatprep.subr.mxu0 0.0
    %2097 = vmatpush1.xpose.msra.mxu0 0.0
    %2098 = vmatprep.subr.mxu0 0.0
    %2099 = vmatpush1.xpose.msra.mxu0 0.0
    %2100 = vmatprep.subr.mxu0 0.0
    %2101 = vmatpush1.xpose.msra.mxu0 0.0
    %2102 = vmatprep.subr.mxu0 0.0
    %2103 = vmatpush1.xpose.msra.mxu0 0.0
    %2104 = vmatprep.subr.mxu0 0.0
    %2105 = vmatpush1.xpose.msra.mxu0 0.0
    %2106 = vmatprep.subr.mxu0 0.0
    %2107 = vmatpush1.xpose.msra.mxu0 0.0
    %2108 = vmatprep.subr.mxu0 0.0
    %2109 = vmatpush1.xpose.msra.mxu0 0.0
    %2110 = vmatprep.subr.mxu0 0.0
    %2111 = vmatpush1.xpose.msra.mxu0 0.0
    %2112 = vmatprep.mubr.f32.mxu0 0.0
    %2113 = vmatmul.mubr.f32.gmra.mrb[0].mxu0 %v2031
    %v2114 = vpop.f32.mrb[0].mxu0
    %v2115 = vadd.f32 0.0, %v2114
    %v2116 = vpop.f32.mrb[0].mxu0
    %2117 = vmatprep.mubr.f32.mxu0 0.0
    %2118 = vmatmul.mubr.f32.gmra.mrb[0].mxu0 %v2034
    %v2119 = vpop.f32.mrb[0].mxu0
    %v2120 = vadd.f32 0.0, %v2119
    %v2121 = vpop.f32.mrb[0].mxu0
    %2122 = vmatprep.mubr.f32.mxu0 0.0
    %2123 = vmatmul.mubr.f32.gmra.mrb[0].mxu0 %v2037
    %v2124 = vpop.f32.mrb[0].mxu0
    %v2125 = vadd.f32 0.0, %v2124
    %v2126 = vpop.f32.mrb[0].mxu0
    %2127 = vdwg.mxu0
    %v2128 = vadd.f32 %v673, %v67
    %v2129 = vadd.f32 %v678, %v67
    %v2130 = vadd.f32 %v683, %v67
    %v2131 = vadd.f32 %v771, %v67
    %v2132 = vadd.f32 %v776, %v67
    %v2133 = vadd.f32 %v781, %v67
    %v2134 = vadd.f32 %v1121, %v67
    %v2135 = vadd.f32 %v1126, %v67
    %v2136 = vadd.f32 %v1131, %v67
    %v2137 = vadd.f32 %v1219, %v67
    %v2138 = vadd.f32 %v1224, %v67
    %v2139 = vadd.f32 %v1229, %v67
    %v2140 = vadd.f32 %v1569, %v67
    %v2141 = vadd.f32 %v1574, %v67
    %v2142 = vadd.f32 %v1579, %v67
    %v2143 = vadd.f32 %v1667, %v67
    %v2144 = vadd.f32 %v1672, %v67
    %v2145 = vadd.f32 %v1677, %v67
    %v2146 = vadd.f32 %v2017, %v67
    %v2147 = vadd.f32 %v2022, %v67
    %v2148 = vadd.f32 %v2027, %v67
    %v2149 = vadd.f32 %v2115, %v67
    %v2150 = vadd.f32 %v2120, %v67
    %v2151 = vadd.f32 %v2125, %v67
    %vm2152 = vcmask 195584
    %v2153 = vsel %vm2152, %v2128, -inf
    %2154 = vmax.xlane.f32.xlu0 %v2153
    %v2155 = vpop.xlane.xlu0 %2154
    %v2156 = vsel %vm2152, %v2129, -inf
    %2157 = vmax.xlane.f32.xlu0 %v2156
    %v2158 = vpop.xlane.xlu0 %2157
    %v2159 = vsel %vm2152, %v2130, -inf
    %2160 = vmax.xlane.f32.xlu0 %v2159
    %v2161 = vpop.xlane.xlu0 %2160
    %v2162 = vsel %vm2152, %v2131, -inf
    %2163 = vmax.xlane.f32.xlu0 %v2162
    %v2164 = vpop.xlane.xlu0 %2163
    %v2165 = vsel %vm2152, %v2132, -inf
    %2166 = vmax.xlane.f32.xlu0 %v2165
    %v2167 = vpop.xlane.xlu0 %2166
    %v2168 = vsel %vm2152, %v2133, -inf
    %2169 = vmax.xlane.f32.xlu0 %v2168
    %v2170 = vpop.xlane.xlu0 %2169
    %v2171 = vsel %vm2152, %v2134, -inf
    %2172 = vmax.xlane.f32.xlu0 %v2171
    %v2173 = vpop.xlane.xlu0 %2172
    %v2174 = vsel %vm2152, %v2135, -inf
    %2175 = vmax.xlane.f32.xlu0 %v2174
    %v2176 = vpop.xlane.xlu0 %2175
    %v2177 = vsel %vm2152, %v2136, -inf
    %2178 = vmax.xlane.f32.xlu0 %v2177
    %v2179 = vpop.xlane.xlu0 %2178
    %v2180 = vsel %vm2152, %v2137, -inf
    %2181 = vmax.xlane.f32.xlu0 %v2180
    %v2182 = vpop.xlane.xlu0 %2181
    %v2183 = vsel %vm2152, %v2138, -inf
    %2184 = vmax.xlane.f32.xlu0 %v2183
    %v2185 = vpop.xlane.xlu0 %2184
    %v2186 = vsel %vm2152, %v2139, -inf
    %2187 = vmax.xlane.f32.xlu0 %v2186
    %v2188 = vpop.xlane.xlu0 %2187
    %v2189 = vsel %vm2152, %v2140, -inf
    %2190 = vmax.xlane.f32.xlu0 %v2189
    %v2191 = vpop.xlane.xlu0 %2190
    %v2192 = vsel %vm2152, %v2141, -inf
    %2193 = vmax.xlane.f32.xlu0 %v2192
    %v2194 = vpop.xlane.xlu0 %2193
    %v2195 = vsel %vm2152, %v2142, -inf
    %2196 = vmax.xlane.f32.xlu0 %v2195
    %v2197 = vpop.xlane.xlu0 %2196
    %v2198 = vsel %vm2152, %v2143, -inf
    %2199 = vmax.xlane.f32.xlu0 %v2198
    %v2200 = vpop.xlane.xlu0 %2199
    %v2201 = vsel %vm2152, %v2144, -inf
    %2202 = vmax.xlane.f32.xlu0 %v2201
    %v2203 = vpop.xlane.xlu0 %2202
    %v2204 = vsel %vm2152, %v2145, -inf
    %2205 = vmax.xlane.f32.xlu0 %v2204
    %v2206 = vpop.xlane.xlu0 %2205
    %v2207 = vsel %vm2152, %v2146, -inf
    %2208 = vmax.xlane.f32.xlu0 %v2207
    %v2209 = vpop.xlane.xlu0 %2208
    %v2210 = vsel %vm2152, %v2147, -inf
    %2211 = vmax.xlane.f32.xlu0 %v2210
    %v2212 = vpop.xlane.xlu0 %2211
    %v2213 = vsel %vm2152, %v2148, -inf
    %2214 = vmax.xlane.f32.xlu0 %v2213
    %v2215 = vpop.xlane.xlu0 %2214
    %v2216 = vsel %vm2152, %v2149, -inf
    %2217 = vmax.xlane.f32.xlu0 %v2216
    %v2218 = vpop.xlane.xlu0 %2217
    %v2219 = vsel %vm2152, %v2150, -inf
    %2220 = vmax.xlane.f32.xlu0 %v2219
    %v2221 = vpop.xlane.xlu0 %2220
    %v2222 = vsel %vm2152, %v2151, -inf
    %2223 = vmax.xlane.f32.xlu0 %v2222
    %v2224 = vpop.xlane.xlu0 %2223
    %v2225 = vsub.f32 %v2128, %v2155
    %v2226 = vsub.f32 %v2129, %v2158
    %v2227 = vsub.f32 %v2130, %v2161
    %v2228 = vsub.f32 %v2131, %v2164
    %v2229 = vsub.f32 %v2132, %v2167
    %v2230 = vsub.f32 %v2133, %v2170
    %v2231 = vsub.f32 %v2134, %v2173
    %v2232 = vsub.f32 %v2135, %v2176
    %v2233 = vsub.f32 %v2136, %v2179
    %v2234 = vsub.f32 %v2137, %v2182
    %v2235 = vsub.f32 %v2138, %v2185
    %v2236 = vsub.f32 %v2139, %v2188
    %v2237 = vsub.f32 %v2140, %v2191
    %v2238 = vsub.f32 %v2141, %v2194
    %v2239 = vsub.f32 %v2142, %v2197
    %v2240 = vsub.f32 %v2143, %v2200
    %v2241 = vsub.f32 %v2144, %v2203
    %v2242 = vsub.f32 %v2145, %v2206
    %v2243 = vsub.f32 %v2146, %v2209
    %v2244 = vsub.f32 %v2147, %v2212
    %v2245 = vsub.f32 %v2148, %v2215
    %v2246 = vsub.f32 %v2149, %v2218
    %v2247 = vsub.f32 %v2150, %v2221
    %v2248 = vsub.f32 %v2151, %v2224
    %v2249 = vmul.f32 %v2225, 1.442695
    %v2250 = vpow.pop %v2249
    %v2251 = vmul.f32 %v2226, 1.442695
    %v2252 = vpow.pop %v2251
    %v2253 = vmul.f32 %v2227, 1.442695
    %v2254 = vpow.pop %v2253
    %v2255 = vmul.f32 %v2228, 1.442695
    %v2256 = vpow.pop %v2255
    %v2257 = vmul.f32 %v2229, 1.442695
    %v2258 = vpow.pop %v2257
    %v2259 = vmul.f32 %v2230, 1.442695
    %v2260 = vpow.pop %v2259
    %v2261 = vmul.f32 %v2231, 1.442695
    %v2262 = vpow.pop %v2261
    %v2263 = vmul.f32 %v2232, 1.442695
    %v2264 = vpow.pop %v2263
    %v2265 = vmul.f32 %v2233, 1.442695
    %v2266 = vpow.pop %v2265
    %v2267 = vmul.f32 %v2234, 1.442695
    %v2268 = vpow.pop %v2267
    %v2269 = vmul.f32 %v2235, 1.442695
    %v2270 = vpow.pop %v2269
    %v2271 = vmul.f32 %v2236, 1.442695
    %v2272 = vpow.pop %v2271
    %v2273 = vmul.f32 %v2237, 1.442695
    %v2274 = vpow.pop %v2273
    %v2275 = vmul.f32 %v2238, 1.442695
    %v2276 = vpow.pop %v2275
    %v2277 = vmul.f32 %v2239, 1.442695
    %v2278 = vpow.pop %v2277
    %v2279 = vmul.f32 %v2240, 1.442695
    %v2280 = vpow.pop %v2279
    %v2281 = vmul.f32 %v2241, 1.442695
    %v2282 = vpow.pop %v2281
    %v2283 = vmul.f32 %v2242, 1.442695
    %v2284 = vpow.pop %v2283
    %v2285 = vmul.f32 %v2243, 1.442695
    %v2286 = vpow.pop %v2285
    %v2287 = vmul.f32 %v2244, 1.442695
    %v2288 = vpow.pop %v2287
    %v2289 = vmul.f32 %v2245, 1.442695
    %v2290 = vpow.pop %v2289
    %v2291 = vmul.f32 %v2246, 1.442695
    %v2292 = vpow.pop %v2291
    %v2293 = vmul.f32 %v2247, 1.442695
    %v2294 = vpow.pop %v2293
    %v2295 = vmul.f32 %v2248, 1.442695
    %v2296 = vpow.pop %v2295
    %v2297 = vsel %vm2152, %v2250, 0.0
    %2298 = vadd.xlane.f32.xlu0 %v2297
    %v2299 = vpop.xlane.xlu0 %2298
    %v2300 = vsel %vm2152, %v2252, 0.0
    %2301 = vadd.xlane.f32.xlu0 %v2300
    %v2302 = vpop.xlane.xlu0 %2301
    %v2303 = vsel %vm2152, %v2254, 0.0
    %2304 = vadd.xlane.f32.xlu0 %v2303
    %v2305 = vpop.xlane.xlu0 %2304
    %v2306 = vsel %vm2152, %v2256, 0.0
    %2307 = vadd.xlane.f32.xlu0 %v2306
    %v2308 = vpop.xlane.xlu0 %2307
    %v2309 = vsel %vm2152, %v2258, 0.0
    %2310 = vadd.xlane.f32.xlu0 %v2309
    %v2311 = vpop.xlane.xlu0 %2310
    %v2312 = vsel %vm2152, %v2260, 0.0
    %2313 = vadd.xlane.f32.xlu0 %v2312
    %v2314 = vpop.xlane.xlu0 %2313
    %v2315 = vsel %vm2152, %v2262, 0.0
    %2316 = vadd.xlane.f32.xlu0 %v2315
    %v2317 = vpop.xlane.xlu0 %2316
    %v2318 = vsel %vm2152, %v2264, 0.0
    %2319 = vadd.xlane.f32.xlu0 %v2318
    %v2320 = vpop.xlane.xlu0 %2319
    %v2321 = vsel %vm2152, %v2266, 0.0
    %2322 = vadd.xlane.f32.xlu0 %v2321
    %v2323 = vpop.xlane.xlu0 %2322
    %v2324 = vsel %vm2152, %v2268, 0.0
    %2325 = vadd.xlane.f32.xlu0 %v2324
    %v2326 = vpop.xlane.xlu0 %2325
    %v2327 = vsel %vm2152, %v2270, 0.0
    %2328 = vadd.xlane.f32.xlu0 %v2327
    %v2329 = vpop.xlane.xlu0 %2328
    %v2330 = vsel %vm2152, %v2272, 0.0
    %2331 = vadd.xlane.f32.xlu0 %v2330
    %v2332 = vpop.xlane.xlu0 %2331
    %v2333 = vsel %vm2152, %v2274, 0.0
    %2334 = vadd.xlane.f32.xlu0 %v2333
    %v2335 = vpop.xlane.xlu0 %2334
    %v2336 = vsel %vm2152, %v2276, 0.0
    %2337 = vadd.xlane.f32.xlu0 %v2336
    %v2338 = vpop.xlane.xlu0 %2337
    %v2339 = vsel %vm2152, %v2278, 0.0
    %2340 = vadd.xlane.f32.xlu0 %v2339
    %v2341 = vpop.xlane.xlu0 %2340
    %v2342 = vsel %vm2152, %v2280, 0.0
    %2343 = vadd.xlane.f32.xlu0 %v2342
    %v2344 = vpop.xlane.xlu0 %2343
    %v2345 = vsel %vm2152, %v2282, 0.0
    %2346 = vadd.xlane.f32.xlu0 %v2345
    %v2347 = vpop.xlane.xlu0 %2346
    %v2348 = vsel %vm2152, %v2284, 0.0
    %2349 = vadd.xlane.f32.xlu0 %v2348
    %v2350 = vpop.xlane.xlu0 %2349
    %v2351 = vsel %vm2152, %v2286, 0.0
    %2352 = vadd.xlane.f32.xlu0 %v2351
    %v2353 = vpop.xlane.xlu0 %2352
    %v2354 = vsel %vm2152, %v2288, 0.0
    %2355 = vadd.xlane.f32.xlu0 %v2354
    %v2356 = vpop.xlane.xlu0 %2355
    %v2357 = vsel %vm2152, %v2290, 0.0
    %2358 = vadd.xlane.f32.xlu0 %v2357
    %v2359 = vpop.xlane.xlu0 %2358
    %v2360 = vsel %vm2152, %v2292, 0.0
    %2361 = vadd.xlane.f32.xlu0 %v2360
    %v2362 = vpop.xlane.xlu0 %2361
    %v2363 = vsel %vm2152, %v2294, 0.0
    %2364 = vadd.xlane.f32.xlu0 %v2363
    %v2365 = vpop.xlane.xlu0 %2364
    %v2366 = vsel %vm2152, %v2296, 0.0
    %2367 = vadd.xlane.f32.xlu0 %v2366
    %v2368 = vpop.xlane.xlu0 %2367
    %v2369 = vrcp.pop %v2299
    %v2370 = vrcp.pop %v2302
    %v2371 = vrcp.pop %v2305
    %v2372 = vrcp.pop %v2308
    %v2373 = vrcp.pop %v2311
    %v2374 = vrcp.pop %v2314
    %v2375 = vrcp.pop %v2317
    %v2376 = vrcp.pop %v2320
    %v2377 = vrcp.pop %v2323
    %v2378 = vrcp.pop %v2326
    %v2379 = vrcp.pop %v2329
    %v2380 = vrcp.pop %v2332
    %v2381 = vrcp.pop %v2335
    %v2382 = vrcp.pop %v2338
    %v2383 = vrcp.pop %v2341
    %v2384 = vrcp.pop %v2344
    %v2385 = vrcp.pop %v2347
    %v2386 = vrcp.pop %v2350
    %v2387 = vrcp.pop %v2353
    %v2388 = vrcp.pop %v2356
    %v2389 = vrcp.pop %v2359
    %v2390 = vrcp.pop %v2362
    %v2391 = vrcp.pop %v2365
    %v2392 = vrcp.pop %v2368
    %v2393 = vmul.f32 %v2250, %v2369
    %v2394 = vmul.f32 %v2252, %v2370
    %v2395 = vmul.f32 %v2254, %v2371
    %v2396 = vmul.f32 %v2256, %v2372
    %v2397 = vmul.f32 %v2258, %v2373
    %v2398 = vmul.f32 %v2260, %v2374
    %v2399 = vmul.f32 %v2262, %v2375
    %v2400 = vmul.f32 %v2264, %v2376
    %v2401 = vmul.f32 %v2266, %v2377
    %v2402 = vmul.f32 %v2268, %v2378
    %v2403 = vmul.f32 %v2270, %v2379
    %v2404 = vmul.f32 %v2272, %v2380
    %v2405 = vmul.f32 %v2274, %v2381
    %v2406 = vmul.f32 %v2276, %v2382
    %v2407 = vmul.f32 %v2278, %v2383
    %v2408 = vmul.f32 %v2280, %v2384
    %v2409 = vmul.f32 %v2282, %v2385
    %v2410 = vmul.f32 %v2284, %v2386
    %v2411 = vmul.f32 %v2286, %v2387
    %v2412 = vmul.f32 %v2288, %v2388
    %v2413 = vmul.f32 %v2290, %v2389
    %v2414 = vmul.f32 %v2292, %v2390
    %v2415 = vmul.f32 %v2294, %v2391
    %v2416 = vmul.f32 %v2296, %v2392
    %v2417 = vld [vmem:[%s7] sm:$0xf]
    %v2418 = vpack.c.bf16 %v2394, %v2393
    %v2419 = vpack.c.bf16 %v2395, %v2395
    %v2420 = vpack.c.bf16 %v568, %v565
    %v2421 = vpack.c.bf16 %v573, %v573
    %v2423 = vsel %vm2152, %v2418, 0
    %v2426 = vsel %vm2152, %v2419, 0
    %vm2428 = vcmask 1043456
    %v2430 = vsel %vm2428, %v2421, 0
    %2432 = vmatprep.subr.bf16.mxu0 0
    %2433 = vmatpush1.bf16.msra.mxu0 %v2420
    %2434 = vmatprep.subr.bf16.mxu0 0
    %2435 = vmatpush1.bf16.msra.mxu0 %v2430
    %2436 = vmatprep.subr.bf16.mxu0 0
    %2437 = vmatpush1.bf16.msra.mxu0 0
    %2438 = vmatprep.subr.bf16.mxu0 0
    %2439 = vmatpush1.bf16.msra.mxu0 0
    %2440 = vmatprep.subr.bf16.mxu0 0
    %2441 = vmatpush1.bf16.msra.mxu0 0
    %2442 = vmatprep.subr.bf16.mxu0 0
    %2443 = vmatpush1.bf16.msra.mxu0 0
    %2444 = vmatprep.subr.bf16.mxu0 0
    %2445 = vmatpush1.bf16.msra.mxu0 0
    %2446 = vmatprep.subr.bf16.mxu0 0
    %2447 = vmatpush1.bf16.msra.mxu0 0
    %2448 = vmatprep.subr.bf16.mxu0 0
    %2449 = vmatpush1.bf16.msra.mxu0 0
    %2450 = vmatprep.subr.bf16.mxu0 0
    %2451 = vmatpush1.bf16.msra.mxu0 0
    %2452 = vmatprep.subr.bf16.mxu0 0
    %2453 = vmatpush1.bf16.msra.mxu0 0
    %2454 = vmatprep.subr.bf16.mxu0 0
    %2455 = vmatpush1.bf16.msra.mxu0 0
    %2456 = vmatprep.subr.bf16.mxu0 0
    %2457 = vmatpush1.bf16.msra.mxu0 0
    %2458 = vmatprep.subr.bf16.mxu0 0
    %2459 = vmatpush1.bf16.msra.mxu0 0
    %2460 = vmatprep.subr.bf16.mxu0 0
    %2461 = vmatpush1.bf16.msra.mxu0 0
    %2462 = vmatprep.subr.bf16.mxu0 0
    %2463 = vmatpush1.bf16.msra.mxu0 0
    %2464 = vmatprep.mubr.bf16.mxu0 0
    %2465 = vmatmul.mubr.bf16.gmra.mrb[0].mxu0 %v2423
    %v2466 = vpop.f32.mrb[0].mxu0
    %v2467 = vadd.f32 0.0, %v2466
    %v2468 = vpop.f32.mrb[0].mxu0
    %v2469 = vpop.f32.mrb[0].mxu0
    %v2470 = vadd.f32 0.0, %v2469
    %v2471 = vpop.f32.mrb[0].mxu0
    %2472 = vmatprep.mubr.bf16.mxu0 0
    %2473 = vmatmul.mubr.bf16.gmra.mrb[0].mxu0 %v2426
    %v2474 = vpop.f32.mrb[0].mxu0
    %v2475 = vadd.f32 0.0, %v2474
    %v2476 = vpop.f32.mrb[0].mxu0
    %v2477 = vpop.f32.mrb[0].mxu0
    %v2478 = vpop.f32.mrb[0].mxu0
    %2479 = vdwg.mxu0
    %v2480 = vpack.c.bf16 %v2470, %v2467
    %v2481 = vpack.c.bf16 %v2475, %v2475
    %v2482 = vpack.c.bf16 %v2397, %v2396
    %v2483 = vpack.c.bf16 %v2398, %v2398
    %v2484 = vpack.c.bf16 %v581, %v576
    %v2485 = vpack.c.bf16 %v584, %v584
    %v2487 = vsel %vm2152, %v2482, 0
    %v2490 = vsel %vm2152, %v2483, 0
    %v2493 = vsel %vm2428, %v2485, 0
    %2495 = vmatprep.subr.bf16.mxu0 0
    %2496 = vmatpush1.bf16.msra.mxu0 %v2484
    %2497 = vmatprep.subr.bf16.mxu0 0
    %2498 = vmatpush1.bf16.msra.mxu0 %v2493
    %2499 = vmatprep.subr.bf16.mxu0 0
    %2500 = vmatpush1.bf16.msra.mxu0 0
    %2501 = vmatprep.subr.bf16.mxu0 0
    %2502 = vmatpush1.bf16.msra.mxu0 0
    %2503 = vmatprep.subr.bf16.mxu0 0
    %2504 = vmatpush1.bf16.msra.mxu0 0
    %2505 = vmatprep.subr.bf16.mxu0 0
    %2506 = vmatpush1.bf16.msra.mxu0 0
    %2507 = vmatprep.subr.bf16.mxu0 0
    %2508 = vmatpush1.bf16.msra.mxu0 0
    %2509 = vmatprep.subr.bf16.mxu0 0
    %2510 = vmatpush1.bf16.msra.mxu0 0
    %2511 = vmatprep.subr.bf16.mxu0 0
    %2512 = vmatpush1.bf16.msra.mxu0 0
    %2513 = vmatprep.subr.bf16.mxu0 0
    %2514 = vmatpush1.bf16.msra.mxu0 0
    %2515 = vmatprep.subr.bf16.mxu0 0
    %2516 = vmatpush1.bf16.msra.mxu0 0
    %2517 = vmatprep.subr.bf16.mxu0 0
    %2518 = vmatpush1.bf16.msra.mxu0 0
    %2519 = vmatprep.subr.bf16.mxu0 0
    %2520 = vmatpush1.bf16.msra.mxu0 0
    %2521 = vmatprep.subr.bf16.mxu0 0
    %2522 = vmatpush1.bf16.msra.mxu0 0
    %2523 = vmatprep.subr.bf16.mxu0 0
    %2524 = vmatpush1.bf16.msra.mxu0 0
    %2525 = vmatprep.subr.bf16.mxu0 0
    %2526 = vmatpush1.bf16.msra.mxu0 0
    %2527 = vmatprep.mubr.bf16.mxu0 0
    %2528 = vmatmul.mubr.bf16.gmra.mrb[0].mxu0 %v2487
    %v2529 = vpop.f32.mrb[0].mxu0
    %v2530 = vadd.f32 0.0, %v2529
    %v2531 = vpop.f32.mrb[0].mxu0
    %v2532 = vpop.f32.mrb[0].mxu0
    %v2533 = vadd.f32 0.0, %v2532
    %v2534 = vpop.f32.mrb[0].mxu0
    %2535 = vmatprep.mubr.bf16.mxu0 0
    %2536 = vmatmul.mubr.bf16.gmra.mrb[0].mxu0 %v2490
    %v2537 = vpop.f32.mrb[0].mxu0
    %v2538 = vadd.f32 0.0, %v2537
    %v2539 = vpop.f32.mrb[0].mxu0
    %v2540 = vpop.f32.mrb[0].mxu0
    %v2541 = vpop.f32.mrb[0].mxu0
    %2542 = vdwg.mxu0
    %v2543 = vpack.c.bf16 %v2533, %v2530
    %v2544 = vpack.c.bf16 %v2538, %v2538
    %s2545 = scalar_lea.vmem %s7, 4
    %v2546 = vld [vmem:[%s2545] sm:$0xf]
    %v2547 = vpack.c.bf16 %v2400, %v2399
    %v2548 = vpack.c.bf16 %v2401, %v2401
    %v2549 = vpack.c.bf16 %v1017, %v1014
    %v2550 = vpack.c.bf16 %v1022, %v1022
    %v2552 = vsel %vm2152, %v2547, 0
    %v2555 = vsel %vm2152, %v2548, 0
    %v2558 = vsel %vm2428, %v2550, 0
    %2560 = vmatprep.subr.bf16.mxu0 0
    %2561 = vmatpush1.bf16.msra.mxu0 %v2549
    %2562 = vmatprep.subr.bf16.mxu0 0
    %2563 = vmatpush1.bf16.msra.mxu0 %v2558
    %2564 = vmatprep.subr.bf16.mxu0 0
    %2565 = vmatpush1.bf16.msra.mxu0 0
    %2566 = vmatprep.subr.bf16.mxu0 0
    %2567 = vmatpush1.bf16.msra.mxu0 0
    %2568 = vmatprep.subr.bf16.mxu0 0
    %2569 = vmatpush1.bf16.msra.mxu0 0
    %2570 = vmatprep.subr.bf16.mxu0 0
    %2571 = vmatpush1.bf16.msra.mxu0 0
    %2572 = vmatprep.subr.bf16.mxu0 0
    %2573 = vmatpush1.bf16.msra.mxu0 0
    %2574 = vmatprep.subr.bf16.mxu0 0
    %2575 = vmatpush1.bf16.msra.mxu0 0
    %2576 = vmatprep.subr.bf16.mxu0 0
    %2577 = vmatpush1.bf16.msra.mxu0 0
    %2578 = vmatprep.subr.bf16.mxu0 0
    %2579 = vmatpush1.bf16.msra.mxu0 0
    %2580 = vmatprep.subr.bf16.mxu0 0
    %2581 = vmatpush1.bf16.msra.mxu0 0
    %2582 = vmatprep.subr.bf16.mxu0 0
    %2583 = vmatpush1.bf16.msra.mxu0 0
    %2584 = vmatprep.subr.bf16.mxu0 0
    %2585 = vmatpush1.bf16.msra.mxu0 0
    %2586 = vmatprep.subr.bf16.mxu0 0
    %2587 = vmatpush1.bf16.msra.mxu0 0
    %2588 = vmatprep.subr.bf16.mxu0 0
    %2589 = vmatpush1.bf16.msra.mxu0 0
    %2590 = vmatprep.subr.bf16.mxu0 0
    %2591 = vmatpush1.bf16.msra.mxu0 0
    %2592 = vmatprep.mubr.bf16.mxu0 0
    %2593 = vmatmul.mubr.bf16.gmra.mrb[0].mxu0 %v2552
    %v2594 = vpop.f32.mrb[0].mxu0
    %v2595 = vadd.f32 0.0, %v2594
    %v2596 = vpop.f32.mrb[0].mxu0
    %v2597 = vpop.f32.mrb[0].mxu0
    %v2598 = vadd.f32 0.0, %v2597
    %v2599 = vpop.f32.mrb[0].mxu0
    %2600 = vmatprep.mubr.bf16.mxu0 0
    %2601 = vmatmul.mubr.bf16.gmra.mrb[0].mxu0 %v2555
    %v2602 = vpop.f32.mrb[0].mxu0
    %v2603 = vadd.f32 0.0, %v2602
    %v2604 = vpop.f32.mrb[0].mxu0
    %v2605 = vpop.f32.mrb[0].mxu0
    %v2606 = vpop.f32.mrb[0].mxu0
    %2607 = vdwg.mxu0
    %v2608 = vpack.c.bf16 %v2598, %v2595
    %v2609 = vpack.c.bf16 %v2603, %v2603
    %v2611 = vsel %vm587, %v2608, 0
    %v2614 = vsel %vm587, %v2609, 0
    %v2617 = vsel %vm2428, %v2546, 0
    %2619 = vmatprep.subr.bf16.mxu0 0
    %2620 = vmatpush1.bf16.msra.mxu0 %v2617
    %2621 = vmatprep.subr.bf16.mxu0 0
    %2622 = vmatpush1.bf16.msra.mxu0 0
    %2623 = vmatprep.subr.bf16.mxu0 0
    %2624 = vmatpush1.bf16.msra.mxu0 0
    %2625 = vmatprep.subr.bf16.mxu0 0
    %2626 = vmatpush1.bf16.msra.mxu0 0
    %2627 = vmatprep.subr.bf16.mxu0 0
    %2628 = vmatpush1.bf16.msra.mxu0 0
    %2629 = vmatprep.subr.bf16.mxu0 0
    %2630 = vmatpush1.bf16.msra.mxu0 0
    %2631 = vmatprep.subr.bf16.mxu0 0
    %2632 = vmatpush1.bf16.msra.mxu0 0
    %2633 = vmatprep.subr.bf16.mxu0 0
    %2634 = vmatpush1.bf16.msra.mxu0 0
    %2635 = vmatprep.subr.bf16.mxu0 0
    %2636 = vmatpush1.bf16.msra.mxu0 0
    %2637 = vmatprep.subr.bf16.mxu0 0
    %2638 = vmatpush1.bf16.msra.mxu0 0
    %2639 = vmatprep.subr.bf16.mxu0 0
    %2640 = vmatpush1.bf16.msra.mxu0 0
    %2641 = vmatprep.subr.bf16.mxu0 0
    %2642 = vmatpush1.bf16.msra.mxu0 0
    %2643 = vmatprep.subr.bf16.mxu0 0
    %2644 = vmatpush1.bf16.msra.mxu0 0
    %2645 = vmatprep.subr.bf16.mxu0 0
    %2646 = vmatpush1.bf16.msra.mxu0 0
    %2647 = vmatprep.subr.bf16.mxu0 0
    %2648 = vmatpush1.bf16.msra.mxu0 0
    %2649 = vmatprep.subr.bf16.mxu0 0
    %2650 = vmatpush1.bf16.msra.mxu0 0
    %2651 = vmatprep.mubr.bf16.mxu0 0
    %2652 = vmatmul.mubr.bf16.gmra.mrb[0].mxu0 %v2611
    %v2653 = vpop.f32.mrb[0].mxu0
    %v2654 = vadd.f32 0.0, %v2653
    %v2655 = vpop.f32.mrb[0].mxu0
    %v2656 = vpop.f32.mrb[0].mxu0
    %v2657 = vadd.f32 0.0, %v2656
    %v2658 = vpop.f32.mrb[0].mxu0
    %2659 = vmatprep.mubr.bf16.mxu0 0
    %2660 = vmatmul.mubr.bf16.gmra.mrb[0].mxu0 %v2614
    %v2661 = vpop.f32.mrb[0].mxu0
    %v2662 = vadd.f32 0.0, %v2661
    %v2663 = vpop.f32.mrb[0].mxu0
    %v2664 = vpop.f32.mrb[0].mxu0
    %v2665 = vpop.f32.mrb[0].mxu0
    %2666 = vdwg.mxu0
    %v2668 = vsel %vm587, %v2480, 0
    %v2671 = vsel %vm587, %v2481, 0
    %v2674 = vsel %vm2428, %v2417, 0
    %2676 = vmatprep.subr.bf16.mxu0 0
    %2677 = vmatpush1.bf16.msra.mxu0 %v2674
    %2678 = vmatprep.subr.bf16.mxu0 0
    %2679 = vmatpush1.bf16.msra.mxu0 0
    %2680 = vmatprep.subr.bf16.mxu0 0
    %2681 = vmatpush1.bf16.msra.mxu0 0
    %2682 = vmatprep.subr.bf16.mxu0 0
    %2683 = vmatpush1.bf16.msra.mxu0 0
    %2684 = vmatprep.subr.bf16.mxu0 0
    %2685 = vmatpush1.bf16.msra.mxu0 0
    %2686 = vmatprep.subr.bf16.mxu0 0
    %2687 = vmatpush1.bf16.msra.mxu0 0
    %2688 = vmatprep.subr.bf16.mxu0 0
    %2689 = vmatpush1.bf16.msra.mxu0 0
    %2690 = vmatprep.subr.bf16.mxu0 0
    %2691 = vmatpush1.bf16.msra.mxu0 0
    %2692 = vmatprep.subr.bf16.mxu0 0
    %2693 = vmatpush1.bf16.msra.mxu0 0
    %2694 = vmatprep.subr.bf16.mxu0 0
    %2695 = vmatpush1.bf16.msra.mxu0 0
    %2696 = vmatprep.subr.bf16.mxu0 0
    %2697 = vmatpush1.bf16.msra.mxu0 0
    %2698 = vmatprep.subr.bf16.mxu0 0
    %2699 = vmatpush1.bf16.msra.mxu0 0
    %2700 = vmatprep.subr.bf16.mxu0 0
    %2701 = vmatpush1.bf16.msra.mxu0 0
    %2702 = vmatprep.subr.bf16.mxu0 0
    %2703 = vmatpush1.bf16.msra.mxu0 0
    %2704 = vmatprep.subr.bf16.mxu0 0
    %2705 = vmatpush1.bf16.msra.mxu0 0
    %2706 = vmatprep.subr.bf16.mxu0 0
    %2707 = vmatpush1.bf16.msra.mxu0 0
    %2708 = vmatprep.mubr.bf16.mxu0 0
    %2709 = vmatmul.mubr.bf16.gmra.mrb[0].mxu0 %v2668
    %v2710 = vpop.f32.mrb[0].mxu0
    %v2711 = vadd.f32 %v2654, %v2710
    %v2712 = vpop.f32.mrb[0].mxu0
    %v2713 = vpop.f32.mrb[0].mxu0
    %v2714 = vadd.f32 %v2657, %v2713
    %v2715 = vpop.f32.mrb[0].mxu0
    %2716 = vmatprep.mubr.bf16.mxu0 0
    %2717 = vmatmul.mubr.bf16.gmra.mrb[0].mxu0 %v2671
    %v2718 = vpop.f32.mrb[0].mxu0
    %v2719 = vadd.f32 %v2662, %v2718
    %v2720 = vpop.f32.mrb[0].mxu0
    %v2721 = vpop.f32.mrb[0].mxu0
    %v2722 = vpop.f32.mrb[0].mxu0
    %2723 = vdwg.mxu0
    %v2724 = vpack.c.bf16 %v2403, %v2402
    %v2725 = vpack.c.bf16 %v2404, %v2404
    %v2726 = vpack.c.bf16 %v1030, %v1025
    %v2727 = vpack.c.bf16 %v1033, %v1033
    %v2729 = vsel %vm2152, %v2724, 0
    %v2732 = vsel %vm2152, %v2725, 0
    %v2735 = vsel %vm2428, %v2727, 0
    %2737 = vmatprep.subr.bf16.mxu0 0
    %2738 = vmatpush1.bf16.msra.mxu0 %v2726
    %2739 = vmatprep.subr.bf16.mxu0 0
    %2740 = vmatpush1.bf16.msra.mxu0 %v2735
    %2741 = vmatprep.subr.bf16.mxu0 0
    %2742 = vmatpush1.bf16.msra.mxu0 0
    %2743 = vmatprep.subr.bf16.mxu0 0
    %2744 = vmatpush1.bf16.msra.mxu0 0
    %2745 = vmatprep.subr.bf16.mxu0 0
    %2746 = vmatpush1.bf16.msra.mxu0 0
    %2747 = vmatprep.subr.bf16.mxu0 0
    %2748 = vmatpush1.bf16.msra.mxu0 0
    %2749 = vmatprep.subr.bf16.mxu0 0
    %2750 = vmatpush1.bf16.msra.mxu0 0
    %2751 = vmatprep.subr.bf16.mxu0 0
    %2752 = vmatpush1.bf16.msra.mxu0 0
    %2753 = vmatprep.subr.bf16.mxu0 0
    %2754 = vmatpush1.bf16.msra.mxu0 0
    %2755 = vmatprep.subr.bf16.mxu0 0
    %2756 = vmatpush1.bf16.msra.mxu0 0
    %2757 = vmatprep.subr.bf16.mxu0 0
    %2758 = vmatpush1.bf16.msra.mxu0 0
    %2759 = vmatprep.subr.bf16.mxu0 0
    %2760 = vmatpush1.bf16.msra.mxu0 0
    %2761 = vmatprep.subr.bf16.mxu0 0
    %2762 = vmatpush1.bf16.msra.mxu0 0
    %2763 = vmatprep.subr.bf16.mxu0 0
    %2764 = vmatpush1.bf16.msra.mxu0 0
    %2765 = vmatprep.subr.bf16.mxu0 0
    %2766 = vmatpush1.bf16.msra.mxu0 0
    %2767 = vmatprep.subr.bf16.mxu0 0
    %2768 = vmatpush1.bf16.msra.mxu0 0
    %2769 = vmatprep.mubr.bf16.mxu0 0
    %2770 = vmatmul.mubr.bf16.gmra.mrb[0].mxu0 %v2729
    %v2771 = vpop.f32.mrb[0].mxu0
    %v2772 = vadd.f32 0.0, %v2771
    %v2773 = vpop.f32.mrb[0].mxu0
    %v2774 = vpop.f32.mrb[0].mxu0
    %v2775 = vadd.f32 0.0, %v2774
    %v2776 = vpop.f32.mrb[0].mxu0
    %2777 = vmatprep.mubr.bf16.mxu0 0
    %2778 = vmatmul.mubr.bf16.gmra.mrb[0].mxu0 %v2732
    %v2779 = vpop.f32.mrb[0].mxu0
    %v2780 = vadd.f32 0.0, %v2779
    %v2781 = vpop.f32.mrb[0].mxu0
    %v2782 = vpop.f32.mrb[0].mxu0
    %v2783 = vpop.f32.mrb[0].mxu0
    %2784 = vdwg.mxu0
    %v2785 = vpack.c.bf16 %v2775, %v2772
    %v2786 = vpack.c.bf16 %v2780, %v2780
    %v2788 = vsel %vm587, %v2785, 0
    %v2791 = vsel %vm587, %v2786, 0
    %2793 = vmatprep.subr.bf16.mxu0 0
    %2794 = vmatpush1.bf16.msra.mxu0 %v2617
    %2795 = vmatprep.subr.bf16.mxu0 0
    %2796 = vmatpush1.bf16.msra.mxu0 0
    %2797 = vmatprep.subr.bf16.mxu0 0
    %2798 = vmatpush1.bf16.msra.mxu0 0
    %2799 = vmatprep.subr.bf16.mxu0 0
    %2800 = vmatpush1.bf16.msra.mxu0 0
    %2801 = vmatprep.subr.bf16.mxu0 0
    %2802 = vmatpush1.bf16.msra.mxu0 0
    %2803 = vmatprep.subr.bf16.mxu0 0
    %2804 = vmatpush1.bf16.msra.mxu0 0
    %2805 = vmatprep.subr.bf16.mxu0 0
    %2806 = vmatpush1.bf16.msra.mxu0 0
    %2807 = vmatprep.subr.bf16.mxu0 0
    %2808 = vmatpush1.bf16.msra.mxu0 0
    %2809 = vmatprep.subr.bf16.mxu0 0
    %2810 = vmatpush1.bf16.msra.mxu0 0
    %2811 = vmatprep.subr.bf16.mxu0 0
    %2812 = vmatpush1.bf16.msra.mxu0 0
    %2813 = vmatprep.subr.bf16.mxu0 0
    %2814 = vmatpush1.bf16.msra.mxu0 0
    %2815 = vmatprep.subr.bf16.mxu0 0
    %2816 = vmatpush1.bf16.msra.mxu0 0
    %2817 = vmatprep.subr.bf16.mxu0 0
    %2818 = vmatpush1.bf16.msra.mxu0 0
    %2819 = vmatprep.subr.bf16.mxu0 0
    %2820 = vmatpush1.bf16.msra.mxu0 0
    %2821 = vmatprep.subr.bf16.mxu0 0
    %2822 = vmatpush1.bf16.msra.mxu0 0
    %2823 = vmatprep.subr.bf16.mxu0 0
    %2824 = vmatpush1.bf16.msra.mxu0 0
    %2825 = vmatprep.mubr.bf16.mxu0 0
    %2826 = vmatmul.mubr.bf16.gmra.mrb[0].mxu0 %v2788
    %v2827 = vpop.f32.mrb[0].mxu0
    %v2828 = vadd.f32 0.0, %v2827
    %v2829 = vpop.f32.mrb[0].mxu0
    %v2830 = vpop.f32.mrb[0].mxu0
    %v2831 = vadd.f32 0.0, %v2830
    %v2832 = vpop.f32.mrb[0].mxu0
    %2833 = vmatprep.mubr.bf16.mxu0 0
    %2834 = vmatmul.mubr.bf16.gmra.mrb[0].mxu0 %v2791
    %v2835 = vpop.f32.mrb[0].mxu0
    %v2836 = vadd.f32 0.0, %v2835
    %v2837 = vpop.f32.mrb[0].mxu0
    %v2838 = vpop.f32.mrb[0].mxu0
    %v2839 = vpop.f32.mrb[0].mxu0
    %2840 = vdwg.mxu0
    %v2842 = vsel %vm587, %v2543, 0
    %v2845 = vsel %vm587, %v2544, 0
    %2847 = vmatprep.subr.bf16.mxu0 0
    %2848 = vmatpush1.bf16.msra.mxu0 %v2674
    %2849 = vmatprep.subr.bf16.mxu0 0
    %2850 = vmatpush1.bf16.msra.mxu0 0
    %2851 = vmatprep.subr.bf16.mxu0 0
    %2852 = vmatpush1.bf16.msra.mxu0 0
    %2853 = vmatprep.subr.bf16.mxu0 0
    %2854 = vmatpush1.bf16.msra.mxu0 0
    %2855 = vmatprep.subr.bf16.mxu0 0
    %2856 = vmatpush1.bf16.msra.mxu0 0
    %2857 = vmatprep.subr.bf16.mxu0 0
    %2858 = vmatpush1.bf16.msra.mxu0 0
    %2859 = vmatprep.subr.bf16.mxu0 0
    %2860 = vmatpush1.bf16.msra.mxu0 0
    %2861 = vmatprep.subr.bf16.mxu0 0
    %2862 = vmatpush1.bf16.msra.mxu0 0
    %2863 = vmatprep.subr.bf16.mxu0 0
    %2864 = vmatpush1.bf16.msra.mxu0 0
    %2865 = vmatprep.subr.bf16.mxu0 0
    %2866 = vmatpush1.bf16.msra.mxu0 0
    %2867 = vmatprep.subr.bf16.mxu0 0
    %2868 = vmatpush1.bf16.msra.mxu0 0
    %2869 = vmatprep.subr.bf16.mxu0 0
    %2870 = vmatpush1.bf16.msra.mxu0 0
    %2871 = vmatprep.subr.bf16.mxu0 0
    %2872 = vmatpush1.bf16.msra.mxu0 0
    %2873 = vmatprep.subr.bf16.mxu0 0
    %2874 = vmatpush1.bf16.msra.mxu0 0
    %2875 = vmatprep.subr.bf16.mxu0 0
    %2876 = vmatpush1.bf16.msra.mxu0 0
    %2877 = vmatprep.subr.bf16.mxu0 0
    %2878 = vmatpush1.bf16.msra.mxu0 0
    %2879 = vmatprep.mubr.bf16.mxu0 0
    %2880 = vmatmul.mubr.bf16.gmra.mrb[0].mxu0 %v2842
    %v2881 = vpop.f32.mrb[0].mxu0
    %v2882 = vadd.f32 %v2828, %v2881
    %v2883 = vpop.f32.mrb[0].mxu0
    %v2884 = vpop.f32.mrb[0].mxu0
    %v2885 = vadd.f32 %v2831, %v2884
    %v2886 = vpop.f32.mrb[0].mxu0
    %2887 = vmatprep.mubr.bf16.mxu0 0
    %2888 = vmatmul.mubr.bf16.gmra.mrb[0].mxu0 %v2845
    %v2889 = vpop.f32.mrb[0].mxu0
    %v2890 = vadd.f32 %v2836, %v2889
    %v2891 = vpop.f32.mrb[0].mxu0
    %v2892 = vpop.f32.mrb[0].mxu0
    %v2893 = vpop.f32.mrb[0].mxu0
    %2894 = vdwg.mxu0
    %s2895 = scalar_lea.vmem %s7, 8
    %v2896 = vld [vmem:[%s2895] sm:$0xf]
    %v2897 = vpack.c.bf16 %v2406, %v2405
    %v2898 = vpack.c.bf16 %v2407, %v2407
    %v2899 = vpack.c.bf16 %v1465, %v1462
    %v2900 = vpack.c.bf16 %v1470, %v1470
    %v2902 = vsel %vm2152, %v2897, 0
    %v2905 = vsel %vm2152, %v2898, 0
    %v2908 = vsel %vm2428, %v2900, 0
    %2910 = vmatprep.subr.bf16.mxu0 0
    %2911 = vmatpush1.bf16.msra.mxu0 %v2899
    %2912 = vmatprep.subr.bf16.mxu0 0
    %2913 = vmatpush1.bf16.msra.mxu0 %v2908
    %2914 = vmatprep.subr.bf16.mxu0 0
    %2915 = vmatpush1.bf16.msra.mxu0 0
    %2916 = vmatprep.subr.bf16.mxu0 0
    %2917 = vmatpush1.bf16.msra.mxu0 0
    %2918 = vmatprep.subr.bf16.mxu0 0
    %2919 = vmatpush1.bf16.msra.mxu0 0
    %2920 = vmatprep.subr.bf16.mxu0 0
    %2921 = vmatpush1.bf16.msra.mxu0 0
    %2922 = vmatprep.subr.bf16.mxu0 0
    %2923 = vmatpush1.bf16.msra.mxu0 0
    %2924 = vmatprep.subr.bf16.mxu0 0
    %2925 = vmatpush1.bf16.msra.mxu0 0
    %2926 = vmatprep.subr.bf16.mxu0 0
    %2927 = vmatpush1.bf16.msra.mxu0 0
    %2928 = vmatprep.subr.bf16.mxu0 0
    %2929 = vmatpush1.bf16.msra.mxu0 0
    %2930 = vmatprep.subr.bf16.mxu0 0
    %2931 = vmatpush1.bf16.msra.mxu0 0
    %2932 = vmatprep.subr.bf16.mxu0 0
    %2933 = vmatpush1.bf16.msra.mxu0 0
    %2934 = vmatprep.subr.bf16.mxu0 0
    %2935 = vmatpush1.bf16.msra.mxu0 0
    %2936 = vmatprep.subr.bf16.mxu0 0
    %2937 = vmatpush1.bf16.msra.mxu0 0
    %2938 = vmatprep.subr.bf16.mxu0 0
    %2939 = vmatpush1.bf16.msra.mxu0 0
    %2940 = vmatprep.subr.bf16.mxu0 0
    %2941 = vmatpush1.bf16.msra.mxu0 0
    %2942 = vmatprep.mubr.bf16.mxu0 0
    %2943 = vmatmul.mubr.bf16.gmra.mrb[0].mxu0 %v2902
    %v2944 = vpop.f32.mrb[0].mxu0
    %v2945 = vadd.f32 0.0, %v2944
    %v2946 = vpop.f32.mrb[0].mxu0
    %v2947 = vpop.f32.mrb[0].mxu0
    %v2948 = vadd.f32 0.0, %v2947
    %v2949 = vpop.f32.mrb[0].mxu0
    %2950 = vmatprep.mubr.bf16.mxu0 0
    %2951 = vmatmul.mubr.bf16.gmra.mrb[0].mxu0 %v2905
    %v2952 = vpop.f32.mrb[0].mxu0
    %v2953 = vadd.f32 0.0, %v2952
    %v2954 = vpop.f32.mrb[0].mxu0
    %v2955 = vpop.f32.mrb[0].mxu0
    %v2956 = vpop.f32.mrb[0].mxu0
    %2957 = vdwg.mxu0
    %v2958 = vpack.c.bf16 %v2948, %v2945
    %v2959 = vpack.c.bf16 %v2953, %v2953
    %v2961 = vsel %vm587, %v2958, 0
    %v2964 = vsel %vm587, %v2959, 0
    %v2967 = vsel %vm2428, %v2896, 0
    %2969 = vmatprep.subr.bf16.mxu0 0
    %2970 = vmatpush1.bf16.msra.mxu0 %v2967
    %2971 = vmatprep.subr.bf16.mxu0 0
    %2972 = vmatpush1.bf16.msra.mxu0 0
    %2973 = vmatprep.subr.bf16.mxu0 0
    %2974 = vmatpush1.bf16.msra.mxu0 0
    %2975 = vmatprep.subr.bf16.mxu0 0
    %2976 = vmatpush1.bf16.msra.mxu0 0
    %2977 = vmatprep.subr.bf16.mxu0 0
    %2978 = vmatpush1.bf16.msra.mxu0 0
    %2979 = vmatprep.subr.bf16.mxu0 0
    %2980 = vmatpush1.bf16.msra.mxu0 0
    %2981 = vmatprep.subr.bf16.mxu0 0
    %2982 = vmatpush1.bf16.msra.mxu0 0
    %2983 = vmatprep.subr.bf16.mxu0 0
    %2984 = vmatpush1.bf16.msra.mxu0 0
    %2985 = vmatprep.subr.bf16.mxu0 0
    %2986 = vmatpush1.bf16.msra.mxu0 0
    %2987 = vmatprep.subr.bf16.mxu0 0
    %2988 = vmatpush1.bf16.msra.mxu0 0
    %2989 = vmatprep.subr.bf16.mxu0 0
    %2990 = vmatpush1.bf16.msra.mxu0 0
    %2991 = vmatprep.subr.bf16.mxu0 0
    %2992 = vmatpush1.bf16.msra.mxu0 0
    %2993 = vmatprep.subr.bf16.mxu0 0
    %2994 = vmatpush1.bf16.msra.mxu0 0
    %2995 = vmatprep.subr.bf16.mxu0 0
    %2996 = vmatpush1.bf16.msra.mxu0 0
    %2997 = vmatprep.subr.bf16.mxu0 0
    %2998 = vmatpush1.bf16.msra.mxu0 0
    %2999 = vmatprep.subr.bf16.mxu0 0
    %3000 = vmatpush1.bf16.msra.mxu0 0
    %3001 = vmatprep.mubr.bf16.mxu0 0
    %3002 = vmatmul.mubr.bf16.gmra.mrb[0].mxu0 %v2961
    %v3003 = vpop.f32.mrb[0].mxu0
    %v3004 = vadd.f32 0.0, %v3003
    %v3005 = vpop.f32.mrb[0].mxu0
    %v3006 = vpop.f32.mrb[0].mxu0
    %v3007 = vadd.f32 0.0, %v3006
    %v3008 = vpop.f32.mrb[0].mxu0
    %3009 = vmatprep.mubr.bf16.mxu0 0
    %3010 = vmatmul.mubr.bf16.gmra.mrb[0].mxu0 %v2964
    %v3011 = vpop.f32.mrb[0].mxu0
    %v3012 = vadd.f32 0.0, %v3011
    %v3013 = vpop.f32.mrb[0].mxu0
    %v3014 = vpop.f32.mrb[0].mxu0
    %v3015 = vpop.f32.mrb[0].mxu0
    %3016 = vdwg.mxu0
    %v3017 = vadd.f32 %v2711, %v3004
    %v3018 = vadd.f32 %v2714, %v3007
    %v3019 = vadd.f32 %v2719, %v3012
    %v3020 = vpack.c.bf16 %v2409, %v2408
    %v3021 = vpack.c.bf16 %v2410, %v2410
    %v3022 = vpack.c.bf16 %v1478, %v1473
    %v3023 = vpack.c.bf16 %v1481, %v1481
    %v3025 = vsel %vm2152, %v3020, 0
    %v3028 = vsel %vm2152, %v3021, 0
    %v3031 = vsel %vm2428, %v3023, 0
    %3033 = vmatprep.subr.bf16.mxu0 0
    %3034 = vmatpush1.bf16.msra.mxu0 %v3022
    %3035 = vmatprep.subr.bf16.mxu0 0
    %3036 = vmatpush1.bf16.msra.mxu0 %v3031
    %3037 = vmatprep.subr.bf16.mxu0 0
    %3038 = vmatpush1.bf16.msra.mxu0 0
    %3039 = vmatprep.subr.bf16.mxu0 0
    %3040 = vmatpush1.bf16.msra.mxu0 0
    %3041 = vmatprep.subr.bf16.mxu0 0
    %3042 = vmatpush1.bf16.msra.mxu0 0
    %3043 = vmatprep.subr.bf16.mxu0 0
    %3044 = vmatpush1.bf16.msra.mxu0 0
    %3045 = vmatprep.subr.bf16.mxu0 0
    %3046 = vmatpush1.bf16.msra.mxu0 0
    %3047 = vmatprep.subr.bf16.mxu0 0
    %3048 = vmatpush1.bf16.msra.mxu0 0
    %3049 = vmatprep.subr.bf16.mxu0 0
    %3050 = vmatpush1.bf16.msra.mxu0 0
    %3051 = vmatprep.subr.bf16.mxu0 0
    %3052 = vmatpush1.bf16.msra.mxu0 0
    %3053 = vmatprep.subr.bf16.mxu0 0
    %3054 = vmatpush1.bf16.msra.mxu0 0
    %3055 = vmatprep.subr.bf16.mxu0 0
    %3056 = vmatpush1.bf16.msra.mxu0 0
    %3057 = vmatprep.subr.bf16.mxu0 0
    %3058 = vmatpush1.bf16.msra.mxu0 0
    %3059 = vmatprep.subr.bf16.mxu0 0
    %3060 = vmatpush1.bf16.msra.mxu0 0
    %3061 = vmatprep.subr.bf16.mxu0 0
    %3062 = vmatpush1.bf16.msra.mxu0 0
    %3063 = vmatprep.subr.bf16.mxu0 0
    %3064 = vmatpush1.bf16.msra.mxu0 0
    %3065 = vmatprep.mubr.bf16.mxu0 0
    %3066 = vmatmul.mubr.bf16.gmra.mrb[0].mxu0 %v3025
    %v3067 = vpop.f32.mrb[0].mxu0
    %v3068 = vadd.f32 0.0, %v3067
    %v3069 = vpop.f32.mrb[0].mxu0
    %v3070 = vpop.f32.mrb[0].mxu0
    %v3071 = vadd.f32 0.0, %v3070
    %v3072 = vpop.f32.mrb[0].mxu0
    %3073 = vmatprep.mubr.bf16.mxu0 0
    %3074 = vmatmul.mubr.bf16.gmra.mrb[0].mxu0 %v3028
    %v3075 = vpop.f32.mrb[0].mxu0
    %v3076 = vadd.f32 0.0, %v3075
    %v3077 = vpop.f32.mrb[0].mxu0
    %v3078 = vpop.f32.mrb[0].mxu0
    %v3079 = vpop.f32.mrb[0].mxu0
    %3080 = vdwg.mxu0
    %v3081 = vpack.c.bf16 %v3071, %v3068
    %v3082 = vpack.c.bf16 %v3076, %v3076
    %v3084 = vsel %vm587, %v3081, 0
    %v3087 = vsel %vm587, %v3082, 0
    %3089 = vmatprep.subr.bf16.mxu0 0
    %3090 = vmatpush1.bf16.msra.mxu0 %v2967
    %3091 = vmatprep.subr.bf16.mxu0 0
    %3092 = vmatpush1.bf16.msra.mxu0 0
    %3093 = vmatprep.subr.bf16.mxu0 0
    %3094 = vmatpush1.bf16.msra.mxu0 0
    %3095 = vmatprep.subr.bf16.mxu0 0
    %3096 = vmatpush1.bf16.msra.mxu0 0
    %3097 = vmatprep.subr.bf16.mxu0 0
    %3098 = vmatpush1.bf16.msra.mxu0 0
    %3099 = vmatprep.subr.bf16.mxu0 0
    %3100 = vmatpush1.bf16.msra.mxu0 0
    %3101 = vmatprep.subr.bf16.mxu0 0
    %3102 = vmatpush1.bf16.msra.mxu0 0
    %3103 = vmatprep.subr.bf16.mxu0 0
    %3104 = vmatpush1.bf16.msra.mxu0 0
    %3105 = vmatprep.subr.bf16.mxu0 0
    %3106 = vmatpush1.bf16.msra.mxu0 0
    %3107 = vmatprep.subr.bf16.mxu0 0
    %3108 = vmatpush1.bf16.msra.mxu0 0
    %3109 = vmatprep.subr.bf16.mxu0 0
    %3110 = vmatpush1.bf16.msra.mxu0 0
    %3111 = vmatprep.subr.bf16.mxu0 0
    %3112 = vmatpush1.bf16.msra.mxu0 0
    %3113 = vmatprep.subr.bf16.mxu0 0
    %3114 = vmatpush1.bf16.msra.mxu0 0
    %3115 = vmatprep.subr.bf16.mxu0 0
    %3116 = vmatpush1.bf16.msra.mxu0 0
    %3117 = vmatprep.subr.bf16.mxu0 0
    %3118 = vmatpush1.bf16.msra.mxu0 0
    %3119 = vmatprep.subr.bf16.mxu0 0
    %3120 = vmatpush1.bf16.msra.mxu0 0
    %3121 = vmatprep.mubr.bf16.mxu0 0
    %3122 = vmatmul.mubr.bf16.gmra.mrb[0].mxu0 %v3084
    %v3123 = vpop.f32.mrb[0].mxu0
    %v3124 = vadd.f32 0.0, %v3123
    %v3125 = vpop.f32.mrb[0].mxu0
    %v3126 = vpop.f32.mrb[0].mxu0
    %v3127 = vadd.f32 0.0, %v3126
    %v3128 = vpop.f32.mrb[0].mxu0
    %3129 = vmatprep.mubr.bf16.mxu0 0
    %3130 = vmatmul.mubr.bf16.gmra.mrb[0].mxu0 %v3087
    %v3131 = vpop.f32.mrb[0].mxu0
    %v3132 = vadd.f32 0.0, %v3131
    %v3133 = vpop.f32.mrb[0].mxu0
    %v3134 = vpop.f32.mrb[0].mxu0
    %v3135 = vpop.f32.mrb[0].mxu0
    %3136 = vdwg.mxu0
    %v3137 = vadd.f32 %v2882, %v3124
    %v3138 = vadd.f32 %v2885, %v3127
    %v3139 = vadd.f32 %v2890, %v3132
    %s3140 = scalar_lea.vmem %s7, 12
    %v3141 = vld [vmem:[%s3140] sm:$0xf]
    %v3142 = vpack.c.bf16 %v2412, %v2411
    %v3143 = vpack.c.bf16 %v2413, %v2413
    %v3144 = vpack.c.bf16 %v1913, %v1910
    %v3145 = vpack.c.bf16 %v1918, %v1918
    %v3147 = vsel %vm2152, %v3142, 0
    %v3150 = vsel %vm2152, %v3143, 0
    %v3153 = vsel %vm2428, %v3145, 0
    %3155 = vmatprep.subr.bf16.mxu0 0
    %3156 = vmatpush1.bf16.msra.mxu0 %v3144
    %3157 = vmatprep.subr.bf16.mxu0 0
    %3158 = vmatpush1.bf16.msra.mxu0 %v3153
    %3159 = vmatprep.subr.bf16.mxu0 0
    %3160 = vmatpush1.bf16.msra.mxu0 0
    %3161 = vmatprep.subr.bf16.mxu0 0
    %3162 = vmatpush1.bf16.msra.mxu0 0
    %3163 = vmatprep.subr.bf16.mxu0 0
    %3164 = vmatpush1.bf16.msra.mxu0 0
    %3165 = vmatprep.subr.bf16.mxu0 0
    %3166 = vmatpush1.bf16.msra.mxu0 0
    %3167 = vmatprep.subr.bf16.mxu0 0
    %3168 = vmatpush1.bf16.msra.mxu0 0
    %3169 = vmatprep.subr.bf16.mxu0 0
    %3170 = vmatpush1.bf16.msra.mxu0 0
    %3171 = vmatprep.subr.bf16.mxu0 0
    %3172 = vmatpush1.bf16.msra.mxu0 0
    %3173 = vmatprep.subr.bf16.mxu0 0
    %3174 = vmatpush1.bf16.msra.mxu0 0
    %3175 = vmatprep.subr.bf16.mxu0 0
    %3176 = vmatpush1.bf16.msra.mxu0 0
    %3177 = vmatprep.subr.bf16.mxu0 0
    %3178 = vmatpush1.bf16.msra.mxu0 0
    %3179 = vmatprep.subr.bf16.mxu0 0
    %3180 = vmatpush1.bf16.msra.mxu0 0
    %3181 = vmatprep.subr.bf16.mxu0 0
    %3182 = vmatpush1.bf16.msra.mxu0 0
    %3183 = vmatprep.subr.bf16.mxu0 0
    %3184 = vmatpush1.bf16.msra.mxu0 0
    %3185 = vmatprep.subr.bf16.mxu0 0
    %3186 = vmatpush1.bf16.msra.mxu0 0
    %3187 = vmatprep.mubr.bf16.mxu0 0
    %3188 = vmatmul.mubr.bf16.gmra.mrb[0].mxu0 %v3147
    %v3189 = vpop.f32.mrb[0].mxu0
    %v3190 = vadd.f32 0.0, %v3189
    %v3191 = vpop.f32.mrb[0].mxu0
    %v3192 = vpop.f32.mrb[0].mxu0
    %v3193 = vadd.f32 0.0, %v3192
    %v3194 = vpop.f32.mrb[0].mxu0
    %3195 = vmatprep.mubr.bf16.mxu0 0
    %3196 = vmatmul.mubr.bf16.gmra.mrb[0].mxu0 %v3150
    %v3197 = vpop.f32.mrb[0].mxu0
    %v3198 = vadd.f32 0.0, %v3197
    %v3199 = vpop.f32.mrb[0].mxu0
    %v3200 = vpop.f32.mrb[0].mxu0
    %v3201 = vpop.f32.mrb[0].mxu0
    %3202 = vdwg.mxu0
    %v3203 = vpack.c.bf16 %v3193, %v3190
    %v3204 = vpack.c.bf16 %v3198, %v3198
    %v3206 = vsel %vm587, %v3203, 0
    %v3209 = vsel %vm587, %v3204, 0
    %v3212 = vsel %vm2428, %v3141, 0
    %3214 = vmatprep.subr.bf16.mxu0 0
    %3215 = vmatpush1.bf16.msra.mxu0 %v3212
    %3216 = vmatprep.subr.bf16.mxu0 0
    %3217 = vmatpush1.bf16.msra.mxu0 0
    %3218 = vmatprep.subr.bf16.mxu0 0
    %3219 = vmatpush1.bf16.msra.mxu0 0
    %3220 = vmatprep.subr.bf16.mxu0 0
    %3221 = vmatpush1.bf16.msra.mxu0 0
    %3222 = vmatprep.subr.bf16.mxu0 0
    %3223 = vmatpush1.bf16.msra.mxu0 0
    %3224 = vmatprep.subr.bf16.mxu0 0
    %3225 = vmatpush1.bf16.msra.mxu0 0
    %3226 = vmatprep.subr.bf16.mxu0 0
    %3227 = vmatpush1.bf16.msra.mxu0 0
    %3228 = vmatprep.subr.bf16.mxu0 0
    %3229 = vmatpush1.bf16.msra.mxu0 0
    %3230 = vmatprep.subr.bf16.mxu0 0
    %3231 = vmatpush1.bf16.msra.mxu0 0
    %3232 = vmatprep.subr.bf16.mxu0 0
    %3233 = vmatpush1.bf16.msra.mxu0 0
    %3234 = vmatprep.subr.bf16.mxu0 0
    %3235 = vmatpush1.bf16.msra.mxu0 0
    %3236 = vmatprep.subr.bf16.mxu0 0
    %3237 = vmatpush1.bf16.msra.mxu0 0
    %3238 = vmatprep.subr.bf16.mxu0 0
    %3239 = vmatpush1.bf16.msra.mxu0 0
    %3240 = vmatprep.subr.bf16.mxu0 0
    %3241 = vmatpush1.bf16.msra.mxu0 0
    %3242 = vmatprep.subr.bf16.mxu0 0
    %3243 = vmatpush1.bf16.msra.mxu0 0
    %3244 = vmatprep.subr.bf16.mxu0 0
    %3245 = vmatpush1.bf16.msra.mxu0 0
    %3246 = vmatprep.mubr.bf16.mxu0 0
    %3247 = vmatmul.mubr.bf16.gmra.mrb[0].mxu0 %v3206
    %v3248 = vpop.f32.mrb[0].mxu0
    %v3249 = vadd.f32 0.0, %v3248
    %v3250 = vpop.f32.mrb[0].mxu0
    %v3251 = vpop.f32.mrb[0].mxu0
    %v3252 = vadd.f32 0.0, %v3251
    %v3253 = vpop.f32.mrb[0].mxu0
    %3254 = vmatprep.mubr.bf16.mxu0 0
    %3255 = vmatmul.mubr.bf16.gmra.mrb[0].mxu0 %v3209
    %v3256 = vpop.f32.mrb[0].mxu0
    %v3257 = vadd.f32 0.0, %v3256
    %v3258 = vpop.f32.mrb[0].mxu0
    %v3259 = vpop.f32.mrb[0].mxu0
    %v3260 = vpop.f32.mrb[0].mxu0
    %3261 = vdwg.mxu0
    %v3262 = vadd.f32 %v3017, %v3249
    %v3263 = vadd.f32 %v3018, %v3252
    %v3264 = vadd.f32 %v3019, %v3257
    %v3265 = vpack.c.bf16 %v2415, %v2414
    %v3266 = vpack.c.bf16 %v2416, %v2416
    %v3267 = vpack.c.bf16 %v1926, %v1921
    %v3268 = vpack.c.bf16 %v1929, %v1929
    %v3270 = vsel %vm2152, %v3265, 0
    %v3273 = vsel %vm2152, %v3266, 0
    %v3276 = vsel %vm2428, %v3268, 0
    %3278 = vmatprep.subr.bf16.mxu0 0
    %3279 = vmatpush1.bf16.msra.mxu0 %v3267
    %3280 = vmatprep.subr.bf16.mxu0 0
    %3281 = vmatpush1.bf16.msra.mxu0 %v3276
    %3282 = vmatprep.subr.bf16.mxu0 0
    %3283 = vmatpush1.bf16.msra.mxu0 0
    %3284 = vmatprep.subr.bf16.mxu0 0
    %3285 = vmatpush1.bf16.msra.mxu0 0
    %3286 = vmatprep.subr.bf16.mxu0 0
    %3287 = vmatpush1.bf16.msra.mxu0 0
    %3288 = vmatprep.subr.bf16.mxu0 0
    %3289 = vmatpush1.bf16.msra.mxu0 0
    %3290 = vmatprep.subr.bf16.mxu0 0
    %3291 = vmatpush1.bf16.msra.mxu0 0
    %3292 = vmatprep.subr.bf16.mxu0 0
    %3293 = vmatpush1.bf16.msra.mxu0 0
    %3294 = vmatprep.subr.bf16.mxu0 0
    %3295 = vmatpush1.bf16.msra.mxu0 0
    %3296 = vmatprep.subr.bf16.mxu0 0
    %3297 = vmatpush1.bf16.msra.mxu0 0
    %3298 = vmatprep.subr.bf16.mxu0 0
    %3299 = vmatpush1.bf16.msra.mxu0 0
    %3300 = vmatprep.subr.bf16.mxu0 0
    %3301 = vmatpush1.bf16.msra.mxu0 0
    %3302 = vmatprep.subr.bf16.mxu0 0
    %3303 = vmatpush1.bf16.msra.mxu0 0
    %3304 = vmatprep.subr.bf16.mxu0 0
    %3305 = vmatpush1.bf16.msra.mxu0 0
    %3306 = vmatprep.subr.bf16.mxu0 0
    %3307 = vmatpush1.bf16.msra.mxu0 0
    %3308 = vmatprep.subr.bf16.mxu0 0
    %3309 = vmatpush1.bf16.msra.mxu0 0
    %3310 = vmatprep.mubr.bf16.mxu0 0
    %3311 = vmatmul.mubr.bf16.gmra.mrb[0].mxu0 %v3270
    %v3312 = vpop.f32.mrb[0].mxu0
    %v3313 = vadd.f32 0.0, %v3312
    %v3314 = vpop.f32.mrb[0].mxu0
    %v3315 = vpop.f32.mrb[0].mxu0
    %v3316 = vadd.f32 0.0, %v3315
    %v3317 = vpop.f32.mrb[0].mxu0
    %3318 = vmatprep.mubr.bf16.mxu0 0
    %3319 = vmatmul.mubr.bf16.gmra.mrb[0].mxu0 %v3273
    %v3320 = vpop.f32.mrb[0].mxu0
    %v3321 = vadd.f32 0.0, %v3320
    %v3322 = vpop.f32.mrb[0].mxu0
    %v3323 = vpop.f32.mrb[0].mxu0
    %v3324 = vpop.f32.mrb[0].mxu0
    %3325 = vdwg.mxu0
    %v3326 = vpack.c.bf16 %v3316, %v3313
    %v3327 = vpack.c.bf16 %v3321, %v3321
    %v3329 = vsel %vm587, %v3326, 0
    %v3332 = vsel %vm587, %v3327, 0
    %3334 = vmatprep.subr.bf16.mxu0 0
    %3335 = vmatpush1.bf16.msra.mxu0 %v3212
    %3336 = vmatprep.subr.bf16.mxu0 0
    %3337 = vmatpush1.bf16.msra.mxu0 0
    %3338 = vmatprep.subr.bf16.mxu0 0
    %3339 = vmatpush1.bf16.msra.mxu0 0
    %3340 = vmatprep.subr.bf16.mxu0 0
    %3341 = vmatpush1.bf16.msra.mxu0 0
    %3342 = vmatprep.subr.bf16.mxu0 0
    %3343 = vmatpush1.bf16.msra.mxu0 0
    %3344 = vmatprep.subr.bf16.mxu0 0
    %3345 = vmatpush1.bf16.msra.mxu0 0
    %3346 = vmatprep.subr.bf16.mxu0 0
    %3347 = vmatpush1.bf16.msra.mxu0 0
    %3348 = vmatprep.subr.bf16.mxu0 0
    %3349 = vmatpush1.bf16.msra.mxu0 0
    %3350 = vmatprep.subr.bf16.mxu0 0
    %3351 = vmatpush1.bf16.msra.mxu0 0
    %3352 = vmatprep.subr.bf16.mxu0 0
    %3353 = vmatpush1.bf16.msra.mxu0 0
    %3354 = vmatprep.subr.bf16.mxu0 0
    %3355 = vmatpush1.bf16.msra.mxu0 0
    %3356 = vmatprep.subr.bf16.mxu0 0
    %3357 = vmatpush1.bf16.msra.mxu0 0
    %3358 = vmatprep.subr.bf16.mxu0 0
    %3359 = vmatpush1.bf16.msra.mxu0 0
    %3360 = vmatprep.subr.bf16.mxu0 0
    %3361 = vmatpush1.bf16.msra.mxu0 0
    %3362 = vmatprep.subr.bf16.mxu0 0
    %3363 = vmatpush1.bf16.msra.mxu0 0
    %3364 = vmatprep.subr.bf16.mxu0 0
    %3365 = vmatpush1.bf16.msra.mxu0 0
    %3366 = vmatprep.mubr.bf16.mxu0 0
    %3367 = vmatmul.mubr.bf16.gmra.mrb[0].mxu0 %v3329
    %v3368 = vpop.f32.mrb[0].mxu0
    %v3369 = vadd.f32 0.0, %v3368
    %v3370 = vpop.f32.mrb[0].mxu0
    %v3371 = vpop.f32.mrb[0].mxu0
    %v3372 = vadd.f32 0.0, %v3371
    %v3373 = vpop.f32.mrb[0].mxu0
    %3374 = vmatprep.mubr.bf16.mxu0 0
    %3375 = vmatmul.mubr.bf16.gmra.mrb[0].mxu0 %v3332
    %v3376 = vpop.f32.mrb[0].mxu0
    %v3377 = vadd.f32 0.0, %v3376
    %v3378 = vpop.f32.mrb[0].mxu0
    %v3379 = vpop.f32.mrb[0].mxu0
    %v3380 = vpop.f32.mrb[0].mxu0
    %3381 = vdwg.mxu0
    %v3382 = vadd.f32 %v3137, %v3369
    %v3383 = vadd.f32 %v3138, %v3372
    %v3384 = vadd.f32 %v3139, %v3377
    %v3385 = vadd.f32 %v197, %v3262
    %v3386 = vadd.f32 %v200, %v3263
    %v3387 = vadd.f32 %v205, %v3264
    %v3388 = vadd.f32 %v208, %v3382
    %v3389 = vadd.f32 %v213, %v3383
    %v3390 = vadd.f32 %v216, %v3384
    %v3391 = vld [vmem:[%s8] sm:$0x1]
    %v3393 = vlaneseq
    %v3394 = vshrl.u32 %v3393, 7
    %v3395 = vsub.s32 0, %v3394
    %v3396 = vrot.slane %v3391, %v3395
    %v3398 = vadd.f32 %v3385, %v3396
    %v3399 = vadd.f32 %v3386, %v3396
    %v3400 = vadd.f32 %v3387, %v3396
    %v3401 = vadd.f32 %v3388, %v3396
    %v3402 = vadd.f32 %v3389, %v3396
    %v3403 = vadd.f32 %v3390, %v3396
    %v3404 = vld [vmem:[%s9] sm:$0x1]
    %v3405 = vld [vmem:[%s10] sm:$0x1]
    %v3406 = vsel %vm221, %v3398, 0.0
    %3407 = vadd.xlane.f32.xlu0 %v3406
    %v3408 = vpop.xlane.xlu0 %3407
    %v3409 = vsel %vm221, %v3399, 0.0
    %3410 = vadd.xlane.f32.xlu0 %v3409
    %v3411 = vpop.xlane.xlu0 %3410
    %v3412 = vsel %vm221, %v3400, 0.0
    %3413 = vadd.xlane.f32.xlu0 %v3412
    %v3414 = vpop.xlane.xlu0 %3413
    %v3415 = vsel %vm221, %v3401, 0.0
    %3416 = vadd.xlane.f32.xlu0 %v3415
    %v3417 = vpop.xlane.xlu0 %3416
    %v3418 = vsel %vm221, %v3402, 0.0
    %3419 = vadd.xlane.f32.xlu0 %v3418
    %v3420 = vpop.xlane.xlu0 %3419
    %v3421 = vsel %vm221, %v3403, 0.0
    %3422 = vadd.xlane.f32.xlu0 %v3421
    %v3423 = vpop.xlane.xlu0 %3422
    %v3424 = vmul.f32 %v3408, %v240
    %v3425 = vmul.f32 %v3411, %v240
    %v3426 = vmul.f32 %v3414, %v240
    %v3427 = vmul.f32 %v3417, %v240
    %v3428 = vmul.f32 %v3420, %v240
    %v3429 = vmul.f32 %v3423, %v240
    %v3430 = vsub.f32 %v3398, %v3424
    %v3431 = vsub.f32 %v3399, %v3425
    %v3432 = vsub.f32 %v3400, %v3426
    %v3433 = vsub.f32 %v3401, %v3427
    %v3434 = vsub.f32 %v3402, %v3428
    %v3435 = vsub.f32 %v3403, %v3429
    %v3436 = vmul.f32 %v3430, %v3430
    %v3437 = vmul.f32 %v3431, %v3431
    %v3438 = vmul.f32 %v3432, %v3432
    %v3439 = vmul.f32 %v3433, %v3433
    %v3440 = vmul.f32 %v3434, %v3434
    %v3441 = vmul.f32 %v3435, %v3435
    %v3442 = vsel %vm221, %v3436, 0.0
    %3443 = vadd.xlane.f32.xlu0 %v3442
    %v3444 = vpop.xlane.xlu0 %3443
    %v3445 = vsel %vm221, %v3437, 0.0
    %3446 = vadd.xlane.f32.xlu0 %v3445
    %v3447 = vpop.xlane.xlu0 %3446
    %v3448 = vsel %vm221, %v3438, 0.0
    %3449 = vadd.xlane.f32.xlu0 %v3448
    %v3450 = vpop.xlane.xlu0 %3449
    %v3451 = vsel %vm221, %v3439, 0.0
    %3452 = vadd.xlane.f32.xlu0 %v3451
    %v3453 = vpop.xlane.xlu0 %3452
    %v3454 = vsel %vm221, %v3440, 0.0
    %3455 = vadd.xlane.f32.xlu0 %v3454
    %v3456 = vpop.xlane.xlu0 %3455
    %v3457 = vsel %vm221, %v3441, 0.0
    %3458 = vadd.xlane.f32.xlu0 %v3457
    %v3459 = vpop.xlane.xlu0 %3458
    %v3460 = vmul.f32 %v3444, %v240
    %v3461 = vmul.f32 %v3447, %v240
    %v3462 = vmul.f32 %v3450, %v240
    %v3463 = vmul.f32 %v3453, %v240
    %v3464 = vmul.f32 %v3456, %v240
    %v3465 = vmul.f32 %v3459, %v240
    %v3466 = vadd.f32 %v3460, 1e-06
    %v3467 = vadd.f32 %v3461, 1e-06
    %v3468 = vadd.f32 %v3462, 1e-06
    %v3469 = vadd.f32 %v3463, 1e-06
    %v3470 = vadd.f32 %v3464, 1e-06
    %v3471 = vadd.f32 %v3465, 1e-06
    %v3472 = vrsqrt.pop %v3466
    %v3473 = vrsqrt.pop %v3467
    %v3474 = vrsqrt.pop %v3468
    %v3475 = vrsqrt.pop %v3469
    %v3476 = vrsqrt.pop %v3470
    %v3477 = vrsqrt.pop %v3471
    %v3478 = vmul.f32 %v3430, %v3472
    %v3479 = vmul.f32 %v3431, %v3473
    %v3480 = vmul.f32 %v3432, %v3474
    %v3481 = vmul.f32 %v3433, %v3475
    %v3482 = vmul.f32 %v3434, %v3476
    %v3483 = vmul.f32 %v3435, %v3477
    %v3485 = vlaneseq
    %v3486 = vshrl.u32 %v3485, 7
    %v3487 = vsub.s32 0, %v3486
    %v3488 = vrot.slane %v3404, %v3487
    %v3490 = vmul.f32 %v3478, %v3488
    %v3491 = vmul.f32 %v3479, %v3488
    %v3492 = vmul.f32 %v3480, %v3488
    %v3493 = vmul.f32 %v3481, %v3488
    %v3494 = vmul.f32 %v3482, %v3488
    %v3495 = vmul.f32 %v3483, %v3488
    %v3497 = vlaneseq
    %v3498 = vshrl.u32 %v3497, 7
    %v3499 = vsub.s32 0, %v3498
    %v3500 = vrot.slane %v3405, %v3499
    %v3502 = vadd.f32 %v3490, %v3500
    %v3503 = vadd.f32 %v3491, %v3500
    %v3504 = vadd.f32 %v3492, %v3500
    %v3505 = vadd.f32 %v3493, %v3500
    %v3506 = vadd.f32 %v3494, %v3500
    %v3507 = vadd.f32 %v3495, %v3500
    %v3508 = vpack.c.bf16 %v3503, %v3502
    %v3509 = vpack.c.bf16 %v3505, %v3504
    %v3510 = vpack.c.bf16 %v3507, %v3506
    %v3511 = vld [vmem:[%s11] sm:$0xf]
    %v3512 = vld [vmem:[%s11 + $0x4] sm:$0xf]
    %v3513 = vld [vmem:[%s11 + $0x8] sm:$0xf]
    %v3514 = vld [vmem:[%s11 + $0xc] sm:$0xf]
    %v3515 = vld [vmem:[%s12] sm:$0x1]
    %v3517 = vlaneseq
    %v3518 = vshrl.u32 %v3517, 7
    %v3519 = vsub.s32 0, %v3518
    %v3520 = vrot.slane %v3515, %v3519
    %v3526 = vunpack.c.l.b16 %v3511
    %v3527 = vunpack.c.l.b16 %v3512
    %v3528 = vunpack.c.l.b16 %v3513
    %v3529 = vunpack.c.l.b16 %v3514
    %v3530 = vpack.c.b16 %v3527, %v3526
    %v3531 = vpack.c.b16 %v3529, %v3528
    %v3535 = vsel %vm221, %v3508, 0
    %v3538 = vsel %vm221, %v3509, 0
    %v3541 = vsel %vm221, %v3510, 0
    %3543 = vmatprep.subr.bf16.mxu0 0
    %3544 = vmatpush1.bf16.msra.mxu0 %v3530
    %3545 = vmatprep.subr.bf16.mxu0 0
    %3546 = vmatpush1.bf16.msra.mxu0 %v3531
    %3547 = vmatprep.subr.bf16.mxu0 0
    %3548 = vmatpush1.bf16.msra.mxu0 0
    %3549 = vmatprep.subr.bf16.mxu0 0
    %3550 = vmatpush1.bf16.msra.mxu0 0
    %3551 = vmatprep.subr.bf16.mxu0 0
    %3552 = vmatpush1.bf16.msra.mxu0 0
    %3553 = vmatprep.subr.bf16.mxu0 0
    %3554 = vmatpush1.bf16.msra.mxu0 0
    %3555 = vmatprep.subr.bf16.mxu0 0
    %3556 = vmatpush1.bf16.msra.mxu0 0
    %3557 = vmatprep.subr.bf16.mxu0 0
    %3558 = vmatpush1.bf16.msra.mxu0 0
    %3559 = vmatprep.subr.bf16.mxu0 0
    %3560 = vmatpush1.bf16.msra.mxu0 0
    %3561 = vmatprep.subr.bf16.mxu0 0
    %3562 = vmatpush1.bf16.msra.mxu0 0
    %3563 = vmatprep.subr.bf16.mxu0 0
    %3564 = vmatpush1.bf16.msra.mxu0 0
    %3565 = vmatprep.subr.bf16.mxu0 0
    %3566 = vmatpush1.bf16.msra.mxu0 0
    %3567 = vmatprep.subr.bf16.mxu0 0
    %3568 = vmatpush1.bf16.msra.mxu0 0
    %3569 = vmatprep.subr.bf16.mxu0 0
    %3570 = vmatpush1.bf16.msra.mxu0 0
    %3571 = vmatprep.subr.bf16.mxu0 0
    %3572 = vmatpush1.bf16.msra.mxu0 0
    %3573 = vmatprep.subr.bf16.mxu0 0
    %3574 = vmatpush1.bf16.msra.mxu0 0
    %3575 = vmatprep.mubr.bf16.mxu0 0
    %3576 = vmatmul.mubr.bf16.gmra.mrb[0].mxu0 %v3535
    %v3577 = vpop.f32.mrb[0].mxu0
    %v3578 = vadd.f32 %v3520, %v3577
    %v3579 = vpop.f32.mrb[0].mxu0
    %v3580 = vpop.f32.mrb[0].mxu0
    %v3581 = vadd.f32 %v3520, %v3580
    %v3582 = vpop.f32.mrb[0].mxu0
    %3583 = vmatprep.mubr.bf16.mxu0 0
    %3584 = vmatmul.mubr.bf16.gmra.mrb[0].mxu0 %v3538
    %v3585 = vpop.f32.mrb[0].mxu0
    %v3586 = vadd.f32 %v3520, %v3585
    %v3587 = vpop.f32.mrb[0].mxu0
    %v3588 = vpop.f32.mrb[0].mxu0
    %v3589 = vadd.f32 %v3520, %v3588
    %v3590 = vpop.f32.mrb[0].mxu0
    %3591 = vmatprep.mubr.bf16.mxu0 0
    %3592 = vmatmul.mubr.bf16.gmra.mrb[0].mxu0 %v3541
    %v3593 = vpop.f32.mrb[0].mxu0
    %v3594 = vadd.f32 %v3520, %v3593
    %v3595 = vpop.f32.mrb[0].mxu0
    %v3596 = vpop.f32.mrb[0].mxu0
    %v3597 = vadd.f32 %v3520, %v3596
    %v3598 = vpop.f32.mrb[0].mxu0
    %3599 = vdwg.mxu0
    %v3600 = vmul.f32 %v3578, %v3578
    %v3601 = vmul.f32 %v3581, %v3581
    %v3602 = vmul.f32 %v3586, %v3586
    %v3603 = vmul.f32 %v3589, %v3589
    %v3604 = vmul.f32 %v3594, %v3594
    %v3605 = vmul.f32 %v3597, %v3597
    %v3606 = vmul.f32 %v3578, %v3600
    %v3607 = vmul.f32 %v3581, %v3601
    %v3608 = vmul.f32 %v3586, %v3602
    %v3609 = vmul.f32 %v3589, %v3603
    %v3610 = vmul.f32 %v3594, %v3604
    %v3611 = vmul.f32 %v3597, %v3605
    %v3612 = vmul.f32 %v3606, 0.044715
    %v3613 = vmul.f32 %v3607, 0.044715
    %v3614 = vmul.f32 %v3608, 0.044715
    %v3615 = vmul.f32 %v3609, 0.044715
    %v3616 = vmul.f32 %v3610, 0.044715
    %v3617 = vmul.f32 %v3611, 0.044715
    %v3618 = vadd.f32 %v3578, %v3612
    %v3619 = vadd.f32 %v3581, %v3613
    %v3620 = vadd.f32 %v3586, %v3614
    %v3621 = vadd.f32 %v3589, %v3615
    %v3622 = vadd.f32 %v3594, %v3616
    %v3623 = vadd.f32 %v3597, %v3617
    %v3624 = vmul.f32 %v3618, 0.7978846
    %v3625 = vmul.f32 %v3619, 0.7978846
    %v3626 = vmul.f32 %v3620, 0.7978846
    %v3627 = vmul.f32 %v3621, 0.7978846
    %v3628 = vmul.f32 %v3622, 0.7978846
    %v3629 = vmul.f32 %v3623, 0.7978846
    %v3630 = vtanh.pop %v3624
    %v3631 = vtanh.pop %v3625
    %v3632 = vtanh.pop %v3626
    %v3633 = vtanh.pop %v3627
    %v3634 = vtanh.pop %v3628
    %v3635 = vtanh.pop %v3629
    %v3636 = vadd.f32 %v3630, 1.0
    %v3637 = vadd.f32 %v3631, 1.0
    %v3638 = vadd.f32 %v3632, 1.0
    %v3639 = vadd.f32 %v3633, 1.0
    %v3640 = vadd.f32 %v3634, 1.0
    %v3641 = vadd.f32 %v3635, 1.0
    %v3642 = vmul.f32 %v3636, 0.5
    %v3643 = vmul.f32 %v3637, 0.5
    %v3644 = vmul.f32 %v3638, 0.5
    %v3645 = vmul.f32 %v3639, 0.5
    %v3646 = vmul.f32 %v3640, 0.5
    %v3647 = vmul.f32 %v3641, 0.5
    %v3648 = vmul.f32 %v3578, %v3642
    %v3649 = vmul.f32 %v3581, %v3643
    %v3650 = vmul.f32 %v3586, %v3644
    %v3651 = vmul.f32 %v3589, %v3645
    %v3652 = vmul.f32 %v3594, %v3646
    %v3653 = vmul.f32 %v3597, %v3647
    %v3654 = vpack.c.bf16 %v3649, %v3648
    %v3655 = vpack.c.bf16 %v3651, %v3650
    %v3656 = vpack.c.bf16 %v3653, %v3652
    %v3657 = vld [vmem:[%s13] sm:$0xf]
    %v3658 = vld [vmem:[%s13 + $0x4] sm:$0xf]
    %v3659 = vld [vmem:[%s13 + $0x8] sm:$0xf]
    %v3660 = vld [vmem:[%s13 + $0xc] sm:$0xf]
    %v3661 = vld [vmem:[%s13 + $0x10] sm:$0xf]
    %v3662 = vld [vmem:[%s13 + $0x14] sm:$0xf]
    %v3663 = vld [vmem:[%s13 + $0x18] sm:$0xf]
    %v3664 = vld [vmem:[%s13 + $0x1c] sm:$0xf]
    %v3665 = vld [vmem:[%s13 + $0x20] sm:$0xf]
    %v3666 = vld [vmem:[%s13 + $0x24] sm:$0xf]
    %v3667 = vld [vmem:[%s13 + $0x28] sm:$0xf]
    %v3668 = vld [vmem:[%s13 + $0x2c] sm:$0xf]
    %v3669 = vld [vmem:[%s13 + $0x30] sm:$0xf]
    %v3670 = vld [vmem:[%s13 + $0x34] sm:$0xf]
    %v3671 = vld [vmem:[%s13 + $0x38] sm:$0xf]
    %v3672 = vld [vmem:[%s13 + $0x3c] sm:$0xf]
    %v3673 = vld [vmem:[%s14] sm:$0x1]
    %v3675 = vlaneseq
    %v3676 = vshrl.u32 %v3675, 7
    %v3677 = vsub.s32 0, %v3676
    %v3678 = vrot.slane %v3673, %v3677
    %v3696 = vunpack.c.l.b16 %v3657
    %v3697 = vunpack.c.l.b16 %v3658
    %v3698 = vunpack.c.l.b16 %v3659
    %v3699 = vunpack.c.l.b16 %v3660
    %v3700 = vunpack.c.l.b16 %v3661
    %v3701 = vunpack.c.l.b16 %v3662
    %v3702 = vunpack.c.l.b16 %v3663
    %v3703 = vunpack.c.l.b16 %v3664
    %v3704 = vunpack.c.l.b16 %v3665
    %v3705 = vunpack.c.l.b16 %v3666
    %v3706 = vunpack.c.l.b16 %v3667
    %v3707 = vunpack.c.l.b16 %v3668
    %v3708 = vunpack.c.l.b16 %v3669
    %v3709 = vunpack.c.l.b16 %v3670
    %v3710 = vunpack.c.l.b16 %v3671
    %v3711 = vunpack.c.l.b16 %v3672
    %v3712 = vpack.c.b16 %v3697, %v3696
    %v3713 = vpack.c.b16 %v3699, %v3698
    %v3714 = vpack.c.b16 %v3701, %v3700
    %v3715 = vpack.c.b16 %v3703, %v3702
    %v3716 = vpack.c.b16 %v3705, %v3704
    %v3717 = vpack.c.b16 %v3707, %v3706
    %v3718 = vpack.c.b16 %v3709, %v3708
    %v3719 = vpack.c.b16 %v3711, %v3710
    %3728 = vmatprep.subr.bf16.mxu0 0
    %3729 = vmatpush1.bf16.msra.mxu0 %v3712
    %3730 = vmatprep.subr.bf16.mxu0 0
    %3731 = vmatpush1.bf16.msra.mxu0 %v3713
    %3732 = vmatprep.subr.bf16.mxu0 0
    %3733 = vmatpush1.bf16.msra.mxu0 %v3714
    %3734 = vmatprep.subr.bf16.mxu0 0
    %3735 = vmatpush1.bf16.msra.mxu0 %v3715
    %3736 = vmatprep.subr.bf16.mxu0 0
    %3737 = vmatpush1.bf16.msra.mxu0 %v3716
    %3738 = vmatprep.subr.bf16.mxu0 0
    %3739 = vmatpush1.bf16.msra.mxu0 %v3717
    %3740 = vmatprep.subr.bf16.mxu0 0
    %3741 = vmatpush1.bf16.msra.mxu0 %v3718
    %3742 = vmatprep.subr.bf16.mxu0 0
    %3743 = vmatpush1.bf16.msra.mxu0 %v3719
    %3744 = vmatprep.subr.bf16.mxu0 0
    %3745 = vmatpush1.bf16.msra.mxu0 0
    %3746 = vmatprep.subr.bf16.mxu0 0
    %3747 = vmatpush1.bf16.msra.mxu0 0
    %3748 = vmatprep.subr.bf16.mxu0 0
    %3749 = vmatpush1.bf16.msra.mxu0 0
    %3750 = vmatprep.subr.bf16.mxu0 0
    %3751 = vmatpush1.bf16.msra.mxu0 0
    %3752 = vmatprep.subr.bf16.mxu0 0
    %3753 = vmatpush1.bf16.msra.mxu0 0
    %3754 = vmatprep.subr.bf16.mxu0 0
    %3755 = vmatpush1.bf16.msra.mxu0 0
    %3756 = vmatprep.subr.bf16.mxu0 0
    %3757 = vmatpush1.bf16.msra.mxu0 0
    %3758 = vmatprep.subr.bf16.mxu0 0
    %3759 = vmatpush1.bf16.msra.mxu0 0
    %3760 = vmatprep.mubr.bf16.mxu0 0
    %3761 = vmatmul.mubr.bf16.gmra.mrb[0].mxu0 %v3654
    %v3762 = vpop.f32.mrb[0].mxu0
    %v3763 = vadd.f32 %v3678, %v3762
    %v3764 = vpop.f32.mrb[0].mxu0
    %v3765 = vpop.f32.mrb[0].mxu0
    %v3766 = vadd.f32 %v3678, %v3765
    %v3767 = vpop.f32.mrb[0].mxu0
    %3768 = vmatprep.mubr.bf16.mxu0 0
    %3769 = vmatmul.mubr.bf16.gmra.mrb[0].mxu0 %v3655
    %v3770 = vpop.f32.mrb[0].mxu0
    %v3771 = vadd.f32 %v3678, %v3770
    %v3772 = vpop.f32.mrb[0].mxu0
    %v3773 = vpop.f32.mrb[0].mxu0
    %v3774 = vadd.f32 %v3678, %v3773
    %v3775 = vpop.f32.mrb[0].mxu0
    %3776 = vmatprep.mubr.bf16.mxu0 0
    %3777 = vmatmul.mubr.bf16.gmra.mrb[0].mxu0 %v3656
    %v3778 = vpop.f32.mrb[0].mxu0
    %v3779 = vadd.f32 %v3678, %v3778
    %v3780 = vpop.f32.mrb[0].mxu0
    %v3781 = vpop.f32.mrb[0].mxu0
    %v3782 = vadd.f32 %v3678, %v3781
    %v3783 = vpop.f32.mrb[0].mxu0
    %3784 = vdwg.mxu0
    %v3785 = vadd.f32 %v3398, %v3763
    %v3786 = vadd.f32 %v3399, %v3766
    %v3787 = vadd.f32 %v3400, %v3771
    %v3788 = vadd.f32 %v3401, %v3774
    %v3789 = vadd.f32 %v3402, %v3779
    %v3790 = vadd.f32 %v3403, %v3782
    %s3791 = scalar_lea.vmem %s3, 1
    %v3792 = vld [vmem:[%s3791] sm:$0x1]
    %s3793 = scalar_lea.vmem %s4, 1
    %v3794 = vld [vmem:[%s3793] sm:$0x1]
    %v3795 = vsel %vm221, %v3785, 0.0
    %3796 = vadd.xlane.f32.xlu0 %v3795
    %v3797 = vpop.xlane.xlu0 %3796
    %v3798 = vsel %vm221, %v3786, 0.0
    %3799 = vadd.xlane.f32.xlu0 %v3798
    %v3800 = vpop.xlane.xlu0 %3799
    %v3801 = vsel %vm221, %v3787, 0.0
    %3802 = vadd.xlane.f32.xlu0 %v3801
    %v3803 = vpop.xlane.xlu0 %3802
    %v3804 = vsel %vm221, %v3788, 0.0
    %3805 = vadd.xlane.f32.xlu0 %v3804
    %v3806 = vpop.xlane.xlu0 %3805
    %v3807 = vsel %vm221, %v3789, 0.0
    %3808 = vadd.xlane.f32.xlu0 %v3807
    %v3809 = vpop.xlane.xlu0 %3808
    %v3810 = vsel %vm221, %v3790, 0.0
    %3811 = vadd.xlane.f32.xlu0 %v3810
    %v3812 = vpop.xlane.xlu0 %3811
    %v3813 = vmul.f32 %v3797, %v240
    %v3814 = vmul.f32 %v3800, %v240
    %v3815 = vmul.f32 %v3803, %v240
    %v3816 = vmul.f32 %v3806, %v240
    %v3817 = vmul.f32 %v3809, %v240
    %v3818 = vmul.f32 %v3812, %v240
    %v3819 = vsub.f32 %v3785, %v3813
    %v3820 = vsub.f32 %v3786, %v3814
    %v3821 = vsub.f32 %v3787, %v3815
    %v3822 = vsub.f32 %v3788, %v3816
    %v3823 = vsub.f32 %v3789, %v3817
    %v3824 = vsub.f32 %v3790, %v3818
    %v3825 = vmul.f32 %v3819, %v3819
    %v3826 = vmul.f32 %v3820, %v3820
    %v3827 = vmul.f32 %v3821, %v3821
    %v3828 = vmul.f32 %v3822, %v3822
    %v3829 = vmul.f32 %v3823, %v3823
    %v3830 = vmul.f32 %v3824, %v3824
    %v3831 = vsel %vm221, %v3825, 0.0
    %3832 = vadd.xlane.f32.xlu0 %v3831
    %v3833 = vpop.xlane.xlu0 %3832
    %v3834 = vsel %vm221, %v3826, 0.0
    %3835 = vadd.xlane.f32.xlu0 %v3834
    %v3836 = vpop.xlane.xlu0 %3835
    %v3837 = vsel %vm221, %v3827, 0.0
    %3838 = vadd.xlane.f32.xlu0 %v3837
    %v3839 = vpop.xlane.xlu0 %3838
    %v3840 = vsel %vm221, %v3828, 0.0
    %3841 = vadd.xlane.f32.xlu0 %v3840
    %v3842 = vpop.xlane.xlu0 %3841
    %v3843 = vsel %vm221, %v3829, 0.0
    %3844 = vadd.xlane.f32.xlu0 %v3843
    %v3845 = vpop.xlane.xlu0 %3844
    %v3846 = vsel %vm221, %v3830, 0.0
    %3847 = vadd.xlane.f32.xlu0 %v3846
    %v3848 = vpop.xlane.xlu0 %3847
    %v3849 = vmul.f32 %v3833, %v240
    %v3850 = vmul.f32 %v3836, %v240
    %v3851 = vmul.f32 %v3839, %v240
    %v3852 = vmul.f32 %v3842, %v240
    %v3853 = vmul.f32 %v3845, %v240
    %v3854 = vmul.f32 %v3848, %v240
    %v3855 = vadd.f32 %v3849, 1e-06
    %v3856 = vadd.f32 %v3850, 1e-06
    %v3857 = vadd.f32 %v3851, 1e-06
    %v3858 = vadd.f32 %v3852, 1e-06
    %v3859 = vadd.f32 %v3853, 1e-06
    %v3860 = vadd.f32 %v3854, 1e-06
    %v3861 = vrsqrt.pop %v3855
    %v3862 = vrsqrt.pop %v3856
    %v3863 = vrsqrt.pop %v3857
    %v3864 = vrsqrt.pop %v3858
    %v3865 = vrsqrt.pop %v3859
    %v3866 = vrsqrt.pop %v3860
    %v3867 = vmul.f32 %v3819, %v3861
    %v3868 = vmul.f32 %v3820, %v3862
    %v3869 = vmul.f32 %v3821, %v3863
    %v3870 = vmul.f32 %v3822, %v3864
    %v3871 = vmul.f32 %v3823, %v3865
    %v3872 = vmul.f32 %v3824, %v3866
    %v3874 = vlaneseq
    %v3875 = vshrl.u32 %v3874, 7
    %v3876 = vsub.s32 0, %v3875
    %v3877 = vrot.slane %v3792, %v3876
    %v3879 = vmul.f32 %v3867, %v3877
    %v3880 = vmul.f32 %v3868, %v3877
    %v3881 = vmul.f32 %v3869, %v3877
    %v3882 = vmul.f32 %v3870, %v3877
    %v3883 = vmul.f32 %v3871, %v3877
    %v3884 = vmul.f32 %v3872, %v3877
    %v3886 = vlaneseq
    %v3887 = vshrl.u32 %v3886, 7
    %v3888 = vsub.s32 0, %v3887
    %v3889 = vrot.slane %v3794, %v3888
    %v3891 = vadd.f32 %v3879, %v3889
    %v3892 = vadd.f32 %v3880, %v3889
    %v3893 = vadd.f32 %v3881, %v3889
    %v3894 = vadd.f32 %v3882, %v3889
    %v3895 = vadd.f32 %v3883, %v3889
    %v3896 = vadd.f32 %v3884, %v3889
    %v3897 = vpack.c.bf16 %v3892, %v3891
    %v3898 = vpack.c.bf16 %v3894, %v3893
    %v3899 = vpack.c.bf16 %v3896, %v3895
    %s3900 = scalar_lea.vmem %s5, 192
    %v3901 = vld [vmem:[%s3900] sm:$0xf]
    %v3902 = vld [vmem:[%s3900 + $0x4] sm:$0xf]
    %v3903 = vld [vmem:[%s3900 + $0x8] sm:$0xf]
    %v3904 = vld [vmem:[%s3900 + $0xc] sm:$0xf]
    %s3905 = scalar_lea.vmem %s6, 12
    %v3906 = vld [vmem:[%s3905] sm:$0x1]
    %v3908 = vlaneseq
    %v3909 = vshrl.u32 %v3908, 7
    %v3910 = vsub.s32 0, %v3909
    %v3911 = vrot.slane %v3906, %v3910
    %v3917 = vunpack.c.l.b16 %v3901
    %v3918 = vunpack.c.l.b16 %v3902
    %v3919 = vunpack.c.l.b16 %v3903
    %v3920 = vunpack.c.l.b16 %v3904
    %v3921 = vpack.c.b16 %v3918, %v3917
    %v3922 = vpack.c.b16 %v3920, %v3919
    %v3926 = vsel %vm221, %v3897, 0
    %v3929 = vsel %vm221, %v3898, 0
    %v3932 = vsel %vm221, %v3899, 0
    %3934 = vmatprep.subr.bf16.mxu0 0
    %3935 = vmatpush1.bf16.msra.mxu0 %v3921
    %3936 = vmatprep.subr.bf16.mxu0 0
    %3937 = vmatpush1.bf16.msra.mxu0 %v3922
    %3938 = vmatprep.subr.bf16.mxu0 0
    %3939 = vmatpush1.bf16.msra.mxu0 0
    %3940 = vmatprep.subr.bf16.mxu0 0
    %3941 = vmatpush1.bf16.msra.mxu0 0
    %3942 = vmatprep.subr.bf16.mxu0 0
    %3943 = vmatpush1.bf16.msra.mxu0 0
    %3944 = vmatprep.subr.bf16.mxu0 0
    %3945 = vmatpush1.bf16.msra.mxu0 0
    %3946 = vmatprep.subr.bf16.mxu0 0
    %3947 = vmatpush1.bf16.msra.mxu0 0
    %3948 = vmatprep.subr.bf16.mxu0 0
    %3949 = vmatpush1.bf16.msra.mxu0 0
    %3950 = vmatprep.subr.bf16.mxu0 0
    %3951 = vmatpush1.bf16.msra.mxu0 0
    %3952 = vmatprep.subr.bf16.mxu0 0
    %3953 = vmatpush1.bf16.msra.mxu0 0
    %3954 = vmatprep.subr.bf16.mxu0 0
    %3955 = vmatpush1.bf16.msra.mxu0 0
    %3956 = vmatprep.subr.bf16.mxu0 0
    %3957 = vmatpush1.bf16.msra.mxu0 0
    %3958 = vmatprep.subr.bf16.mxu0 0
    %3959 = vmatpush1.bf16.msra.mxu0 0
    %3960 = vmatprep.subr.bf16.mxu0 0
    %3961 = vmatpush1.bf16.msra.mxu0 0
    %3962 = vmatprep.subr.bf16.mxu0 0
    %3963 = vmatpush1.bf16.msra.mxu0 0
    %3964 = vmatprep.subr.bf16.mxu0 0
    %3965 = vmatpush1.bf16.msra.mxu0 0
    %3966 = vmatprep.mubr.bf16.mxu0 0
    %3967 = vmatmul.mubr.bf16.gmra.mrb[0].mxu0 %v3926
    %v3968 = vpop.f32.mrb[0].mxu0
    %v3969 = vadd.f32 %v3911, %v3968
    %v3970 = vpop.f32.mrb[0].mxu0
    %v3971 = vpop.f32.mrb[0].mxu0
    %v3972 = vadd.f32 %v3911, %v3971
    %v3973 = vpop.f32.mrb[0].mxu0
    %3974 = vmatprep.mubr.bf16.mxu0 0
    %3975 = vmatmul.mubr.bf16.gmra.mrb[0].mxu0 %v3929
    %v3976 = vpop.f32.mrb[0].mxu0
    %v3977 = vadd.f32 %v3911, %v3976
    %v3978 = vpop.f32.mrb[0].mxu0
    %v3979 = vpop.f32.mrb[0].mxu0
    %v3980 = vadd.f32 %v3911, %v3979
    %v3981 = vpop.f32.mrb[0].mxu0
    %3982 = vmatprep.mubr.bf16.mxu0 0
    %3983 = vmatmul.mubr.bf16.gmra.mrb[0].mxu0 %v3932
    %v3984 = vpop.f32.mrb[0].mxu0
    %v3985 = vadd.f32 %v3911, %v3984
    %v3986 = vpop.f32.mrb[0].mxu0
    %v3987 = vpop.f32.mrb[0].mxu0
    %v3988 = vadd.f32 %v3911, %v3987
    %v3989 = vpop.f32.mrb[0].mxu0
    %3990 = vdwg.mxu0
    %v3991 = vmul.f32 %v3969, 0.35355338
    %v3992 = vmul.f32 %v3972, 0.35355338
    %v3993 = vmul.f32 %v3977, 0.35355338
    %v3994 = vmul.f32 %v3980, 0.35355338
    %v3995 = vmul.f32 %v3985, 0.35355338
    %v3996 = vmul.f32 %v3988, 0.35355338
    %s3997 = scalar_lea.vmem %s5, 256
    %v3998 = vld [vmem:[%s3997] sm:$0xf]
    %v3999 = vld [vmem:[%s3997 + $0x4] sm:$0xf]
    %v4000 = vld [vmem:[%s3997 + $0x8] sm:$0xf]
    %v4001 = vld [vmem:[%s3997 + $0xc] sm:$0xf]
    %s4002 = scalar_lea.vmem %s6, 16
    %v4003 = vld [vmem:[%s4002] sm:$0x1]
    %v4005 = vlaneseq
    %v4006 = vshrl.u32 %v4005, 7
    %v4007 = vsub.s32 0, %v4006
    %v4008 = vrot.slane %v4003, %v4007
    %v4014 = vunpack.c.l.b16 %v3998
    %v4015 = vunpack.c.l.b16 %v3999
    %v4016 = vunpack.c.l.b16 %v4000
    %v4017 = vunpack.c.l.b16 %v4001
    %v4018 = vpack.c.b16 %v4015, %v4014
    %v4019 = vpack.c.b16 %v4017, %v4016
    %4022 = vmatprep.subr.bf16.mxu0 0
    %4023 = vmatpush1.bf16.msra.mxu0 %v4018
    %4024 = vmatprep.subr.bf16.mxu0 0
    %4025 = vmatpush1.bf16.msra.mxu0 %v4019
    %4026 = vmatprep.subr.bf16.mxu0 0
    %4027 = vmatpush1.bf16.msra.mxu0 0
    %4028 = vmatprep.subr.bf16.mxu0 0
    %4029 = vmatpush1.bf16.msra.mxu0 0
    %4030 = vmatprep.subr.bf16.mxu0 0
    %4031 = vmatpush1.bf16.msra.mxu0 0
    %4032 = vmatprep.subr.bf16.mxu0 0
    %4033 = vmatpush1.bf16.msra.mxu0 0
    %4034 = vmatprep.subr.bf16.mxu0 0
    %4035 = vmatpush1.bf16.msra.mxu0 0
    %4036 = vmatprep.subr.bf16.mxu0 0
    %4037 = vmatpush1.bf16.msra.mxu0 0
    %4038 = vmatprep.subr.bf16.mxu0 0
    %4039 = vmatpush1.bf16.msra.mxu0 0
    %4040 = vmatprep.subr.bf16.mxu0 0
    %4041 = vmatpush1.bf16.msra.mxu0 0
    %4042 = vmatprep.subr.bf16.mxu0 0
    %4043 = vmatpush1.bf16.msra.mxu0 0
    %4044 = vmatprep.subr.bf16.mxu0 0
    %4045 = vmatpush1.bf16.msra.mxu0 0
    %4046 = vmatprep.subr.bf16.mxu0 0
    %4047 = vmatpush1.bf16.msra.mxu0 0
    %4048 = vmatprep.subr.bf16.mxu0 0
    %4049 = vmatpush1.bf16.msra.mxu0 0
    %4050 = vmatprep.subr.bf16.mxu0 0
    %4051 = vmatpush1.bf16.msra.mxu0 0
    %4052 = vmatprep.subr.bf16.mxu0 0
    %4053 = vmatpush1.bf16.msra.mxu0 0
    %4054 = vmatprep.mubr.bf16.mxu0 0
    %4055 = vmatmul.mubr.bf16.gmra.mrb[0].mxu0 %v3926
    %v4056 = vpop.f32.mrb[0].mxu0
    %v4057 = vadd.f32 %v4008, %v4056
    %v4058 = vpop.f32.mrb[0].mxu0
    %v4059 = vpop.f32.mrb[0].mxu0
    %v4060 = vadd.f32 %v4008, %v4059
    %v4061 = vpop.f32.mrb[0].mxu0
    %4062 = vmatprep.mubr.bf16.mxu0 0
    %4063 = vmatmul.mubr.bf16.gmra.mrb[0].mxu0 %v3929
    %v4064 = vpop.f32.mrb[0].mxu0
    %v4065 = vadd.f32 %v4008, %v4064
    %v4066 = vpop.f32.mrb[0].mxu0
    %v4067 = vpop.f32.mrb[0].mxu0
    %v4068 = vadd.f32 %v4008, %v4067
    %v4069 = vpop.f32.mrb[0].mxu0
    %4070 = vmatprep.mubr.bf16.mxu0 0
    %4071 = vmatmul.mubr.bf16.gmra.mrb[0].mxu0 %v3932
    %v4072 = vpop.f32.mrb[0].mxu0
    %v4073 = vadd.f32 %v4008, %v4072
    %v4074 = vpop.f32.mrb[0].mxu0
    %v4075 = vpop.f32.mrb[0].mxu0
    %v4076 = vadd.f32 %v4008, %v4075
    %v4077 = vpop.f32.mrb[0].mxu0
    %4078 = vdwg.mxu0
    %s4079 = scalar_lea.vmem %s5, 320
    %v4080 = vld [vmem:[%s4079] sm:$0xf]
    %v4081 = vld [vmem:[%s4079 + $0x4] sm:$0xf]
    %v4082 = vld [vmem:[%s4079 + $0x8] sm:$0xf]
    %v4083 = vld [vmem:[%s4079 + $0xc] sm:$0xf]
    %s4084 = scalar_lea.vmem %s6, 20
    %v4085 = vld [vmem:[%s4084] sm:$0x1]
    %v4087 = vlaneseq
    %v4088 = vshrl.u32 %v4087, 7
    %v4089 = vsub.s32 0, %v4088
    %v4090 = vrot.slane %v4085, %v4089
    %v4096 = vunpack.c.l.b16 %v4080
    %v4097 = vunpack.c.l.b16 %v4081
    %v4098 = vunpack.c.l.b16 %v4082
    %v4099 = vunpack.c.l.b16 %v4083
    %v4100 = vpack.c.b16 %v4097, %v4096
    %v4101 = vpack.c.b16 %v4099, %v4098
    %4104 = vmatprep.subr.bf16.mxu0 0
    %4105 = vmatpush1.bf16.msra.mxu0 %v4100
    %4106 = vmatprep.subr.bf16.mxu0 0
    %4107 = vmatpush1.bf16.msra.mxu0 %v4101
    %4108 = vmatprep.subr.bf16.mxu0 0
    %4109 = vmatpush1.bf16.msra.mxu0 0
    %4110 = vmatprep.subr.bf16.mxu0 0
    %4111 = vmatpush1.bf16.msra.mxu0 0
    %4112 = vmatprep.subr.bf16.mxu0 0
    %4113 = vmatpush1.bf16.msra.mxu0 0
    %4114 = vmatprep.subr.bf16.mxu0 0
    %4115 = vmatpush1.bf16.msra.mxu0 0
    %4116 = vmatprep.subr.bf16.mxu0 0
    %4117 = vmatpush1.bf16.msra.mxu0 0
    %4118 = vmatprep.subr.bf16.mxu0 0
    %4119 = vmatpush1.bf16.msra.mxu0 0
    %4120 = vmatprep.subr.bf16.mxu0 0
    %4121 = vmatpush1.bf16.msra.mxu0 0
    %4122 = vmatprep.subr.bf16.mxu0 0
    %4123 = vmatpush1.bf16.msra.mxu0 0
    %4124 = vmatprep.subr.bf16.mxu0 0
    %4125 = vmatpush1.bf16.msra.mxu0 0
    %4126 = vmatprep.subr.bf16.mxu0 0
    %4127 = vmatpush1.bf16.msra.mxu0 0
    %4128 = vmatprep.subr.bf16.mxu0 0
    %4129 = vmatpush1.bf16.msra.mxu0 0
    %4130 = vmatprep.subr.bf16.mxu0 0
    %4131 = vmatpush1.bf16.msra.mxu0 0
    %4132 = vmatprep.subr.bf16.mxu0 0
    %4133 = vmatpush1.bf16.msra.mxu0 0
    %4134 = vmatprep.subr.bf16.mxu0 0
    %4135 = vmatpush1.bf16.msra.mxu0 0
    %4136 = vmatprep.mubr.bf16.mxu0 0
    %4137 = vmatmul.mubr.bf16.gmra.mrb[0].mxu0 %v3926
    %v4138 = vpop.f32.mrb[0].mxu0
    %v4139 = vadd.f32 %v4090, %v4138
    %v4140 = vpop.f32.mrb[0].mxu0
    %v4141 = vpop.f32.mrb[0].mxu0
    %v4142 = vadd.f32 %v4090, %v4141
    %v4143 = vpop.f32.mrb[0].mxu0
    %4144 = vmatprep.mubr.bf16.mxu0 0
    %4145 = vmatmul.mubr.bf16.gmra.mrb[0].mxu0 %v3929
    %v4146 = vpop.f32.mrb[0].mxu0
    %v4147 = vadd.f32 %v4090, %v4146
    %v4148 = vpop.f32.mrb[0].mxu0
    %v4149 = vpop.f32.mrb[0].mxu0
    %v4150 = vadd.f32 %v4090, %v4149
    %v4151 = vpop.f32.mrb[0].mxu0
    %4152 = vmatprep.mubr.bf16.mxu0 0
    %4153 = vmatmul.mubr.bf16.gmra.mrb[0].mxu0 %v3932
    %v4154 = vpop.f32.mrb[0].mxu0
    %v4155 = vadd.f32 %v4090, %v4154
    %v4156 = vpop.f32.mrb[0].mxu0
    %v4157 = vpop.f32.mrb[0].mxu0
    %v4158 = vadd.f32 %v4090, %v4157
    %v4159 = vpop.f32.mrb[0].mxu0
    %4160 = vdwg.mxu0
    %v4162 = vsel %vm587, %v3991, 0
    %v4165 = vsel %vm587, %v3992, 0
    %v4168 = vsel %vm587, %v3993, 0
    %v4171 = vsel %vm587, %v4057, 0
    %v4174 = vsel %vm587, %v4060, 0
    %v4177 = vsel %vm587, %v4065, 0
    %4179 = vmatprep.subr.mxu0 0.0
    %4180 = vmatpush1.xpose.msra.mxu0 %v4171
    %4181 = vmatprep.subr.mxu0 0.0
    %4182 = vmatpush1.xpose.msra.mxu0 %v4174
    %4183 = vmatprep.subr.mxu0 0.0
    %4184 = vmatpush1.xpose.msra.mxu0 %v4177
    %4185 = vmatprep.subr.mxu0 0.0
    %4186 = vmatpush1.xpose.msra.mxu0 0.0
    %4187 = vmatprep.subr.mxu0 0.0
    %4188 = vmatpush1.xpose.msra.mxu0 0.0
    %4189 = vmatprep.subr.mxu0 0.0
    %4190 = vmatpush1.xpose.msra.mxu0 0.0
    %4191 = vmatprep.subr.mxu0 0.0
    %4192 = vmatpush1.xpose.msra.mxu0 0.0
    %4193 = vmatprep.subr.mxu0 0.0
    %4194 = vmatpush1.xpose.msra.mxu0 0.0
    %4195 = vmatprep.subr.mxu0 0.0
    %4196 = vmatpush1.xpose.msra.mxu0 0.0
    %4197 = vmatprep.subr.mxu0 0.0
    %4198 = vmatpush1.xpose.msra.mxu0 0.0
    %4199 = vmatprep.subr.mxu0 0.0
    %4200 = vmatpush1.xpose.msra.mxu0 0.0
    %4201 = vmatprep.subr.mxu0 0.0
    %4202 = vmatpush1.xpose.msra.mxu0 0.0
    %4203 = vmatprep.subr.mxu0 0.0
    %4204 = vmatpush1.xpose.msra.mxu0 0.0
    %4205 = vmatprep.subr.mxu0 0.0
    %4206 = vmatpush1.xpose.msra.mxu0 0.0
    %4207 = vmatprep.subr.mxu0 0.0
    %4208 = vmatpush1.xpose.msra.mxu0 0.0
    %4209 = vmatprep.subr.mxu0 0.0
    %4210 = vmatpush1.xpose.msra.mxu0 0.0
    %4211 = vmatprep.subr.mxu0 0.0
    %4212 = vmatpush1.xpose.msra.mxu0 0.0
    %4213 = vmatprep.subr.mxu0 0.0
    %4214 = vmatpush1.xpose.msra.mxu0 0.0
    %4215 = vmatprep.subr.mxu0 0.0
    %4216 = vmatpush1.xpose.msra.mxu0 0.0
    %4217 = vmatprep.subr.mxu0 0.0
    %4218 = vmatpush1.xpose.msra.mxu0 0.0
    %4219 = vmatprep.subr.mxu0 0.0
    %4220 = vmatpush1.xpose.msra.mxu0 0.0
    %4221 = vmatprep.subr.mxu0 0.0
    %4222 = vmatpush1.xpose.msra.mxu0 0.0
    %4223 = vmatprep.subr.mxu0 0.0
    %4224 = vmatpush1.xpose.msra.mxu0 0.0
    %4225 = vmatprep.subr.mxu0 0.0
    %4226 = vmatpush1.xpose.msra.mxu0 0.0
    %4227 = vmatprep.subr.mxu0 0.0
    %4228 = vmatpush1.xpose.msra.mxu0 0.0
    %4229 = vmatprep.subr.mxu0 0.0
    %4230 = vmatpush1.xpose.msra.mxu0 0.0
    %4231 = vmatprep.subr.mxu0 0.0
    %4232 = vmatpush1.xpose.msra.mxu0 0.0
    %4233 = vmatprep.subr.mxu0 0.0
    %4234 = vmatpush1.xpose.msra.mxu0 0.0
    %4235 = vmatprep.subr.mxu0 0.0
    %4236 = vmatpush1.xpose.msra.mxu0 0.0
    %4237 = vmatprep.subr.mxu0 0.0
    %4238 = vmatpush1.xpose.msra.mxu0 0.0
    %4239 = vmatprep.subr.mxu0 0.0
    %4240 = vmatpush1.xpose.msra.mxu0 0.0
    %4241 = vmatprep.subr.mxu0 0.0
    %4242 = vmatpush1.xpose.msra.mxu0 0.0
    %4243 = vmatprep.mubr.f32.mxu0 0.0
    %4244 = vmatmul.mubr.f32.gmra.mrb[0].mxu0 %v4162
    %v4245 = vpop.f32.mrb[0].mxu0
    %v4246 = vadd.f32 0.0, %v4245
    %v4247 = vpop.f32.mrb[0].mxu0
    %4248 = vmatprep.mubr.f32.mxu0 0.0
    %4249 = vmatmul.mubr.f32.gmra.mrb[0].mxu0 %v4165
    %v4250 = vpop.f32.mrb[0].mxu0
    %v4251 = vadd.f32 0.0, %v4250
    %v4252 = vpop.f32.mrb[0].mxu0
    %4253 = vmatprep.mubr.f32.mxu0 0.0
    %4254 = vmatmul.mubr.f32.gmra.mrb[0].mxu0 %v4168
    %v4255 = vpop.f32.mrb[0].mxu0
    %v4256 = vadd.f32 0.0, %v4255
    %v4257 = vpop.f32.mrb[0].mxu0
    %4258 = vdwg.mxu0
    %v4260 = vsel %vm587, %v3994, 0
    %v4263 = vsel %vm587, %v3995, 0
    %v4266 = vsel %vm587, %v3996, 0
    %v4269 = vsel %vm587, %v4068, 0
    %v4272 = vsel %vm587, %v4073, 0
    %v4275 = vsel %vm587, %v4076, 0
    %4277 = vmatprep.subr.mxu0 0.0
    %4278 = vmatpush1.xpose.msra.mxu0 %v4269
    %4279 = vmatprep.subr.mxu0 0.0
    %4280 = vmatpush1.xpose.msra.mxu0 %v4272
    %4281 = vmatprep.subr.mxu0 0.0
    %4282 = vmatpush1.xpose.msra.mxu0 %v4275
    %4283 = vmatprep.subr.mxu0 0.0
    %4284 = vmatpush1.xpose.msra.mxu0 0.0
    %4285 = vmatprep.subr.mxu0 0.0
    %4286 = vmatpush1.xpose.msra.mxu0 0.0
    %4287 = vmatprep.subr.mxu0 0.0
    %4288 = vmatpush1.xpose.msra.mxu0 0.0
    %4289 = vmatprep.subr.mxu0 0.0
    %4290 = vmatpush1.xpose.msra.mxu0 0.0
    %4291 = vmatprep.subr.mxu0 0.0
    %4292 = vmatpush1.xpose.msra.mxu0 0.0
    %4293 = vmatprep.subr.mxu0 0.0
    %4294 = vmatpush1.xpose.msra.mxu0 0.0
    %4295 = vmatprep.subr.mxu0 0.0
    %4296 = vmatpush1.xpose.msra.mxu0 0.0
    %4297 = vmatprep.subr.mxu0 0.0
    %4298 = vmatpush1.xpose.msra.mxu0 0.0
    %4299 = vmatprep.subr.mxu0 0.0
    %4300 = vmatpush1.xpose.msra.mxu0 0.0
    %4301 = vmatprep.subr.mxu0 0.0
    %4302 = vmatpush1.xpose.msra.mxu0 0.0
    %4303 = vmatprep.subr.mxu0 0.0
    %4304 = vmatpush1.xpose.msra.mxu0 0.0
    %4305 = vmatprep.subr.mxu0 0.0
    %4306 = vmatpush1.xpose.msra.mxu0 0.0
    %4307 = vmatprep.subr.mxu0 0.0
    %4308 = vmatpush1.xpose.msra.mxu0 0.0
    %4309 = vmatprep.subr.mxu0 0.0
    %4310 = vmatpush1.xpose.msra.mxu0 0.0
    %4311 = vmatprep.subr.mxu0 0.0
    %4312 = vmatpush1.xpose.msra.mxu0 0.0
    %4313 = vmatprep.subr.mxu0 0.0
    %4314 = vmatpush1.xpose.msra.mxu0 0.0
    %4315 = vmatprep.subr.mxu0 0.0
    %4316 = vmatpush1.xpose.msra.mxu0 0.0
    %4317 = vmatprep.subr.mxu0 0.0
    %4318 = vmatpush1.xpose.msra.mxu0 0.0
    %4319 = vmatprep.subr.mxu0 0.0
    %4320 = vmatpush1.xpose.msra.mxu0 0.0
    %4321 = vmatprep.subr.mxu0 0.0
    %4322 = vmatpush1.xpose.msra.mxu0 0.0
    %4323 = vmatprep.subr.mxu0 0.0
    %4324 = vmatpush1.xpose.msra.mxu0 0.0
    %4325 = vmatprep.subr.mxu0 0.0
    %4326 = vmatpush1.xpose.msra.mxu0 0.0
    %4327 = vmatprep.subr.mxu0 0.0
    %4328 = vmatpush1.xpose.msra.mxu0 0.0
    %4329 = vmatprep.subr.mxu0 0.0
    %4330 = vmatpush1.xpose.msra.mxu0 0.0
    %4331 = vmatprep.subr.mxu0 0.0
    %4332 = vmatpush1.xpose.msra.mxu0 0.0
    %4333 = vmatprep.subr.mxu0 0.0
    %4334 = vmatpush1.xpose.msra.mxu0 0.0
    %4335 = vmatprep.subr.mxu0 0.0
    %4336 = vmatpush1.xpose.msra.mxu0 0.0
    %4337 = vmatprep.subr.mxu0 0.0
    %4338 = vmatpush1.xpose.msra.mxu0 0.0
    %4339 = vmatprep.subr.mxu0 0.0
    %4340 = vmatpush1.xpose.msra.mxu0 0.0
    %4341 = vmatprep.mubr.f32.mxu0 0.0
    %4342 = vmatmul.mubr.f32.gmra.mrb[0].mxu0 %v4260
    %v4343 = vpop.f32.mrb[0].mxu0
    %v4344 = vadd.f32 0.0, %v4343
    %v4345 = vpop.f32.mrb[0].mxu0
    %4346 = vmatprep.mubr.f32.mxu0 0.0
    %4347 = vmatmul.mubr.f32.gmra.mrb[0].mxu0 %v4263
    %v4348 = vpop.f32.mrb[0].mxu0
    %v4349 = vadd.f32 0.0, %v4348
    %v4350 = vpop.f32.mrb[0].mxu0
    %4351 = vmatprep.mubr.f32.mxu0 0.0
    %4352 = vmatmul.mubr.f32.gmra.mrb[0].mxu0 %v4266
    %v4353 = vpop.f32.mrb[0].mxu0
    %v4354 = vadd.f32 0.0, %v4353
    %v4355 = vpop.f32.mrb[0].mxu0
    %4356 = vdwg.mxu0
    %s4357 = scalar_lea.vmem %s5, 208
    %v4358 = vld [vmem:[%s4357] sm:$0xf]
    %v4359 = vld [vmem:[%s4357 + $0x4] sm:$0xf]
    %v4360 = vld [vmem:[%s4357 + $0x8] sm:$0xf]
    %v4361 = vld [vmem:[%s4357 + $0xc] sm:$0xf]
    %s4362 = scalar_lea.vmem %s6, 13
    %v4363 = vld [vmem:[%s4362] sm:$0x1]
    %v4365 = vlaneseq
    %v4366 = vshrl.u32 %v4365, 7
    %v4367 = vsub.s32 0, %v4366
    %v4368 = vrot.slane %v4363, %v4367
    %v4374 = vunpack.c.l.b16 %v4358
    %v4375 = vunpack.c.l.b16 %v4359
    %v4376 = vunpack.c.l.b16 %v4360
    %v4377 = vunpack.c.l.b16 %v4361
    %v4378 = vpack.c.b16 %v4375, %v4374
    %v4379 = vpack.c.b16 %v4377, %v4376
    %4382 = vmatprep.subr.bf16.mxu0 0
    %4383 = vmatpush1.bf16.msra.mxu0 %v4378
    %4384 = vmatprep.subr.bf16.mxu0 0
    %4385 = vmatpush1.bf16.msra.mxu0 %v4379
    %4386 = vmatprep.subr.bf16.mxu0 0
    %4387 = vmatpush1.bf16.msra.mxu0 0
    %4388 = vmatprep.subr.bf16.mxu0 0
    %4389 = vmatpush1.bf16.msra.mxu0 0
    %4390 = vmatprep.subr.bf16.mxu0 0
    %4391 = vmatpush1.bf16.msra.mxu0 0
    %4392 = vmatprep.subr.bf16.mxu0 0
    %4393 = vmatpush1.bf16.msra.mxu0 0
    %4394 = vmatprep.subr.bf16.mxu0 0
    %4395 = vmatpush1.bf16.msra.mxu0 0
    %4396 = vmatprep.subr.bf16.mxu0 0
    %4397 = vmatpush1.bf16.msra.mxu0 0
    %4398 = vmatprep.subr.bf16.mxu0 0
    %4399 = vmatpush1.bf16.msra.mxu0 0
    %4400 = vmatprep.subr.bf16.mxu0 0
    %4401 = vmatpush1.bf16.msra.mxu0 0
    %4402 = vmatprep.subr.bf16.mxu0 0
    %4403 = vmatpush1.bf16.msra.mxu0 0
    %4404 = vmatprep.subr.bf16.mxu0 0
    %4405 = vmatpush1.bf16.msra.mxu0 0
    %4406 = vmatprep.subr.bf16.mxu0 0
    %4407 = vmatpush1.bf16.msra.mxu0 0
    %4408 = vmatprep.subr.bf16.mxu0 0
    %4409 = vmatpush1.bf16.msra.mxu0 0
    %4410 = vmatprep.subr.bf16.mxu0 0
    %4411 = vmatpush1.bf16.msra.mxu0 0
    %4412 = vmatprep.subr.bf16.mxu0 0
    %4413 = vmatpush1.bf16.msra.mxu0 0
    %4414 = vmatprep.mubr.bf16.mxu0 0
    %4415 = vmatmul.mubr.bf16.gmra.mrb[0].mxu0 %v3926
    %v4416 = vpop.f32.mrb[0].mxu0
    %v4417 = vadd.f32 %v4368, %v4416
    %v4418 = vpop.f32.mrb[0].mxu0
    %v4419 = vpop.f32.mrb[0].mxu0
    %v4420 = vadd.f32 %v4368, %v4419
    %v4421 = vpop.f32.mrb[0].mxu0
    %4422 = vmatprep.mubr.bf16.mxu0 0
    %4423 = vmatmul.mubr.bf16.gmra.mrb[0].mxu0 %v3929
    %v4424 = vpop.f32.mrb[0].mxu0
    %v4425 = vadd.f32 %v4368, %v4424
    %v4426 = vpop.f32.mrb[0].mxu0
    %v4427 = vpop.f32.mrb[0].mxu0
    %v4428 = vadd.f32 %v4368, %v4427
    %v4429 = vpop.f32.mrb[0].mxu0
    %4430 = vmatprep.mubr.bf16.mxu0 0
    %4431 = vmatmul.mubr.bf16.gmra.mrb[0].mxu0 %v3932
    %v4432 = vpop.f32.mrb[0].mxu0
    %v4433 = vadd.f32 %v4368, %v4432
    %v4434 = vpop.f32.mrb[0].mxu0
    %v4435 = vpop.f32.mrb[0].mxu0
    %v4436 = vadd.f32 %v4368, %v4435
    %v4437 = vpop.f32.mrb[0].mxu0
    %4438 = vdwg.mxu0
    %v4439 = vmul.f32 %v4417, 0.35355338
    %v4440 = vmul.f32 %v4420, 0.35355338
    %v4441 = vmul.f32 %v4425, 0.35355338
    %v4442 = vmul.f32 %v4428, 0.35355338
    %v4443 = vmul.f32 %v4433, 0.35355338
    %v4444 = vmul.f32 %v4436, 0.35355338
    %s4445 = scalar_lea.vmem %s5, 272
    %v4446 = vld [vmem:[%s4445] sm:$0xf]
    %v4447 = vld [vmem:[%s4445 + $0x4] sm:$0xf]
    %v4448 = vld [vmem:[%s4445 + $0x8] sm:$0xf]
    %v4449 = vld [vmem:[%s4445 + $0xc] sm:$0xf]
    %s4450 = scalar_lea.vmem %s6, 17
    %v4451 = vld [vmem:[%s4450] sm:$0x1]
    %v4453 = vlaneseq
    %v4454 = vshrl.u32 %v4453, 7
    %v4455 = vsub.s32 0, %v4454
    %v4456 = vrot.slane %v4451, %v4455
    %v4462 = vunpack.c.l.b16 %v4446
    %v4463 = vunpack.c.l.b16 %v4447
    %v4464 = vunpack.c.l.b16 %v4448
    %v4465 = vunpack.c.l.b16 %v4449
    %v4466 = vpack.c.b16 %v4463, %v4462
    %v4467 = vpack.c.b16 %v4465, %v4464
    %4470 = vmatprep.subr.bf16.mxu0 0
    %4471 = vmatpush1.bf16.msra.mxu0 %v4466
    %4472 = vmatprep.subr.bf16.mxu0 0
    %4473 = vmatpush1.bf16.msra.mxu0 %v4467
    %4474 = vmatprep.subr.bf16.mxu0 0
    %4475 = vmatpush1.bf16.msra.mxu0 0
    %4476 = vmatprep.subr.bf16.mxu0 0
    %4477 = vmatpush1.bf16.msra.mxu0 0
    %4478 = vmatprep.subr.bf16.mxu0 0
    %4479 = vmatpush1.bf16.msra.mxu0 0
    %4480 = vmatprep.subr.bf16.mxu0 0
    %4481 = vmatpush1.bf16.msra.mxu0 0
    %4482 = vmatprep.subr.bf16.mxu0 0
    %4483 = vmatpush1.bf16.msra.mxu0 0
    %4484 = vmatprep.subr.bf16.mxu0 0
    %4485 = vmatpush1.bf16.msra.mxu0 0
    %4486 = vmatprep.subr.bf16.mxu0 0
    %4487 = vmatpush1.bf16.msra.mxu0 0
    %4488 = vmatprep.subr.bf16.mxu0 0
    %4489 = vmatpush1.bf16.msra.mxu0 0
    %4490 = vmatprep.subr.bf16.mxu0 0
    %4491 = vmatpush1.bf16.msra.mxu0 0
    %4492 = vmatprep.subr.bf16.mxu0 0
    %4493 = vmatpush1.bf16.msra.mxu0 0
    %4494 = vmatprep.subr.bf16.mxu0 0
    %4495 = vmatpush1.bf16.msra.mxu0 0
    %4496 = vmatprep.subr.bf16.mxu0 0
    %4497 = vmatpush1.bf16.msra.mxu0 0
    %4498 = vmatprep.subr.bf16.mxu0 0
    %4499 = vmatpush1.bf16.msra.mxu0 0
    %4500 = vmatprep.subr.bf16.mxu0 0
    %4501 = vmatpush1.bf16.msra.mxu0 0
    %4502 = vmatprep.mubr.bf16.mxu0 0
    %4503 = vmatmul.mubr.bf16.gmra.mrb[0].mxu0 %v3926
    %v4504 = vpop.f32.mrb[0].mxu0
    %v4505 = vadd.f32 %v4456, %v4504
    %v4506 = vpop.f32.mrb[0].mxu0
    %v4507 = vpop.f32.mrb[0].mxu0
    %v4508 = vadd.f32 %v4456, %v4507
    %v4509 = vpop.f32.mrb[0].mxu0
    %4510 = vmatprep.mubr.bf16.mxu0 0
    %4511 = vmatmul.mubr.bf16.gmra.mrb[0].mxu0 %v3929
    %v4512 = vpop.f32.mrb[0].mxu0
    %v4513 = vadd.f32 %v4456, %v4512
    %v4514 = vpop.f32.mrb[0].mxu0
    %v4515 = vpop.f32.mrb[0].mxu0
    %v4516 = vadd.f32 %v4456, %v4515
    %v4517 = vpop.f32.mrb[0].mxu0
    %4518 = vmatprep.mubr.bf16.mxu0 0
    %4519 = vmatmul.mubr.bf16.gmra.mrb[0].mxu0 %v3932
    %v4520 = vpop.f32.mrb[0].mxu0
    %v4521 = vadd.f32 %v4456, %v4520
    %v4522 = vpop.f32.mrb[0].mxu0
    %v4523 = vpop.f32.mrb[0].mxu0
    %v4524 = vadd.f32 %v4456, %v4523
    %v4525 = vpop.f32.mrb[0].mxu0
    %4526 = vdwg.mxu0
    %s4527 = scalar_lea.vmem %s5, 336
    %v4528 = vld [vmem:[%s4527] sm:$0xf]
    %v4529 = vld [vmem:[%s4527 + $0x4] sm:$0xf]
    %v4530 = vld [vmem:[%s4527 + $0x8] sm:$0xf]
    %v4531 = vld [vmem:[%s4527 + $0xc] sm:$0xf]
    %s4532 = scalar_lea.vmem %s6, 21
    %v4533 = vld [vmem:[%s4532] sm:$0x1]
    %v4535 = vlaneseq
    %v4536 = vshrl.u32 %v4535, 7
    %v4537 = vsub.s32 0, %v4536
    %v4538 = vrot.slane %v4533, %v4537
    %v4544 = vunpack.c.l.b16 %v4528
    %v4545 = vunpack.c.l.b16 %v4529
    %v4546 = vunpack.c.l.b16 %v4530
    %v4547 = vunpack.c.l.b16 %v4531
    %v4548 = vpack.c.b16 %v4545, %v4544
    %v4549 = vpack.c.b16 %v4547, %v4546
    %4552 = vmatprep.subr.bf16.mxu0 0
    %4553 = vmatpush1.bf16.msra.mxu0 %v4548
    %4554 = vmatprep.subr.bf16.mxu0 0
    %4555 = vmatpush1.bf16.msra.mxu0 %v4549
    %4556 = vmatprep.subr.bf16.mxu0 0
    %4557 = vmatpush1.bf16.msra.mxu0 0
    %4558 = vmatprep.subr.bf16.mxu0 0
    %4559 = vmatpush1.bf16.msra.mxu0 0
    %4560 = vmatprep.subr.bf16.mxu0 0
    %4561 = vmatpush1.bf16.msra.mxu0 0
    %4562 = vmatprep.subr.bf16.mxu0 0
    %4563 = vmatpush1.bf16.msra.mxu0 0
    %4564 = vmatprep.subr.bf16.mxu0 0
    %4565 = vmatpush1.bf16.msra.mxu0 0
    %4566 = vmatprep.subr.bf16.mxu0 0
    %4567 = vmatpush1.bf16.msra.mxu0 0
    %4568 = vmatprep.subr.bf16.mxu0 0
    %4569 = vmatpush1.bf16.msra.mxu0 0
    %4570 = vmatprep.subr.bf16.mxu0 0
    %4571 = vmatpush1.bf16.msra.mxu0 0
    %4572 = vmatprep.subr.bf16.mxu0 0
    %4573 = vmatpush1.bf16.msra.mxu0 0
    %4574 = vmatprep.subr.bf16.mxu0 0
    %4575 = vmatpush1.bf16.msra.mxu0 0
    %4576 = vmatprep.subr.bf16.mxu0 0
    %4577 = vmatpush1.bf16.msra.mxu0 0
    %4578 = vmatprep.subr.bf16.mxu0 0
    %4579 = vmatpush1.bf16.msra.mxu0 0
    %4580 = vmatprep.subr.bf16.mxu0 0
    %4581 = vmatpush1.bf16.msra.mxu0 0
    %4582 = vmatprep.subr.bf16.mxu0 0
    %4583 = vmatpush1.bf16.msra.mxu0 0
    %4584 = vmatprep.mubr.bf16.mxu0 0
    %4585 = vmatmul.mubr.bf16.gmra.mrb[0].mxu0 %v3926
    %v4586 = vpop.f32.mrb[0].mxu0
    %v4587 = vadd.f32 %v4538, %v4586
    %v4588 = vpop.f32.mrb[0].mxu0
    %v4589 = vpop.f32.mrb[0].mxu0
    %v4590 = vadd.f32 %v4538, %v4589
    %v4591 = vpop.f32.mrb[0].mxu0
    %4592 = vmatprep.mubr.bf16.mxu0 0
    %4593 = vmatmul.mubr.bf16.gmra.mrb[0].mxu0 %v3929
    %v4594 = vpop.f32.mrb[0].mxu0
    %v4595 = vadd.f32 %v4538, %v4594
    %v4596 = vpop.f32.mrb[0].mxu0
    %v4597 = vpop.f32.mrb[0].mxu0
    %v4598 = vadd.f32 %v4538, %v4597
    %v4599 = vpop.f32.mrb[0].mxu0
    %4600 = vmatprep.mubr.bf16.mxu0 0
    %4601 = vmatmul.mubr.bf16.gmra.mrb[0].mxu0 %v3932
    %v4602 = vpop.f32.mrb[0].mxu0
    %v4603 = vadd.f32 %v4538, %v4602
    %v4604 = vpop.f32.mrb[0].mxu0
    %v4605 = vpop.f32.mrb[0].mxu0
    %v4606 = vadd.f32 %v4538, %v4605
    %v4607 = vpop.f32.mrb[0].mxu0
    %4608 = vdwg.mxu0
    %v4610 = vsel %vm587, %v4439, 0
    %v4613 = vsel %vm587, %v4440, 0
    %v4616 = vsel %vm587, %v4441, 0
    %v4619 = vsel %vm587, %v4505, 0
    %v4622 = vsel %vm587, %v4508, 0
    %v4625 = vsel %vm587, %v4513, 0
    %4627 = vmatprep.subr.mxu0 0.0
    %4628 = vmatpush1.xpose.msra.mxu0 %v4619
    %4629 = vmatprep.subr.mxu0 0.0
    %4630 = vmatpush1.xpose.msra.mxu0 %v4622
    %4631 = vmatprep.subr.mxu0 0.0
    %4632 = vmatpush1.xpose.msra.mxu0 %v4625
    %4633 = vmatprep.subr.mxu0 0.0
    %4634 = vmatpush1.xpose.msra.mxu0 0.0
    %4635 = vmatprep.subr.mxu0 0.0
    %4636 = vmatpush1.xpose.msra.mxu0 0.0
    %4637 = vmatprep.subr.mxu0 0.0
    %4638 = vmatpush1.xpose.msra.mxu0 0.0
    %4639 = vmatprep.subr.mxu0 0.0
    %4640 = vmatpush1.xpose.msra.mxu0 0.0
    %4641 = vmatprep.subr.mxu0 0.0
    %4642 = vmatpush1.xpose.msra.mxu0 0.0
    %4643 = vmatprep.subr.mxu0 0.0
    %4644 = vmatpush1.xpose.msra.mxu0 0.0
    %4645 = vmatprep.subr.mxu0 0.0
    %4646 = vmatpush1.xpose.msra.mxu0 0.0
    %4647 = vmatprep.subr.mxu0 0.0
    %4648 = vmatpush1.xpose.msra.mxu0 0.0
    %4649 = vmatprep.subr.mxu0 0.0
    %4650 = vmatpush1.xpose.msra.mxu0 0.0
    %4651 = vmatprep.subr.mxu0 0.0
    %4652 = vmatpush1.xpose.msra.mxu0 0.0
    %4653 = vmatprep.subr.mxu0 0.0
    %4654 = vmatpush1.xpose.msra.mxu0 0.0
    %4655 = vmatprep.subr.mxu0 0.0
    %4656 = vmatpush1.xpose.msra.mxu0 0.0
    %4657 = vmatprep.subr.mxu0 0.0
    %4658 = vmatpush1.xpose.msra.mxu0 0.0
    %4659 = vmatprep.subr.mxu0 0.0
    %4660 = vmatpush1.xpose.msra.mxu0 0.0
    %4661 = vmatprep.subr.mxu0 0.0
    %4662 = vmatpush1.xpose.msra.mxu0 0.0
    %4663 = vmatprep.subr.mxu0 0.0
    %4664 = vmatpush1.xpose.msra.mxu0 0.0
    %4665 = vmatprep.subr.mxu0 0.0
    %4666 = vmatpush1.xpose.msra.mxu0 0.0
    %4667 = vmatprep.subr.mxu0 0.0
    %4668 = vmatpush1.xpose.msra.mxu0 0.0
    %4669 = vmatprep.subr.mxu0 0.0
    %4670 = vmatpush1.xpose.msra.mxu0 0.0
    %4671 = vmatprep.subr.mxu0 0.0
    %4672 = vmatpush1.xpose.msra.mxu0 0.0
    %4673 = vmatprep.subr.mxu0 0.0
    %4674 = vmatpush1.xpose.msra.mxu0 0.0
    %4675 = vmatprep.subr.mxu0 0.0
    %4676 = vmatpush1.xpose.msra.mxu0 0.0
    %4677 = vmatprep.subr.mxu0 0.0
    %4678 = vmatpush1.xpose.msra.mxu0 0.0
    %4679 = vmatprep.subr.mxu0 0.0
    %4680 = vmatpush1.xpose.msra.mxu0 0.0
    %4681 = vmatprep.subr.mxu0 0.0
    %4682 = vmatpush1.xpose.msra.mxu0 0.0
    %4683 = vmatprep.subr.mxu0 0.0
    %4684 = vmatpush1.xpose.msra.mxu0 0.0
    %4685 = vmatprep.subr.mxu0 0.0
    %4686 = vmatpush1.xpose.msra.mxu0 0.0
    %4687 = vmatprep.subr.mxu0 0.0
    %4688 = vmatpush1.xpose.msra.mxu0 0.0
    %4689 = vmatprep.subr.mxu0 0.0
    %4690 = vmatpush1.xpose.msra.mxu0 0.0
    %4691 = vmatprep.mubr.f32.mxu0 0.0
    %4692 = vmatmul.mubr.f32.gmra.mrb[0].mxu0 %v4610
    %v4693 = vpop.f32.mrb[0].mxu0
    %v4694 = vadd.f32 0.0, %v4693
    %v4695 = vpop.f32.mrb[0].mxu0
    %4696 = vmatprep.mubr.f32.mxu0 0.0
    %4697 = vmatmul.mubr.f32.gmra.mrb[0].mxu0 %v4613
    %v4698 = vpop.f32.mrb[0].mxu0
    %v4699 = vadd.f32 0.0, %v4698
    %v4700 = vpop.f32.mrb[0].mxu0
    %4701 = vmatprep.mubr.f32.mxu0 0.0
    %4702 = vmatmul.mubr.f32.gmra.mrb[0].mxu0 %v4616
    %v4703 = vpop.f32.mrb[0].mxu0
    %v4704 = vadd.f32 0.0, %v4703
    %v4705 = vpop.f32.mrb[0].mxu0
    %4706 = vdwg.mxu0
    %v4708 = vsel %vm587, %v4442, 0
    %v4711 = vsel %vm587, %v4443, 0
    %v4714 = vsel %vm587, %v4444, 0
    %v4717 = vsel %vm587, %v4516, 0
    %v4720 = vsel %vm587, %v4521, 0
    %v4723 = vsel %vm587, %v4524, 0
    %4725 = vmatprep.subr.mxu0 0.0
    %4726 = vmatpush1.xpose.msra.mxu0 %v4717
    %4727 = vmatprep.subr.mxu0 0.0
    %4728 = vmatpush1.xpose.msra.mxu0 %v4720
    %4729 = vmatprep.subr.mxu0 0.0
    %4730 = vmatpush1.xpose.msra.mxu0 %v4723
    %4731 = vmatprep.subr.mxu0 0.0
    %4732 = vmatpush1.xpose.msra.mxu0 0.0
    %4733 = vmatprep.subr.mxu0 0.0
    %4734 = vmatpush1.xpose.msra.mxu0 0.0
    %4735 = vmatprep.subr.mxu0 0.0
    %4736 = vmatpush1.xpose.msra.mxu0 0.0
    %4737 = vmatprep.subr.mxu0 0.0
    %4738 = vmatpush1.xpose.msra.mxu0 0.0
    %4739 = vmatprep.subr.mxu0 0.0
    %4740 = vmatpush1.xpose.msra.mxu0 0.0
    %4741 = vmatprep.subr.mxu0 0.0
    %4742 = vmatpush1.xpose.msra.mxu0 0.0
    %4743 = vmatprep.subr.mxu0 0.0
    %4744 = vmatpush1.xpose.msra.mxu0 0.0
    %4745 = vmatprep.subr.mxu0 0.0
    %4746 = vmatpush1.xpose.msra.mxu0 0.0
    %4747 = vmatprep.subr.mxu0 0.0
    %4748 = vmatpush1.xpose.msra.mxu0 0.0
    %4749 = vmatprep.subr.mxu0 0.0
    %4750 = vmatpush1.xpose.msra.mxu0 0.0
    %4751 = vmatprep.subr.mxu0 0.0
    %4752 = vmatpush1.xpose.msra.mxu0 0.0
    %4753 = vmatprep.subr.mxu0 0.0
    %4754 = vmatpush1.xpose.msra.mxu0 0.0
    %4755 = vmatprep.subr.mxu0 0.0
    %4756 = vmatpush1.xpose.msra.mxu0 0.0
    %4757 = vmatprep.subr.mxu0 0.0
    %4758 = vmatpush1.xpose.msra.mxu0 0.0
    %4759 = vmatprep.subr.mxu0 0.0
    %4760 = vmatpush1.xpose.msra.mxu0 0.0
    %4761 = vmatprep.subr.mxu0 0.0
    %4762 = vmatpush1.xpose.msra.mxu0 0.0
    %4763 = vmatprep.subr.mxu0 0.0
    %4764 = vmatpush1.xpose.msra.mxu0 0.0
    %4765 = vmatprep.subr.mxu0 0.0
    %4766 = vmatpush1.xpose.msra.mxu0 0.0
    %4767 = vmatprep.subr.mxu0 0.0
    %4768 = vmatpush1.xpose.msra.mxu0 0.0
    %4769 = vmatprep.subr.mxu0 0.0
    %4770 = vmatpush1.xpose.msra.mxu0 0.0
    %4771 = vmatprep.subr.mxu0 0.0
    %4772 = vmatpush1.xpose.msra.mxu0 0.0
    %4773 = vmatprep.subr.mxu0 0.0
    %4774 = vmatpush1.xpose.msra.mxu0 0.0
    %4775 = vmatprep.subr.mxu0 0.0
    %4776 = vmatpush1.xpose.msra.mxu0 0.0
    %4777 = vmatprep.subr.mxu0 0.0
    %4778 = vmatpush1.xpose.msra.mxu0 0.0
    %4779 = vmatprep.subr.mxu0 0.0
    %4780 = vmatpush1.xpose.msra.mxu0 0.0
    %4781 = vmatprep.subr.mxu0 0.0
    %4782 = vmatpush1.xpose.msra.mxu0 0.0
    %4783 = vmatprep.subr.mxu0 0.0
    %4784 = vmatpush1.xpose.msra.mxu0 0.0
    %4785 = vmatprep.subr.mxu0 0.0
    %4786 = vmatpush1.xpose.msra.mxu0 0.0
    %4787 = vmatprep.subr.mxu0 0.0
    %4788 = vmatpush1.xpose.msra.mxu0 0.0
    %4789 = vmatprep.mubr.f32.mxu0 0.0
    %4790 = vmatmul.mubr.f32.gmra.mrb[0].mxu0 %v4708
    %v4791 = vpop.f32.mrb[0].mxu0
    %v4792 = vadd.f32 0.0, %v4791
    %v4793 = vpop.f32.mrb[0].mxu0
    %4794 = vmatprep.mubr.f32.mxu0 0.0
    %4795 = vmatmul.mubr.f32.gmra.mrb[0].mxu0 %v4711
    %v4796 = vpop.f32.mrb[0].mxu0
    %v4797 = vadd.f32 0.0, %v4796
    %v4798 = vpop.f32.mrb[0].mxu0
    %4799 = vmatprep.mubr.f32.mxu0 0.0
    %4800 = vmatmul.mubr.f32.gmra.mrb[0].mxu0 %v4714
    %v4801 = vpop.f32.mrb[0].mxu0
    %v4802 = vadd.f32 0.0, %v4801
    %v4803 = vpop.f32.mrb[0].mxu0
    %4804 = vdwg.mxu0
    %s4805 = scalar_lea.vmem %s5, 224
    %v4806 = vld [vmem:[%s4805] sm:$0xf]
    %v4807 = vld [vmem:[%s4805 + $0x4] sm:$0xf]
    %v4808 = vld [vmem:[%s4805 + $0x8] sm:$0xf]
    %v4809 = vld [vmem:[%s4805 + $0xc] sm:$0xf]
    %s4810 = scalar_lea.vmem %s6, 14
    %v4811 = vld [vmem:[%s4810] sm:$0x1]
    %v4813 = vlaneseq
    %v4814 = vshrl.u32 %v4813, 7
    %v4815 = vsub.s32 0, %v4814
    %v4816 = vrot.slane %v4811, %v4815
    %v4822 = vunpack.c.l.b16 %v4806
    %v4823 = vunpack.c.l.b16 %v4807
    %v4824 = vunpack.c.l.b16 %v4808
    %v4825 = vunpack.c.l.b16 %v4809
    %v4826 = vpack.c.b16 %v4823, %v4822
    %v4827 = vpack.c.b16 %v4825, %v4824
    %4830 = vmatprep.subr.bf16.mxu0 0
    %4831 = vmatpush1.bf16.msra.mxu0 %v4826
    %4832 = vmatprep.subr.bf16.mxu0 0
    %4833 = vmatpush1.bf16.msra.mxu0 %v4827
    %4834 = vmatprep.subr.bf16.mxu0 0
    %4835 = vmatpush1.bf16.msra.mxu0 0
    %4836 = vmatprep.subr.bf16.mxu0 0
    %4837 = vmatpush1.bf16.msra.mxu0 0
    %4838 = vmatprep.subr.bf16.mxu0 0
    %4839 = vmatpush1.bf16.msra.mxu0 0
    %4840 = vmatprep.subr.bf16.mxu0 0
    %4841 = vmatpush1.bf16.msra.mxu0 0
    %4842 = vmatprep.subr.bf16.mxu0 0
    %4843 = vmatpush1.bf16.msra.mxu0 0
    %4844 = vmatprep.subr.bf16.mxu0 0
    %4845 = vmatpush1.bf16.msra.mxu0 0
    %4846 = vmatprep.subr.bf16.mxu0 0
    %4847 = vmatpush1.bf16.msra.mxu0 0
    %4848 = vmatprep.subr.bf16.mxu0 0
    %4849 = vmatpush1.bf16.msra.mxu0 0
    %4850 = vmatprep.subr.bf16.mxu0 0
    %4851 = vmatpush1.bf16.msra.mxu0 0
    %4852 = vmatprep.subr.bf16.mxu0 0
    %4853 = vmatpush1.bf16.msra.mxu0 0
    %4854 = vmatprep.subr.bf16.mxu0 0
    %4855 = vmatpush1.bf16.msra.mxu0 0
    %4856 = vmatprep.subr.bf16.mxu0 0
    %4857 = vmatpush1.bf16.msra.mxu0 0
    %4858 = vmatprep.subr.bf16.mxu0 0
    %4859 = vmatpush1.bf16.msra.mxu0 0
    %4860 = vmatprep.subr.bf16.mxu0 0
    %4861 = vmatpush1.bf16.msra.mxu0 0
    %4862 = vmatprep.mubr.bf16.mxu0 0
    %4863 = vmatmul.mubr.bf16.gmra.mrb[0].mxu0 %v3926
    %v4864 = vpop.f32.mrb[0].mxu0
    %v4865 = vadd.f32 %v4816, %v4864
    %v4866 = vpop.f32.mrb[0].mxu0
    %v4867 = vpop.f32.mrb[0].mxu0
    %v4868 = vadd.f32 %v4816, %v4867
    %v4869 = vpop.f32.mrb[0].mxu0
    %4870 = vmatprep.mubr.bf16.mxu0 0
    %4871 = vmatmul.mubr.bf16.gmra.mrb[0].mxu0 %v3929
    %v4872 = vpop.f32.mrb[0].mxu0
    %v4873 = vadd.f32 %v4816, %v4872
    %v4874 = vpop.f32.mrb[0].mxu0
    %v4875 = vpop.f32.mrb[0].mxu0
    %v4876 = vadd.f32 %v4816, %v4875
    %v4877 = vpop.f32.mrb[0].mxu0
    %4878 = vmatprep.mubr.bf16.mxu0 0
    %4879 = vmatmul.mubr.bf16.gmra.mrb[0].mxu0 %v3932
    %v4880 = vpop.f32.mrb[0].mxu0
    %v4881 = vadd.f32 %v4816, %v4880
    %v4882 = vpop.f32.mrb[0].mxu0
    %v4883 = vpop.f32.mrb[0].mxu0
    %v4884 = vadd.f32 %v4816, %v4883
    %v4885 = vpop.f32.mrb[0].mxu0
    %4886 = vdwg.mxu0
    %v4887 = vmul.f32 %v4865, 0.35355338
    %v4888 = vmul.f32 %v4868, 0.35355338
    %v4889 = vmul.f32 %v4873, 0.35355338
    %v4890 = vmul.f32 %v4876, 0.35355338
    %v4891 = vmul.f32 %v4881, 0.35355338
    %v4892 = vmul.f32 %v4884, 0.35355338
    %s4893 = scalar_lea.vmem %s5, 288
    %v4894 = vld [vmem:[%s4893] sm:$0xf]
    %v4895 = vld [vmem:[%s4893 + $0x4] sm:$0xf]
    %v4896 = vld [vmem:[%s4893 + $0x8] sm:$0xf]
    %v4897 = vld [vmem:[%s4893 + $0xc] sm:$0xf]
    %s4898 = scalar_lea.vmem %s6, 18
    %v4899 = vld [vmem:[%s4898] sm:$0x1]
    %v4901 = vlaneseq
    %v4902 = vshrl.u32 %v4901, 7
    %v4903 = vsub.s32 0, %v4902
    %v4904 = vrot.slane %v4899, %v4903
    %v4910 = vunpack.c.l.b16 %v4894
    %v4911 = vunpack.c.l.b16 %v4895
    %v4912 = vunpack.c.l.b16 %v4896
    %v4913 = vunpack.c.l.b16 %v4897
    %v4914 = vpack.c.b16 %v4911, %v4910
    %v4915 = vpack.c.b16 %v4913, %v4912
    %4918 = vmatprep.subr.bf16.mxu0 0
    %4919 = vmatpush1.bf16.msra.mxu0 %v4914
    %4920 = vmatprep.subr.bf16.mxu0 0
    %4921 = vmatpush1.bf16.msra.mxu0 %v4915
    %4922 = vmatprep.subr.bf16.mxu0 0
    %4923 = vmatpush1.bf16.msra.mxu0 0
    %4924 = vmatprep.subr.bf16.mxu0 0
    %4925 = vmatpush1.bf16.msra.mxu0 0
    %4926 = vmatprep.subr.bf16.mxu0 0
    %4927 = vmatpush1.bf16.msra.mxu0 0
    %4928 = vmatprep.subr.bf16.mxu0 0
    %4929 = vmatpush1.bf16.msra.mxu0 0
    %4930 = vmatprep.subr.bf16.mxu0 0
    %4931 = vmatpush1.bf16.msra.mxu0 0
    %4932 = vmatprep.subr.bf16.mxu0 0
    %4933 = vmatpush1.bf16.msra.mxu0 0
    %4934 = vmatprep.subr.bf16.mxu0 0
    %4935 = vmatpush1.bf16.msra.mxu0 0
    %4936 = vmatprep.subr.bf16.mxu0 0
    %4937 = vmatpush1.bf16.msra.mxu0 0
    %4938 = vmatprep.subr.bf16.mxu0 0
    %4939 = vmatpush1.bf16.msra.mxu0 0
    %4940 = vmatprep.subr.bf16.mxu0 0
    %4941 = vmatpush1.bf16.msra.mxu0 0
    %4942 = vmatprep.subr.bf16.mxu0 0
    %4943 = vmatpush1.bf16.msra.mxu0 0
    %4944 = vmatprep.subr.bf16.mxu0 0
    %4945 = vmatpush1.bf16.msra.mxu0 0
    %4946 = vmatprep.subr.bf16.mxu0 0
    %4947 = vmatpush1.bf16.msra.mxu0 0
    %4948 = vmatprep.subr.bf16.mxu0 0
    %4949 = vmatpush1.bf16.msra.mxu0 0
    %4950 = vmatprep.mubr.bf16.mxu0 0
    %4951 = vmatmul.mubr.bf16.gmra.mrb[0].mxu0 %v3926
    %v4952 = vpop.f32.mrb[0].mxu0
    %v4953 = vadd.f32 %v4904, %v4952
    %v4954 = vpop.f32.mrb[0].mxu0
    %v4955 = vpop.f32.mrb[0].mxu0
    %v4956 = vadd.f32 %v4904, %v4955
    %v4957 = vpop.f32.mrb[0].mxu0
    %4958 = vmatprep.mubr.bf16.mxu0 0
    %4959 = vmatmul.mubr.bf16.gmra.mrb[0].mxu0 %v3929
    %v4960 = vpop.f32.mrb[0].mxu0
    %v4961 = vadd.f32 %v4904, %v4960
    %v4962 = vpop.f32.mrb[0].mxu0
    %v4963 = vpop.f32.mrb[0].mxu0
    %v4964 = vadd.f32 %v4904, %v4963
    %v4965 = vpop.f32.mrb[0].mxu0
    %4966 = vmatprep.mubr.bf16.mxu0 0
    %4967 = vmatmul.mubr.bf16.gmra.mrb[0].mxu0 %v3932
    %v4968 = vpop.f32.mrb[0].mxu0
    %v4969 = vadd.f32 %v4904, %v4968
    %v4970 = vpop.f32.mrb[0].mxu0
    %v4971 = vpop.f32.mrb[0].mxu0
    %v4972 = vadd.f32 %v4904, %v4971
    %v4973 = vpop.f32.mrb[0].mxu0
    %4974 = vdwg.mxu0
    %s4975 = scalar_lea.vmem %s5, 352
    %v4976 = vld [vmem:[%s4975] sm:$0xf]
    %v4977 = vld [vmem:[%s4975 + $0x4] sm:$0xf]
    %v4978 = vld [vmem:[%s4975 + $0x8] sm:$0xf]
    %v4979 = vld [vmem:[%s4975 + $0xc] sm:$0xf]
    %s4980 = scalar_lea.vmem %s6, 22
    %v4981 = vld [vmem:[%s4980] sm:$0x1]
    %v4983 = vlaneseq
    %v4984 = vshrl.u32 %v4983, 7
    %v4985 = vsub.s32 0, %v4984
    %v4986 = vrot.slane %v4981, %v4985
    %v4992 = vunpack.c.l.b16 %v4976
    %v4993 = vunpack.c.l.b16 %v4977
    %v4994 = vunpack.c.l.b16 %v4978
    %v4995 = vunpack.c.l.b16 %v4979
    %v4996 = vpack.c.b16 %v4993, %v4992
    %v4997 = vpack.c.b16 %v4995, %v4994
    %5000 = vmatprep.subr.bf16.mxu0 0
    %5001 = vmatpush1.bf16.msra.mxu0 %v4996
    %5002 = vmatprep.subr.bf16.mxu0 0
    %5003 = vmatpush1.bf16.msra.mxu0 %v4997
    %5004 = vmatprep.subr.bf16.mxu0 0
    %5005 = vmatpush1.bf16.msra.mxu0 0
    %5006 = vmatprep.subr.bf16.mxu0 0
    %5007 = vmatpush1.bf16.msra.mxu0 0
    %5008 = vmatprep.subr.bf16.mxu0 0
    %5009 = vmatpush1.bf16.msra.mxu0 0
    %5010 = vmatprep.subr.bf16.mxu0 0
    %5011 = vmatpush1.bf16.msra.mxu0 0
    %5012 = vmatprep.subr.bf16.mxu0 0
    %5013 = vmatpush1.bf16.msra.mxu0 0
    %5014 = vmatprep.subr.bf16.mxu0 0
    %5015 = vmatpush1.bf16.msra.mxu0 0
    %5016 = vmatprep.subr.bf16.mxu0 0
    %5017 = vmatpush1.bf16.msra.mxu0 0
    %5018 = vmatprep.subr.bf16.mxu0 0
    %5019 = vmatpush1.bf16.msra.mxu0 0
    %5020 = vmatprep.subr.bf16.mxu0 0
    %5021 = vmatpush1.bf16.msra.mxu0 0
    %5022 = vmatprep.subr.bf16.mxu0 0
    %5023 = vmatpush1.bf16.msra.mxu0 0
    %5024 = vmatprep.subr.bf16.mxu0 0
    %5025 = vmatpush1.bf16.msra.mxu0 0
    %5026 = vmatprep.subr.bf16.mxu0 0
    %5027 = vmatpush1.bf16.msra.mxu0 0
    %5028 = vmatprep.subr.bf16.mxu0 0
    %5029 = vmatpush1.bf16.msra.mxu0 0
    %5030 = vmatprep.subr.bf16.mxu0 0
    %5031 = vmatpush1.bf16.msra.mxu0 0
    %5032 = vmatprep.mubr.bf16.mxu0 0
    %5033 = vmatmul.mubr.bf16.gmra.mrb[0].mxu0 %v3926
    %v5034 = vpop.f32.mrb[0].mxu0
    %v5035 = vadd.f32 %v4986, %v5034
    %v5036 = vpop.f32.mrb[0].mxu0
    %v5037 = vpop.f32.mrb[0].mxu0
    %v5038 = vadd.f32 %v4986, %v5037
    %v5039 = vpop.f32.mrb[0].mxu0
    %5040 = vmatprep.mubr.bf16.mxu0 0
    %5041 = vmatmul.mubr.bf16.gmra.mrb[0].mxu0 %v3929
    %v5042 = vpop.f32.mrb[0].mxu0
    %v5043 = vadd.f32 %v4986, %v5042
    %v5044 = vpop.f32.mrb[0].mxu0
    %v5045 = vpop.f32.mrb[0].mxu0
    %v5046 = vadd.f32 %v4986, %v5045
    %v5047 = vpop.f32.mrb[0].mxu0
    %5048 = vmatprep.mubr.bf16.mxu0 0
    %5049 = vmatmul.mubr.bf16.gmra.mrb[0].mxu0 %v3932
    %v5050 = vpop.f32.mrb[0].mxu0
    %v5051 = vadd.f32 %v4986, %v5050
    %v5052 = vpop.f32.mrb[0].mxu0
    %v5053 = vpop.f32.mrb[0].mxu0
    %v5054 = vadd.f32 %v4986, %v5053
    %v5055 = vpop.f32.mrb[0].mxu0
    %5056 = vdwg.mxu0
    %v5058 = vsel %vm587, %v4887, 0
    %v5061 = vsel %vm587, %v4888, 0
    %v5064 = vsel %vm587, %v4889, 0
    %v5067 = vsel %vm587, %v4953, 0
    %v5070 = vsel %vm587, %v4956, 0
    %v5073 = vsel %vm587, %v4961, 0
    %5075 = vmatprep.subr.mxu0 0.0
    %5076 = vmatpush1.xpose.msra.mxu0 %v5067
    %5077 = vmatprep.subr.mxu0 0.0
    %5078 = vmatpush1.xpose.msra.mxu0 %v5070
    %5079 = vmatprep.subr.mxu0 0.0
    %5080 = vmatpush1.xpose.msra.mxu0 %v5073
    %5081 = vmatprep.subr.mxu0 0.0
    %5082 = vmatpush1.xpose.msra.mxu0 0.0
    %5083 = vmatprep.subr.mxu0 0.0
    %5084 = vmatpush1.xpose.msra.mxu0 0.0
    %5085 = vmatprep.subr.mxu0 0.0
    %5086 = vmatpush1.xpose.msra.mxu0 0.0
    %5087 = vmatprep.subr.mxu0 0.0
    %5088 = vmatpush1.xpose.msra.mxu0 0.0
    %5089 = vmatprep.subr.mxu0 0.0
    %5090 = vmatpush1.xpose.msra.mxu0 0.0
    %5091 = vmatprep.subr.mxu0 0.0
    %5092 = vmatpush1.xpose.msra.mxu0 0.0
    %5093 = vmatprep.subr.mxu0 0.0
    %5094 = vmatpush1.xpose.msra.mxu0 0.0
    %5095 = vmatprep.subr.mxu0 0.0
    %5096 = vmatpush1.xpose.msra.mxu0 0.0
    %5097 = vmatprep.subr.mxu0 0.0
    %5098 = vmatpush1.xpose.msra.mxu0 0.0
    %5099 = vmatprep.subr.mxu0 0.0
    %5100 = vmatpush1.xpose.msra.mxu0 0.0
    %5101 = vmatprep.subr.mxu0 0.0
    %5102 = vmatpush1.xpose.msra.mxu0 0.0
    %5103 = vmatprep.subr.mxu0 0.0
    %5104 = vmatpush1.xpose.msra.mxu0 0.0
    %5105 = vmatprep.subr.mxu0 0.0
    %5106 = vmatpush1.xpose.msra.mxu0 0.0
    %5107 = vmatprep.subr.mxu0 0.0
    %5108 = vmatpush1.xpose.msra.mxu0 0.0
    %5109 = vmatprep.subr.mxu0 0.0
    %5110 = vmatpush1.xpose.msra.mxu0 0.0
    %5111 = vmatprep.subr.mxu0 0.0
    %5112 = vmatpush1.xpose.msra.mxu0 0.0
    %5113 = vmatprep.subr.mxu0 0.0
    %5114 = vmatpush1.xpose.msra.mxu0 0.0
    %5115 = vmatprep.subr.mxu0 0.0
    %5116 = vmatpush1.xpose.msra.mxu0 0.0
    %5117 = vmatprep.subr.mxu0 0.0
    %5118 = vmatpush1.xpose.msra.mxu0 0.0
    %5119 = vmatprep.subr.mxu0 0.0
    %5120 = vmatpush1.xpose.msra.mxu0 0.0
    %5121 = vmatprep.subr.mxu0 0.0
    %5122 = vmatpush1.xpose.msra.mxu0 0.0
    %5123 = vmatprep.subr.mxu0 0.0
    %5124 = vmatpush1.xpose.msra.mxu0 0.0
    %5125 = vmatprep.subr.mxu0 0.0
    %5126 = vmatpush1.xpose.msra.mxu0 0.0
    %5127 = vmatprep.subr.mxu0 0.0
    %5128 = vmatpush1.xpose.msra.mxu0 0.0
    %5129 = vmatprep.subr.mxu0 0.0
    %5130 = vmatpush1.xpose.msra.mxu0 0.0
    %5131 = vmatprep.subr.mxu0 0.0
    %5132 = vmatpush1.xpose.msra.mxu0 0.0
    %5133 = vmatprep.subr.mxu0 0.0
    %5134 = vmatpush1.xpose.msra.mxu0 0.0
    %5135 = vmatprep.subr.mxu0 0.0
    %5136 = vmatpush1.xpose.msra.mxu0 0.0
    %5137 = vmatprep.subr.mxu0 0.0
    %5138 = vmatpush1.xpose.msra.mxu0 0.0
    %5139 = vmatprep.mubr.f32.mxu0 0.0
    %5140 = vmatmul.mubr.f32.gmra.mrb[0].mxu0 %v5058
    %v5141 = vpop.f32.mrb[0].mxu0
    %v5142 = vadd.f32 0.0, %v5141
    %v5143 = vpop.f32.mrb[0].mxu0
    %5144 = vmatprep.mubr.f32.mxu0 0.0
    %5145 = vmatmul.mubr.f32.gmra.mrb[0].mxu0 %v5061
    %v5146 = vpop.f32.mrb[0].mxu0
    %v5147 = vadd.f32 0.0, %v5146
    %v5148 = vpop.f32.mrb[0].mxu0
    %5149 = vmatprep.mubr.f32.mxu0 0.0
    %5150 = vmatmul.mubr.f32.gmra.mrb[0].mxu0 %v5064
    %v5151 = vpop.f32.mrb[0].mxu0
    %v5152 = vadd.f32 0.0, %v5151
    %v5153 = vpop.f32.mrb[0].mxu0
    %5154 = vdwg.mxu0
    %v5156 = vsel %vm587, %v4890, 0
    %v5159 = vsel %vm587, %v4891, 0
    %v5162 = vsel %vm587, %v4892, 0
    %v5165 = vsel %vm587, %v4964, 0
    %v5168 = vsel %vm587, %v4969, 0
    %v5171 = vsel %vm587, %v4972, 0
    %5173 = vmatprep.subr.mxu0 0.0
    %5174 = vmatpush1.xpose.msra.mxu0 %v5165
    %5175 = vmatprep.subr.mxu0 0.0
    %5176 = vmatpush1.xpose.msra.mxu0 %v5168
    %5177 = vmatprep.subr.mxu0 0.0
    %5178 = vmatpush1.xpose.msra.mxu0 %v5171
    %5179 = vmatprep.subr.mxu0 0.0
    %5180 = vmatpush1.xpose.msra.mxu0 0.0
    %5181 = vmatprep.subr.mxu0 0.0
    %5182 = vmatpush1.xpose.msra.mxu0 0.0
    %5183 = vmatprep.subr.mxu0 0.0
    %5184 = vmatpush1.xpose.msra.mxu0 0.0
    %5185 = vmatprep.subr.mxu0 0.0
    %5186 = vmatpush1.xpose.msra.mxu0 0.0
    %5187 = vmatprep.subr.mxu0 0.0
    %5188 = vmatpush1.xpose.msra.mxu0 0.0
    %5189 = vmatprep.subr.mxu0 0.0
    %5190 = vmatpush1.xpose.msra.mxu0 0.0
    %5191 = vmatprep.subr.mxu0 0.0
    %5192 = vmatpush1.xpose.msra.mxu0 0.0
    %5193 = vmatprep.subr.mxu0 0.0
    %5194 = vmatpush1.xpose.msra.mxu0 0.0
    %5195 = vmatprep.subr.mxu0 0.0
    %5196 = vmatpush1.xpose.msra.mxu0 0.0
    %5197 = vmatprep.subr.mxu0 0.0
    %5198 = vmatpush1.xpose.msra.mxu0 0.0
    %5199 = vmatprep.subr.mxu0 0.0
    %5200 = vmatpush1.xpose.msra.mxu0 0.0
    %5201 = vmatprep.subr.mxu0 0.0
    %5202 = vmatpush1.xpose.msra.mxu0 0.0
    %5203 = vmatprep.subr.mxu0 0.0
    %5204 = vmatpush1.xpose.msra.mxu0 0.0
    %5205 = vmatprep.subr.mxu0 0.0
    %5206 = vmatpush1.xpose.msra.mxu0 0.0
    %5207 = vmatprep.subr.mxu0 0.0
    %5208 = vmatpush1.xpose.msra.mxu0 0.0
    %5209 = vmatprep.subr.mxu0 0.0
    %5210 = vmatpush1.xpose.msra.mxu0 0.0
    %5211 = vmatprep.subr.mxu0 0.0
    %5212 = vmatpush1.xpose.msra.mxu0 0.0
    %5213 = vmatprep.subr.mxu0 0.0
    %5214 = vmatpush1.xpose.msra.mxu0 0.0
    %5215 = vmatprep.subr.mxu0 0.0
    %5216 = vmatpush1.xpose.msra.mxu0 0.0
    %5217 = vmatprep.subr.mxu0 0.0
    %5218 = vmatpush1.xpose.msra.mxu0 0.0
    %5219 = vmatprep.subr.mxu0 0.0
    %5220 = vmatpush1.xpose.msra.mxu0 0.0
    %5221 = vmatprep.subr.mxu0 0.0
    %5222 = vmatpush1.xpose.msra.mxu0 0.0
    %5223 = vmatprep.subr.mxu0 0.0
    %5224 = vmatpush1.xpose.msra.mxu0 0.0
    %5225 = vmatprep.subr.mxu0 0.0
    %5226 = vmatpush1.xpose.msra.mxu0 0.0
    %5227 = vmatprep.subr.mxu0 0.0
    %5228 = vmatpush1.xpose.msra.mxu0 0.0
    %5229 = vmatprep.subr.mxu0 0.0
    %5230 = vmatpush1.xpose.msra.mxu0 0.0
    %5231 = vmatprep.subr.mxu0 0.0
    %5232 = vmatpush1.xpose.msra.mxu0 0.0
    %5233 = vmatprep.subr.mxu0 0.0
    %5234 = vmatpush1.xpose.msra.mxu0 0.0
    %5235 = vmatprep.subr.mxu0 0.0
    %5236 = vmatpush1.xpose.msra.mxu0 0.0
    %5237 = vmatprep.mubr.f32.mxu0 0.0
    %5238 = vmatmul.mubr.f32.gmra.mrb[0].mxu0 %v5156
    %v5239 = vpop.f32.mrb[0].mxu0
    %v5240 = vadd.f32 0.0, %v5239
    %v5241 = vpop.f32.mrb[0].mxu0
    %5242 = vmatprep.mubr.f32.mxu0 0.0
    %5243 = vmatmul.mubr.f32.gmra.mrb[0].mxu0 %v5159
    %v5244 = vpop.f32.mrb[0].mxu0
    %v5245 = vadd.f32 0.0, %v5244
    %v5246 = vpop.f32.mrb[0].mxu0
    %5247 = vmatprep.mubr.f32.mxu0 0.0
    %5248 = vmatmul.mubr.f32.gmra.mrb[0].mxu0 %v5162
    %v5249 = vpop.f32.mrb[0].mxu0
    %v5250 = vadd.f32 0.0, %v5249
    %v5251 = vpop.f32.mrb[0].mxu0
    %5252 = vdwg.mxu0
    %s5253 = scalar_lea.vmem %s5, 240
    %v5254 = vld [vmem:[%s5253] sm:$0xf]
    %v5255 = vld [vmem:[%s5253 + $0x4] sm:$0xf]
    %v5256 = vld [vmem:[%s5253 + $0x8] sm:$0xf]
    %v5257 = vld [vmem:[%s5253 + $0xc] sm:$0xf]
    %s5258 = scalar_lea.vmem %s6, 15
    %v5259 = vld [vmem:[%s5258] sm:$0x1]
    %v5261 = vlaneseq
    %v5262 = vshrl.u32 %v5261, 7
    %v5263 = vsub.s32 0, %v5262
    %v5264 = vrot.slane %v5259, %v5263
    %v5270 = vunpack.c.l.b16 %v5254
    %v5271 = vunpack.c.l.b16 %v5255
    %v5272 = vunpack.c.l.b16 %v5256
    %v5273 = vunpack.c.l.b16 %v5257
    %v5274 = vpack.c.b16 %v5271, %v5270
    %v5275 = vpack.c.b16 %v5273, %v5272
    %5278 = vmatprep.subr.bf16.mxu0 0
    %5279 = vmatpush1.bf16.msra.mxu0 %v5274
    %5280 = vmatprep.subr.bf16.mxu0 0
    %5281 = vmatpush1.bf16.msra.mxu0 %v5275
    %5282 = vmatprep.subr.bf16.mxu0 0
    %5283 = vmatpush1.bf16.msra.mxu0 0
    %5284 = vmatprep.subr.bf16.mxu0 0
    %5285 = vmatpush1.bf16.msra.mxu0 0
    %5286 = vmatprep.subr.bf16.mxu0 0
    %5287 = vmatpush1.bf16.msra.mxu0 0
    %5288 = vmatprep.subr.bf16.mxu0 0
    %5289 = vmatpush1.bf16.msra.mxu0 0
    %5290 = vmatprep.subr.bf16.mxu0 0
    %5291 = vmatpush1.bf16.msra.mxu0 0
    %5292 = vmatprep.subr.bf16.mxu0 0
    %5293 = vmatpush1.bf16.msra.mxu0 0
    %5294 = vmatprep.subr.bf16.mxu0 0
    %5295 = vmatpush1.bf16.msra.mxu0 0
    %5296 = vmatprep.subr.bf16.mxu0 0
    %5297 = vmatpush1.bf16.msra.mxu0 0
    %5298 = vmatprep.subr.bf16.mxu0 0
    %5299 = vmatpush1.bf16.msra.mxu0 0
    %5300 = vmatprep.subr.bf16.mxu0 0
    %5301 = vmatpush1.bf16.msra.mxu0 0
    %5302 = vmatprep.subr.bf16.mxu0 0
    %5303 = vmatpush1.bf16.msra.mxu0 0
    %5304 = vmatprep.subr.bf16.mxu0 0
    %5305 = vmatpush1.bf16.msra.mxu0 0
    %5306 = vmatprep.subr.bf16.mxu0 0
    %5307 = vmatpush1.bf16.msra.mxu0 0
    %5308 = vmatprep.subr.bf16.mxu0 0
    %5309 = vmatpush1.bf16.msra.mxu0 0
    %5310 = vmatprep.mubr.bf16.mxu0 0
    %5311 = vmatmul.mubr.bf16.gmra.mrb[0].mxu0 %v3926
    %v5312 = vpop.f32.mrb[0].mxu0
    %v5313 = vadd.f32 %v5264, %v5312
    %v5314 = vpop.f32.mrb[0].mxu0
    %v5315 = vpop.f32.mrb[0].mxu0
    %v5316 = vadd.f32 %v5264, %v5315
    %v5317 = vpop.f32.mrb[0].mxu0
    %5318 = vmatprep.mubr.bf16.mxu0 0
    %5319 = vmatmul.mubr.bf16.gmra.mrb[0].mxu0 %v3929
    %v5320 = vpop.f32.mrb[0].mxu0
    %v5321 = vadd.f32 %v5264, %v5320
    %v5322 = vpop.f32.mrb[0].mxu0
    %v5323 = vpop.f32.mrb[0].mxu0
    %v5324 = vadd.f32 %v5264, %v5323
    %v5325 = vpop.f32.mrb[0].mxu0
    %5326 = vmatprep.mubr.bf16.mxu0 0
    %5327 = vmatmul.mubr.bf16.gmra.mrb[0].mxu0 %v3932
    %v5328 = vpop.f32.mrb[0].mxu0
    %v5329 = vadd.f32 %v5264, %v5328
    %v5330 = vpop.f32.mrb[0].mxu0
    %v5331 = vpop.f32.mrb[0].mxu0
    %v5332 = vadd.f32 %v5264, %v5331
    %v5333 = vpop.f32.mrb[0].mxu0
    %5334 = vdwg.mxu0
    %v5335 = vmul.f32 %v5313, 0.35355338
    %v5336 = vmul.f32 %v5316, 0.35355338
    %v5337 = vmul.f32 %v5321, 0.35355338
    %v5338 = vmul.f32 %v5324, 0.35355338
    %v5339 = vmul.f32 %v5329, 0.35355338
    %v5340 = vmul.f32 %v5332, 0.35355338
    %s5341 = scalar_lea.vmem %s5, 304
    %v5342 = vld [vmem:[%s5341] sm:$0xf]
    %v5343 = vld [vmem:[%s5341 + $0x4] sm:$0xf]
    %v5344 = vld [vmem:[%s5341 + $0x8] sm:$0xf]
    %v5345 = vld [vmem:[%s5341 + $0xc] sm:$0xf]
    %s5346 = scalar_lea.vmem %s6, 19
    %v5347 = vld [vmem:[%s5346] sm:$0x1]
    %v5349 = vlaneseq
    %v5350 = vshrl.u32 %v5349, 7
    %v5351 = vsub.s32 0, %v5350
    %v5352 = vrot.slane %v5347, %v5351
    %v5358 = vunpack.c.l.b16 %v5342
    %v5359 = vunpack.c.l.b16 %v5343
    %v5360 = vunpack.c.l.b16 %v5344
    %v5361 = vunpack.c.l.b16 %v5345
    %v5362 = vpack.c.b16 %v5359, %v5358
    %v5363 = vpack.c.b16 %v5361, %v5360
    %5366 = vmatprep.subr.bf16.mxu0 0
    %5367 = vmatpush1.bf16.msra.mxu0 %v5362
    %5368 = vmatprep.subr.bf16.mxu0 0
    %5369 = vmatpush1.bf16.msra.mxu0 %v5363
    %5370 = vmatprep.subr.bf16.mxu0 0
    %5371 = vmatpush1.bf16.msra.mxu0 0
    %5372 = vmatprep.subr.bf16.mxu0 0
    %5373 = vmatpush1.bf16.msra.mxu0 0
    %5374 = vmatprep.subr.bf16.mxu0 0
    %5375 = vmatpush1.bf16.msra.mxu0 0
    %5376 = vmatprep.subr.bf16.mxu0 0
    %5377 = vmatpush1.bf16.msra.mxu0 0
    %5378 = vmatprep.subr.bf16.mxu0 0
    %5379 = vmatpush1.bf16.msra.mxu0 0
    %5380 = vmatprep.subr.bf16.mxu0 0
    %5381 = vmatpush1.bf16.msra.mxu0 0
    %5382 = vmatprep.subr.bf16.mxu0 0
    %5383 = vmatpush1.bf16.msra.mxu0 0
    %5384 = vmatprep.subr.bf16.mxu0 0
    %5385 = vmatpush1.bf16.msra.mxu0 0
    %5386 = vmatprep.subr.bf16.mxu0 0
    %5387 = vmatpush1.bf16.msra.mxu0 0
    %5388 = vmatprep.subr.bf16.mxu0 0
    %5389 = vmatpush1.bf16.msra.mxu0 0
    %5390 = vmatprep.subr.bf16.mxu0 0
    %5391 = vmatpush1.bf16.msra.mxu0 0
    %5392 = vmatprep.subr.bf16.mxu0 0
    %5393 = vmatpush1.bf16.msra.mxu0 0
    %5394 = vmatprep.subr.bf16.mxu0 0
    %5395 = vmatpush1.bf16.msra.mxu0 0
    %5396 = vmatprep.subr.bf16.mxu0 0
    %5397 = vmatpush1.bf16.msra.mxu0 0
    %5398 = vmatprep.mubr.bf16.mxu0 0
    %5399 = vmatmul.mubr.bf16.gmra.mrb[0].mxu0 %v3926
    %v5400 = vpop.f32.mrb[0].mxu0
    %v5401 = vadd.f32 %v5352, %v5400
    %v5402 = vpop.f32.mrb[0].mxu0
    %v5403 = vpop.f32.mrb[0].mxu0
    %v5404 = vadd.f32 %v5352, %v5403
    %v5405 = vpop.f32.mrb[0].mxu0
    %5406 = vmatprep.mubr.bf16.mxu0 0
    %5407 = vmatmul.mubr.bf16.gmra.mrb[0].mxu0 %v3929
    %v5408 = vpop.f32.mrb[0].mxu0
    %v5409 = vadd.f32 %v5352, %v5408
    %v5410 = vpop.f32.mrb[0].mxu0
    %v5411 = vpop.f32.mrb[0].mxu0
    %v5412 = vadd.f32 %v5352, %v5411
    %v5413 = vpop.f32.mrb[0].mxu0
    %5414 = vmatprep.mubr.bf16.mxu0 0
    %5415 = vmatmul.mubr.bf16.gmra.mrb[0].mxu0 %v3932
    %v5416 = vpop.f32.mrb[0].mxu0
    %v5417 = vadd.f32 %v5352, %v5416
    %v5418 = vpop.f32.mrb[0].mxu0
    %v5419 = vpop.f32.mrb[0].mxu0
    %v5420 = vadd.f32 %v5352, %v5419
    %v5421 = vpop.f32.mrb[0].mxu0
    %5422 = vdwg.mxu0
    %s5423 = scalar_lea.vmem %s5, 368
    %v5424 = vld [vmem:[%s5423] sm:$0xf]
    %v5425 = vld [vmem:[%s5423 + $0x4] sm:$0xf]
    %v5426 = vld [vmem:[%s5423 + $0x8] sm:$0xf]
    %v5427 = vld [vmem:[%s5423 + $0xc] sm:$0xf]
    %s5428 = scalar_lea.vmem %s6, 23
    %v5429 = vld [vmem:[%s5428] sm:$0x1]
    %v5431 = vlaneseq
    %v5432 = vshrl.u32 %v5431, 7
    %v5433 = vsub.s32 0, %v5432
    %v5434 = vrot.slane %v5429, %v5433
    %v5440 = vunpack.c.l.b16 %v5424
    %v5441 = vunpack.c.l.b16 %v5425
    %v5442 = vunpack.c.l.b16 %v5426
    %v5443 = vunpack.c.l.b16 %v5427
    %v5444 = vpack.c.b16 %v5441, %v5440
    %v5445 = vpack.c.b16 %v5443, %v5442
    %5448 = vmatprep.subr.bf16.mxu0 0
    %5449 = vmatpush1.bf16.msra.mxu0 %v5444
    %5450 = vmatprep.subr.bf16.mxu0 0
    %5451 = vmatpush1.bf16.msra.mxu0 %v5445
    %5452 = vmatprep.subr.bf16.mxu0 0
    %5453 = vmatpush1.bf16.msra.mxu0 0
    %5454 = vmatprep.subr.bf16.mxu0 0
    %5455 = vmatpush1.bf16.msra.mxu0 0
    %5456 = vmatprep.subr.bf16.mxu0 0
    %5457 = vmatpush1.bf16.msra.mxu0 0
    %5458 = vmatprep.subr.bf16.mxu0 0
    %5459 = vmatpush1.bf16.msra.mxu0 0
    %5460 = vmatprep.subr.bf16.mxu0 0
    %5461 = vmatpush1.bf16.msra.mxu0 0
    %5462 = vmatprep.subr.bf16.mxu0 0
    %5463 = vmatpush1.bf16.msra.mxu0 0
    %5464 = vmatprep.subr.bf16.mxu0 0
    %5465 = vmatpush1.bf16.msra.mxu0 0
    %5466 = vmatprep.subr.bf16.mxu0 0
    %5467 = vmatpush1.bf16.msra.mxu0 0
    %5468 = vmatprep.subr.bf16.mxu0 0
    %5469 = vmatpush1.bf16.msra.mxu0 0
    %5470 = vmatprep.subr.bf16.mxu0 0
    %5471 = vmatpush1.bf16.msra.mxu0 0
    %5472 = vmatprep.subr.bf16.mxu0 0
    %5473 = vmatpush1.bf16.msra.mxu0 0
    %5474 = vmatprep.subr.bf16.mxu0 0
    %5475 = vmatpush1.bf16.msra.mxu0 0
    %5476 = vmatprep.subr.bf16.mxu0 0
    %5477 = vmatpush1.bf16.msra.mxu0 0
    %5478 = vmatprep.subr.bf16.mxu0 0
    %5479 = vmatpush1.bf16.msra.mxu0 0
    %5480 = vmatprep.mubr.bf16.mxu0 0
    %5481 = vmatmul.mubr.bf16.gmra.mrb[0].mxu0 %v3926
    %v5482 = vpop.f32.mrb[0].mxu0
    %v5483 = vadd.f32 %v5434, %v5482
    %v5484 = vpop.f32.mrb[0].mxu0
    %v5485 = vpop.f32.mrb[0].mxu0
    %v5486 = vadd.f32 %v5434, %v5485
    %v5487 = vpop.f32.mrb[0].mxu0
    %5488 = vmatprep.mubr.bf16.mxu0 0
    %5489 = vmatmul.mubr.bf16.gmra.mrb[0].mxu0 %v3929
    %v5490 = vpop.f32.mrb[0].mxu0
    %v5491 = vadd.f32 %v5434, %v5490
    %v5492 = vpop.f32.mrb[0].mxu0
    %v5493 = vpop.f32.mrb[0].mxu0
    %v5494 = vadd.f32 %v5434, %v5493
    %v5495 = vpop.f32.mrb[0].mxu0
    %5496 = vmatprep.mubr.bf16.mxu0 0
    %5497 = vmatmul.mubr.bf16.gmra.mrb[0].mxu0 %v3932
    %v5498 = vpop.f32.mrb[0].mxu0
    %v5499 = vadd.f32 %v5434, %v5498
    %v5500 = vpop.f32.mrb[0].mxu0
    %v5501 = vpop.f32.mrb[0].mxu0
    %v5502 = vadd.f32 %v5434, %v5501
    %v5503 = vpop.f32.mrb[0].mxu0
    %5504 = vdwg.mxu0
    %v5506 = vsel %vm587, %v5335, 0
    %v5509 = vsel %vm587, %v5336, 0
    %v5512 = vsel %vm587, %v5337, 0
    %v5515 = vsel %vm587, %v5401, 0
    %v5518 = vsel %vm587, %v5404, 0
    %v5521 = vsel %vm587, %v5409, 0
    %5523 = vmatprep.subr.mxu0 0.0
    %5524 = vmatpush1.xpose.msra.mxu0 %v5515
    %5525 = vmatprep.subr.mxu0 0.0
    %5526 = vmatpush1.xpose.msra.mxu0 %v5518
    %5527 = vmatprep.subr.mxu0 0.0
    %5528 = vmatpush1.xpose.msra.mxu0 %v5521
    %5529 = vmatprep.subr.mxu0 0.0
    %5530 = vmatpush1.xpose.msra.mxu0 0.0
    %5531 = vmatprep.subr.mxu0 0.0
    %5532 = vmatpush1.xpose.msra.mxu0 0.0
    %5533 = vmatprep.subr.mxu0 0.0
    %5534 = vmatpush1.xpose.msra.mxu0 0.0
    %5535 = vmatprep.subr.mxu0 0.0
    %5536 = vmatpush1.xpose.msra.mxu0 0.0
    %5537 = vmatprep.subr.mxu0 0.0
    %5538 = vmatpush1.xpose.msra.mxu0 0.0
    %5539 = vmatprep.subr.mxu0 0.0
    %5540 = vmatpush1.xpose.msra.mxu0 0.0
    %5541 = vmatprep.subr.mxu0 0.0
    %5542 = vmatpush1.xpose.msra.mxu0 0.0
    %5543 = vmatprep.subr.mxu0 0.0
    %5544 = vmatpush1.xpose.msra.mxu0 0.0
    %5545 = vmatprep.subr.mxu0 0.0
    %5546 = vmatpush1.xpose.msra.mxu0 0.0
    %5547 = vmatprep.subr.mxu0 0.0
    %5548 = vmatpush1.xpose.msra.mxu0 0.0
    %5549 = vmatprep.subr.mxu0 0.0
    %5550 = vmatpush1.xpose.msra.mxu0 0.0
    %5551 = vmatprep.subr.mxu0 0.0
    %5552 = vmatpush1.xpose.msra.mxu0 0.0
    %5553 = vmatprep.subr.mxu0 0.0
    %5554 = vmatpush1.xpose.msra.mxu0 0.0
    %5555 = vmatprep.subr.mxu0 0.0
    %5556 = vmatpush1.xpose.msra.mxu0 0.0
    %5557 = vmatprep.subr.mxu0 0.0
    %5558 = vmatpush1.xpose.msra.mxu0 0.0
    %5559 = vmatprep.subr.mxu0 0.0
    %5560 = vmatpush1.xpose.msra.mxu0 0.0
    %5561 = vmatprep.subr.mxu0 0.0
    %5562 = vmatpush1.xpose.msra.mxu0 0.0
    %5563 = vmatprep.subr.mxu0 0.0
    %5564 = vmatpush1.xpose.msra.mxu0 0.0
    %5565 = vmatprep.subr.mxu0 0.0
    %5566 = vmatpush1.xpose.msra.mxu0 0.0
    %5567 = vmatprep.subr.mxu0 0.0
    %5568 = vmatpush1.xpose.msra.mxu0 0.0
    %5569 = vmatprep.subr.mxu0 0.0
    %5570 = vmatpush1.xpose.msra.mxu0 0.0
    %5571 = vmatprep.subr.mxu0 0.0
    %5572 = vmatpush1.xpose.msra.mxu0 0.0
    %5573 = vmatprep.subr.mxu0 0.0
    %5574 = vmatpush1.xpose.msra.mxu0 0.0
    %5575 = vmatprep.subr.mxu0 0.0
    %5576 = vmatpush1.xpose.msra.mxu0 0.0
    %5577 = vmatprep.subr.mxu0 0.0
    %5578 = vmatpush1.xpose.msra.mxu0 0.0
    %5579 = vmatprep.subr.mxu0 0.0
    %5580 = vmatpush1.xpose.msra.mxu0 0.0
    %5581 = vmatprep.subr.mxu0 0.0
    %5582 = vmatpush1.xpose.msra.mxu0 0.0
    %5583 = vmatprep.subr.mxu0 0.0
    %5584 = vmatpush1.xpose.msra.mxu0 0.0
    %5585 = vmatprep.subr.mxu0 0.0
    %5586 = vmatpush1.xpose.msra.mxu0 0.0
    %5587 = vmatprep.mubr.f32.mxu0 0.0
    %5588 = vmatmul.mubr.f32.gmra.mrb[0].mxu0 %v5506
    %v5589 = vpop.f32.mrb[0].mxu0
    %v5590 = vadd.f32 0.0, %v5589
    %v5591 = vpop.f32.mrb[0].mxu0
    %5592 = vmatprep.mubr.f32.mxu0 0.0
    %5593 = vmatmul.mubr.f32.gmra.mrb[0].mxu0 %v5509
    %v5594 = vpop.f32.mrb[0].mxu0
    %v5595 = vadd.f32 0.0, %v5594
    %v5596 = vpop.f32.mrb[0].mxu0
    %5597 = vmatprep.mubr.f32.mxu0 0.0
    %5598 = vmatmul.mubr.f32.gmra.mrb[0].mxu0 %v5512
    %v5599 = vpop.f32.mrb[0].mxu0
    %v5600 = vadd.f32 0.0, %v5599
    %v5601 = vpop.f32.mrb[0].mxu0
    %5602 = vdwg.mxu0
    %v5604 = vsel %vm587, %v5338, 0
    %v5607 = vsel %vm587, %v5339, 0
    %v5610 = vsel %vm587, %v5340, 0
    %v5613 = vsel %vm587, %v5412, 0
    %v5616 = vsel %vm587, %v5417, 0
    %v5619 = vsel %vm587, %v5420, 0
    %5621 = vmatprep.subr.mxu0 0.0
    %5622 = vmatpush1.xpose.msra.mxu0 %v5613
    %5623 = vmatprep.subr.mxu0 0.0
    %5624 = vmatpush1.xpose.msra.mxu0 %v5616
    %5625 = vmatprep.subr.mxu0 0.0
    %5626 = vmatpush1.xpose.msra.mxu0 %v5619
    %5627 = vmatprep.subr.mxu0 0.0
    %5628 = vmatpush1.xpose.msra.mxu0 0.0
    %5629 = vmatprep.subr.mxu0 0.0
    %5630 = vmatpush1.xpose.msra.mxu0 0.0
    %5631 = vmatprep.subr.mxu0 0.0
    %5632 = vmatpush1.xpose.msra.mxu0 0.0
    %5633 = vmatprep.subr.mxu0 0.0
    %5634 = vmatpush1.xpose.msra.mxu0 0.0
    %5635 = vmatprep.subr.mxu0 0.0
    %5636 = vmatpush1.xpose.msra.mxu0 0.0
    %5637 = vmatprep.subr.mxu0 0.0
    %5638 = vmatpush1.xpose.msra.mxu0 0.0
    %5639 = vmatprep.subr.mxu0 0.0
    %5640 = vmatpush1.xpose.msra.mxu0 0.0
    %5641 = vmatprep.subr.mxu0 0.0
    %5642 = vmatpush1.xpose.msra.mxu0 0.0
    %5643 = vmatprep.subr.mxu0 0.0
    %5644 = vmatpush1.xpose.msra.mxu0 0.0
    %5645 = vmatprep.subr.mxu0 0.0
    %5646 = vmatpush1.xpose.msra.mxu0 0.0
    %5647 = vmatprep.subr.mxu0 0.0
    %5648 = vmatpush1.xpose.msra.mxu0 0.0
    %5649 = vmatprep.subr.mxu0 0.0
    %5650 = vmatpush1.xpose.msra.mxu0 0.0
    %5651 = vmatprep.subr.mxu0 0.0
    %5652 = vmatpush1.xpose.msra.mxu0 0.0
    %5653 = vmatprep.subr.mxu0 0.0
    %5654 = vmatpush1.xpose.msra.mxu0 0.0
    %5655 = vmatprep.subr.mxu0 0.0
    %5656 = vmatpush1.xpose.msra.mxu0 0.0
    %5657 = vmatprep.subr.mxu0 0.0
    %5658 = vmatpush1.xpose.msra.mxu0 0.0
    %5659 = vmatprep.subr.mxu0 0.0
    %5660 = vmatpush1.xpose.msra.mxu0 0.0
    %5661 = vmatprep.subr.mxu0 0.0
    %5662 = vmatpush1.xpose.msra.mxu0 0.0
    %5663 = vmatprep.subr.mxu0 0.0
    %5664 = vmatpush1.xpose.msra.mxu0 0.0
    %5665 = vmatprep.subr.mxu0 0.0
    %5666 = vmatpush1.xpose.msra.mxu0 0.0
    %5667 = vmatprep.subr.mxu0 0.0
    %5668 = vmatpush1.xpose.msra.mxu0 0.0
    %5669 = vmatprep.subr.mxu0 0.0
    %5670 = vmatpush1.xpose.msra.mxu0 0.0
    %5671 = vmatprep.subr.mxu0 0.0
    %5672 = vmatpush1.xpose.msra.mxu0 0.0
    %5673 = vmatprep.subr.mxu0 0.0
    %5674 = vmatpush1.xpose.msra.mxu0 0.0
    %5675 = vmatprep.subr.mxu0 0.0
    %5676 = vmatpush1.xpose.msra.mxu0 0.0
    %5677 = vmatprep.subr.mxu0 0.0
    %5678 = vmatpush1.xpose.msra.mxu0 0.0
    %5679 = vmatprep.subr.mxu0 0.0
    %5680 = vmatpush1.xpose.msra.mxu0 0.0
    %5681 = vmatprep.subr.mxu0 0.0
    %5682 = vmatpush1.xpose.msra.mxu0 0.0
    %5683 = vmatprep.subr.mxu0 0.0
    %5684 = vmatpush1.xpose.msra.mxu0 0.0
    %5685 = vmatprep.mubr.f32.mxu0 0.0
    %5686 = vmatmul.mubr.f32.gmra.mrb[0].mxu0 %v5604
    %v5687 = vpop.f32.mrb[0].mxu0
    %v5688 = vadd.f32 0.0, %v5687
    %v5689 = vpop.f32.mrb[0].mxu0
    %5690 = vmatprep.mubr.f32.mxu0 0.0
    %5691 = vmatmul.mubr.f32.gmra.mrb[0].mxu0 %v5607
    %v5692 = vpop.f32.mrb[0].mxu0
    %v5693 = vadd.f32 0.0, %v5692
    %v5694 = vpop.f32.mrb[0].mxu0
    %5695 = vmatprep.mubr.f32.mxu0 0.0
    %5696 = vmatmul.mubr.f32.gmra.mrb[0].mxu0 %v5610
    %v5697 = vpop.f32.mrb[0].mxu0
    %v5698 = vadd.f32 0.0, %v5697
    %v5699 = vpop.f32.mrb[0].mxu0
    %5700 = vdwg.mxu0
    %v5701 = vadd.f32 %v4246, %v67
    %v5702 = vadd.f32 %v4251, %v67
    %v5703 = vadd.f32 %v4256, %v67
    %v5704 = vadd.f32 %v4344, %v67
    %v5705 = vadd.f32 %v4349, %v67
    %v5706 = vadd.f32 %v4354, %v67
    %v5707 = vadd.f32 %v4694, %v67
    %v5708 = vadd.f32 %v4699, %v67
    %v5709 = vadd.f32 %v4704, %v67
    %v5710 = vadd.f32 %v4792, %v67
    %v5711 = vadd.f32 %v4797, %v67
    %v5712 = vadd.f32 %v4802, %v67
    %v5713 = vadd.f32 %v5142, %v67
    %v5714 = vadd.f32 %v5147, %v67
    %v5715 = vadd.f32 %v5152, %v67
    %v5716 = vadd.f32 %v5240, %v67
    %v5717 = vadd.f32 %v5245, %v67
    %v5718 = vadd.f32 %v5250, %v67
    %v5719 = vadd.f32 %v5590, %v67
    %v5720 = vadd.f32 %v5595, %v67
    %v5721 = vadd.f32 %v5600, %v67
    %v5722 = vadd.f32 %v5688, %v67
    %v5723 = vadd.f32 %v5693, %v67
    %v5724 = vadd.f32 %v5698, %v67
    %v5725 = vsel %vm2152, %v5701, -inf
    %5726 = vmax.xlane.f32.xlu0 %v5725
    %v5727 = vpop.xlane.xlu0 %5726
    %v5728 = vsel %vm2152, %v5702, -inf
    %5729 = vmax.xlane.f32.xlu0 %v5728
    %v5730 = vpop.xlane.xlu0 %5729
    %v5731 = vsel %vm2152, %v5703, -inf
    %5732 = vmax.xlane.f32.xlu0 %v5731
    %v5733 = vpop.xlane.xlu0 %5732
    %v5734 = vsel %vm2152, %v5704, -inf
    %5735 = vmax.xlane.f32.xlu0 %v5734
    %v5736 = vpop.xlane.xlu0 %5735
    %v5737 = vsel %vm2152, %v5705, -inf
    %5738 = vmax.xlane.f32.xlu0 %v5737
    %v5739 = vpop.xlane.xlu0 %5738
    %v5740 = vsel %vm2152, %v5706, -inf
    %5741 = vmax.xlane.f32.xlu0 %v5740
    %v5742 = vpop.xlane.xlu0 %5741
    %v5743 = vsel %vm2152, %v5707, -inf
    %5744 = vmax.xlane.f32.xlu0 %v5743
    %v5745 = vpop.xlane.xlu0 %5744
    %v5746 = vsel %vm2152, %v5708, -inf
    %5747 = vmax.xlane.f32.xlu0 %v5746
    %v5748 = vpop.xlane.xlu0 %5747
    %v5749 = vsel %vm2152, %v5709, -inf
    %5750 = vmax.xlane.f32.xlu0 %v5749
    %v5751 = vpop.xlane.xlu0 %5750
    %v5752 = vsel %vm2152, %v5710, -inf
    %5753 = vmax.xlane.f32.xlu0 %v5752
    %v5754 = vpop.xlane.xlu0 %5753
    %v5755 = vsel %vm2152, %v5711, -inf
    %5756 = vmax.xlane.f32.xlu0 %v5755
    %v5757 = vpop.xlane.xlu0 %5756
    %v5758 = vsel %vm2152, %v5712, -inf
    %5759 = vmax.xlane.f32.xlu0 %v5758
    %v5760 = vpop.xlane.xlu0 %5759
    %v5761 = vsel %vm2152, %v5713, -inf
    %5762 = vmax.xlane.f32.xlu0 %v5761
    %v5763 = vpop.xlane.xlu0 %5762
    %v5764 = vsel %vm2152, %v5714, -inf
    %5765 = vmax.xlane.f32.xlu0 %v5764
    %v5766 = vpop.xlane.xlu0 %5765
    %v5767 = vsel %vm2152, %v5715, -inf
    %5768 = vmax.xlane.f32.xlu0 %v5767
    %v5769 = vpop.xlane.xlu0 %5768
    %v5770 = vsel %vm2152, %v5716, -inf
    %5771 = vmax.xlane.f32.xlu0 %v5770
    %v5772 = vpop.xlane.xlu0 %5771
    %v5773 = vsel %vm2152, %v5717, -inf
    %5774 = vmax.xlane.f32.xlu0 %v5773
    %v5775 = vpop.xlane.xlu0 %5774
    %v5776 = vsel %vm2152, %v5718, -inf
    %5777 = vmax.xlane.f32.xlu0 %v5776
    %v5778 = vpop.xlane.xlu0 %5777
    %v5779 = vsel %vm2152, %v5719, -inf
    %5780 = vmax.xlane.f32.xlu0 %v5779
    %v5781 = vpop.xlane.xlu0 %5780
    %v5782 = vsel %vm2152, %v5720, -inf
    %5783 = vmax.xlane.f32.xlu0 %v5782
    %v5784 = vpop.xlane.xlu0 %5783
    %v5785 = vsel %vm2152, %v5721, -inf
    %5786 = vmax.xlane.f32.xlu0 %v5785
    %v5787 = vpop.xlane.xlu0 %5786
    %v5788 = vsel %vm2152, %v5722, -inf
    %5789 = vmax.xlane.f32.xlu0 %v5788
    %v5790 = vpop.xlane.xlu0 %5789
    %v5791 = vsel %vm2152, %v5723, -inf
    %5792 = vmax.xlane.f32.xlu0 %v5791
    %v5793 = vpop.xlane.xlu0 %5792
    %v5794 = vsel %vm2152, %v5724, -inf
    %5795 = vmax.xlane.f32.xlu0 %v5794
    %v5796 = vpop.xlane.xlu0 %5795
    %v5797 = vsub.f32 %v5701, %v5727
    %v5798 = vsub.f32 %v5702, %v5730
    %v5799 = vsub.f32 %v5703, %v5733
    %v5800 = vsub.f32 %v5704, %v5736
    %v5801 = vsub.f32 %v5705, %v5739
    %v5802 = vsub.f32 %v5706, %v5742
    %v5803 = vsub.f32 %v5707, %v5745
    %v5804 = vsub.f32 %v5708, %v5748
    %v5805 = vsub.f32 %v5709, %v5751
    %v5806 = vsub.f32 %v5710, %v5754
    %v5807 = vsub.f32 %v5711, %v5757
    %v5808 = vsub.f32 %v5712, %v5760
    %v5809 = vsub.f32 %v5713, %v5763
    %v5810 = vsub.f32 %v5714, %v5766
    %v5811 = vsub.f32 %v5715, %v5769
    %v5812 = vsub.f32 %v5716, %v5772
    %v5813 = vsub.f32 %v5717, %v5775
    %v5814 = vsub.f32 %v5718, %v5778
    %v5815 = vsub.f32 %v5719, %v5781
    %v5816 = vsub.f32 %v5720, %v5784
    %v5817 = vsub.f32 %v5721, %v5787
    %v5818 = vsub.f32 %v5722, %v5790
    %v5819 = vsub.f32 %v5723, %v5793
    %v5820 = vsub.f32 %v5724, %v5796
    %v5821 = vmul.f32 %v5797, 1.442695
    %v5822 = vpow.pop %v5821
    %v5823 = vmul.f32 %v5798, 1.442695
    %v5824 = vpow.pop %v5823
    %v5825 = vmul.f32 %v5799, 1.442695
    %v5826 = vpow.pop %v5825
    %v5827 = vmul.f32 %v5800, 1.442695
    %v5828 = vpow.pop %v5827
    %v5829 = vmul.f32 %v5801, 1.442695
    %v5830 = vpow.pop %v5829
    %v5831 = vmul.f32 %v5802, 1.442695
    %v5832 = vpow.pop %v5831
    %v5833 = vmul.f32 %v5803, 1.442695
    %v5834 = vpow.pop %v5833
    %v5835 = vmul.f32 %v5804, 1.442695
    %v5836 = vpow.pop %v5835
    %v5837 = vmul.f32 %v5805, 1.442695
    %v5838 = vpow.pop %v5837
    %v5839 = vmul.f32 %v5806, 1.442695
    %v5840 = vpow.pop %v5839
    %v5841 = vmul.f32 %v5807, 1.442695
    %v5842 = vpow.pop %v5841
    %v5843 = vmul.f32 %v5808, 1.442695
    %v5844 = vpow.pop %v5843
    %v5845 = vmul.f32 %v5809, 1.442695
    %v5846 = vpow.pop %v5845
    %v5847 = vmul.f32 %v5810, 1.442695
    %v5848 = vpow.pop %v5847
    %v5849 = vmul.f32 %v5811, 1.442695
    %v5850 = vpow.pop %v5849
    %v5851 = vmul.f32 %v5812, 1.442695
    %v5852 = vpow.pop %v5851
    %v5853 = vmul.f32 %v5813, 1.442695
    %v5854 = vpow.pop %v5853
    %v5855 = vmul.f32 %v5814, 1.442695
    %v5856 = vpow.pop %v5855
    %v5857 = vmul.f32 %v5815, 1.442695
    %v5858 = vpow.pop %v5857
    %v5859 = vmul.f32 %v5816, 1.442695
    %v5860 = vpow.pop %v5859
    %v5861 = vmul.f32 %v5817, 1.442695
    %v5862 = vpow.pop %v5861
    %v5863 = vmul.f32 %v5818, 1.442695
    %v5864 = vpow.pop %v5863
    %v5865 = vmul.f32 %v5819, 1.442695
    %v5866 = vpow.pop %v5865
    %v5867 = vmul.f32 %v5820, 1.442695
    %v5868 = vpow.pop %v5867
    %v5869 = vsel %vm2152, %v5822, 0.0
    %5870 = vadd.xlane.f32.xlu0 %v5869
    %v5871 = vpop.xlane.xlu0 %5870
    %v5872 = vsel %vm2152, %v5824, 0.0
    %5873 = vadd.xlane.f32.xlu0 %v5872
    %v5874 = vpop.xlane.xlu0 %5873
    %v5875 = vsel %vm2152, %v5826, 0.0
    %5876 = vadd.xlane.f32.xlu0 %v5875
    %v5877 = vpop.xlane.xlu0 %5876
    %v5878 = vsel %vm2152, %v5828, 0.0
    %5879 = vadd.xlane.f32.xlu0 %v5878
    %v5880 = vpop.xlane.xlu0 %5879
    %v5881 = vsel %vm2152, %v5830, 0.0
    %5882 = vadd.xlane.f32.xlu0 %v5881
    %v5883 = vpop.xlane.xlu0 %5882
    %v5884 = vsel %vm2152, %v5832, 0.0
    %5885 = vadd.xlane.f32.xlu0 %v5884
    %v5886 = vpop.xlane.xlu0 %5885
    %v5887 = vsel %vm2152, %v5834, 0.0
    %5888 = vadd.xlane.f32.xlu0 %v5887
    %v5889 = vpop.xlane.xlu0 %5888
    %v5890 = vsel %vm2152, %v5836, 0.0
    %5891 = vadd.xlane.f32.xlu0 %v5890
    %v5892 = vpop.xlane.xlu0 %5891
    %v5893 = vsel %vm2152, %v5838, 0.0
    %5894 = vadd.xlane.f32.xlu0 %v5893
    %v5895 = vpop.xlane.xlu0 %5894
    %v5896 = vsel %vm2152, %v5840, 0.0
    %5897 = vadd.xlane.f32.xlu0 %v5896
    %v5898 = vpop.xlane.xlu0 %5897
    %v5899 = vsel %vm2152, %v5842, 0.0
    %5900 = vadd.xlane.f32.xlu0 %v5899
    %v5901 = vpop.xlane.xlu0 %5900
    %v5902 = vsel %vm2152, %v5844, 0.0
    %5903 = vadd.xlane.f32.xlu0 %v5902
    %v5904 = vpop.xlane.xlu0 %5903
    %v5905 = vsel %vm2152, %v5846, 0.0
    %5906 = vadd.xlane.f32.xlu0 %v5905
    %v5907 = vpop.xlane.xlu0 %5906
    %v5908 = vsel %vm2152, %v5848, 0.0
    %5909 = vadd.xlane.f32.xlu0 %v5908
    %v5910 = vpop.xlane.xlu0 %5909
    %v5911 = vsel %vm2152, %v5850, 0.0
    %5912 = vadd.xlane.f32.xlu0 %v5911
    %v5913 = vpop.xlane.xlu0 %5912
    %v5914 = vsel %vm2152, %v5852, 0.0
    %5915 = vadd.xlane.f32.xlu0 %v5914
    %v5916 = vpop.xlane.xlu0 %5915
    %v5917 = vsel %vm2152, %v5854, 0.0
    %5918 = vadd.xlane.f32.xlu0 %v5917
    %v5919 = vpop.xlane.xlu0 %5918
    %v5920 = vsel %vm2152, %v5856, 0.0
    %5921 = vadd.xlane.f32.xlu0 %v5920
    %v5922 = vpop.xlane.xlu0 %5921
    %v5923 = vsel %vm2152, %v5858, 0.0
    %5924 = vadd.xlane.f32.xlu0 %v5923
    %v5925 = vpop.xlane.xlu0 %5924
    %v5926 = vsel %vm2152, %v5860, 0.0
    %5927 = vadd.xlane.f32.xlu0 %v5926
    %v5928 = vpop.xlane.xlu0 %5927
    %v5929 = vsel %vm2152, %v5862, 0.0
    %5930 = vadd.xlane.f32.xlu0 %v5929
    %v5931 = vpop.xlane.xlu0 %5930
    %v5932 = vsel %vm2152, %v5864, 0.0
    %5933 = vadd.xlane.f32.xlu0 %v5932
    %v5934 = vpop.xlane.xlu0 %5933
    %v5935 = vsel %vm2152, %v5866, 0.0
    %5936 = vadd.xlane.f32.xlu0 %v5935
    %v5937 = vpop.xlane.xlu0 %5936
    %v5938 = vsel %vm2152, %v5868, 0.0
    %5939 = vadd.xlane.f32.xlu0 %v5938
    %v5940 = vpop.xlane.xlu0 %5939
    %v5941 = vrcp.pop %v5871
    %v5942 = vrcp.pop %v5874
    %v5943 = vrcp.pop %v5877
    %v5944 = vrcp.pop %v5880
    %v5945 = vrcp.pop %v5883
    %v5946 = vrcp.pop %v5886
    %v5947 = vrcp.pop %v5889
    %v5948 = vrcp.pop %v5892
    %v5949 = vrcp.pop %v5895
    %v5950 = vrcp.pop %v5898
    %v5951 = vrcp.pop %v5901
    %v5952 = vrcp.pop %v5904
    %v5953 = vrcp.pop %v5907
    %v5954 = vrcp.pop %v5910
    %v5955 = vrcp.pop %v5913
    %v5956 = vrcp.pop %v5916
    %v5957 = vrcp.pop %v5919
    %v5958 = vrcp.pop %v5922
    %v5959 = vrcp.pop %v5925
    %v5960 = vrcp.pop %v5928
    %v5961 = vrcp.pop %v5931
    %v5962 = vrcp.pop %v5934
    %v5963 = vrcp.pop %v5937
    %v5964 = vrcp.pop %v5940
    %v5965 = vmul.f32 %v5822, %v5941
    %v5966 = vmul.f32 %v5824, %v5942
    %v5967 = vmul.f32 %v5826, %v5943
    %v5968 = vmul.f32 %v5828, %v5944
    %v5969 = vmul.f32 %v5830, %v5945
    %v5970 = vmul.f32 %v5832, %v5946
    %v5971 = vmul.f32 %v5834, %v5947
    %v5972 = vmul.f32 %v5836, %v5948
    %v5973 = vmul.f32 %v5838, %v5949
    %v5974 = vmul.f32 %v5840, %v5950
    %v5975 = vmul.f32 %v5842, %v5951
    %v5976 = vmul.f32 %v5844, %v5952
    %v5977 = vmul.f32 %v5846, %v5953
    %v5978 = vmul.f32 %v5848, %v5954
    %v5979 = vmul.f32 %v5850, %v5955
    %v5980 = vmul.f32 %v5852, %v5956
    %v5981 = vmul.f32 %v5854, %v5957
    %v5982 = vmul.f32 %v5856, %v5958
    %v5983 = vmul.f32 %v5858, %v5959
    %v5984 = vmul.f32 %v5860, %v5960
    %v5985 = vmul.f32 %v5862, %v5961
    %v5986 = vmul.f32 %v5864, %v5962
    %v5987 = vmul.f32 %v5866, %v5963
    %v5988 = vmul.f32 %v5868, %v5964
    %s5989 = scalar_lea.vmem %s7, 16
    %v5990 = vld [vmem:[%s5989] sm:$0xf]
    %v5991 = vpack.c.bf16 %v5966, %v5965
    %v5992 = vpack.c.bf16 %v5967, %v5967
    %v5993 = vpack.c.bf16 %v4142, %v4139
    %v5994 = vpack.c.bf16 %v4147, %v4147
    %v5996 = vsel %vm2152, %v5991, 0
    %v5999 = vsel %vm2152, %v5992, 0
    %v6002 = vsel %vm2428, %v5994, 0
    %6004 = vmatprep.subr.bf16.mxu0 0
    %6005 = vmatpush1.bf16.msra.mxu0 %v5993
    %6006 = vmatprep.subr.bf16.mxu0 0
    %6007 = vmatpush1.bf16.msra.mxu0 %v6002
    %6008 = vmatprep.subr.bf16.mxu0 0
    %6009 = vmatpush1.bf16.msra.mxu0 0
    %6010 = vmatprep.subr.bf16.mxu0 0
    %6011 = vmatpush1.bf16.msra.mxu0 0
    %6012 = vmatprep.subr.bf16.mxu0 0
    %6013 = vmatpush1.bf16.msra.mxu0 0
    %6014 = vmatprep.subr.bf16.mxu0 0
    %6015 = vmatpush1.bf16.msra.mxu0 0
    %6016 = vmatprep.subr.bf16.mxu0 0
    %6017 = vmatpush1.bf16.msra.mxu0 0
    %6018 = vmatprep.subr.bf16.mxu0 0
    %6019 = vmatpush1.bf16.msra.mxu0 0
    %6020 = vmatprep.subr.bf16.mxu0 0
    %6021 = vmatpush1.bf16.msra.mxu0 0
    %6022 = vmatprep.subr.bf16.mxu0 0
    %6023 = vmatpush1.bf16.msra.mxu0 0
    %6024 = vmatprep.subr.bf16.mxu0 0
    %6025 = vmatpush1.bf16.msra.mxu0 0
    %6026 = vmatprep.subr.bf16.mxu0 0
    %6027 = vmatpush1.bf16.msra.mxu0 0
    %6028 = vmatprep.subr.bf16.mxu0 0
    %6029 = vmatpush1.bf16.msra.mxu0 0
    %6030 = vmatprep.subr.bf16.mxu0 0
    %6031 = vmatpush1.bf16.msra.mxu0 0
    %6032 = vmatprep.subr.bf16.mxu0 0
    %6033 = vmatpush1.bf16.msra.mxu0 0
    %6034 = vmatprep.subr.bf16.mxu0 0
    %6035 = vmatpush1.bf16.msra.mxu0 0
    %6036 = vmatprep.mubr.bf16.mxu0 0
    %6037 = vmatmul.mubr.bf16.gmra.mrb[0].mxu0 %v5996
    %v6038 = vpop.f32.mrb[0].mxu0
    %v6039 = vadd.f32 0.0, %v6038
    %v6040 = vpop.f32.mrb[0].mxu0
    %v6041 = vpop.f32.mrb[0].mxu0
    %v6042 = vadd.f32 0.0, %v6041
    %v6043 = vpop.f32.mrb[0].mxu0
    %6044 = vmatprep.mubr.bf16.mxu0 0
    %6045 = vmatmul.mubr.bf16.gmra.mrb[0].mxu0 %v5999
    %v6046 = vpop.f32.mrb[0].mxu0
    %v6047 = vadd.f32 0.0, %v6046
    %v6048 = vpop.f32.mrb[0].mxu0
    %v6049 = vpop.f32.mrb[0].mxu0
    %v6050 = vpop.f32.mrb[0].mxu0
    %6051 = vdwg.mxu0
    %v6052 = vpack.c.bf16 %v6042, %v6039
    %v6053 = vpack.c.bf16 %v6047, %v6047
    %v6054 = vpack.c.bf16 %v5969, %v5968
    %v6055 = vpack.c.bf16 %v5970, %v5970
    %v6056 = vpack.c.bf16 %v4155, %v4150
    %v6057 = vpack.c.bf16 %v4158, %v4158
    %v6059 = vsel %vm2152, %v6054, 0
    %v6062 = vsel %vm2152, %v6055, 0
    %v6065 = vsel %vm2428, %v6057, 0
    %6067 = vmatprep.subr.bf16.mxu0 0
    %6068 = vmatpush1.bf16.msra.mxu0 %v6056
    %6069 = vmatprep.subr.bf16.mxu0 0
    %6070 = vmatpush1.bf16.msra.mxu0 %v6065
    %6071 = vmatprep.subr.bf16.mxu0 0
    %6072 = vmatpush1.bf16.msra.mxu0 0
    %6073 = vmatprep.subr.bf16.mxu0 0
    %6074 = vmatpush1.bf16.msra.mxu0 0
    %6075 = vmatprep.subr.bf16.mxu0 0
    %6076 = vmatpush1.bf16.msra.mxu0 0
    %6077 = vmatprep.subr.bf16.mxu0 0
    %6078 = vmatpush1.bf16.msra.mxu0 0
    %6079 = vmatprep.subr.bf16.mxu0 0
    %6080 = vmatpush1.bf16.msra.mxu0 0
    %6081 = vmatprep.subr.bf16.mxu0 0
    %6082 = vmatpush1.bf16.msra.mxu0 0
    %6083 = vmatprep.subr.bf16.mxu0 0
    %6084 = vmatpush1.bf16.msra.mxu0 0
    %6085 = vmatprep.subr.bf16.mxu0 0
    %6086 = vmatpush1.bf16.msra.mxu0 0
    %6087 = vmatprep.subr.bf16.mxu0 0
    %6088 = vmatpush1.bf16.msra.mxu0 0
    %6089 = vmatprep.subr.bf16.mxu0 0
    %6090 = vmatpush1.bf16.msra.mxu0 0
    %6091 = vmatprep.subr.bf16.mxu0 0
    %6092 = vmatpush1.bf16.msra.mxu0 0
    %6093 = vmatprep.subr.bf16.mxu0 0
    %6094 = vmatpush1.bf16.msra.mxu0 0
    %6095 = vmatprep.subr.bf16.mxu0 0
    %6096 = vmatpush1.bf16.msra.mxu0 0
    %6097 = vmatprep.subr.bf16.mxu0 0
    %6098 = vmatpush1.bf16.msra.mxu0 0
    %6099 = vmatprep.mubr.bf16.mxu0 0
    %6100 = vmatmul.mubr.bf16.gmra.mrb[0].mxu0 %v6059
    %v6101 = vpop.f32.mrb[0].mxu0
    %v6102 = vadd.f32 0.0, %v6101
    %v6103 = vpop.f32.mrb[0].mxu0
    %v6104 = vpop.f32.mrb[0].mxu0
    %v6105 = vadd.f32 0.0, %v6104
    %v6106 = vpop.f32.mrb[0].mxu0
    %6107 = vmatprep.mubr.bf16.mxu0 0
    %6108 = vmatmul.mubr.bf16.gmra.mrb[0].mxu0 %v6062
    %v6109 = vpop.f32.mrb[0].mxu0
    %v6110 = vadd.f32 0.0, %v6109
    %v6111 = vpop.f32.mrb[0].mxu0
    %v6112 = vpop.f32.mrb[0].mxu0
    %v6113 = vpop.f32.mrb[0].mxu0
    %6114 = vdwg.mxu0
    %v6115 = vpack.c.bf16 %v6105, %v6102
    %v6116 = vpack.c.bf16 %v6110, %v6110
    %s6117 = scalar_lea.vmem %s7, 20
    %v6118 = vld [vmem:[%s6117] sm:$0xf]
    %v6119 = vpack.c.bf16 %v5972, %v5971
    %v6120 = vpack.c.bf16 %v5973, %v5973
    %v6121 = vpack.c.bf16 %v4590, %v4587
    %v6122 = vpack.c.bf16 %v4595, %v4595
    %v6124 = vsel %vm2152, %v6119, 0
    %v6127 = vsel %vm2152, %v6120, 0
    %v6130 = vsel %vm2428, %v6122, 0
    %6132 = vmatprep.subr.bf16.mxu0 0
    %6133 = vmatpush1.bf16.msra.mxu0 %v6121
    %6134 = vmatprep.subr.bf16.mxu0 0
    %6135 = vmatpush1.bf16.msra.mxu0 %v6130
    %6136 = vmatprep.subr.bf16.mxu0 0
    %6137 = vmatpush1.bf16.msra.mxu0 0
    %6138 = vmatprep.subr.bf16.mxu0 0
    %6139 = vmatpush1.bf16.msra.mxu0 0
    %6140 = vmatprep.subr.bf16.mxu0 0
    %6141 = vmatpush1.bf16.msra.mxu0 0
    %6142 = vmatprep.subr.bf16.mxu0 0
    %6143 = vmatpush1.bf16.msra.mxu0 0
    %6144 = vmatprep.subr.bf16.mxu0 0
    %6145 = vmatpush1.bf16.msra.mxu0 0
    %6146 = vmatprep.subr.bf16.mxu0 0
    %6147 = vmatpush1.bf16.msra.mxu0 0
    %6148 = vmatprep.subr.bf16.mxu0 0
    %6149 = vmatpush1.bf16.msra.mxu0 0
    %6150 = vmatprep.subr.bf16.mxu0 0
    %6151 = vmatpush1.bf16.msra.mxu0 0
    %6152 = vmatprep.subr.bf16.mxu0 0
    %6153 = vmatpush1.bf16.msra.mxu0 0
    %6154 = vmatprep.subr.bf16.mxu0 0
    %6155 = vmatpush1.bf16.msra.mxu0 0
    %6156 = vmatprep.subr.bf16.mxu0 0
    %6157 = vmatpush1.bf16.msra.mxu0 0
    %6158 = vmatprep.subr.bf16.mxu0 0
    %6159 = vmatpush1.bf16.msra.mxu0 0
    %6160 = vmatprep.subr.bf16.mxu0 0
    %6161 = vmatpush1.bf16.msra.mxu0 0
    %6162 = vmatprep.subr.bf16.mxu0 0
    %6163 = vmatpush1.bf16.msra.mxu0 0
    %6164 = vmatprep.mubr.bf16.mxu0 0
    %6165 = vmatmul.mubr.bf16.gmra.mrb[0].mxu0 %v6124
    %v6166 = vpop.f32.mrb[0].mxu0
    %v6167 = vadd.f32 0.0, %v6166
    %v6168 = vpop.f32.mrb[0].mxu0
    %v6169 = vpop.f32.mrb[0].mxu0
    %v6170 = vadd.f32 0.0, %v6169
    %v6171 = vpop.f32.mrb[0].mxu0
    %6172 = vmatprep.mubr.bf16.mxu0 0
    %6173 = vmatmul.mubr.bf16.gmra.mrb[0].mxu0 %v6127
    %v6174 = vpop.f32.mrb[0].mxu0
    %v6175 = vadd.f32 0.0, %v6174
    %v6176 = vpop.f32.mrb[0].mxu0
    %v6177 = vpop.f32.mrb[0].mxu0
    %v6178 = vpop.f32.mrb[0].mxu0
    %6179 = vdwg.mxu0
    %v6180 = vpack.c.bf16 %v6170, %v6167
    %v6181 = vpack.c.bf16 %v6175, %v6175
    %v6183 = vsel %vm587, %v6180, 0
    %v6186 = vsel %vm587, %v6181, 0
    %v6189 = vsel %vm2428, %v6118, 0
    %6191 = vmatprep.subr.bf16.mxu0 0
    %6192 = vmatpush1.bf16.msra.mxu0 %v6189
    %6193 = vmatprep.subr.bf16.mxu0 0
    %6194 = vmatpush1.bf16.msra.mxu0 0
    %6195 = vmatprep.subr.bf16.mxu0 0
    %6196 = vmatpush1.bf16.msra.mxu0 0
    %6197 = vmatprep.subr.bf16.mxu0 0
    %6198 = vmatpush1.bf16.msra.mxu0 0
    %6199 = vmatprep.subr.bf16.mxu0 0
    %6200 = vmatpush1.bf16.msra.mxu0 0
    %6201 = vmatprep.subr.bf16.mxu0 0
    %6202 = vmatpush1.bf16.msra.mxu0 0
    %6203 = vmatprep.subr.bf16.mxu0 0
    %6204 = vmatpush1.bf16.msra.mxu0 0
    %6205 = vmatprep.subr.bf16.mxu0 0
    %6206 = vmatpush1.bf16.msra.mxu0 0
    %6207 = vmatprep.subr.bf16.mxu0 0
    %6208 = vmatpush1.bf16.msra.mxu0 0
    %6209 = vmatprep.subr.bf16.mxu0 0
    %6210 = vmatpush1.bf16.msra.mxu0 0
    %6211 = vmatprep.subr.bf16.mxu0 0
    %6212 = vmatpush1.bf16.msra.mxu0 0
    %6213 = vmatprep.subr.bf16.mxu0 0
    %6214 = vmatpush1.bf16.msra.mxu0 0
    %6215 = vmatprep.subr.bf16.mxu0 0
    %6216 = vmatpush1.bf16.msra.mxu0 0
    %6217 = vmatprep.subr.bf16.mxu0 0
    %6218 = vmatpush1.bf16.msra.mxu0 0
    %6219 = vmatprep.subr.bf16.mxu0 0
    %6220 = vmatpush1.bf16.msra.mxu0 0
    %6221 = vmatprep.subr.bf16.mxu0 0
    %6222 = vmatpush1.bf16.msra.mxu0 0
    %6223 = vmatprep.mubr.bf16.mxu0 0
    %6224 = vmatmul.mubr.bf16.gmra.mrb[0].mxu0 %v6183
    %v6225 = vpop.f32.mrb[0].mxu0
    %v6226 = vadd.f32 0.0, %v6225
    %v6227 = vpop.f32.mrb[0].mxu0
    %v6228 = vpop.f32.mrb[0].mxu0
    %v6229 = vadd.f32 0.0, %v6228
    %v6230 = vpop.f32.mrb[0].mxu0
    %6231 = vmatprep.mubr.bf16.mxu0 0
    %6232 = vmatmul.mubr.bf16.gmra.mrb[0].mxu0 %v6186
    %v6233 = vpop.f32.mrb[0].mxu0
    %v6234 = vadd.f32 0.0, %v6233
    %v6235 = vpop.f32.mrb[0].mxu0
    %v6236 = vpop.f32.mrb[0].mxu0
    %v6237 = vpop.f32.mrb[0].mxu0
    %6238 = vdwg.mxu0
    %v6240 = vsel %vm587, %v6052, 0
    %v6243 = vsel %vm587, %v6053, 0
    %v6246 = vsel %vm2428, %v5990, 0
    %6248 = vmatprep.subr.bf16.mxu0 0
    %6249 = vmatpush1.bf16.msra.mxu0 %v6246
    %6250 = vmatprep.subr.bf16.mxu0 0
    %6251 = vmatpush1.bf16.msra.mxu0 0
    %6252 = vmatprep.subr.bf16.mxu0 0
    %6253 = vmatpush1.bf16.msra.mxu0 0
    %6254 = vmatprep.subr.bf16.mxu0 0
    %6255 = vmatpush1.bf16.msra.mxu0 0
    %6256 = vmatprep.subr.bf16.mxu0 0
    %6257 = vmatpush1.bf16.msra.mxu0 0
    %6258 = vmatprep.subr.bf16.mxu0 0
    %6259 = vmatpush1.bf16.msra.mxu0 0
    %6260 = vmatprep.subr.bf16.mxu0 0
    %6261 = vmatpush1.bf16.msra.mxu0 0
    %6262 = vmatprep.subr.bf16.mxu0 0
    %6263 = vmatpush1.bf16.msra.mxu0 0
    %6264 = vmatprep.subr.bf16.mxu0 0
    %6265 = vmatpush1.bf16.msra.mxu0 0
    %6266 = vmatprep.subr.bf16.mxu0 0
    %6267 = vmatpush1.bf16.msra.mxu0 0
    %6268 = vmatprep.subr.bf16.mxu0 0
    %6269 = vmatpush1.bf16.msra.mxu0 0
    %6270 = vmatprep.subr.bf16.mxu0 0
    %6271 = vmatpush1.bf16.msra.mxu0 0
    %6272 = vmatprep.subr.bf16.mxu0 0
    %6273 = vmatpush1.bf16.msra.mxu0 0
    %6274 = vmatprep.subr.bf16.mxu0 0
    %6275 = vmatpush1.bf16.msra.mxu0 0
    %6276 = vmatprep.subr.bf16.mxu0 0
    %6277 = vmatpush1.bf16.msra.mxu0 0
    %6278 = vmatprep.subr.bf16.mxu0 0
    %6279 = vmatpush1.bf16.msra.mxu0 0
    %6280 = vmatprep.mubr.bf16.mxu0 0
    %6281 = vmatmul.mubr.bf16.gmra.mrb[0].mxu0 %v6240
    %v6282 = vpop.f32.mrb[0].mxu0
    %v6283 = vadd.f32 %v6226, %v6282
    %v6284 = vpop.f32.mrb[0].mxu0
    %v6285 = vpop.f32.mrb[0].mxu0
    %v6286 = vadd.f32 %v6229, %v6285
    %v6287 = vpop.f32.mrb[0].mxu0
    %6288 = vmatprep.mubr.bf16.mxu0 0
    %6289 = vmatmul.mubr.bf16.gmra.mrb[0].mxu0 %v6243
    %v6290 = vpop.f32.mrb[0].mxu0
    %v6291 = vadd.f32 %v6234, %v6290
    %v6292 = vpop.f32.mrb[0].mxu0
    %v6293 = vpop.f32.mrb[0].mxu0
    %v6294 = vpop.f32.mrb[0].mxu0
    %6295 = vdwg.mxu0
    %v6296 = vpack.c.bf16 %v5975, %v5974
    %v6297 = vpack.c.bf16 %v5976, %v5976
    %v6298 = vpack.c.bf16 %v4603, %v4598
    %v6299 = vpack.c.bf16 %v4606, %v4606
    %v6301 = vsel %vm2152, %v6296, 0
    %v6304 = vsel %vm2152, %v6297, 0
    %v6307 = vsel %vm2428, %v6299, 0
    %6309 = vmatprep.subr.bf16.mxu0 0
    %6310 = vmatpush1.bf16.msra.mxu0 %v6298
    %6311 = vmatprep.subr.bf16.mxu0 0
    %6312 = vmatpush1.bf16.msra.mxu0 %v6307
    %6313 = vmatprep.subr.bf16.mxu0 0
    %6314 = vmatpush1.bf16.msra.mxu0 0
    %6315 = vmatprep.subr.bf16.mxu0 0
    %6316 = vmatpush1.bf16.msra.mxu0 0
    %6317 = vmatprep.subr.bf16.mxu0 0
    %6318 = vmatpush1.bf16.msra.mxu0 0
    %6319 = vmatprep.subr.bf16.mxu0 0
    %6320 = vmatpush1.bf16.msra.mxu0 0
    %6321 = vmatprep.subr.bf16.mxu0 0
    %6322 = vmatpush1.bf16.msra.mxu0 0
    %6323 = vmatprep.subr.bf16.mxu0 0
    %6324 = vmatpush1.bf16.msra.mxu0 0
    %6325 = vmatprep.subr.bf16.mxu0 0
    %6326 = vmatpush1.bf16.msra.mxu0 0
    %6327 = vmatprep.subr.bf16.mxu0 0
    %6328 = vmatpush1.bf16.msra.mxu0 0
    %6329 = vmatprep.subr.bf16.mxu0 0
    %6330 = vmatpush1.bf16.msra.mxu0 0
    %6331 = vmatprep.subr.bf16.mxu0 0
    %6332 = vmatpush1.bf16.msra.mxu0 0
    %6333 = vmatprep.subr.bf16.mxu0 0
    %6334 = vmatpush1.bf16.msra.mxu0 0
    %6335 = vmatprep.subr.bf16.mxu0 0
    %6336 = vmatpush1.bf16.msra.mxu0 0
    %6337 = vmatprep.subr.bf16.mxu0 0
    %6338 = vmatpush1.bf16.msra.mxu0 0
    %6339 = vmatprep.subr.bf16.mxu0 0
    %6340 = vmatpush1.bf16.msra.mxu0 0
    %6341 = vmatprep.mubr.bf16.mxu0 0
    %6342 = vmatmul.mubr.bf16.gmra.mrb[0].mxu0 %v6301
    %v6343 = vpop.f32.mrb[0].mxu0
    %v6344 = vadd.f32 0.0, %v6343
    %v6345 = vpop.f32.mrb[0].mxu0
    %v6346 = vpop.f32.mrb[0].mxu0
    %v6347 = vadd.f32 0.0, %v6346
    %v6348 = vpop.f32.mrb[0].mxu0
    %6349 = vmatprep.mubr.bf16.mxu0 0
    %6350 = vmatmul.mubr.bf16.gmra.mrb[0].mxu0 %v6304
    %v6351 = vpop.f32.mrb[0].mxu0
    %v6352 = vadd.f32 0.0, %v6351
    %v6353 = vpop.f32.mrb[0].mxu0
    %v6354 = vpop.f32.mrb[0].mxu0
    %v6355 = vpop.f32.mrb[0].mxu0
    %6356 = vdwg.mxu0
    %v6357 = vpack.c.bf16 %v6347, %v6344
    %v6358 = vpack.c.bf16 %v6352, %v6352
    %v6360 = vsel %vm587, %v6357, 0
    %v6363 = vsel %vm587, %v6358, 0
    %6365 = vmatprep.subr.bf16.mxu0 0
    %6366 = vmatpush1.bf16.msra.mxu0 %v6189
    %6367 = vmatprep.subr.bf16.mxu0 0
    %6368 = vmatpush1.bf16.msra.mxu0 0
    %6369 = vmatprep.subr.bf16.mxu0 0
    %6370 = vmatpush1.bf16.msra.mxu0 0
    %6371 = vmatprep.subr.bf16.mxu0 0
    %6372 = vmatpush1.bf16.msra.mxu0 0
    %6373 = vmatprep.subr.bf16.mxu0 0
    %6374 = vmatpush1.bf16.msra.mxu0 0
    %6375 = vmatprep.subr.bf16.mxu0 0
    %6376 = vmatpush1.bf16.msra.mxu0 0
    %6377 = vmatprep.subr.bf16.mxu0 0
    %6378 = vmatpush1.bf16.msra.mxu0 0
    %6379 = vmatprep.subr.bf16.mxu0 0
    %6380 = vmatpush1.bf16.msra.mxu0 0
    %6381 = vmatprep.subr.bf16.mxu0 0
    %6382 = vmatpush1.bf16.msra.mxu0 0
    %6383 = vmatprep.subr.bf16.mxu0 0
    %6384 = vmatpush1.bf16.msra.mxu0 0
    %6385 = vmatprep.subr.bf16.mxu0 0
    %6386 = vmatpush1.bf16.msra.mxu0 0
    %6387 = vmatprep.subr.bf16.mxu0 0
    %6388 = vmatpush1.bf16.msra.mxu0 0
    %6389 = vmatprep.subr.bf16.mxu0 0
    %6390 = vmatpush1.bf16.msra.mxu0 0
    %6391 = vmatprep.subr.bf16.mxu0 0
    %6392 = vmatpush1.bf16.msra.mxu0 0
    %6393 = vmatprep.subr.bf16.mxu0 0
    %6394 = vmatpush1.bf16.msra.mxu0 0
    %6395 = vmatprep.subr.bf16.mxu0 0
    %6396 = vmatpush1.bf16.msra.mxu0 0
    %6397 = vmatprep.mubr.bf16.mxu0 0
    %6398 = vmatmul.mubr.bf16.gmra.mrb[0].mxu0 %v6360
    %v6399 = vpop.f32.mrb[0].mxu0
    %v6400 = vadd.f32 0.0, %v6399
    %v6401 = vpop.f32.mrb[0].mxu0
    %v6402 = vpop.f32.mrb[0].mxu0
    %v6403 = vadd.f32 0.0, %v6402
    %v6404 = vpop.f32.mrb[0].mxu0
    %6405 = vmatprep.mubr.bf16.mxu0 0
    %6406 = vmatmul.mubr.bf16.gmra.mrb[0].mxu0 %v6363
    %v6407 = vpop.f32.mrb[0].mxu0
    %v6408 = vadd.f32 0.0, %v6407
    %v6409 = vpop.f32.mrb[0].mxu0
    %v6410 = vpop.f32.mrb[0].mxu0
    %v6411 = vpop.f32.mrb[0].mxu0
    %6412 = vdwg.mxu0
    %v6414 = vsel %vm587, %v6115, 0
    %v6417 = vsel %vm587, %v6116, 0
    %6419 = vmatprep.subr.bf16.mxu0 0
    %6420 = vmatpush1.bf16.msra.mxu0 %v6246
    %6421 = vmatprep.subr.bf16.mxu0 0
    %6422 = vmatpush1.bf16.msra.mxu0 0
    %6423 = vmatprep.subr.bf16.mxu0 0
    %6424 = vmatpush1.bf16.msra.mxu0 0
    %6425 = vmatprep.subr.bf16.mxu0 0
    %6426 = vmatpush1.bf16.msra.mxu0 0
    %6427 = vmatprep.subr.bf16.mxu0 0
    %6428 = vmatpush1.bf16.msra.mxu0 0
    %6429 = vmatprep.subr.bf16.mxu0 0
    %6430 = vmatpush1.bf16.msra.mxu0 0
    %6431 = vmatprep.subr.bf16.mxu0 0
    %6432 = vmatpush1.bf16.msra.mxu0 0
    %6433 = vmatprep.subr.bf16.mxu0 0
    %6434 = vmatpush1.bf16.msra.mxu0 0
    %6435 = vmatprep.subr.bf16.mxu0 0
    %6436 = vmatpush1.bf16.msra.mxu0 0
    %6437 = vmatprep.subr.bf16.mxu0 0
    %6438 = vmatpush1.bf16.msra.mxu0 0
    %6439 = vmatprep.subr.bf16.mxu0 0
    %6440 = vmatpush1.bf16.msra.mxu0 0
    %6441 = vmatprep.subr.bf16.mxu0 0
    %6442 = vmatpush1.bf16.msra.mxu0 0
    %6443 = vmatprep.subr.bf16.mxu0 0
    %6444 = vmatpush1.bf16.msra.mxu0 0
    %6445 = vmatprep.subr.bf16.mxu0 0
    %6446 = vmatpush1.bf16.msra.mxu0 0
    %6447 = vmatprep.subr.bf16.mxu0 0
    %6448 = vmatpush1.bf16.msra.mxu0 0
    %6449 = vmatprep.subr.bf16.mxu0 0
    %6450 = vmatpush1.bf16.msra.mxu0 0
    %6451 = vmatprep.mubr.bf16.mxu0 0
    %6452 = vmatmul.mubr.bf16.gmra.mrb[0].mxu0 %v6414
    %v6453 = vpop.f32.mrb[0].mxu0
    %v6454 = vadd.f32 %v6400, %v6453
    %v6455 = vpop.f32.mrb[0].mxu0
    %v6456 = vpop.f32.mrb[0].mxu0
    %v6457 = vadd.f32 %v6403, %v6456
    %v6458 = vpop.f32.mrb[0].mxu0
    %6459 = vmatprep.mubr.bf16.mxu0 0
    %6460 = vmatmul.mubr.bf16.gmra.mrb[0].mxu0 %v6417
    %v6461 = vpop.f32.mrb[0].mxu0
    %v6462 = vadd.f32 %v6408, %v6461
    %v6463 = vpop.f32.mrb[0].mxu0
    %v6464 = vpop.f32.mrb[0].mxu0
    %v6465 = vpop.f32.mrb[0].mxu0
    %6466 = vdwg.mxu0
    %s6467 = scalar_lea.vmem %s7, 24
    %v6468 = vld [vmem:[%s6467] sm:$0xf]
    %v6469 = vpack.c.bf16 %v5978, %v5977
    %v6470 = vpack.c.bf16 %v5979, %v5979
    %v6471 = vpack.c.bf16 %v5038, %v5035
    %v6472 = vpack.c.bf16 %v5043, %v5043
    %v6474 = vsel %vm2152, %v6469, 0
    %v6477 = vsel %vm2152, %v6470, 0
    %v6480 = vsel %vm2428, %v6472, 0
    %6482 = vmatprep.subr.bf16.mxu0 0
    %6483 = vmatpush1.bf16.msra.mxu0 %v6471
    %6484 = vmatprep.subr.bf16.mxu0 0
    %6485 = vmatpush1.bf16.msra.mxu0 %v6480
    %6486 = vmatprep.subr.bf16.mxu0 0
    %6487 = vmatpush1.bf16.msra.mxu0 0
    %6488 = vmatprep.subr.bf16.mxu0 0
    %6489 = vmatpush1.bf16.msra.mxu0 0
    %6490 = vmatprep.subr.bf16.mxu0 0
    %6491 = vmatpush1.bf16.msra.mxu0 0
    %6492 = vmatprep.subr.bf16.mxu0 0
    %6493 = vmatpush1.bf16.msra.mxu0 0
    %6494 = vmatprep.subr.bf16.mxu0 0
    %6495 = vmatpush1.bf16.msra.mxu0 0
    %6496 = vmatprep.subr.bf16.mxu0 0
    %6497 = vmatpush1.bf16.msra.mxu0 0
    %6498 = vmatprep.subr.bf16.mxu0 0
    %6499 = vmatpush1.bf16.msra.mxu0 0
    %6500 = vmatprep.subr.bf16.mxu0 0
    %6501 = vmatpush1.bf16.msra.mxu0 0
    %6502 = vmatprep.subr.bf16.mxu0 0
    %6503 = vmatpush1.bf16.msra.mxu0 0
    %6504 = vmatprep.subr.bf16.mxu0 0
    %6505 = vmatpush1.bf16.msra.mxu0 0
    %6506 = vmatprep.subr.bf16.mxu0 0
    %6507 = vmatpush1.bf16.msra.mxu0 0
    %6508 = vmatprep.subr.bf16.mxu0 0
    %6509 = vmatpush1.bf16.msra.mxu0 0
    %6510 = vmatprep.subr.bf16.mxu0 0
    %6511 = vmatpush1.bf16.msra.mxu0 0
    %6512 = vmatprep.subr.bf16.mxu0 0
    %6513 = vmatpush1.bf16.msra.mxu0 0
    %6514 = vmatprep.mubr.bf16.mxu0 0
    %6515 = vmatmul.mubr.bf16.gmra.mrb[0].mxu0 %v6474
    %v6516 = vpop.f32.mrb[0].mxu0
    %v6517 = vadd.f32 0.0, %v6516
    %v6518 = vpop.f32.mrb[0].mxu0
    %v6519 = vpop.f32.mrb[0].mxu0
    %v6520 = vadd.f32 0.0, %v6519
    %v6521 = vpop.f32.mrb[0].mxu0
    %6522 = vmatprep.mubr.bf16.mxu0 0
    %6523 = vmatmul.mubr.bf16.gmra.mrb[0].mxu0 %v6477
    %v6524 = vpop.f32.mrb[0].mxu0
    %v6525 = vadd.f32 0.0, %v6524
    %v6526 = vpop.f32.mrb[0].mxu0
    %v6527 = vpop.f32.mrb[0].mxu0
    %v6528 = vpop.f32.mrb[0].mxu0
    %6529 = vdwg.mxu0
    %v6530 = vpack.c.bf16 %v6520, %v6517
    %v6531 = vpack.c.bf16 %v6525, %v6525
    %v6533 = vsel %vm587, %v6530, 0
    %v6536 = vsel %vm587, %v6531, 0
    %v6539 = vsel %vm2428, %v6468, 0
    %6541 = vmatprep.subr.bf16.mxu0 0
    %6542 = vmatpush1.bf16.msra.mxu0 %v6539
    %6543 = vmatprep.subr.bf16.mxu0 0
    %6544 = vmatpush1.bf16.msra.mxu0 0
    %6545 = vmatprep.subr.bf16.mxu0 0
    %6546 = vmatpush1.bf16.msra.mxu0 0
    %6547 = vmatprep.subr.bf16.mxu0 0
    %6548 = vmatpush1.bf16.msra.mxu0 0
    %6549 = vmatprep.subr.bf16.mxu0 0
    %6550 = vmatpush1.bf16.msra.mxu0 0
    %6551 = vmatprep.subr.bf16.mxu0 0
    %6552 = vmatpush1.bf16.msra.mxu0 0
    %6553 = vmatprep.subr.bf16.mxu0 0
    %6554 = vmatpush1.bf16.msra.mxu0 0
    %6555 = vmatprep.subr.bf16.mxu0 0
    %6556 = vmatpush1.bf16.msra.mxu0 0
    %6557 = vmatprep.subr.bf16.mxu0 0
    %6558 = vmatpush1.bf16.msra.mxu0 0
    %6559 = vmatprep.subr.bf16.mxu0 0
    %6560 = vmatpush1.bf16.msra.mxu0 0
    %6561 = vmatprep.subr.bf16.mxu0 0
    %6562 = vmatpush1.bf16.msra.mxu0 0
    %6563 = vmatprep.subr.bf16.mxu0 0
    %6564 = vmatpush1.bf16.msra.mxu0 0
    %6565 = vmatprep.subr.bf16.mxu0 0
    %6566 = vmatpush1.bf16.msra.mxu0 0
    %6567 = vmatprep.subr.bf16.mxu0 0
    %6568 = vmatpush1.bf16.msra.mxu0 0
    %6569 = vmatprep.subr.bf16.mxu0 0
    %6570 = vmatpush1.bf16.msra.mxu0 0
    %6571 = vmatprep.subr.bf16.mxu0 0
    %6572 = vmatpush1.bf16.msra.mxu0 0
    %6573 = vmatprep.mubr.bf16.mxu0 0
    %6574 = vmatmul.mubr.bf16.gmra.mrb[0].mxu0 %v6533
    %v6575 = vpop.f32.mrb[0].mxu0
    %v6576 = vadd.f32 0.0, %v6575
    %v6577 = vpop.f32.mrb[0].mxu0
    %v6578 = vpop.f32.mrb[0].mxu0
    %v6579 = vadd.f32 0.0, %v6578
    %v6580 = vpop.f32.mrb[0].mxu0
    %6581 = vmatprep.mubr.bf16.mxu0 0
    %6582 = vmatmul.mubr.bf16.gmra.mrb[0].mxu0 %v6536
    %v6583 = vpop.f32.mrb[0].mxu0
    %v6584 = vadd.f32 0.0, %v6583
    %v6585 = vpop.f32.mrb[0].mxu0
    %v6586 = vpop.f32.mrb[0].mxu0
    %v6587 = vpop.f32.mrb[0].mxu0
    %6588 = vdwg.mxu0
    %v6589 = vadd.f32 %v6283, %v6576
    %v6590 = vadd.f32 %v6286, %v6579
    %v6591 = vadd.f32 %v6291, %v6584
    %v6592 = vpack.c.bf16 %v5981, %v5980
    %v6593 = vpack.c.bf16 %v5982, %v5982
    %v6594 = vpack.c.bf16 %v5051, %v5046
    %v6595 = vpack.c.bf16 %v5054, %v5054
    %v6597 = vsel %vm2152, %v6592, 0
    %v6600 = vsel %vm2152, %v6593, 0
    %v6603 = vsel %vm2428, %v6595, 0
    %6605 = vmatprep.subr.bf16.mxu0 0
    %6606 = vmatpush1.bf16.msra.mxu0 %v6594
    %6607 = vmatprep.subr.bf16.mxu0 0
    %6608 = vmatpush1.bf16.msra.mxu0 %v6603
    %6609 = vmatprep.subr.bf16.mxu0 0
    %6610 = vmatpush1.bf16.msra.mxu0 0
    %6611 = vmatprep.subr.bf16.mxu0 0
    %6612 = vmatpush1.bf16.msra.mxu0 0
    %6613 = vmatprep.subr.bf16.mxu0 0
    %6614 = vmatpush1.bf16.msra.mxu0 0
    %6615 = vmatprep.subr.bf16.mxu0 0
    %6616 = vmatpush1.bf16.msra.mxu0 0
    %6617 = vmatprep.subr.bf16.mxu0 0
    %6618 = vmatpush1.bf16.msra.mxu0 0
    %6619 = vmatprep.subr.bf16.mxu0 0
    %6620 = vmatpush1.bf16.msra.mxu0 0
    %6621 = vmatprep.subr.bf16.mxu0 0
    %6622 = vmatpush1.bf16.msra.mxu0 0
    %6623 = vmatprep.subr.bf16.mxu0 0
    %6624 = vmatpush1.bf16.msra.mxu0 0
    %6625 = vmatprep.subr.bf16.mxu0 0
    %6626 = vmatpush1.bf16.msra.mxu0 0
    %6627 = vmatprep.subr.bf16.mxu0 0
    %6628 = vmatpush1.bf16.msra.mxu0 0
    %6629 = vmatprep.subr.bf16.mxu0 0
    %6630 = vmatpush1.bf16.msra.mxu0 0
    %6631 = vmatprep.subr.bf16.mxu0 0
    %6632 = vmatpush1.bf16.msra.mxu0 0
    %6633 = vmatprep.subr.bf16.mxu0 0
    %6634 = vmatpush1.bf16.msra.mxu0 0
    %6635 = vmatprep.subr.bf16.mxu0 0
    %6636 = vmatpush1.bf16.msra.mxu0 0
    %6637 = vmatprep.mubr.bf16.mxu0 0
    %6638 = vmatmul.mubr.bf16.gmra.mrb[0].mxu0 %v6597
    %v6639 = vpop.f32.mrb[0].mxu0
    %v6640 = vadd.f32 0.0, %v6639
    %v6641 = vpop.f32.mrb[0].mxu0
    %v6642 = vpop.f32.mrb[0].mxu0
    %v6643 = vadd.f32 0.0, %v6642
    %v6644 = vpop.f32.mrb[0].mxu0
    %6645 = vmatprep.mubr.bf16.mxu0 0
    %6646 = vmatmul.mubr.bf16.gmra.mrb[0].mxu0 %v6600
    %v6647 = vpop.f32.mrb[0].mxu0
    %v6648 = vadd.f32 0.0, %v6647
    %v6649 = vpop.f32.mrb[0].mxu0
    %v6650 = vpop.f32.mrb[0].mxu0
    %v6651 = vpop.f32.mrb[0].mxu0
    %6652 = vdwg.mxu0
    %v6653 = vpack.c.bf16 %v6643, %v6640
    %v6654 = vpack.c.bf16 %v6648, %v6648
    %v6656 = vsel %vm587, %v6653, 0
    %v6659 = vsel %vm587, %v6654, 0
    %6661 = vmatprep.subr.bf16.mxu0 0
    %6662 = vmatpush1.bf16.msra.mxu0 %v6539
    %6663 = vmatprep.subr.bf16.mxu0 0
    %6664 = vmatpush1.bf16.msra.mxu0 0
    %6665 = vmatprep.subr.bf16.mxu0 0
    %6666 = vmatpush1.bf16.msra.mxu0 0
    %6667 = vmatprep.subr.bf16.mxu0 0
    %6668 = vmatpush1.bf16.msra.mxu0 0
    %6669 = vmatprep.subr.bf16.mxu0 0
    %6670 = vmatpush1.bf16.msra.mxu0 0
    %6671 = vmatprep.subr.bf16.mxu0 0
    %6672 = vmatpush1.bf16.msra.mxu0 0
    %6673 = vmatprep.subr.bf16.mxu0 0
    %6674 = vmatpush1.bf16.msra.mxu0 0
    %6675 = vmatprep.subr.bf16.mxu0 0
    %6676 = vmatpush1.bf16.msra.mxu0 0
    %6677 = vmatprep.subr.bf16.mxu0 0
    %6678 = vmatpush1.bf16.msra.mxu0 0
    %6679 = vmatprep.subr.bf16.mxu0 0
    %6680 = vmatpush1.bf16.msra.mxu0 0
    %6681 = vmatprep.subr.bf16.mxu0 0
    %6682 = vmatpush1.bf16.msra.mxu0 0
    %6683 = vmatprep.subr.bf16.mxu0 0
    %6684 = vmatpush1.bf16.msra.mxu0 0
    %6685 = vmatprep.subr.bf16.mxu0 0
    %6686 = vmatpush1.bf16.msra.mxu0 0
    %6687 = vmatprep.subr.bf16.mxu0 0
    %6688 = vmatpush1.bf16.msra.mxu0 0
    %6689 = vmatprep.subr.bf16.mxu0 0
    %6690 = vmatpush1.bf16.msra.mxu0 0
    %6691 = vmatprep.subr.bf16.mxu0 0
    %6692 = vmatpush1.bf16.msra.mxu0 0
    %6693 = vmatprep.mubr.bf16.mxu0 0
    %6694 = vmatmul.mubr.bf16.gmra.mrb[0].mxu0 %v6656
    %v6695 = vpop.f32.mrb[0].mxu0
    %v6696 = vadd.f32 0.0, %v6695
    %v6697 = vpop.f32.mrb[0].mxu0
    %v6698 = vpop.f32.mrb[0].mxu0
    %v6699 = vadd.f32 0.0, %v6698
    %v6700 = vpop.f32.mrb[0].mxu0
    %6701 = vmatprep.mubr.bf16.mxu0 0
    %6702 = vmatmul.mubr.bf16.gmra.mrb[0].mxu0 %v6659
    %v6703 = vpop.f32.mrb[0].mxu0
    %v6704 = vadd.f32 0.0, %v6703
    %v6705 = vpop.f32.mrb[0].mxu0
    %v6706 = vpop.f32.mrb[0].mxu0
    %v6707 = vpop.f32.mrb[0].mxu0
    %6708 = vdwg.mxu0
    %v6709 = vadd.f32 %v6454, %v6696
    %v6710 = vadd.f32 %v6457, %v6699
    %v6711 = vadd.f32 %v6462, %v6704
    %s6712 = scalar_lea.vmem %s7, 28
    %v6713 = vld [vmem:[%s6712] sm:$0xf]
    %v6714 = vpack.c.bf16 %v5984, %v5983
    %v6715 = vpack.c.bf16 %v5985, %v5985
    %v6716 = vpack.c.bf16 %v5486, %v5483
    %v6717 = vpack.c.bf16 %v5491, %v5491
    %v6719 = vsel %vm2152, %v6714, 0
    %v6722 = vsel %vm2152, %v6715, 0
    %v6725 = vsel %vm2428, %v6717, 0
    %6727 = vmatprep.subr.bf16.mxu0 0
    %6728 = vmatpush1.bf16.msra.mxu0 %v6716
    %6729 = vmatprep.subr.bf16.mxu0 0
    %6730 = vmatpush1.bf16.msra.mxu0 %v6725
    %6731 = vmatprep.subr.bf16.mxu0 0
    %6732 = vmatpush1.bf16.msra.mxu0 0
    %6733 = vmatprep.subr.bf16.mxu0 0
    %6734 = vmatpush1.bf16.msra.mxu0 0
    %6735 = vmatprep.subr.bf16.mxu0 0
    %6736 = vmatpush1.bf16.msra.mxu0 0
    %6737 = vmatprep.subr.bf16.mxu0 0
    %6738 = vmatpush1.bf16.msra.mxu0 0
    %6739 = vmatprep.subr.bf16.mxu0 0
    %6740 = vmatpush1.bf16.msra.mxu0 0
    %6741 = vmatprep.subr.bf16.mxu0 0
    %6742 = vmatpush1.bf16.msra.mxu0 0
    %6743 = vmatprep.subr.bf16.mxu0 0
    %6744 = vmatpush1.bf16.msra.mxu0 0
    %6745 = vmatprep.subr.bf16.mxu0 0
    %6746 = vmatpush1.bf16.msra.mxu0 0
    %6747 = vmatprep.subr.bf16.mxu0 0
    %6748 = vmatpush1.bf16.msra.mxu0 0
    %6749 = vmatprep.subr.bf16.mxu0 0
    %6750 = vmatpush1.bf16.msra.mxu0 0
    %6751 = vmatprep.subr.bf16.mxu0 0
    %6752 = vmatpush1.bf16.msra.mxu0 0
    %6753 = vmatprep.subr.bf16.mxu0 0
    %6754 = vmatpush1.bf16.msra.mxu0 0
    %6755 = vmatprep.subr.bf16.mxu0 0
    %6756 = vmatpush1.bf16.msra.mxu0 0
    %6757 = vmatprep.subr.bf16.mxu0 0
    %6758 = vmatpush1.bf16.msra.mxu0 0
    %6759 = vmatprep.mubr.bf16.mxu0 0
    %6760 = vmatmul.mubr.bf16.gmra.mrb[0].mxu0 %v6719
    %v6761 = vpop.f32.mrb[0].mxu0
    %v6762 = vadd.f32 0.0, %v6761
    %v6763 = vpop.f32.mrb[0].mxu0
    %v6764 = vpop.f32.mrb[0].mxu0
    %v6765 = vadd.f32 0.0, %v6764
    %v6766 = vpop.f32.mrb[0].mxu0
    %6767 = vmatprep.mubr.bf16.mxu0 0
    %6768 = vmatmul.mubr.bf16.gmra.mrb[0].mxu0 %v6722
    %v6769 = vpop.f32.mrb[0].mxu0
    %v6770 = vadd.f32 0.0, %v6769
    %v6771 = vpop.f32.mrb[0].mxu0
    %v6772 = vpop.f32.mrb[0].mxu0
    %v6773 = vpop.f32.mrb[0].mxu0
    %6774 = vdwg.mxu0
    %v6775 = vpack.c.bf16 %v6765, %v6762
    %v6776 = vpack.c.bf16 %v6770, %v6770
    %v6778 = vsel %vm587, %v6775, 0
    %v6781 = vsel %vm587, %v6776, 0
    %v6784 = vsel %vm2428, %v6713, 0
    %6786 = vmatprep.subr.bf16.mxu0 0
    %6787 = vmatpush1.bf16.msra.mxu0 %v6784
    %6788 = vmatprep.subr.bf16.mxu0 0
    %6789 = vmatpush1.bf16.msra.mxu0 0
    %6790 = vmatprep.subr.bf16.mxu0 0
    %6791 = vmatpush1.bf16.msra.mxu0 0
    %6792 = vmatprep.subr.bf16.mxu0 0
    %6793 = vmatpush1.bf16.msra.mxu0 0
    %6794 = vmatprep.subr.bf16.mxu0 0
    %6795 = vmatpush1.bf16.msra.mxu0 0
    %6796 = vmatprep.subr.bf16.mxu0 0
    %6797 = vmatpush1.bf16.msra.mxu0 0
    %6798 = vmatprep.subr.bf16.mxu0 0
    %6799 = vmatpush1.bf16.msra.mxu0 0
    %6800 = vmatprep.subr.bf16.mxu0 0
    %6801 = vmatpush1.bf16.msra.mxu0 0
    %6802 = vmatprep.subr.bf16.mxu0 0
    %6803 = vmatpush1.bf16.msra.mxu0 0
    %6804 = vmatprep.subr.bf16.mxu0 0
    %6805 = vmatpush1.bf16.msra.mxu0 0
    %6806 = vmatprep.subr.bf16.mxu0 0
    %6807 = vmatpush1.bf16.msra.mxu0 0
    %6808 = vmatprep.subr.bf16.mxu0 0
    %6809 = vmatpush1.bf16.msra.mxu0 0
    %6810 = vmatprep.subr.bf16.mxu0 0
    %6811 = vmatpush1.bf16.msra.mxu0 0
    %6812 = vmatprep.subr.bf16.mxu0 0
    %6813 = vmatpush1.bf16.msra.mxu0 0
    %6814 = vmatprep.subr.bf16.mxu0 0
    %6815 = vmatpush1.bf16.msra.mxu0 0
    %6816 = vmatprep.subr.bf16.mxu0 0
    %6817 = vmatpush1.bf16.msra.mxu0 0
    %6818 = vmatprep.mubr.bf16.mxu0 0
    %6819 = vmatmul.mubr.bf16.gmra.mrb[0].mxu0 %v6778
    %v6820 = vpop.f32.mrb[0].mxu0
    %v6821 = vadd.f32 0.0, %v6820
    %v6822 = vpop.f32.mrb[0].mxu0
    %v6823 = vpop.f32.mrb[0].mxu0
    %v6824 = vadd.f32 0.0, %v6823
    %v6825 = vpop.f32.mrb[0].mxu0
    %6826 = vmatprep.mubr.bf16.mxu0 0
    %6827 = vmatmul.mubr.bf16.gmra.mrb[0].mxu0 %v6781
    %v6828 = vpop.f32.mrb[0].mxu0
    %v6829 = vadd.f32 0.0, %v6828
    %v6830 = vpop.f32.mrb[0].mxu0
    %v6831 = vpop.f32.mrb[0].mxu0
    %v6832 = vpop.f32.mrb[0].mxu0
    %6833 = vdwg.mxu0
    %v6834 = vadd.f32 %v6589, %v6821
    %v6835 = vadd.f32 %v6590, %v6824
    %v6836 = vadd.f32 %v6591, %v6829
    %v6837 = vpack.c.bf16 %v5987, %v5986
    %v6838 = vpack.c.bf16 %v5988, %v5988
    %v6839 = vpack.c.bf16 %v5499, %v5494
    %v6840 = vpack.c.bf16 %v5502, %v5502
    %v6842 = vsel %vm2152, %v6837, 0
    %v6845 = vsel %vm2152, %v6838, 0
    %v6848 = vsel %vm2428, %v6840, 0
    %6850 = vmatprep.subr.bf16.mxu0 0
    %6851 = vmatpush1.bf16.msra.mxu0 %v6839
    %6852 = vmatprep.subr.bf16.mxu0 0
    %6853 = vmatpush1.bf16.msra.mxu0 %v6848
    %6854 = vmatprep.subr.bf16.mxu0 0
    %6855 = vmatpush1.bf16.msra.mxu0 0
    %6856 = vmatprep.subr.bf16.mxu0 0
    %6857 = vmatpush1.bf16.msra.mxu0 0
    %6858 = vmatprep.subr.bf16.mxu0 0
    %6859 = vmatpush1.bf16.msra.mxu0 0
    %6860 = vmatprep.subr.bf16.mxu0 0
    %6861 = vmatpush1.bf16.msra.mxu0 0
    %6862 = vmatprep.subr.bf16.mxu0 0
    %6863 = vmatpush1.bf16.msra.mxu0 0
    %6864 = vmatprep.subr.bf16.mxu0 0
    %6865 = vmatpush1.bf16.msra.mxu0 0
    %6866 = vmatprep.subr.bf16.mxu0 0
    %6867 = vmatpush1.bf16.msra.mxu0 0
    %6868 = vmatprep.subr.bf16.mxu0 0
    %6869 = vmatpush1.bf16.msra.mxu0 0
    %6870 = vmatprep.subr.bf16.mxu0 0
    %6871 = vmatpush1.bf16.msra.mxu0 0
    %6872 = vmatprep.subr.bf16.mxu0 0
    %6873 = vmatpush1.bf16.msra.mxu0 0
    %6874 = vmatprep.subr.bf16.mxu0 0
    %6875 = vmatpush1.bf16.msra.mxu0 0
    %6876 = vmatprep.subr.bf16.mxu0 0
    %6877 = vmatpush1.bf16.msra.mxu0 0
    %6878 = vmatprep.subr.bf16.mxu0 0
    %6879 = vmatpush1.bf16.msra.mxu0 0
    %6880 = vmatprep.subr.bf16.mxu0 0
    %6881 = vmatpush1.bf16.msra.mxu0 0
    %6882 = vmatprep.mubr.bf16.mxu0 0
    %6883 = vmatmul.mubr.bf16.gmra.mrb[0].mxu0 %v6842
    %v6884 = vpop.f32.mrb[0].mxu0
    %v6885 = vadd.f32 0.0, %v6884
    %v6886 = vpop.f32.mrb[0].mxu0
    %v6887 = vpop.f32.mrb[0].mxu0
    %v6888 = vadd.f32 0.0, %v6887
    %v6889 = vpop.f32.mrb[0].mxu0
    %6890 = vmatprep.mubr.bf16.mxu0 0
    %6891 = vmatmul.mubr.bf16.gmra.mrb[0].mxu0 %v6845
    %v6892 = vpop.f32.mrb[0].mxu0
    %v6893 = vadd.f32 0.0, %v6892
    %v6894 = vpop.f32.mrb[0].mxu0
    %v6895 = vpop.f32.mrb[0].mxu0
    %v6896 = vpop.f32.mrb[0].mxu0
    %6897 = vdwg.mxu0
    %v6898 = vpack.c.bf16 %v6888, %v6885
    %v6899 = vpack.c.bf16 %v6893, %v6893
    %v6901 = vsel %vm587, %v6898, 0
    %v6904 = vsel %vm587, %v6899, 0
    %6906 = vmatprep.subr.bf16.mxu0 0
    %6907 = vmatpush1.bf16.msra.mxu0 %v6784
    %6908 = vmatprep.subr.bf16.mxu0 0
    %6909 = vmatpush1.bf16.msra.mxu0 0
    %6910 = vmatprep.subr.bf16.mxu0 0
    %6911 = vmatpush1.bf16.msra.mxu0 0
    %6912 = vmatprep.subr.bf16.mxu0 0
    %6913 = vmatpush1.bf16.msra.mxu0 0
    %6914 = vmatprep.subr.bf16.mxu0 0
    %6915 = vmatpush1.bf16.msra.mxu0 0
    %6916 = vmatprep.subr.bf16.mxu0 0
    %6917 = vmatpush1.bf16.msra.mxu0 0
    %6918 = vmatprep.subr.bf16.mxu0 0
    %6919 = vmatpush1.bf16.msra.mxu0 0
    %6920 = vmatprep.subr.bf16.mxu0 0
    %6921 = vmatpush1.bf16.msra.mxu0 0
    %6922 = vmatprep.subr.bf16.mxu0 0
    %6923 = vmatpush1.bf16.msra.mxu0 0
    %6924 = vmatprep.subr.bf16.mxu0 0
    %6925 = vmatpush1.bf16.msra.mxu0 0
    %6926 = vmatprep.subr.bf16.mxu0 0
    %6927 = vmatpush1.bf16.msra.mxu0 0
    %6928 = vmatprep.subr.bf16.mxu0 0
    %6929 = vmatpush1.bf16.msra.mxu0 0
    %6930 = vmatprep.subr.bf16.mxu0 0
    %6931 = vmatpush1.bf16.msra.mxu0 0
    %6932 = vmatprep.subr.bf16.mxu0 0
    %6933 = vmatpush1.bf16.msra.mxu0 0
    %6934 = vmatprep.subr.bf16.mxu0 0
    %6935 = vmatpush1.bf16.msra.mxu0 0
    %6936 = vmatprep.subr.bf16.mxu0 0
    %6937 = vmatpush1.bf16.msra.mxu0 0
    %6938 = vmatprep.mubr.bf16.mxu0 0
    %6939 = vmatmul.mubr.bf16.gmra.mrb[0].mxu0 %v6901
    %v6940 = vpop.f32.mrb[0].mxu0
    %v6941 = vadd.f32 0.0, %v6940
    %v6942 = vpop.f32.mrb[0].mxu0
    %v6943 = vpop.f32.mrb[0].mxu0
    %v6944 = vadd.f32 0.0, %v6943
    %v6945 = vpop.f32.mrb[0].mxu0
    %6946 = vmatprep.mubr.bf16.mxu0 0
    %6947 = vmatmul.mubr.bf16.gmra.mrb[0].mxu0 %v6904
    %v6948 = vpop.f32.mrb[0].mxu0
    %v6949 = vadd.f32 0.0, %v6948
    %v6950 = vpop.f32.mrb[0].mxu0
    %v6951 = vpop.f32.mrb[0].mxu0
    %v6952 = vpop.f32.mrb[0].mxu0
    %6953 = vdwg.mxu0
    %v6954 = vadd.f32 %v6709, %v6941
    %v6955 = vadd.f32 %v6710, %v6944
    %v6956 = vadd.f32 %v6711, %v6949
    %v6957 = vadd.f32 %v3785, %v6834
    %v6958 = vadd.f32 %v3786, %v6835
    %v6959 = vadd.f32 %v3787, %v6836
    %v6960 = vadd.f32 %v3788, %v6954
    %v6961 = vadd.f32 %v3789, %v6955
    %v6962 = vadd.f32 %v3790, %v6956
    %s6963 = scalar_lea.vmem %s8, 1
    %v6964 = vld [vmem:[%s6963] sm:$0x1]
    %v6966 = vlaneseq
    %v6967 = vshrl.u32 %v6966, 7
    %v6968 = vsub.s32 0, %v6967
    %v6969 = vrot.slane %v6964, %v6968
    %v6971 = vadd.f32 %v6957, %v6969
    %v6972 = vadd.f32 %v6958, %v6969
    %v6973 = vadd.f32 %v6959, %v6969
    %v6974 = vadd.f32 %v6960, %v6969
    %v6975 = vadd.f32 %v6961, %v6969
    %v6976 = vadd.f32 %v6962, %v6969
    %s6977 = scalar_lea.vmem %s9, 1
    %v6978 = vld [vmem:[%s6977] sm:$0x1]
    %s6979 = scalar_lea.vmem %s10, 1
    %v6980 = vld [vmem:[%s6979] sm:$0x1]
    %v6981 = vsel %vm221, %v6971, 0.0
    %6982 = vadd.xlane.f32.xlu0 %v6981
    %v6983 = vpop.xlane.xlu0 %6982
    %v6984 = vsel %vm221, %v6972, 0.0
    %6985 = vadd.xlane.f32.xlu0 %v6984
    %v6986 = vpop.xlane.xlu0 %6985
    %v6987 = vsel %vm221, %v6973, 0.0
    %6988 = vadd.xlane.f32.xlu0 %v6987
    %v6989 = vpop.xlane.xlu0 %6988
    %v6990 = vsel %vm221, %v6974, 0.0
    %6991 = vadd.xlane.f32.xlu0 %v6990
    %v6992 = vpop.xlane.xlu0 %6991
    %v6993 = vsel %vm221, %v6975, 0.0
    %6994 = vadd.xlane.f32.xlu0 %v6993
    %v6995 = vpop.xlane.xlu0 %6994
    %v6996 = vsel %vm221, %v6976, 0.0
    %6997 = vadd.xlane.f32.xlu0 %v6996
    %v6998 = vpop.xlane.xlu0 %6997
    %v6999 = vmul.f32 %v6983, %v240
    %v7000 = vmul.f32 %v6986, %v240
    %v7001 = vmul.f32 %v6989, %v240
    %v7002 = vmul.f32 %v6992, %v240
    %v7003 = vmul.f32 %v6995, %v240
    %v7004 = vmul.f32 %v6998, %v240
    %v7005 = vsub.f32 %v6971, %v6999
    %v7006 = vsub.f32 %v6972, %v7000
    %v7007 = vsub.f32 %v6973, %v7001
    %v7008 = vsub.f32 %v6974, %v7002
    %v7009 = vsub.f32 %v6975, %v7003
    %v7010 = vsub.f32 %v6976, %v7004
    %v7011 = vmul.f32 %v7005, %v7005
    %v7012 = vmul.f32 %v7006, %v7006
    %v7013 = vmul.f32 %v7007, %v7007
    %v7014 = vmul.f32 %v7008, %v7008
    %v7015 = vmul.f32 %v7009, %v7009
    %v7016 = vmul.f32 %v7010, %v7010
    %v7017 = vsel %vm221, %v7011, 0.0
    %7018 = vadd.xlane.f32.xlu0 %v7017
    %v7019 = vpop.xlane.xlu0 %7018
    %v7020 = vsel %vm221, %v7012, 0.0
    %7021 = vadd.xlane.f32.xlu0 %v7020
    %v7022 = vpop.xlane.xlu0 %7021
    %v7023 = vsel %vm221, %v7013, 0.0
    %7024 = vadd.xlane.f32.xlu0 %v7023
    %v7025 = vpop.xlane.xlu0 %7024
    %v7026 = vsel %vm221, %v7014, 0.0
    %7027 = vadd.xlane.f32.xlu0 %v7026
    %v7028 = vpop.xlane.xlu0 %7027
    %v7029 = vsel %vm221, %v7015, 0.0
    %7030 = vadd.xlane.f32.xlu0 %v7029
    %v7031 = vpop.xlane.xlu0 %7030
    %v7032 = vsel %vm221, %v7016, 0.0
    %7033 = vadd.xlane.f32.xlu0 %v7032
    %v7034 = vpop.xlane.xlu0 %7033
    %v7035 = vmul.f32 %v7019, %v240
    %v7036 = vmul.f32 %v7022, %v240
    %v7037 = vmul.f32 %v7025, %v240
    %v7038 = vmul.f32 %v7028, %v240
    %v7039 = vmul.f32 %v7031, %v240
    %v7040 = vmul.f32 %v7034, %v240
    %v7041 = vadd.f32 %v7035, 1e-06
    %v7042 = vadd.f32 %v7036, 1e-06
    %v7043 = vadd.f32 %v7037, 1e-06
    %v7044 = vadd.f32 %v7038, 1e-06
    %v7045 = vadd.f32 %v7039, 1e-06
    %v7046 = vadd.f32 %v7040, 1e-06
    %v7047 = vrsqrt.pop %v7041
    %v7048 = vrsqrt.pop %v7042
    %v7049 = vrsqrt.pop %v7043
    %v7050 = vrsqrt.pop %v7044
    %v7051 = vrsqrt.pop %v7045
    %v7052 = vrsqrt.pop %v7046
    %v7053 = vmul.f32 %v7005, %v7047
    %v7054 = vmul.f32 %v7006, %v7048
    %v7055 = vmul.f32 %v7007, %v7049
    %v7056 = vmul.f32 %v7008, %v7050
    %v7057 = vmul.f32 %v7009, %v7051
    %v7058 = vmul.f32 %v7010, %v7052
    %v7060 = vlaneseq
    %v7061 = vshrl.u32 %v7060, 7
    %v7062 = vsub.s32 0, %v7061
    %v7063 = vrot.slane %v6978, %v7062
    %v7065 = vmul.f32 %v7053, %v7063
    %v7066 = vmul.f32 %v7054, %v7063
    %v7067 = vmul.f32 %v7055, %v7063
    %v7068 = vmul.f32 %v7056, %v7063
    %v7069 = vmul.f32 %v7057, %v7063
    %v7070 = vmul.f32 %v7058, %v7063
    %v7072 = vlaneseq
    %v7073 = vshrl.u32 %v7072, 7
    %v7074 = vsub.s32 0, %v7073
    %v7075 = vrot.slane %v6980, %v7074
    %v7077 = vadd.f32 %v7065, %v7075
    %v7078 = vadd.f32 %v7066, %v7075
    %v7079 = vadd.f32 %v7067, %v7075
    %v7080 = vadd.f32 %v7068, %v7075
    %v7081 = vadd.f32 %v7069, %v7075
    %v7082 = vadd.f32 %v7070, %v7075
    %v7083 = vpack.c.bf16 %v7078, %v7077
    %v7084 = vpack.c.bf16 %v7080, %v7079
    %v7085 = vpack.c.bf16 %v7082, %v7081
    %s7086 = scalar_lea.vmem %s11, 16
    %v7087 = vld [vmem:[%s7086] sm:$0xf]
    %v7088 = vld [vmem:[%s7086 + $0x4] sm:$0xf]
    %v7089 = vld [vmem:[%s7086 + $0x8] sm:$0xf]
    %v7090 = vld [vmem:[%s7086 + $0xc] sm:$0xf]
    %s7091 = scalar_lea.vmem %s12, 1
    %v7092 = vld [vmem:[%s7091] sm:$0x1]
    %v7094 = vlaneseq
    %v7095 = vshrl.u32 %v7094, 7
    %v7096 = vsub.s32 0, %v7095
    %v7097 = vrot.slane %v7092, %v7096
    %v7103 = vunpack.c.l.b16 %v7087
    %v7104 = vunpack.c.l.b16 %v7088
    %v7105 = vunpack.c.l.b16 %v7089
    %v7106 = vunpack.c.l.b16 %v7090
    %v7107 = vpack.c.b16 %v7104, %v7103
    %v7108 = vpack.c.b16 %v7106, %v7105
    %v7112 = vsel %vm221, %v7083, 0
    %v7115 = vsel %vm221, %v7084, 0
    %v7118 = vsel %vm221, %v7085, 0
    %7120 = vmatprep.subr.bf16.mxu0 0
    %7121 = vmatpush1.bf16.msra.mxu0 %v7107
    %7122 = vmatprep.subr.bf16.mxu0 0
    %7123 = vmatpush1.bf16.msra.mxu0 %v7108
    %7124 = vmatprep.subr.bf16.mxu0 0
    %7125 = vmatpush1.bf16.msra.mxu0 0
    %7126 = vmatprep.subr.bf16.mxu0 0
    %7127 = vmatpush1.bf16.msra.mxu0 0
    %7128 = vmatprep.subr.bf16.mxu0 0
    %7129 = vmatpush1.bf16.msra.mxu0 0
    %7130 = vmatprep.subr.bf16.mxu0 0
    %7131 = vmatpush1.bf16.msra.mxu0 0
    %7132 = vmatprep.subr.bf16.mxu0 0
    %7133 = vmatpush1.bf16.msra.mxu0 0
    %7134 = vmatprep.subr.bf16.mxu0 0
    %7135 = vmatpush1.bf16.msra.mxu0 0
    %7136 = vmatprep.subr.bf16.mxu0 0
    %7137 = vmatpush1.bf16.msra.mxu0 0
    %7138 = vmatprep.subr.bf16.mxu0 0
    %7139 = vmatpush1.bf16.msra.mxu0 0
    %7140 = vmatprep.subr.bf16.mxu0 0
    %7141 = vmatpush1.bf16.msra.mxu0 0
    %7142 = vmatprep.subr.bf16.mxu0 0
    %7143 = vmatpush1.bf16.msra.mxu0 0
    %7144 = vmatprep.subr.bf16.mxu0 0
    %7145 = vmatpush1.bf16.msra.mxu0 0
    %7146 = vmatprep.subr.bf16.mxu0 0
    %7147 = vmatpush1.bf16.msra.mxu0 0
    %7148 = vmatprep.subr.bf16.mxu0 0
    %7149 = vmatpush1.bf16.msra.mxu0 0
    %7150 = vmatprep.subr.bf16.mxu0 0
    %7151 = vmatpush1.bf16.msra.mxu0 0
    %7152 = vmatprep.mubr.bf16.mxu0 0
    %7153 = vmatmul.mubr.bf16.gmra.mrb[0].mxu0 %v7112
    %v7154 = vpop.f32.mrb[0].mxu0
    %v7155 = vadd.f32 %v7097, %v7154
    %v7156 = vpop.f32.mrb[0].mxu0
    %v7157 = vpop.f32.mrb[0].mxu0
    %v7158 = vadd.f32 %v7097, %v7157
    %v7159 = vpop.f32.mrb[0].mxu0
    %7160 = vmatprep.mubr.bf16.mxu0 0
    %7161 = vmatmul.mubr.bf16.gmra.mrb[0].mxu0 %v7115
    %v7162 = vpop.f32.mrb[0].mxu0
    %v7163 = vadd.f32 %v7097, %v7162
    %v7164 = vpop.f32.mrb[0].mxu0
    %v7165 = vpop.f32.mrb[0].mxu0
    %v7166 = vadd.f32 %v7097, %v7165
    %v7167 = vpop.f32.mrb[0].mxu0
    %7168 = vmatprep.mubr.bf16.mxu0 0
    %7169 = vmatmul.mubr.bf16.gmra.mrb[0].mxu0 %v7118
    %v7170 = vpop.f32.mrb[0].mxu0
    %v7171 = vadd.f32 %v7097, %v7170
    %v7172 = vpop.f32.mrb[0].mxu0
    %v7173 = vpop.f32.mrb[0].mxu0
    %v7174 = vadd.f32 %v7097, %v7173
    %v7175 = vpop.f32.mrb[0].mxu0
    %7176 = vdwg.mxu0
    %v7177 = vmul.f32 %v7155, %v7155
    %v7178 = vmul.f32 %v7158, %v7158
    %v7179 = vmul.f32 %v7163, %v7163
    %v7180 = vmul.f32 %v7166, %v7166
    %v7181 = vmul.f32 %v7171, %v7171
    %v7182 = vmul.f32 %v7174, %v7174
    %v7183 = vmul.f32 %v7155, %v7177
    %v7184 = vmul.f32 %v7158, %v7178
    %v7185 = vmul.f32 %v7163, %v7179
    %v7186 = vmul.f32 %v7166, %v7180
    %v7187 = vmul.f32 %v7171, %v7181
    %v7188 = vmul.f32 %v7174, %v7182
    %v7189 = vmul.f32 %v7183, 0.044715
    %v7190 = vmul.f32 %v7184, 0.044715
    %v7191 = vmul.f32 %v7185, 0.044715
    %v7192 = vmul.f32 %v7186, 0.044715
    %v7193 = vmul.f32 %v7187, 0.044715
    %v7194 = vmul.f32 %v7188, 0.044715
    %v7195 = vadd.f32 %v7155, %v7189
    %v7196 = vadd.f32 %v7158, %v7190
    %v7197 = vadd.f32 %v7163, %v7191
    %v7198 = vadd.f32 %v7166, %v7192
    %v7199 = vadd.f32 %v7171, %v7193
    %v7200 = vadd.f32 %v7174, %v7194
    %v7201 = vmul.f32 %v7195, 0.7978846
    %v7202 = vmul.f32 %v7196, 0.7978846
    %v7203 = vmul.f32 %v7197, 0.7978846
    %v7204 = vmul.f32 %v7198, 0.7978846
    %v7205 = vmul.f32 %v7199, 0.7978846
    %v7206 = vmul.f32 %v7200, 0.7978846
    %v7207 = vtanh.pop %v7201
    %v7208 = vtanh.pop %v7202
    %v7209 = vtanh.pop %v7203
    %v7210 = vtanh.pop %v7204
    %v7211 = vtanh.pop %v7205
    %v7212 = vtanh.pop %v7206
    %v7213 = vadd.f32 %v7207, 1.0
    %v7214 = vadd.f32 %v7208, 1.0
    %v7215 = vadd.f32 %v7209, 1.0
    %v7216 = vadd.f32 %v7210, 1.0
    %v7217 = vadd.f32 %v7211, 1.0
    %v7218 = vadd.f32 %v7212, 1.0
    %v7219 = vmul.f32 %v7213, 0.5
    %v7220 = vmul.f32 %v7214, 0.5
    %v7221 = vmul.f32 %v7215, 0.5
    %v7222 = vmul.f32 %v7216, 0.5
    %v7223 = vmul.f32 %v7217, 0.5
    %v7224 = vmul.f32 %v7218, 0.5
    %v7225 = vmul.f32 %v7155, %v7219
    %v7226 = vmul.f32 %v7158, %v7220
    %v7227 = vmul.f32 %v7163, %v7221
    %v7228 = vmul.f32 %v7166, %v7222
    %v7229 = vmul.f32 %v7171, %v7223
    %v7230 = vmul.f32 %v7174, %v7224
    %v7231 = vpack.c.bf16 %v7226, %v7225
    %v7232 = vpack.c.bf16 %v7228, %v7227
    %v7233 = vpack.c.bf16 %v7230, %v7229
    %s7234 = scalar_lea.vmem %s13, 64
    %v7235 = vld [vmem:[%s7234] sm:$0xf]
    %v7236 = vld [vmem:[%s7234 + $0x4] sm:$0xf]
    %v7237 = vld [vmem:[%s7234 + $0x8] sm:$0xf]
    %v7238 = vld [vmem:[%s7234 + $0xc] sm:$0xf]
    %v7239 = vld [vmem:[%s7234 + $0x10] sm:$0xf]
    %v7240 = vld [vmem:[%s7234 + $0x14] sm:$0xf]
    %v7241 = vld [vmem:[%s7234 + $0x18] sm:$0xf]
    %v7242 = vld [vmem:[%s7234 + $0x1c] sm:$0xf]
    %v7243 = vld [vmem:[%s7234 + $0x20] sm:$0xf]
    %v7244 = vld [vmem:[%s7234 + $0x24] sm:$0xf]
    %v7245 = vld [vmem:[%s7234 + $0x28] sm:$0xf]
    %v7246 = vld [vmem:[%s7234 + $0x2c] sm:$0xf]
    %v7247 = vld [vmem:[%s7234 + $0x30] sm:$0xf]
    %v7248 = vld [vmem:[%s7234 + $0x34] sm:$0xf]
    %v7249 = vld [vmem:[%s7234 + $0x38] sm:$0xf]
    %v7250 = vld [vmem:[%s7234 + $0x3c] sm:$0xf]
    %s7251 = scalar_lea.vmem %s14, 1
    %v7252 = vld [vmem:[%s7251] sm:$0x1]
    %v7254 = vlaneseq
    %v7255 = vshrl.u32 %v7254, 7
    %v7256 = vsub.s32 0, %v7255
    %v7257 = vrot.slane %v7252, %v7256
    %v7275 = vunpack.c.l.b16 %v7235
    %v7276 = vunpack.c.l.b16 %v7236
    %v7277 = vunpack.c.l.b16 %v7237
    %v7278 = vunpack.c.l.b16 %v7238
    %v7279 = vunpack.c.l.b16 %v7239
    %v7280 = vunpack.c.l.b16 %v7240
    %v7281 = vunpack.c.l.b16 %v7241
    %v7282 = vunpack.c.l.b16 %v7242
    %v7283 = vunpack.c.l.b16 %v7243
    %v7284 = vunpack.c.l.b16 %v7244
    %v7285 = vunpack.c.l.b16 %v7245
    %v7286 = vunpack.c.l.b16 %v7246
    %v7287 = vunpack.c.l.b16 %v7247
    %v7288 = vunpack.c.l.b16 %v7248
    %v7289 = vunpack.c.l.b16 %v7249
    %v7290 = vunpack.c.l.b16 %v7250
    %v7291 = vpack.c.b16 %v7276, %v7275
    %v7292 = vpack.c.b16 %v7278, %v7277
    %v7293 = vpack.c.b16 %v7280, %v7279
    %v7294 = vpack.c.b16 %v7282, %v7281
    %v7295 = vpack.c.b16 %v7284, %v7283
    %v7296 = vpack.c.b16 %v7286, %v7285
    %v7297 = vpack.c.b16 %v7288, %v7287
    %v7298 = vpack.c.b16 %v7290, %v7289
    %7307 = vmatprep.subr.bf16.mxu0 0
    %7308 = vmatpush1.bf16.msra.mxu0 %v7291
    %7309 = vmatprep.subr.bf16.mxu0 0
    %7310 = vmatpush1.bf16.msra.mxu0 %v7292
    %7311 = vmatprep.subr.bf16.mxu0 0
    %7312 = vmatpush1.bf16.msra.mxu0 %v7293
    %7313 = vmatprep.subr.bf16.mxu0 0
    %7314 = vmatpush1.bf16.msra.mxu0 %v7294
    %7315 = vmatprep.subr.bf16.mxu0 0
    %7316 = vmatpush1.bf16.msra.mxu0 %v7295
    %7317 = vmatprep.subr.bf16.mxu0 0
    %7318 = vmatpush1.bf16.msra.mxu0 %v7296
    %7319 = vmatprep.subr.bf16.mxu0 0
    %7320 = vmatpush1.bf16.msra.mxu0 %v7297
    %7321 = vmatprep.subr.bf16.mxu0 0
    %7322 = vmatpush1.bf16.msra.mxu0 %v7298
    %7323 = vmatprep.subr.bf16.mxu0 0
    %7324 = vmatpush1.bf16.msra.mxu0 0
    %7325 = vmatprep.subr.bf16.mxu0 0
    %7326 = vmatpush1.bf16.msra.mxu0 0
    %7327 = vmatprep.subr.bf16.mxu0 0
    %7328 = vmatpush1.bf16.msra.mxu0 0
    %7329 = vmatprep.subr.bf16.mxu0 0
    %7330 = vmatpush1.bf16.msra.mxu0 0
    %7331 = vmatprep.subr.bf16.mxu0 0
    %7332 = vmatpush1.bf16.msra.mxu0 0
    %7333 = vmatprep.subr.bf16.mxu0 0
    %7334 = vmatpush1.bf16.msra.mxu0 0
    %7335 = vmatprep.subr.bf16.mxu0 0
    %7336 = vmatpush1.bf16.msra.mxu0 0
    %7337 = vmatprep.subr.bf16.mxu0 0
    %7338 = vmatpush1.bf16.msra.mxu0 0
    %7339 = vmatprep.mubr.bf16.mxu0 0
    %7340 = vmatmul.mubr.bf16.gmra.mrb[0].mxu0 %v7231
    %v7341 = vpop.f32.mrb[0].mxu0
    %v7342 = vadd.f32 %v7257, %v7341
    %v7343 = vpop.f32.mrb[0].mxu0
    %v7344 = vpop.f32.mrb[0].mxu0
    %v7345 = vpop.f32.mrb[0].mxu0
    %7346 = vmatprep.mubr.bf16.mxu0 0
    %7347 = vmatmul.mubr.bf16.gmra.mrb[0].mxu0 %v7232
    %v7348 = vpop.f32.mrb[0].mxu0
    %v7349 = vpop.f32.mrb[0].mxu0
    %v7350 = vpop.f32.mrb[0].mxu0
    %v7351 = vadd.f32 %v7257, %v7350
    %v7352 = vpop.f32.mrb[0].mxu0
    %7353 = vmatprep.mubr.bf16.mxu0 0
    %7354 = vmatmul.mubr.bf16.gmra.mrb[0].mxu0 %v7233
    %v7355 = vpop.f32.mrb[0].mxu0
    %v7356 = vpop.f32.mrb[0].mxu0
    %v7357 = vpop.f32.mrb[0].mxu0
    %v7358 = vpop.f32.mrb[0].mxu0
    %7359 = vdwg.mxu0
    %v7360 = vadd.f32 %v6971, %v7342
    %v7361 = vadd.f32 %v6974, %v7351
    %v7363 = vrot.slane %v7361, 7
    %vm7365 = vcmask 1040384
    %v7366 = vsel %vm7365, %v7360, %v7363
    %v7367 = vld [vmem:[%s15] sm:$0x1]
    %v7368 = vld [vmem:[%s16] sm:$0x1]
    %vm7369 = vcmask 254976
    %v7370 = vsel %vm7369, %v7366, 0.0
    %7371 = vadd.xlane.f32.xlu0 %v7370
    %v7372 = vpop.xlane.xlu0 %7371
    %v7373 = vmul.f32 %v7372, %v240
    %v7374 = vsub.f32 %v7366, %v7373
    %v7375 = vmul.f32 %v7374, %v7374
    %v7376 = vsel %vm7369, %v7375, 0.0
    %7377 = vadd.xlane.f32.xlu0 %v7376
    %v7378 = vpop.xlane.xlu0 %7377
    %v7379 = vmul.f32 %v7378, %v240
    %v7380 = vadd.f32 %v7379, 1e-06
    %v7381 = vrsqrt.pop %v7380
    %v7382 = vmul.f32 %v7374, %v7381
    %v7384 = vlaneseq
    %v7385 = vshrl.u32 %v7384, 7
    %v7386 = vsub.s32 0, %v7385
    %v7387 = vrot.slane %v7367, %v7386
    %v7389 = vmul.f32 %v7382, %v7387
    %v7391 = vlaneseq
    %v7392 = vshrl.u32 %v7391, 7
    %v7393 = vsub.s32 0, %v7392
    %v7394 = vrot.slane %v7368, %v7393
    %v7396 = vadd.f32 %v7389, %v7394
    %v7397 = vpack.c.bf16 %v7396, %v7396
    %v7398 = vld [vmem:[%s17] sm:$0xf]
    %v7399 = vld [vmem:[%s17 + $0x4] sm:$0xf]
    %v7400 = vld [vmem:[%s17 + $0x8] sm:$0xf]
    %v7401 = vld [vmem:[%s17 + $0xc] sm:$0xf]
    %v7402 = vld [vmem:[%s18] sm:$0x1]
    %v7404 = vlaneseq
    %v7405 = vshrl.u32 %v7404, 7
    %v7406 = vsub.s32 0, %v7405
    %v7407 = vrot.slane %v7402, %v7406
    %v7413 = vunpack.c.l.b16 %v7398
    %v7414 = vunpack.c.l.b16 %v7399
    %v7415 = vunpack.c.l.b16 %v7400
    %v7416 = vunpack.c.l.b16 %v7401
    %v7417 = vpack.c.b16 %v7414, %v7413
    %v7418 = vpack.c.b16 %v7416, %v7415
    %v7422 = vsel %vm221, %v7397, 0
    %7424 = vmatprep.subr.bf16.mxu0 0
    %7425 = vmatpush1.bf16.msra.mxu0 %v7417
    %7426 = vmatprep.subr.bf16.mxu0 0
    %7427 = vmatpush1.bf16.msra.mxu0 %v7418
    %7428 = vmatprep.subr.bf16.mxu0 0
    %7429 = vmatpush1.bf16.msra.mxu0 0
    %7430 = vmatprep.subr.bf16.mxu0 0
    %7431 = vmatpush1.bf16.msra.mxu0 0
    %7432 = vmatprep.subr.bf16.mxu0 0
    %7433 = vmatpush1.bf16.msra.mxu0 0
    %7434 = vmatprep.subr.bf16.mxu0 0
    %7435 = vmatpush1.bf16.msra.mxu0 0
    %7436 = vmatprep.subr.bf16.mxu0 0
    %7437 = vmatpush1.bf16.msra.mxu0 0
    %7438 = vmatprep.subr.bf16.mxu0 0
    %7439 = vmatpush1.bf16.msra.mxu0 0
    %7440 = vmatprep.subr.bf16.mxu0 0
    %7441 = vmatpush1.bf16.msra.mxu0 0
    %7442 = vmatprep.subr.bf16.mxu0 0
    %7443 = vmatpush1.bf16.msra.mxu0 0
    %7444 = vmatprep.subr.bf16.mxu0 0
    %7445 = vmatpush1.bf16.msra.mxu0 0
    %7446 = vmatprep.subr.bf16.mxu0 0
    %7447 = vmatpush1.bf16.msra.mxu0 0
    %7448 = vmatprep.subr.bf16.mxu0 0
    %7449 = vmatpush1.bf16.msra.mxu0 0
    %7450 = vmatprep.subr.bf16.mxu0 0
    %7451 = vmatpush1.bf16.msra.mxu0 0
    %7452 = vmatprep.subr.bf16.mxu0 0
    %7453 = vmatpush1.bf16.msra.mxu0 0
    %7454 = vmatprep.subr.bf16.mxu0 0
    %7455 = vmatpush1.bf16.msra.mxu0 0
    %7456 = vmatprep.mubr.bf16.mxu0 0
    %7457 = vmatmul.mubr.bf16.gmra.mrb[0].mxu0 %v7422
    %v7458 = vpop.f32.mrb[0].mxu0
    %v7459 = vadd.f32 %v7407, %v7458
    %v7460 = vpop.f32.mrb[0].mxu0
    %v7461 = vpop.f32.mrb[0].mxu0
    %v7462 = vpop.f32.mrb[0].mxu0
    %7463 = vdwg.mxu0
    %7464 = vst [vmem:[#allocation2] sm:$0x3] %v7459
    // Predicated region
    $region78: #{vit_forward.1} parent=1 // pred_check
      _
    $region79: #{vit_forward.1} parent=1 // pred_check_branch
      %7466 = sbr.rel (0) target = $region81
    $region80: #{vit_forward.1} parent=1 // pred_region
      %s7468 = ssub.s32 32, 32
      %7469 = vsyncadd [#allocation3], %s7468
      %s7471 = sshll.u32 [#allocation2], 4
      %s7472 = int_to_ptr.vmem [resolvable:$true] %s7471
      %7474 = dma.vmem_to_hbm [thread:$0]  %s7472, 32, %s19, [#allocation3]
    $region81: #{vit_forward.1} parent=1 // pred_fallthru
      _
    // Predicated region
    $region82: #{vit_forward.1} parent=1 // pred_check
      _
    $region83: #{vit_forward.1} parent=1 // pred_check_branch
      %7476 = sbr.rel (0) target = $region85
    $region84: #{vit_forward.1} parent=1 // pred_region
      %7477 = dma.done [#allocation3], 32
    $region85: #{vit_forward.1} parent=1 // pred_fallthru
      _
    %7478 = vsyncpa [#allocation3], 1

</llo_original>
